<compile_context>
chip_gen: v5e
topology: v5e:2x2
jax: 0.10.0
libtpu: 0.0.40
codegen_flags: <defaults>
</compile_context>

<pallas_src>
import functools
import numpy as np
import jax
import jax.numpy as jnp
from jax.experimental import pallas as pl
from jax.experimental.pallas import tpu as pltpu


# ---------------------------------------------------------------------------
# Pallas kernels
# ---------------------------------------------------------------------------
def _encoder_kernel(depth, heads, scale,
                    patches_ref, patch_w_ref, emb_add_ref,
                    ln1_g_ref, ln1_b_ref,
                    wq_ref, wk_ref, wv_ref, bq_ref, bk_ref, bv_ref,
                    wproj_ref, bproj_ref, ln2_g_ref, ln2_b_ref,
                    w1_ref, b1_ref, w2_ref, b2_ref,
                    lnf_g_ref, lnf_b_ref,
                    tok_ref):
    """Whole ViT encoder for one batch element, fully resident in VMEM."""
    f32, bf16 = jnp.float32, jnp.bfloat16

    def layer_norm(x, g, b, eps=1e-6):
        mu = jnp.mean(x, axis=-1, keepdims=True)
        xc = x - mu
        var = jnp.mean(xc * xc, axis=-1, keepdims=True)
        return xc * jax.lax.rsqrt(var + eps) * g + b

    # Patch embedding.  Row 0 of the patch matrix is all zeros; emb_add folds the cls
    # token, positional embedding and patch-embed bias into one additive term.
    h = jnp.dot(patches_ref[0].astype(bf16), patch_w_ref[...],
                preferred_element_type=f32) + emb_add_ref[...]            # (N, D) f32

    for l in range(depth):
        # ---- multi-head self-attention ----
        y = layer_norm(h, ln1_g_ref[l], ln1_b_ref[l])
        yb = y.astype(bf16)
        att = jnp.zeros_like(h)
        for hh in range(heads):
            q = jnp.dot(yb, wq_ref[l, hh], preferred_element_type=f32) + bq_ref[l, hh]
            k = jnp.dot(yb, wk_ref[l, hh], preferred_element_type=f32) + bk_ref[l, hh]
            v = jnp.dot(yb, wv_ref[l, hh], preferred_element_type=f32) + bv_ref[l, hh]
            # q @ k^T on the MXU (contract last dims, no explicit transpose).
            s = jax.lax.dot_general(q.astype(bf16), k.astype(bf16),
                                    (((1,), (1,)), ((), ())),
                                    preferred_element_type=f32) * scale   # (N, N)
            s = s - jnp.max(s, axis=-1, keepdims=True)
            e = jnp.exp(s)
            p = e * pl.reciprocal(jnp.sum(e, axis=-1, keepdims=True), approx=True)
            o = jnp.dot(p.astype(bf16), v.astype(bf16),
                        preferred_element_type=f32)                        # (N, Dh)
            # Per-head slice of the output projection accumulated directly (no concat).
            att = att + jnp.dot(o.astype(bf16), wproj_ref[l, hh],
                                preferred_element_type=f32)                # (N, D)
        h = h + att + bproj_ref[l]

        # ---- MLP ----
        y = layer_norm(h, ln2_g_ref[l], ln2_b_ref[l])
        y = jnp.dot(y.astype(bf16), w1_ref[l], preferred_element_type=f32) + b1_ref[l]
        y = jax.nn.gelu(y, approximate=True)
        h = h + jnp.dot(y.astype(bf16), w2_ref[l], preferred_element_type=f32) + b2_ref[l]

    tok_ref[0] = layer_norm(h, lnf_g_ref[...], lnf_b_ref[...])            # (N, D)


def _decoder_kernel(S, mid, toks_ref, w1_ref, b1_ref, k_ref, w2_ref, b2_ref, o_ref):
    """Bilinear upsample + 3x3 conv (pad=1) + ReLU + 1x1 conv, fused per batch element.

    conv3x3(pad(upsample(feat)))[m, yx] = sum_t sum_p (W1_t @ feat^T)[m, p] * K_t[p, yx]
    where K_t is the tap-t shifted, zero-padded bilinear interpolation matrix and
    K_t[0, :] == 0 drops the cls token.
    """
    f32, bf16 = jnp.float32, jnp.bfloat16
    toks = toks_ref[0].astype(bf16)                                       # (N, D)
    acc = jnp.zeros((mid, S * S), f32)
    for t in range(9):
        g = jax.lax.dot_general(w1_ref[t], toks, (((1,), (1,)), ((), ())),
                                preferred_element_type=f32)               # (mid, N)
        acc = acc + jnp.dot(g.astype(bf16), k_ref[t],
                            preferred_element_type=f32)                   # (mid, S*S)
    acc = jnp.maximum(acc + b1_ref[...], 0.0)                             # bias + ReLU
    out = jnp.dot(w2_ref[...], acc.astype(bf16),
                  preferred_element_type=f32)                             # (nc, S*S)
    o_ref[0] = out + b2_ref[...]                                          # lane-dense store


# ---------------------------------------------------------------------------
# pallas_call wrappers
# ---------------------------------------------------------------------------
def _bcast_spec(shape):
    n = len(shape)
    return pl.BlockSpec(shape, lambda b, _n=n: (0,) * _n)


def encoder_forward(patches_ext, enc_args, cfg):
    B, N, cpp = patches_ext.shape
    depth, heads, D, mlp = cfg["depth"], cfg["heads"], cfg["dim"], cfg["mlp"]
    Dh = D // heads
    scale = float(Dh) ** -0.5
    in_specs = [
        pl.BlockSpec((1, N, cpp), lambda b: (b, 0, 0)),     # patches (per batch)
        _bcast_spec((cpp, D)),                              # patch_w
        _bcast_spec((N, D)),                                # emb_add (cls+pos+bias)
        _bcast_spec((depth, 1, D)), _bcast_spec((depth, 1, D)),            # ln1
        _bcast_spec((depth, heads, D, Dh)), _bcast_spec((depth, heads, D, Dh)),
        _bcast_spec((depth, heads, D, Dh)),                                # wq/wk/wv
        _bcast_spec((depth, heads, 1, Dh)), _bcast_spec((depth, heads, 1, Dh)),
        _bcast_spec((depth, heads, 1, Dh)),                                # bq/bk/bv
        _bcast_spec((depth, heads, Dh, D)), _bcast_spec((depth, 1, D)),    # proj
        _bcast_spec((depth, 1, D)), _bcast_spec((depth, 1, D)),            # ln2
        _bcast_spec((depth, D, mlp)), _bcast_spec((depth, 1, mlp)),        # fc1
        _bcast_spec((depth, mlp, D)), _bcast_spec((depth, 1, D)),          # fc2
        _bcast_spec((1, D)), _bcast_spec((1, D)),                          # final ln
    ]
    return pl.pallas_call(
        functools.partial(_encoder_kernel, depth, heads, scale),
        grid=(B,),
        in_specs=in_specs,
        out_specs=pl.BlockSpec((1, N, D), lambda b: (b, 0, 0)),
        out_shape=jax.ShapeDtypeStruct((B, N, D), jnp.float32),
        compiler_params=pltpu.CompilerParams(dimension_semantics=("parallel",)),
    )(patches_ext, *enc_args)


def decoder_forward(tokens, dec_args, cfg):
    B, N, D = tokens.shape
    S, mid, nc = cfg["img_size"], cfg["dec_mid"], cfg["num_classes"]
    in_specs = [
        pl.BlockSpec((1, N, D), lambda b: (b, 0, 0)),       # tokens (per batch)
        _bcast_spec((9, mid, D)),                           # 3x3 conv taps
        _bcast_spec((mid, 1)),                              # conv1 bias
        _bcast_spec((9, N, S * S)),                         # bilinear tap matrices
        _bcast_spec((nc, mid)),                             # 1x1 conv
        _bcast_spec((nc, 1)),                               # conv2 bias
    ]
    return pl.pallas_call(
        functools.partial(_decoder_kernel, S, mid),
        grid=(B,),
        in_specs=in_specs,
        out_specs=pl.BlockSpec((1, nc, S * S), lambda b: (b, 0, 0)),
        out_shape=jax.ShapeDtypeStruct((B, nc, S * S), jnp.float32),
        compiler_params=pltpu.CompilerParams(dimension_semantics=("parallel",)),
    )(tokens, *dec_args)


# ---------------------------------------------------------------------------
# Host-side constant / weight preparation
# ---------------------------------------------------------------------------
def bilinear_matrix(in_size, out_size):
    """Row-stochastic matrix replicating F.interpolate(mode='bilinear', align_corners=False)."""
    W = np.zeros((out_size, in_size), dtype=np.float32)
    scale = in_size / out_size
    for i in range(out_size):
        src = max((i + 0.5) * scale - 0.5, 0.0)
        i0 = min(int(np.floor(src)), in_size - 1)
        i1 = min(i0 + 1, in_size - 1)
        lam = src - i0
        W[i, i0] += 1.0 - lam
        W[i, i1] += lam
    return W


def make_decoder_interp_taps(Hp, Wp, S):
    """K[t, p, y*S+x]: bilinear coefficient of token p (p=0 is the cls token -> 0) at the
    (kh, kw)-shifted pixel of the zero-padded upsampled feature map, t = kh*3 + kw."""
    Wy = bilinear_matrix(Hp, S)                            # (S, Hp)
    Wx = bilinear_matrix(Wp, S)                            # (S, Wp)
    Kfull = np.kron(Wy, Wx).reshape(S, S, Hp * Wp)         # [(y, x), i*Wp + j]
    Kpad = np.zeros((S + 2, S + 2, Hp * Wp), np.float32)
    Kpad[1:S + 1, 1:S + 1, :] = Kfull
    K = np.zeros((9, Hp * Wp + 1, S * S), np.float32)
    for kh in range(3):
        for kw in range(3):
            win = Kpad[kh:kh + S, kw:kw + S, :].reshape(S * S, Hp * Wp)
            K[kh * 3 + kw, 1:, :] = win.T
    return K


def init_params(key, cfg, num_patches):
    std = 0.02
    D, P, C = cfg["dim"], cfg["patch"], cfg["in_chans"]

    def nxt():
        nonlocal key
        key, sub = jax.random.split(key)
        return sub

    params = {
        "patch_w": jax.random.normal(nxt(), (C * P * P, D), jnp.float32) * std,
        "patch_b": jnp.zeros((D,), jnp.float32),
        "cls": jax.random.normal(nxt(), (1, 1, D), jnp.float32) * std,
        "pos": jax.random.normal(nxt(), (1, num_patches + 1, D), jnp.float32) * std,
        "ln_g": jnp.ones((D,), jnp.float32),
        "ln_b": jnp.zeros((D,), jnp.float32),
        "blocks": [],
    }
    for _ in range(cfg["depth"]):
        params["blocks"].append({
            "ln1_g": jnp.ones((D,)), "ln1_b": jnp.zeros((D,)),
            "qkv_w": jax.random.normal(nxt(), (D, 3 * D), jnp.float32) * std,
            "qkv_b": jnp.zeros((3 * D,)),
            "proj_w": jax.random.normal(nxt(), (D, D), jnp.float32) * std,
            "proj_b": jnp.zeros((D,)),
            "ln2_g": jnp.ones((D,)), "ln2_b": jnp.zeros((D,)),
            "fc1_w": jax.random.normal(nxt(), (D, cfg["mlp"]), jnp.float32) * std,
            "fc1_b": jnp.zeros((cfg["mlp"],)),
            "fc2_w": jax.random.normal(nxt(), (cfg["mlp"], D), jnp.float32) * std,
            "fc2_b": jnp.zeros((D,)),
        })
    # decoder weights in PyTorch Conv2d layout (Cout, Cin, kh, kw)
    params["dec1_w"] = jax.random.normal(nxt(), (cfg["dec_mid"], D, 3, 3), jnp.float32) * std
    params["dec1_b"] = jnp.zeros((cfg["dec_mid"],))
    params["dec2_w"] = jax.random.normal(nxt(), (cfg["num_classes"], cfg["dec_mid"], 1, 1), jnp.float32) * std
    params["dec2_b"] = jnp.zeros((cfg["num_classes"],))
    return params


def prepare_encoder_params(params, cfg):
    D, heads, depth, mlp = cfg["dim"], cfg["heads"], cfg["depth"], cfg["mlp"]
    Dh = D // heads
    Np = (cfg["img_size"] // cfg["patch"]) ** 2
    bf16 = jnp.bfloat16
    blocks = params["blocks"]

    def stack(name):
        return jnp.stack([blk[name] for blk in blocks])

    # cls token + positional embedding + patch-embed bias folded into one (N, D) term.
    emb_add = params["pos"][0] + jnp.concatenate(
        [params["cls"][0],
         jnp.broadcast_to(params["patch_b"][None, :], (Np, D))], axis=0)

    qkv_w = stack("qkv_w").reshape(depth, D, 3, heads, Dh).transpose(0, 2, 3, 1, 4)
    qkv_b = stack("qkv_b").reshape(depth, 3, heads, 1, Dh)
    wq, wk, wv = (qkv_w[:, 0].astype(bf16), qkv_w[:, 1].astype(bf16), qkv_w[:, 2].astype(bf16))
    bq, bk, bv = qkv_b[:, 0], qkv_b[:, 1], qkv_b[:, 2]

    return (
        params["patch_w"].astype(bf16),                     # (CPP, D)
        emb_add,                                            # (N, D)
        stack("ln1_g")[:, None, :], stack("ln1_b")[:, None, :],
        wq, wk, wv, bq, bk, bv,
        stack("proj_w").reshape(depth, heads, Dh, D).astype(bf16),
        stack("proj_b")[:, None, :],
        stack("ln2_g")[:, None, :], stack("ln2_b")[:, None, :],
        stack("fc1_w").astype(bf16), stack("fc1_b")[:, None, :],
        stack("fc2_w").astype(bf16), stack("fc2_b")[:, None, :],
        params["ln_g"][None, :], params["ln_b"][None, :],
    )


def prepare_decoder_params(params, cfg):
    D, mid, nc, S, P = cfg["dim"], cfg["dec_mid"], cfg["num_classes"], cfg["img_size"], cfg["patch"]
    Hp = Wp = S // P
    bf16 = jnp.bfloat16
    w1_taps = jnp.transpose(params["dec1_w"], (2, 3, 0, 1)).reshape(9, mid, D).astype(bf16)
    b1 = params["dec1_b"][:, None]                                    # (mid, 1)
    k_taps = jnp.asarray(make_decoder_interp_taps(Hp, Wp, S)).astype(bf16)   # (9, N, S*S)
    w2 = params["dec2_w"].reshape(nc, mid).astype(bf16)
    b2 = params["dec2_b"][:, None]                                    # (nc, 1)
    return (w1_taps, b1, k_taps, w2, b2)


# ---------------------------------------------------------------------------
# Forward pass
# ---------------------------------------------------------------------------
def vit_segmentation_forward(x, enc_args, dec_args, cfg):
    B, C, H, W = x.shape                                    # NCHW input
    P, nc, S = cfg["patch"], cfg["num_classes"], cfg["img_size"]
    assert H == S and W == S
    Hp, Wp = H // P, W // P
    Np = Hp * Wp

    # Conv2d(k=P, stride=P) patch extraction == unfold; pure layout op, stays in XLA.
    patches = x.reshape(B, C, Hp, P, Wp, P).transpose(0, 2, 4, 1, 3, 5).reshape(B, Np, C * P * P)
    # Prepend an all-zero "patch" standing in for the cls token (its embedding comes
    # entirely from emb_add inside the encoder kernel).
    patches_ext = jnp.concatenate(
        [jnp.zeros((B, 1, C * P * P), patches.dtype), patches], axis=1)       # (B, N, CPP)

    tokens = encoder_forward(patches_ext, enc_args, cfg)                      # (B, N, D)
    logits = decoder_forward(tokens, dec_args, cfg)                           # (B, nc, S*S)
    return logits.reshape(B, nc, S, S)                                        # NCHW output


# ---------------------------------------------------------------------------
if __name__ == "__main__":
    cfg = dict(img_size=32, patch=16, in_chans=3, dim=64, depth=2, heads=4,
               mlp=256, dec_mid=32, num_classes=3)
    key = jax.random.PRNGKey(0)
    pkey, xkey = jax.random.split(key)
    num_patches = (cfg["img_size"] // cfg["patch"]) ** 2
    params = init_params(pkey, cfg, num_patches)
    enc_args = prepare_encoder_params(params, cfg)
    dec_args = prepare_decoder_params(params, cfg)

    x = jax.random.normal(xkey, (2, cfg["in_chans"], cfg["img_size"], cfg["img_size"]),
                          jnp.float32)

    fwd = jax.jit(lambda xx, ee, dd: vit_segmentation_forward(xx, ee, dd, cfg))
    out = jax.block_until_ready(fwd(x, enc_args, dec_args))

    assert out.shape == (2, cfg["num_classes"], cfg["img_size"], cfg["img_size"])
    assert out.dtype == jnp.float32
    print("KERNEL_OK")
</pallas_src>

<mosaic_0001>
module attributes {stable_mosaic.version = 11 : i64} {
  func.func @_decoder_kernel(%arg0: i32, %arg1: memref<1x5x64xf32, #tpu.memory_space<vmem>>, %arg2: memref<9x32x64xbf16, #tpu.memory_space<vmem>>, %arg3: memref<32x1xf32, #tpu.memory_space<vmem>>, %arg4: memref<9x5x1024xbf16, #tpu.memory_space<vmem>>, %arg5: memref<3x32xbf16, #tpu.memory_space<vmem>>, %arg6: memref<3x1xf32, #tpu.memory_space<vmem>>, %arg7: memref<1x3x1024xf32, #tpu.memory_space<vmem>>) attributes {dimension_semantics = [#tpu.dimension_semantics<parallel>], iteration_bounds = array<i64: 2>, scalar_prefetch = 0 : i64, scratch_operands = 0 : i64, tpu.core_type = #tpu.core_type<tc>, window_params = [{transform_indices = @transform_0, window_bounds = array<i64: 1, 5, 64>}, {pipeline_mode = #tpu.pipeline_mode<synchronous>, transform_indices = @transform_1, window_bounds = array<i64: 9, 32, 64>}, {pipeline_mode = #tpu.pipeline_mode<synchronous>, transform_indices = @transform_2, window_bounds = array<i64: 32, 1>}, {pipeline_mode = #tpu.pipeline_mode<synchronous>, transform_indices = @transform_3, window_bounds = array<i64: 9, 5, 1024>}, {pipeline_mode = #tpu.pipeline_mode<synchronous>, transform_indices = @transform_4, window_bounds = array<i64: 3, 32>}, {pipeline_mode = #tpu.pipeline_mode<synchronous>, transform_indices = @transform_5, window_bounds = array<i64: 3, 1>}, {transform_indices = @transform_6, window_bounds = array<i64: 1, 3, 1024>}]} {
    %c0 = arith.constant 0 : index
    %c0_0 = arith.constant 0 : index
    %c0_1 = arith.constant 0 : index
    %0 = vector.load %arg1[%c0, %c0_0, %c0_1] : memref<1x5x64xf32, #tpu.memory_space<vmem>>, vector<1x5x64xf32>
    %1 = vector.shape_cast %0 : vector<1x5x64xf32> to vector<5x64xf32>
    %2 = arith.truncf %1 : vector<5x64xf32> to vector<5x64xbf16>
    %cst = arith.constant 0.000000e+00 : f32
    %3 = vector.broadcast %cst : f32 to vector<32x1024xf32>
    %c0_2 = arith.constant 0 : index
    %c0_3 = arith.constant 0 : index
    %c0_4 = arith.constant 0 : index
    %4 = vector.load %arg2[%c0_2, %c0_3, %c0_4] : memref<9x32x64xbf16, #tpu.memory_space<vmem>>, vector<1x32x64xbf16>
    %5 = vector.shape_cast %4 : vector<1x32x64xbf16> to vector<32x64xbf16>
    %cst_5 = arith.constant dense<0.000000e+00> : vector<32x5xf32>
    %6 = tpu.matmul %5, %2, %cst_5 {dimension_numbers = #tpu.dot_dimension_numbers<[1], [1], [0], [0], [0, 0, 1, 0], [], []>} : vector<32x64xbf16>, vector<5x64xbf16>, vector<32x5xf32> -> vector<32x5xf32>
    %7 = arith.truncf %6 : vector<32x5xf32> to vector<32x5xbf16>
    %c0_6 = arith.constant 0 : index
    %c0_7 = arith.constant 0 : index
    %c0_8 = arith.constant 0 : index
    %8 = vector.load %arg4[%c0_6, %c0_7, %c0_8] : memref<9x5x1024xbf16, #tpu.memory_space<vmem>>, vector<1x5x1024xbf16>
    %9 = vector.shape_cast %8 : vector<1x5x1024xbf16> to vector<5x1024xbf16>
    %cst_9 = arith.constant dense<0.000000e+00> : vector<32x1024xf32>
    %10 = tpu.matmul %7, %9, %cst_9 {dimension_numbers = #tpu.dot_dimension_numbers<[1], [0], [0], [1], [0, 0, 1, 1], [], []>} : vector<32x5xbf16>, vector<5x1024xbf16>, vector<32x1024xf32> -> vector<32x1024xf32>
    %11 = arith.addf %3, %10 : vector<32x1024xf32>
    %c1 = arith.constant 1 : index
    %c0_10 = arith.constant 0 : index
    %c0_11 = arith.constant 0 : index
    %12 = vector.load %arg2[%c1, %c0_10, %c0_11] : memref<9x32x64xbf16, #tpu.memory_space<vmem>>, vector<1x32x64xbf16>
    %13 = vector.shape_cast %12 : vector<1x32x64xbf16> to vector<32x64xbf16>
    %cst_12 = arith.constant dense<0.000000e+00> : vector<32x5xf32>
    %14 = tpu.matmul %13, %2, %cst_12 {dimension_numbers = #tpu.dot_dimension_numbers<[1], [1], [0], [0], [0, 0, 1, 0], [], []>} : vector<32x64xbf16>, vector<5x64xbf16>, vector<32x5xf32> -> vector<32x5xf32>
    %15 = arith.truncf %14 : vector<32x5xf32> to vector<32x5xbf16>
    %c1_13 = arith.constant 1 : index
    %c0_14 = arith.constant 0 : index
    %c0_15 = arith.constant 0 : index
    %16 = vector.load %arg4[%c1_13, %c0_14, %c0_15] : memref<9x5x1024xbf16, #tpu.memory_space<vmem>>, vector<1x5x1024xbf16>
    %17 = vector.shape_cast %16 : vector<1x5x1024xbf16> to vector<5x1024xbf16>
    %cst_16 = arith.constant dense<0.000000e+00> : vector<32x1024xf32>
    %18 = tpu.matmul %15, %17, %cst_16 {dimension_numbers = #tpu.dot_dimension_numbers<[1], [0], [0], [1], [0, 0, 1, 1], [], []>} : vector<32x5xbf16>, vector<5x1024xbf16>, vector<32x1024xf32> -> vector<32x1024xf32>
    %19 = arith.addf %11, %18 : vector<32x1024xf32>
    %c2 = arith.constant 2 : index
    %c0_17 = arith.constant 0 : index
    %c0_18 = arith.constant 0 : index
    %20 = vector.load %arg2[%c2, %c0_17, %c0_18] : memref<9x32x64xbf16, #tpu.memory_space<vmem>>, vector<1x32x64xbf16>
    %21 = vector.shape_cast %20 : vector<1x32x64xbf16> to vector<32x64xbf16>
    %cst_19 = arith.constant dense<0.000000e+00> : vector<32x5xf32>
    %22 = tpu.matmul %21, %2, %cst_19 {dimension_numbers = #tpu.dot_dimension_numbers<[1], [1], [0], [0], [0, 0, 1, 0], [], []>} : vector<32x64xbf16>, vector<5x64xbf16>, vector<32x5xf32> -> vector<32x5xf32>
    %23 = arith.truncf %22 : vector<32x5xf32> to vector<32x5xbf16>
    %c2_20 = arith.constant 2 : index
    %c0_21 = arith.constant 0 : index
    %c0_22 = arith.constant 0 : index
    %24 = vector.load %arg4[%c2_20, %c0_21, %c0_22] : memref<9x5x1024xbf16, #tpu.memory_space<vmem>>, vector<1x5x1024xbf16>
    %25 = vector.shape_cast %24 : vector<1x5x1024xbf16> to vector<5x1024xbf16>
    %cst_23 = arith.constant dense<0.000000e+00> : vector<32x1024xf32>
    %26 = tpu.matmul %23, %25, %cst_23 {dimension_numbers = #tpu.dot_dimension_numbers<[1], [0], [0], [1], [0, 0, 1, 1], [], []>} : vector<32x5xbf16>, vector<5x1024xbf16>, vector<32x1024xf32> -> vector<32x1024xf32>
    %27 = arith.addf %19, %26 : vector<32x1024xf32>
    %c3 = arith.constant 3 : index
    %c0_24 = arith.constant 0 : index
    %c0_25 = arith.constant 0 : index
    %28 = vector.load %arg2[%c3, %c0_24, %c0_25] : memref<9x32x64xbf16, #tpu.memory_space<vmem>>, vector<1x32x64xbf16>
    %29 = vector.shape_cast %28 : vector<1x32x64xbf16> to vector<32x64xbf16>
    %cst_26 = arith.constant dense<0.000000e+00> : vector<32x5xf32>
    %30 = tpu.matmul %29, %2, %cst_26 {dimension_numbers = #tpu.dot_dimension_numbers<[1], [1], [0], [0], [0, 0, 1, 0], [], []>} : vector<32x64xbf16>, vector<5x64xbf16>, vector<32x5xf32> -> vector<32x5xf32>
    %31 = arith.truncf %30 : vector<32x5xf32> to vector<32x5xbf16>
    %c3_27 = arith.constant 3 : index
    %c0_28 = arith.constant 0 : index
    %c0_29 = arith.constant 0 : index
    %32 = vector.load %arg4[%c3_27, %c0_28, %c0_29] : memref<9x5x1024xbf16, #tpu.memory_space<vmem>>, vector<1x5x1024xbf16>
    %33 = vector.shape_cast %32 : vector<1x5x1024xbf16> to vector<5x1024xbf16>
    %cst_30 = arith.constant dense<0.000000e+00> : vector<32x1024xf32>
    %34 = tpu.matmul %31, %33, %cst_30 {dimension_numbers = #tpu.dot_dimension_numbers<[1], [0], [0], [1], [0, 0, 1, 1], [], []>} : vector<32x5xbf16>, vector<5x1024xbf16>, vector<32x1024xf32> -> vector<32x1024xf32>
    %35 = arith.addf %27, %34 : vector<32x1024xf32>
    %c4 = arith.constant 4 : index
    %c0_31 = arith.constant 0 : index
    %c0_32 = arith.constant 0 : index
    %36 = vector.load %arg2[%c4, %c0_31, %c0_32] : memref<9x32x64xbf16, #tpu.memory_space<vmem>>, vector<1x32x64xbf16>
    %37 = vector.shape_cast %36 : vector<1x32x64xbf16> to vector<32x64xbf16>
    %cst_33 = arith.constant dense<0.000000e+00> : vector<32x5xf32>
    %38 = tpu.matmul %37, %2, %cst_33 {dimension_numbers = #tpu.dot_dimension_numbers<[1], [1], [0], [0], [0, 0, 1, 0], [], []>} : vector<32x64xbf16>, vector<5x64xbf16>, vector<32x5xf32> -> vector<32x5xf32>
    %39 = arith.truncf %38 : vector<32x5xf32> to vector<32x5xbf16>
    %c4_34 = arith.constant 4 : index
    %c0_35 = arith.constant 0 : index
    %c0_36 = arith.constant 0 : index
    %40 = vector.load %arg4[%c4_34, %c0_35, %c0_36] : memref<9x5x1024xbf16, #tpu.memory_space<vmem>>, vector<1x5x1024xbf16>
    %41 = vector.shape_cast %40 : vector<1x5x1024xbf16> to vector<5x1024xbf16>
    %cst_37 = arith.constant dense<0.000000e+00> : vector<32x1024xf32>
    %42 = tpu.matmul %39, %41, %cst_37 {dimension_numbers = #tpu.dot_dimension_numbers<[1], [0], [0], [1], [0, 0, 1, 1], [], []>} : vector<32x5xbf16>, vector<5x1024xbf16>, vector<32x1024xf32> -> vector<32x1024xf32>
    %43 = arith.addf %35, %42 : vector<32x1024xf32>
    %c5 = arith.constant 5 : index
    %c0_38 = arith.constant 0 : index
    %c0_39 = arith.constant 0 : index
    %44 = vector.load %arg2[%c5, %c0_38, %c0_39] : memref<9x32x64xbf16, #tpu.memory_space<vmem>>, vector<1x32x64xbf16>
    %45 = vector.shape_cast %44 : vector<1x32x64xbf16> to vector<32x64xbf16>
    %cst_40 = arith.constant dense<0.000000e+00> : vector<32x5xf32>
    %46 = tpu.matmul %45, %2, %cst_40 {dimension_numbers = #tpu.dot_dimension_numbers<[1], [1], [0], [0], [0, 0, 1, 0], [], []>} : vector<32x64xbf16>, vector<5x64xbf16>, vector<32x5xf32> -> vector<32x5xf32>
    %47 = arith.truncf %46 : vector<32x5xf32> to vector<32x5xbf16>
    %c5_41 = arith.constant 5 : index
    %c0_42 = arith.constant 0 : index
    %c0_43 = arith.constant 0 : index
    %48 = vector.load %arg4[%c5_41, %c0_42, %c0_43] : memref<9x5x1024xbf16, #tpu.memory_space<vmem>>, vector<1x5x1024xbf16>
    %49 = vector.shape_cast %48 : vector<1x5x1024xbf16> to vector<5x1024xbf16>
    %cst_44 = arith.constant dense<0.000000e+00> : vector<32x1024xf32>
    %50 = tpu.matmul %47, %49, %cst_44 {dimension_numbers = #tpu.dot_dimension_numbers<[1], [0], [0], [1], [0, 0, 1, 1], [], []>} : vector<32x5xbf16>, vector<5x1024xbf16>, vector<32x1024xf32> -> vector<32x1024xf32>
    %51 = arith.addf %43, %50 : vector<32x1024xf32>
    %c6 = arith.constant 6 : index
    %c0_45 = arith.constant 0 : index
    %c0_46 = arith.constant 0 : index
    %52 = vector.load %arg2[%c6, %c0_45, %c0_46] : memref<9x32x64xbf16, #tpu.memory_space<vmem>>, vector<1x32x64xbf16>
    %53 = vector.shape_cast %52 : vector<1x32x64xbf16> to vector<32x64xbf16>
    %cst_47 = arith.constant dense<0.000000e+00> : vector<32x5xf32>
    %54 = tpu.matmul %53, %2, %cst_47 {dimension_numbers = #tpu.dot_dimension_numbers<[1], [1], [0], [0], [0, 0, 1, 0], [], []>} : vector<32x64xbf16>, vector<5x64xbf16>, vector<32x5xf32> -> vector<32x5xf32>
    %55 = arith.truncf %54 : vector<32x5xf32> to vector<32x5xbf16>
    %c6_48 = arith.constant 6 : index
    %c0_49 = arith.constant 0 : index
    %c0_50 = arith.constant 0 : index
    %56 = vector.load %arg4[%c6_48, %c0_49, %c0_50] : memref<9x5x1024xbf16, #tpu.memory_space<vmem>>, vector<1x5x1024xbf16>
    %57 = vector.shape_cast %56 : vector<1x5x1024xbf16> to vector<5x1024xbf16>
    %cst_51 = arith.constant dense<0.000000e+00> : vector<32x1024xf32>
    %58 = tpu.matmul %55, %57, %cst_51 {dimension_numbers = #tpu.dot_dimension_numbers<[1], [0], [0], [1], [0, 0, 1, 1], [], []>} : vector<32x5xbf16>, vector<5x1024xbf16>, vector<32x1024xf32> -> vector<32x1024xf32>
    %59 = arith.addf %51, %58 : vector<32x1024xf32>
    %c7 = arith.constant 7 : index
    %c0_52 = arith.constant 0 : index
    %c0_53 = arith.constant 0 : index
    %60 = vector.load %arg2[%c7, %c0_52, %c0_53] : memref<9x32x64xbf16, #tpu.memory_space<vmem>>, vector<1x32x64xbf16>
    %61 = vector.shape_cast %60 : vector<1x32x64xbf16> to vector<32x64xbf16>
    %cst_54 = arith.constant dense<0.000000e+00> : vector<32x5xf32>
    %62 = tpu.matmul %61, %2, %cst_54 {dimension_numbers = #tpu.dot_dimension_numbers<[1], [1], [0], [0], [0, 0, 1, 0], [], []>} : vector<32x64xbf16>, vector<5x64xbf16>, vector<32x5xf32> -> vector<32x5xf32>
    %63 = arith.truncf %62 : vector<32x5xf32> to vector<32x5xbf16>
    %c7_55 = arith.constant 7 : index
    %c0_56 = arith.constant 0 : index
    %c0_57 = arith.constant 0 : index
    %64 = vector.load %arg4[%c7_55, %c0_56, %c0_57] : memref<9x5x1024xbf16, #tpu.memory_space<vmem>>, vector<1x5x1024xbf16>
    %65 = vector.shape_cast %64 : vector<1x5x1024xbf16> to vector<5x1024xbf16>
    %cst_58 = arith.constant dense<0.000000e+00> : vector<32x1024xf32>
    %66 = tpu.matmul %63, %65, %cst_58 {dimension_numbers = #tpu.dot_dimension_numbers<[1], [0], [0], [1], [0, 0, 1, 1], [], []>} : vector<32x5xbf16>, vector<5x1024xbf16>, vector<32x1024xf32> -> vector<32x1024xf32>
    %67 = arith.addf %59, %66 : vector<32x1024xf32>
    %c8 = arith.constant 8 : index
    %c0_59 = arith.constant 0 : index
    %c0_60 = arith.constant 0 : index
    %68 = vector.load %arg2[%c8, %c0_59, %c0_60] : memref<9x32x64xbf16, #tpu.memory_space<vmem>>, vector<1x32x64xbf16>
    %69 = vector.shape_cast %68 : vector<1x32x64xbf16> to vector<32x64xbf16>
    %cst_61 = arith.constant dense<0.000000e+00> : vector<32x5xf32>
    %70 = tpu.matmul %69, %2, %cst_61 {dimension_numbers = #tpu.dot_dimension_numbers<[1], [1], [0], [0], [0, 0, 1, 0], [], []>} : vector<32x64xbf16>, vector<5x64xbf16>, vector<32x5xf32> -> vector<32x5xf32>
    %71 = arith.truncf %70 : vector<32x5xf32> to vector<32x5xbf16>
    %c8_62 = arith.constant 8 : index
    %c0_63 = arith.constant 0 : index
    %c0_64 = arith.constant 0 : index
    %72 = vector.load %arg4[%c8_62, %c0_63, %c0_64] : memref<9x5x1024xbf16, #tpu.memory_space<vmem>>, vector<1x5x1024xbf16>
    %73 = vector.shape_cast %72 : vector<1x5x1024xbf16> to vector<5x1024xbf16>
    %cst_65 = arith.constant dense<0.000000e+00> : vector<32x1024xf32>
    %74 = tpu.matmul %71, %73, %cst_65 {dimension_numbers = #tpu.dot_dimension_numbers<[1], [0], [0], [1], [0, 0, 1, 1], [], []>} : vector<32x5xbf16>, vector<5x1024xbf16>, vector<32x1024xf32> -> vector<32x1024xf32>
    %75 = arith.addf %67, %74 : vector<32x1024xf32>
    %c0_66 = arith.constant 0 : index
    %c0_67 = arith.constant 0 : index
    %76 = vector.load %arg3[%c0_66, %c0_67] : memref<32x1xf32, #tpu.memory_space<vmem>>, vector<32x1xf32>
    %77 = vector.broadcast %76 : vector<32x1xf32> to vector<32x1024xf32>
    %78 = arith.addf %75, %77 : vector<32x1024xf32>
    %cst_68 = arith.constant 0.000000e+00 : f32
    %79 = vector.broadcast %cst_68 : f32 to vector<32x1024xf32>
    %80 = arith.maximumf %78, %79 : vector<32x1024xf32>
    %c0_69 = arith.constant 0 : index
    %c0_70 = arith.constant 0 : index
    %81 = vector.load %arg5[%c0_69, %c0_70] : memref<3x32xbf16, #tpu.memory_space<vmem>>, vector<3x32xbf16>
    %82 = arith.truncf %80 : vector<32x1024xf32> to vector<32x1024xbf16>
    %cst_71 = arith.constant dense<0.000000e+00> : vector<3x1024xf32>
    %83 = tpu.matmul %81, %82, %cst_71 {dimension_numbers = #tpu.dot_dimension_numbers<[1], [0], [0], [1], [0, 0, 1, 1], [], []>} : vector<3x32xbf16>, vector<32x1024xbf16>, vector<3x1024xf32> -> vector<3x1024xf32>
    %c0_72 = arith.constant 0 : index
    %c0_73 = arith.constant 0 : index
    %84 = vector.load %arg6[%c0_72, %c0_73] : memref<3x1xf32, #tpu.memory_space<vmem>>, vector<3x1xf32>
    %85 = vector.broadcast %84 : vector<3x1xf32> to vector<3x1024xf32>
    %86 = arith.addf %83, %85 : vector<3x1024xf32>
    %c0_74 = arith.constant 0 : index
    %c0_75 = arith.constant 0 : index
    %c0_76 = arith.constant 0 : index
    %87 = vector.load %arg7[%c0_74, %c0_75, %c0_76] : memref<1x3x1024xf32, #tpu.memory_space<vmem>>, vector<1x3x1024xf32>
    %88 = vector.shape_cast %87 : vector<1x3x1024xf32> to vector<3x1024xf32>
    %89 = vector.shape_cast %86 : vector<3x1024xf32> to vector<1x3x1024xf32>
    tpu.vector_store %arg7[%c0_74, %c0_75, %c0_76], %89 {strides = array<i32>} : memref<1x3x1024xf32, #tpu.memory_space<vmem>>, vector<1x3x1024xf32>,
    return
  }
  func.func @transform_0(%arg0: i32) -> (i32, i32, i32) {
    %c0_i32 = arith.constant 0 : i32
    %c0_i32_0 = arith.constant 0 : i32
    %c0_i32_1 = arith.constant 0 : i32
    return %arg0, %c0_i32, %c0_i32_0 : i32, i32, i32
  }
  func.func @transform_1(%arg0: i32) -> (i32, i32, i32) {
    %c0_i32 = arith.constant 0 : i32
    %c0_i32_0 = arith.constant 0 : i32
    %c0_i32_1 = arith.constant 0 : i32
    %c0_i32_2 = arith.constant 0 : i32
    return %c0_i32, %c0_i32_0, %c0_i32_1 : i32, i32, i32
  }
  func.func @transform_2(%arg0: i32) -> (i32, i32) {
    %c0_i32 = arith.constant 0 : i32
    %c0_i32_0 = arith.constant 0 : i32
    %c0_i32_1 = arith.constant 0 : i32
    return %c0_i32, %c0_i32_0 : i32, i32
  }
  func.func @transform_3(%arg0: i32) -> (i32, i32, i32) {
    %c0_i32 = arith.constant 0 : i32
    %c0_i32_0 = arith.constant 0 : i32
    %c0_i32_1 = arith.constant 0 : i32
    %c0_i32_2 = arith.constant 0 : i32
    return %c0_i32, %c0_i32_0, %c0_i32_1 : i32, i32, i32
  }
  func.func @transform_4(%arg0: i32) -> (i32, i32) {
    %c0_i32 = arith.constant 0 : i32
    %c0_i32_0 = arith.constant 0 : i32
    %c0_i32_1 = arith.constant 0 : i32
    return %c0_i32, %c0_i32_0 : i32, i32
  }
  func.func @transform_5(%arg0: i32) -> (i32, i32) {
    %c0_i32 = arith.constant 0 : i32
    %c0_i32_0 = arith.constant 0 : i32
    %c0_i32_1 = arith.constant 0 : i32
    return %c0_i32, %c0_i32_0 : i32, i32
  }
  func.func @transform_6(%arg0: i32) -> (i32, i32, i32) {
    %c0_i32 = arith.constant 0 : i32
    %c0_i32_0 = arith.constant 0 : i32
    %c0_i32_1 = arith.constant 0 : i32
    return %arg0, %c0_i32, %c0_i32_0 : i32, i32, i32
  }
}

module attributes {stable_mosaic.version = 11 : i64} {
  func.func @_encoder_kernel(%arg0: i32, %arg1: memref<1x5x768xf32, #tpu.memory_space<vmem>>, %arg2: memref<768x64xbf16, #tpu.memory_space<vmem>>, %arg3: memref<5x64xf32, #tpu.memory_space<vmem>>, %arg4: memref<2x1x64xf32, #tpu.memory_space<vmem>>, %arg5: memref<2x1x64xf32, #tpu.memory_space<vmem>>, %arg6: memref<2x4x64x16xbf16, #tpu.memory_space<vmem>>, %arg7: memref<2x4x64x16xbf16, #tpu.memory_space<vmem>>, %arg8: memref<2x4x64x16xbf16, #tpu.memory_space<vmem>>, %arg9: memref<2x4x1x16xf32, #tpu.memory_space<vmem>>, %arg10: memref<2x4x1x16xf32, #tpu.memory_space<vmem>>, %arg11: memref<2x4x1x16xf32, #tpu.memory_space<vmem>>, %arg12: memref<2x4x16x64xbf16, #tpu.memory_space<vmem>>, %arg13: memref<2x1x64xf32, #tpu.memory_space<vmem>>, %arg14: memref<2x1x64xf32, #tpu.memory_space<vmem>>, %arg15: memref<2x1x64xf32, #tpu.memory_space<vmem>>, %arg16: memref<2x64x256xbf16, #tpu.memory_space<vmem>>, %arg17: memref<2x1x256xf32, #tpu.memory_space<vmem>>, %arg18: memref<2x256x64xbf16, #tpu.memory_space<vmem>>, %arg19: memref<2x1x64xf32, #tpu.memory_space<vmem>>, %arg20: memref<1x64xf32, #tpu.memory_space<vmem>>, %arg21: memref<1x64xf32, #tpu.memory_space<vmem>>, %arg22: memref<1x5x64xf32, #tpu.memory_space<vmem>>) attributes {dimension_semantics = [#tpu.dimension_semantics<parallel>], iteration_bounds = array<i64: 2>, scalar_prefetch = 0 : i64, scratch_operands = 0 : i64, tpu.core_type = #tpu.core_type<tc>, window_params = [{transform_indices = @transform_0, window_bounds = array<i64: 1, 5, 768>}, {pipeline_mode = #tpu.pipeline_mode<synchronous>, transform_indices = @transform_1, window_bounds = array<i64: 768, 64>}, {pipeline_mode = #tpu.pipeline_mode<synchronous>, transform_indices = @transform_2, window_bounds = array<i64: 5, 64>}, {pipeline_mode = #tpu.pipeline_mode<synchronous>, transform_indices = @transform_3, window_bounds = array<i64: 2, 1, 64>}, {pipeline_mode = #tpu.pipeline_mode<synchronous>, transform_indices = @transform_4, window_bounds = array<i64: 2, 1, 64>}, {pipeline_mode = #tpu.pipeline_mode<synchronous>, transform_indices = @transform_5, window_bounds = array<i64: 2, 4, 64, 16>}, {pipeline_mode = #tpu.pipeline_mode<synchronous>, transform_indices = @transform_6, window_bounds = array<i64: 2, 4, 64, 16>}, {pipeline_mode = #tpu.pipeline_mode<synchronous>, transform_indices = @transform_7, window_bounds = array<i64: 2, 4, 64, 16>}, {pipeline_mode = #tpu.pipeline_mode<synchronous>, transform_indices = @transform_8, window_bounds = array<i64: 2, 4, 1, 16>}, {pipeline_mode = #tpu.pipeline_mode<synchronous>, transform_indices = @transform_9, window_bounds = array<i64: 2, 4, 1, 16>}, {pipeline_mode = #tpu.pipeline_mode<synchronous>, transform_indices = @transform_10, window_bounds = array<i64: 2, 4, 1, 16>}, {pipeline_mode = #tpu.pipeline_mode<synchronous>, transform_indices = @transform_11, window_bounds = array<i64: 2, 4, 16, 64>}, {pipeline_mode = #tpu.pipeline_mode<synchronous>, transform_indices = @transform_12, window_bounds = array<i64: 2, 1, 64>}, {pipeline_mode = #tpu.pipeline_mode<synchronous>, transform_indices = @transform_13, window_bounds = array<i64: 2, 1, 64>}, {pipeline_mode = #tpu.pipeline_mode<synchronous>, transform_indices = @transform_14, window_bounds = array<i64: 2, 1, 64>}, {pipeline_mode = #tpu.pipeline_mode<synchronous>, transform_indices = @transform_15, window_bounds = array<i64: 2, 64, 256>}, {pipeline_mode = #tpu.pipeline_mode<synchronous>, transform_indices = @transform_16, window_bounds = array<i64: 2, 1, 256>}, {pipeline_mode = #tpu.pipeline_mode<synchronous>, transform_indices = @transform_17, window_bounds = array<i64: 2, 256, 64>}, {pipeline_mode = #tpu.pipeline_mode<synchronous>, transform_indices = @transform_18, window_bounds = array<i64: 2, 1, 64>}, {pipeline_mode = #tpu.pipeline_mode<synchronous>, transform_indices = @transform_19, window_bounds = array<i64: 1, 64>}, {pipeline_mode = #tpu.pipeline_mode<synchronous>, transform_indices = @transform_20, window_bounds = array<i64: 1, 64>}, {transform_indices = @transform_21, window_bounds = array<i64: 1, 5, 64>}]} {
    %c0 = arith.constant 0 : index
    %c0_0 = arith.constant 0 : index
    %c0_1 = arith.constant 0 : index
    %0 = vector.load %arg1[%c0, %c0_0, %c0_1] : memref<1x5x768xf32, #tpu.memory_space<vmem>>, vector<1x5x768xf32>
    %1 = vector.shape_cast %0 : vector<1x5x768xf32> to vector<5x768xf32>
    %2 = arith.truncf %1 : vector<5x768xf32> to vector<5x768xbf16>
    %c0_2 = arith.constant 0 : index
    %c0_3 = arith.constant 0 : index
    %3 = vector.load %arg2[%c0_2, %c0_3] : memref<768x64xbf16, #tpu.memory_space<vmem>>, vector<768x64xbf16>
    %cst = arith.constant dense<0.000000e+00> : vector<5x64xf32>
    %4 = tpu.matmul %2, %3, %cst {dimension_numbers = #tpu.dot_dimension_numbers<[1], [0], [0], [1], [0, 0, 1, 1], [], []>} : vector<5x768xbf16>, vector<768x64xbf16>, vector<5x64xf32> -> vector<5x64xf32>
    %c0_4 = arith.constant 0 : index
    %c0_5 = arith.constant 0 : index
    %5 = vector.load %arg3[%c0_4, %c0_5] : memref<5x64xf32, #tpu.memory_space<vmem>>, vector<5x64xf32>
    %6 = arith.addf %4, %5 : vector<5x64xf32>
    %c0_6 = arith.constant 0 : index
    %c0_7 = arith.constant 0 : index
    %c0_8 = arith.constant 0 : index
    %7 = vector.load %arg4[%c0_6, %c0_7, %c0_8] : memref<2x1x64xf32, #tpu.memory_space<vmem>>, vector<1x1x64xf32>
    %8 = vector.shape_cast %7 : vector<1x1x64xf32> to vector<1x64xf32>
    %c0_9 = arith.constant 0 : index
    %c0_10 = arith.constant 0 : index
    %c0_11 = arith.constant 0 : index
    %9 = vector.load %arg5[%c0_9, %c0_10, %c0_11] : memref<2x1x64xf32, #tpu.memory_space<vmem>>, vector<1x1x64xf32>
    %10 = vector.shape_cast %9 : vector<1x1x64xf32> to vector<1x64xf32>
    %cst_12 = arith.constant dense<0.000000e+00> : vector<5xf32>
    %11 = vector.multi_reduction <add>, %6, %cst_12 [1] : vector<5x64xf32> to vector<5xf32>
    %12 = vector.shape_cast %11 : vector<5xf32> to vector<5x1xf32>
    %cst_13 = arith.constant 6.400000e+01 : f32
    %13 = vector.broadcast %cst_13 : f32 to vector<5x1xf32>
    %14 = arith.divf %12, %13 : vector<5x1xf32>
    %15 = vector.broadcast %14 : vector<5x1xf32> to vector<5x64xf32>
    %16 = arith.subf %6, %15 : vector<5x64xf32>
    %17 = arith.mulf %16, %16 : vector<5x64xf32>
    %cst_14 = arith.constant dense<0.000000e+00> : vector<5xf32>
    %18 = vector.multi_reduction <add>, %17, %cst_14 [1] : vector<5x64xf32> to vector<5xf32>
    %19 = vector.shape_cast %18 : vector<5xf32> to vector<5x1xf32>
    %cst_15 = arith.constant 6.400000e+01 : f32
    %20 = vector.broadcast %cst_15 : f32 to vector<5x1xf32>
    %21 = arith.divf %19, %20 : vector<5x1xf32>
    %cst_16 = arith.constant 9.99999997E-7 : f32
    %22 = vector.broadcast %cst_16 : f32 to vector<5x1xf32>
    %23 = arith.addf %21, %22 : vector<5x1xf32>
    %24 = math.rsqrt %23 : vector<5x1xf32>
    %25 = vector.broadcast %24 : vector<5x1xf32> to vector<5x64xf32>
    %26 = arith.mulf %16, %25 : vector<5x64xf32>
    %27 = vector.broadcast %8 : vector<1x64xf32> to vector<5x64xf32>
    %28 = arith.mulf %26, %27 : vector<5x64xf32>
    %29 = vector.broadcast %10 : vector<1x64xf32> to vector<5x64xf32>
    %30 = arith.addf %28, %29 : vector<5x64xf32>
    %31 = arith.truncf %30 : vector<5x64xf32> to vector<5x64xbf16>
    %cst_17 = arith.constant 0.000000e+00 : f32
    %32 = vector.broadcast %cst_17 : f32 to vector<5x64xf32>
    %c0_18 = arith.constant 0 : index
    %c0_19 = arith.constant 0 : index
    %c0_20 = arith.constant 0 : index
    %c0_21 = arith.constant 0 : index
    %33 = vector.load %arg6[%c0_18, %c0_19, %c0_20, %c0_21] : memref<2x4x64x16xbf16, #tpu.memory_space<vmem>>, vector<1x1x64x16xbf16>
    %34 = vector.shape_cast %33 : vector<1x1x64x16xbf16> to vector<64x16xbf16>
    %cst_22 = arith.constant dense<0.000000e+00> : vector<5x16xf32>
    %35 = tpu.matmul %31, %34, %cst_22 {dimension_numbers = #tpu.dot_dimension_numbers<[1], [0], [0], [1], [0, 0, 1, 1], [], []>} : vector<5x64xbf16>, vector<64x16xbf16>, vector<5x16xf32> -> vector<5x16xf32>
    %c0_23 = arith.constant 0 : index
    %c0_24 = arith.constant 0 : index
    %c0_25 = arith.constant 0 : index
    %c0_26 = arith.constant 0 : index
    %36 = vector.load %arg9[%c0_23, %c0_24, %c0_25, %c0_26] : memref<2x4x1x16xf32, #tpu.memory_space<vmem>>, vector<1x1x1x16xf32>
    %37 = vector.shape_cast %36 : vector<1x1x1x16xf32> to vector<1x16xf32>
    %38 = vector.broadcast %37 : vector<1x16xf32> to vector<5x16xf32>
    %39 = arith.addf %35, %38 : vector<5x16xf32>
    %c0_27 = arith.constant 0 : index
    %c0_28 = arith.constant 0 : index
    %c0_29 = arith.constant 0 : index
    %c0_30 = arith.constant 0 : index
    %40 = vector.load %arg7[%c0_27, %c0_28, %c0_29, %c0_30] : memref<2x4x64x16xbf16, #tpu.memory_space<vmem>>, vector<1x1x64x16xbf16>
    %41 = vector.shape_cast %40 : vector<1x1x64x16xbf16> to vector<64x16xbf16>
    %cst_31 = arith.constant dense<0.000000e+00> : vector<5x16xf32>
    %42 = tpu.matmul %31, %41, %cst_31 {dimension_numbers = #tpu.dot_dimension_numbers<[1], [0], [0], [1], [0, 0, 1, 1], [], []>} : vector<5x64xbf16>, vector<64x16xbf16>, vector<5x16xf32> -> vector<5x16xf32>
    %c0_32 = arith.constant 0 : index
    %c0_33 = arith.constant 0 : index
    %c0_34 = arith.constant 0 : index
    %c0_35 = arith.constant 0 : index
    %43 = vector.load %arg10[%c0_32, %c0_33, %c0_34, %c0_35] : memref<2x4x1x16xf32, #tpu.memory_space<vmem>>, vector<1x1x1x16xf32>
    %44 = vector.shape_cast %43 : vector<1x1x1x16xf32> to vector<1x16xf32>
    %45 = vector.broadcast %44 : vector<1x16xf32> to vector<5x16xf32>
    %46 = arith.addf %42, %45 : vector<5x16xf32>
    %c0_36 = arith.constant 0 : index
    %c0_37 = arith.constant 0 : index
    %c0_38 = arith.constant 0 : index
    %c0_39 = arith.constant 0 : index
    %47 = vector.load %arg8[%c0_36, %c0_37, %c0_38, %c0_39] : memref<2x4x64x16xbf16, #tpu.memory_space<vmem>>, vector<1x1x64x16xbf16>
    %48 = vector.shape_cast %47 : vector<1x1x64x16xbf16> to vector<64x16xbf16>
    %cst_40 = arith.constant dense<0.000000e+00> : vector<5x16xf32>
    %49 = tpu.matmul %31, %48, %cst_40 {dimension_numbers = #tpu.dot_dimension_numbers<[1], [0], [0], [1], [0, 0, 1, 1], [], []>} : vector<5x64xbf16>, vector<64x16xbf16>, vector<5x16xf32> -> vector<5x16xf32>
    %c0_41 = arith.constant 0 : index
    %c0_42 = arith.constant 0 : index
    %c0_43 = arith.constant 0 : index
    %c0_44 = arith.constant 0 : index
    %50 = vector.load %arg11[%c0_41, %c0_42, %c0_43, %c0_44] : memref<2x4x1x16xf32, #tpu.memory_space<vmem>>, vector<1x1x1x16xf32>
    %51 = vector.shape_cast %50 : vector<1x1x1x16xf32> to vector<1x16xf32>
    %52 = vector.broadcast %51 : vector<1x16xf32> to vector<5x16xf32>
    %53 = arith.addf %49, %52 : vector<5x16xf32>
    %54 = arith.truncf %39 : vector<5x16xf32> to vector<5x16xbf16>
    %55 = arith.truncf %46 : vector<5x16xf32> to vector<5x16xbf16>
    %cst_45 = arith.constant dense<0.000000e+00> : vector<5x5xf32>
    %56 = tpu.matmul %54, %55, %cst_45 {dimension_numbers = #tpu.dot_dimension_numbers<[1], [1], [0], [0], [0, 0, 1, 0], [], []>} : vector<5x16xbf16>, vector<5x16xbf16>, vector<5x5xf32> -> vector<5x5xf32>
    %cst_46 = arith.constant 2.500000e-01 : f32
    %57 = vector.broadcast %cst_46 : f32 to vector<5x5xf32>
    %58 = arith.mulf %56, %57 : vector<5x5xf32>
    %cst_47 = arith.constant dense<0xFF800000> : vector<5xf32>
    %59 = vector.multi_reduction <maximumf>, %58, %cst_47 [1] : vector<5x5xf32> to vector<5xf32>
    %60 = vector.shape_cast %59 : vector<5xf32> to vector<5x1xf32>
    %61 = vector.broadcast %60 : vector<5x1xf32> to vector<5x5xf32>
    %62 = arith.subf %58, %61 : vector<5x5xf32>
    %63 = math.exp %62 : vector<5x5xf32>
    %cst_48 = arith.constant dense<0.000000e+00> : vector<5xf32>
    %64 = vector.multi_reduction <add>, %63, %cst_48 [1] : vector<5x5xf32> to vector<5xf32>
    %65 = vector.shape_cast %64 : vector<5xf32> to vector<5x1xf32>
    %66 = tpu.reciprocal %65 {approx = true} : vector<5x1xf32> -> vector<5x1xf32>
    %67 = vector.broadcast %66 : vector<5x1xf32> to vector<5x5xf32>
    %68 = arith.mulf %63, %67 : vector<5x5xf32>
    %69 = arith.truncf %68 : vector<5x5xf32> to vector<5x5xbf16>
    %70 = arith.truncf %53 : vector<5x16xf32> to vector<5x16xbf16>
    %cst_49 = arith.constant dense<0.000000e+00> : vector<5x16xf32>
    %71 = tpu.matmul %69, %70, %cst_49 {dimension_numbers = #tpu.dot_dimension_numbers<[1], [0], [0], [1], [0, 0, 1, 1], [], []>} : vector<5x5xbf16>, vector<5x16xbf16>, vector<5x16xf32> -> vector<5x16xf32>
    %72 = arith.truncf %71 : vector<5x16xf32> to vector<5x16xbf16>
    %c0_50 = arith.constant 0 : index
    %c0_51 = arith.constant 0 : index
    %c0_52 = arith.constant 0 : index
    %c0_53 = arith.constant 0 : index
    %73 = vector.load %arg12[%c0_50, %c0_51, %c0_52, %c0_53] : memref<2x4x16x64xbf16, #tpu.memory_space<vmem>>, vector<1x1x16x64xbf16>
    %74 = vector.shape_cast %73 : vector<1x1x16x64xbf16> to vector<16x64xbf16>
    %cst_54 = arith.constant dense<0.000000e+00> : vector<5x64xf32>
    %75 = tpu.matmul %72, %74, %cst_54 {dimension_numbers = #tpu.dot_dimension_numbers<[1], [0], [0], [1], [0, 0, 1, 1], [], []>} : vector<5x16xbf16>, vector<16x64xbf16>, vector<5x64xf32> -> vector<5x64xf32>
    %76 = arith.addf %32, %75 : vector<5x64xf32>
    %c0_55 = arith.constant 0 : index
    %c1 = arith.constant 1 : index
    %c0_56 = arith.constant 0 : index
    %c0_57 = arith.constant 0 : index
    %77 = vector.load %arg6[%c0_55, %c1, %c0_56, %c0_57] : memref<2x4x64x16xbf16, #tpu.memory_space<vmem>>, vector<1x1x64x16xbf16>
    %78 = vector.shape_cast %77 : vector<1x1x64x16xbf16> to vector<64x16xbf16>
    %cst_58 = arith.constant dense<0.000000e+00> : vector<5x16xf32>
    %79 = tpu.matmul %31, %78, %cst_58 {dimension_numbers = #tpu.dot_dimension_numbers<[1], [0], [0], [1], [0, 0, 1, 1], [], []>} : vector<5x64xbf16>, vector<64x16xbf16>, vector<5x16xf32> -> vector<5x16xf32>
    %c0_59 = arith.constant 0 : index
    %c1_60 = arith.constant 1 : index
    %c0_61 = arith.constant 0 : index
    %c0_62 = arith.constant 0 : index
    %80 = vector.load %arg9[%c0_59, %c1_60, %c0_61, %c0_62] : memref<2x4x1x16xf32, #tpu.memory_space<vmem>>, vector<1x1x1x16xf32>
    %81 = vector.shape_cast %80 : vector<1x1x1x16xf32> to vector<1x16xf32>
    %82 = vector.broadcast %81 : vector<1x16xf32> to vector<5x16xf32>
    %83 = arith.addf %79, %82 : vector<5x16xf32>
    %c0_63 = arith.constant 0 : index
    %c1_64 = arith.constant 1 : index
    %c0_65 = arith.constant 0 : index
    %c0_66 = arith.constant 0 : index
    %84 = vector.load %arg7[%c0_63, %c1_64, %c0_65, %c0_66] : memref<2x4x64x16xbf16, #tpu.memory_space<vmem>>, vector<1x1x64x16xbf16>
    %85 = vector.shape_cast %84 : vector<1x1x64x16xbf16> to vector<64x16xbf16>
    %cst_67 = arith.constant dense<0.000000e+00> : vector<5x16xf32>
    %86 = tpu.matmul %31, %85, %cst_67 {dimension_numbers = #tpu.dot_dimension_numbers<[1], [0], [0], [1], [0, 0, 1, 1], [], []>} : vector<5x64xbf16>, vector<64x16xbf16>, vector<5x16xf32> -> vector<5x16xf32>
    %c0_68 = arith.constant 0 : index
    %c1_69 = arith.constant 1 : index
    %c0_70 = arith.constant 0 : index
    %c0_71 = arith.constant 0 : index
    %87 = vector.load %arg10[%c0_68, %c1_69, %c0_70, %c0_71] : memref<2x4x1x16xf32, #tpu.memory_space<vmem>>, vector<1x1x1x16xf32>
    %88 = vector.shape_cast %87 : vector<1x1x1x16xf32> to vector<1x16xf32>
    %89 = vector.broadcast %88 : vector<1x16xf32> to vector<5x16xf32>
    %90 = arith.addf %86, %89 : vector<5x16xf32>
    %c0_72 = arith.constant 0 : index
    %c1_73 = arith.constant 1 : index
    %c0_74 = arith.constant 0 : index
    %c0_75 = arith.constant 0 : index
    %91 = vector.load %arg8[%c0_72, %c1_73, %c0_74, %c0_75] : memref<2x4x64x16xbf16, #tpu.memory_space<vmem>>, vector<1x1x64x16xbf16>
    %92 = vector.shape_cast %91 : vector<1x1x64x16xbf16> to vector<64x16xbf16>
    %cst_76 = arith.constant dense<0.000000e+00> : vector<5x16xf32>
    %93 = tpu.matmul %31, %92, %cst_76 {dimension_numbers = #tpu.dot_dimension_numbers<[1], [0], [0], [1], [0, 0, 1, 1], [], []>} : vector<5x64xbf16>, vector<64x16xbf16>, vector<5x16xf32> -> vector<5x16xf32>
    %c0_77 = arith.constant 0 : index
    %c1_78 = arith.constant 1 : index
    %c0_79 = arith.constant 0 : index
    %c0_80 = arith.constant 0 : index
    %94 = vector.load %arg11[%c0_77, %c1_78, %c0_79, %c0_80] : memref<2x4x1x16xf32, #tpu.memory_space<vmem>>, vector<1x1x1x16xf32>
    %95 = vector.shape_cast %94 : vector<1x1x1x16xf32> to vector<1x16xf32>
    %96 = vector.broadcast %95 : vector<1x16xf32> to vector<5x16xf32>
    %97 = arith.addf %93, %96 : vector<5x16xf32>
    %98 = arith.truncf %83 : vector<5x16xf32> to vector<5x16xbf16>
    %99 = arith.truncf %90 : vector<5x16xf32> to vector<5x16xbf16>
    %cst_81 = arith.constant dense<0.000000e+00> : vector<5x5xf32>
    %100 = tpu.matmul %98, %99, %cst_81 {dimension_numbers = #tpu.dot_dimension_numbers<[1], [1], [0], [0], [0, 0, 1, 0], [], []>} : vector<5x16xbf16>, vector<5x16xbf16>, vector<5x5xf32> -> vector<5x5xf32>
    %cst_82 = arith.constant 2.500000e-01 : f32
    %101 = vector.broadcast %cst_82 : f32 to vector<5x5xf32>
    %102 = arith.mulf %100, %101 : vector<5x5xf32>
    %cst_83 = arith.constant dense<0xFF800000> : vector<5xf32>
    %103 = vector.multi_reduction <maximumf>, %102, %cst_83 [1] : vector<5x5xf32> to vector<5xf32>
    %104 = vector.shape_cast %103 : vector<5xf32> to vector<5x1xf32>
    %105 = vector.broadcast %104 : vector<5x1xf32> to vector<5x5xf32>
    %106 = arith.subf %102, %105 : vector<5x5xf32>
    %107 = math.exp %106 : vector<5x5xf32>
    %cst_84 = arith.constant dense<0.000000e+00> : vector<5xf32>
    %108 = vector.multi_reduction <add>, %107, %cst_84 [1] : vector<5x5xf32> to vector<5xf32>
    %109 = vector.shape_cast %108 : vector<5xf32> to vector<5x1xf32>
    %110 = tpu.reciprocal %109 {approx = true} : vector<5x1xf32> -> vector<5x1xf32>
    %111 = vector.broadcast %110 : vector<5x1xf32> to vector<5x5xf32>
    %112 = arith.mulf %107, %111 : vector<5x5xf32>
    %113 = arith.truncf %112 : vector<5x5xf32> to vector<5x5xbf16>
    %114 = arith.truncf %97 : vector<5x16xf32> to vector<5x16xbf16>
    %cst_85 = arith.constant dense<0.000000e+00> : vector<5x16xf32>
    %115 = tpu.matmul %113, %114, %cst_85 {dimension_numbers = #tpu.dot_dimension_numbers<[1], [0], [0], [1], [0, 0, 1, 1], [], []>} : vector<5x5xbf16>, vector<5x16xbf16>, vector<5x16xf32> -> vector<5x16xf32>
    %116 = arith.truncf %115 : vector<5x16xf32> to vector<5x16xbf16>
    %c0_86 = arith.constant 0 : index
    %c1_87 = arith.constant 1 : index
    %c0_88 = arith.constant 0 : index
    %c0_89 = arith.constant 0 : index
    %117 = vector.load %arg12[%c0_86, %c1_87, %c0_88, %c0_89] : memref<2x4x16x64xbf16, #tpu.memory_space<vmem>>, vector<1x1x16x64xbf16>
    %118 = vector.shape_cast %117 : vector<1x1x16x64xbf16> to vector<16x64xbf16>
    %cst_90 = arith.constant dense<0.000000e+00> : vector<5x64xf32>
    %119 = tpu.matmul %116, %118, %cst_90 {dimension_numbers = #tpu.dot_dimension_numbers<[1], [0], [0], [1], [0, 0, 1, 1], [], []>} : vector<5x16xbf16>, vector<16x64xbf16>, vector<5x64xf32> -> vector<5x64xf32>
    %120 = arith.addf %76, %119 : vector<5x64xf32>
    %c0_91 = arith.constant 0 : index
    %c2 = arith.constant 2 : index
    %c0_92 = arith.constant 0 : index
    %c0_93 = arith.constant 0 : index
    %121 = vector.load %arg6[%c0_91, %c2, %c0_92, %c0_93] : memref<2x4x64x16xbf16, #tpu.memory_space<vmem>>, vector<1x1x64x16xbf16>
    %122 = vector.shape_cast %121 : vector<1x1x64x16xbf16> to vector<64x16xbf16>
    %cst_94 = arith.constant dense<0.000000e+00> : vector<5x16xf32>
    %123 = tpu.matmul %31, %122, %cst_94 {dimension_numbers = #tpu.dot_dimension_numbers<[1], [0], [0], [1], [0, 0, 1, 1], [], []>} : vector<5x64xbf16>, vector<64x16xbf16>, vector<5x16xf32> -> vector<5x16xf32>
    %c0_95 = arith.constant 0 : index
    %c2_96 = arith.constant 2 : index
    %c0_97 = arith.constant 0 : index
    %c0_98 = arith.constant 0 : index
    %124 = vector.load %arg9[%c0_95, %c2_96, %c0_97, %c0_98] : memref<2x4x1x16xf32, #tpu.memory_space<vmem>>, vector<1x1x1x16xf32>
    %125 = vector.shape_cast %124 : vector<1x1x1x16xf32> to vector<1x16xf32>
    %126 = vector.broadcast %125 : vector<1x16xf32> to vector<5x16xf32>
    %127 = arith.addf %123, %126 : vector<5x16xf32>
    %c0_99 = arith.constant 0 : index
    %c2_100 = arith.constant 2 : index
    %c0_101 = arith.constant 0 : index
    %c0_102 = arith.constant 0 : index
    %128 = vector.load %arg7[%c0_99, %c2_100, %c0_101, %c0_102] : memref<2x4x64x16xbf16, #tpu.memory_space<vmem>>, vector<1x1x64x16xbf16>
    %129 = vector.shape_cast %128 : vector<1x1x64x16xbf16> to vector<64x16xbf16>
    %cst_103 = arith.constant dense<0.000000e+00> : vector<5x16xf32>
    %130 = tpu.matmul %31, %129, %cst_103 {dimension_numbers = #tpu.dot_dimension_numbers<[1], [0], [0], [1], [0, 0, 1, 1], [], []>} : vector<5x64xbf16>, vector<64x16xbf16>, vector<5x16xf32> -> vector<5x16xf32>
    %c0_104 = arith.constant 0 : index
    %c2_105 = arith.constant 2 : index
    %c0_106 = arith.constant 0 : index
    %c0_107 = arith.constant 0 : index
    %131 = vector.load %arg10[%c0_104, %c2_105, %c0_106, %c0_107] : memref<2x4x1x16xf32, #tpu.memory_space<vmem>>, vector<1x1x1x16xf32>
    %132 = vector.shape_cast %131 : vector<1x1x1x16xf32> to vector<1x16xf32>
    %133 = vector.broadcast %132 : vector<1x16xf32> to vector<5x16xf32>
    %134 = arith.addf %130, %133 : vector<5x16xf32>
    %c0_108 = arith.constant 0 : index
    %c2_109 = arith.constant 2 : index
    %c0_110 = arith.constant 0 : index
    %c0_111 = arith.constant 0 : index
    %135 = vector.load %arg8[%c0_108, %c2_109, %c0_110, %c0_111] : memref<2x4x64x16xbf16, #tpu.memory_space<vmem>>, vector<1x1x64x16xbf16>
    %136 = vector.shape_cast %135 : vector<1x1x64x16xbf16> to vector<64x16xbf16>
    %cst_112 = arith.constant dense<0.000000e+00> : vector<5x16xf32>
    %137 = tpu.matmul %31, %136, %cst_112 {dimension_numbers = #tpu.dot_dimension_numbers<[1], [0], [0], [1], [0, 0, 1, 1], [], []>} : vector<5x64xbf16>, vector<64x16xbf16>, vector<5x16xf32> -> vector<5x16xf32>
    %c0_113 = arith.constant 0 : index
    %c2_114 = arith.constant 2 : index
    %c0_115 = arith.constant 0 : index
    %c0_116 = arith.constant 0 : index
    %138 = vector.load %arg11[%c0_113, %c2_114, %c0_115, %c0_116] : memref<2x4x1x16xf32, #tpu.memory_space<vmem>>, vector<1x1x1x16xf32>
    %139 = vector.shape_cast %138 : vector<1x1x1x16xf32> to vector<1x16xf32>
    %140 = vector.broadcast %139 : vector<1x16xf32> to vector<5x16xf32>
    %141 = arith.addf %137, %140 : vector<5x16xf32>
    %142 = arith.truncf %127 : vector<5x16xf32> to vector<5x16xbf16>
    %143 = arith.truncf %134 : vector<5x16xf32> to vector<5x16xbf16>
    %cst_117 = arith.constant dense<0.000000e+00> : vector<5x5xf32>
    %144 = tpu.matmul %142, %143, %cst_117 {dimension_numbers = #tpu.dot_dimension_numbers<[1], [1], [0], [0], [0, 0, 1, 0], [], []>} : vector<5x16xbf16>, vector<5x16xbf16>, vector<5x5xf32> -> vector<5x5xf32>
    %cst_118 = arith.constant 2.500000e-01 : f32
    %145 = vector.broadcast %cst_118 : f32 to vector<5x5xf32>
    %146 = arith.mulf %144, %145 : vector<5x5xf32>
    %cst_119 = arith.constant dense<0xFF800000> : vector<5xf32>
    %147 = vector.multi_reduction <maximumf>, %146, %cst_119 [1] : vector<5x5xf32> to vector<5xf32>
    %148 = vector.shape_cast %147 : vector<5xf32> to vector<5x1xf32>
    %149 = vector.broadcast %148 : vector<5x1xf32> to vector<5x5xf32>
    %150 = arith.subf %146, %149 : vector<5x5xf32>
    %151 = math.exp %150 : vector<5x5xf32>
    %cst_120 = arith.constant dense<0.000000e+00> : vector<5xf32>
    %152 = vector.multi_reduction <add>, %151, %cst_120 [1] : vector<5x5xf32> to vector<5xf32>
    %153 = vector.shape_cast %152 : vector<5xf32> to vector<5x1xf32>
    %154 = tpu.reciprocal %153 {approx = true} : vector<5x1xf32> -> vector<5x1xf32>
    %155 = vector.broadcast %154 : vector<5x1xf32> to vector<5x5xf32>
    %156 = arith.mulf %151, %155 : vector<5x5xf32>
    %157 = arith.truncf %156 : vector<5x5xf32> to vector<5x5xbf16>
    %158 = arith.truncf %141 : vector<5x16xf32> to vector<5x16xbf16>
    %cst_121 = arith.constant dense<0.000000e+00> : vector<5x16xf32>
    %159 = tpu.matmul %157, %158, %cst_121 {dimension_numbers = #tpu.dot_dimension_numbers<[1], [0], [0], [1], [0, 0, 1, 1], [], []>} : vector<5x5xbf16>, vector<5x16xbf16>, vector<5x16xf32> -> vector<5x16xf32>
    %160 = arith.truncf %159 : vector<5x16xf32> to vector<5x16xbf16>
    %c0_122 = arith.constant 0 : index
    %c2_123 = arith.constant 2 : index
    %c0_124 = arith.constant 0 : index
    %c0_125 = arith.constant 0 : index
    %161 = vector.load %arg12[%c0_122, %c2_123, %c0_124, %c0_125] : memref<2x4x16x64xbf16, #tpu.memory_space<vmem>>, vector<1x1x16x64xbf16>
    %162 = vector.shape_cast %161 : vector<1x1x16x64xbf16> to vector<16x64xbf16>
    %cst_126 = arith.constant dense<0.000000e+00> : vector<5x64xf32>
    %163 = tpu.matmul %160, %162, %cst_126 {dimension_numbers = #tpu.dot_dimension_numbers<[1], [0], [0], [1], [0, 0, 1, 1], [], []>} : vector<5x16xbf16>, vector<16x64xbf16>, vector<5x64xf32> -> vector<5x64xf32>
    %164 = arith.addf %120, %163 : vector<5x64xf32>
    %c0_127 = arith.constant 0 : index
    %c3 = arith.constant 3 : index
    %c0_128 = arith.constant 0 : index
    %c0_129 = arith.constant 0 : index
    %165 = vector.load %arg6[%c0_127, %c3, %c0_128, %c0_129] : memref<2x4x64x16xbf16, #tpu.memory_space<vmem>>, vector<1x1x64x16xbf16>
    %166 = vector.shape_cast %165 : vector<1x1x64x16xbf16> to vector<64x16xbf16>
    %cst_130 = arith.constant dense<0.000000e+00> : vector<5x16xf32>
    %167 = tpu.matmul %31, %166, %cst_130 {dimension_numbers = #tpu.dot_dimension_numbers<[1], [0], [0], [1], [0, 0, 1, 1], [], []>} : vector<5x64xbf16>, vector<64x16xbf16>, vector<5x16xf32> -> vector<5x16xf32>
    %c0_131 = arith.constant 0 : index
    %c3_132 = arith.constant 3 : index
    %c0_133 = arith.constant 0 : index
    %c0_134 = arith.constant 0 : index
    %168 = vector.load %arg9[%c0_131, %c3_132, %c0_133, %c0_134] : memref<2x4x1x16xf32, #tpu.memory_space<vmem>>, vector<1x1x1x16xf32>
    %169 = vector.shape_cast %168 : vector<1x1x1x16xf32> to vector<1x16xf32>
    %170 = vector.broadcast %169 : vector<1x16xf32> to vector<5x16xf32>
    %171 = arith.addf %167, %170 : vector<5x16xf32>
    %c0_135 = arith.constant 0 : index
    %c3_136 = arith.constant 3 : index
    %c0_137 = arith.constant 0 : index
    %c0_138 = arith.constant 0 : index
    %172 = vector.load %arg7[%c0_135, %c3_136, %c0_137, %c0_138] : memref<2x4x64x16xbf16, #tpu.memory_space<vmem>>, vector<1x1x64x16xbf16>
    %173 = vector.shape_cast %172 : vector<1x1x64x16xbf16> to vector<64x16xbf16>
    %cst_139 = arith.constant dense<0.000000e+00> : vector<5x16xf32>
    %174 = tpu.matmul %31, %173, %cst_139 {dimension_numbers = #tpu.dot_dimension_numbers<[1], [0], [0], [1], [0, 0, 1, 1], [], []>} : vector<5x64xbf16>, vector<64x16xbf16>, vector<5x16xf32> -> vector<5x16xf32>
    %c0_140 = arith.constant 0 : index
    %c3_141 = arith.constant 3 : index
    %c0_142 = arith.constant 0 : index
    %c0_143 = arith.constant 0 : index
    %175 = vector.load %arg10[%c0_140, %c3_141, %c0_142, %c0_143] : memref<2x4x1x16xf32, #tpu.memory_space<vmem>>, vector<1x1x1x16xf32>
    %176 = vector.shape_cast %175 : vector<1x1x1x16xf32> to vector<1x16xf32>
    %177 = vector.broadcast %176 : vector<1x16xf32> to vector<5x16xf32>
    %178 = arith.addf %174, %177 : vector<5x16xf32>
    %c0_144 = arith.constant 0 : index
    %c3_145 = arith.constant 3 : index
    %c0_146 = arith.constant 0 : index
    %c0_147 = arith.constant 0 : index
    %179 = vector.load %arg8[%c0_144, %c3_145, %c0_146, %c0_147] : memref<2x4x64x16xbf16, #tpu.memory_space<vmem>>, vector<1x1x64x16xbf16>
    %180 = vector.shape_cast %179 : vector<1x1x64x16xbf16> to vector<64x16xbf16>
    %cst_148 = arith.constant dense<0.000000e+00> : vector<5x16xf32>
    %181 = tpu.matmul %31, %180, %cst_148 {dimension_numbers = #tpu.dot_dimension_numbers<[1], [0], [0], [1], [0, 0, 1, 1], [], []>} : vector<5x64xbf16>, vector<64x16xbf16>, vector<5x16xf32> -> vector<5x16xf32>
    %c0_149 = arith.constant 0 : index
    %c3_150 = arith.constant 3 : index
    %c0_151 = arith.constant 0 : index
    %c0_152 = arith.constant 0 : index
    %182 = vector.load %arg11[%c0_149, %c3_150, %c0_151, %c0_152] : memref<2x4x1x16xf32, #tpu.memory_space<vmem>>, vector<1x1x1x16xf32>
    %183 = vector.shape_cast %182 : vector<1x1x1x16xf32> to vector<1x16xf32>
    %184 = vector.broadcast %183 : vector<1x16xf32> to vector<5x16xf32>
    %185 = arith.addf %181, %184 : vector<5x16xf32>
    %186 = arith.truncf %171 : vector<5x16xf32> to vector<5x16xbf16>
    %187 = arith.truncf %178 : vector<5x16xf32> to vector<5x16xbf16>
    %cst_153 = arith.constant dense<0.000000e+00> : vector<5x5xf32>
    %188 = tpu.matmul %186, %187, %cst_153 {dimension_numbers = #tpu.dot_dimension_numbers<[1], [1], [0], [0], [0, 0, 1, 0], [], []>} : vector<5x16xbf16>, vector<5x16xbf16>, vector<5x5xf32> -> vector<5x5xf32>
    %cst_154 = arith.constant 2.500000e-01 : f32
    %189 = vector.broadcast %cst_154 : f32 to vector<5x5xf32>
    %190 = arith.mulf %188, %189 : vector<5x5xf32>
    %cst_155 = arith.constant dense<0xFF800000> : vector<5xf32>
    %191 = vector.multi_reduction <maximumf>, %190, %cst_155 [1] : vector<5x5xf32> to vector<5xf32>
    %192 = vector.shape_cast %191 : vector<5xf32> to vector<5x1xf32>
    %193 = vector.broadcast %192 : vector<5x1xf32> to vector<5x5xf32>
    %194 = arith.subf %190, %193 : vector<5x5xf32>
    %195 = math.exp %194 : vector<5x5xf32>
    %cst_156 = arith.constant dense<0.000000e+00> : vector<5xf32>
    %196 = vector.multi_reduction <add>, %195, %cst_156 [1] : vector<5x5xf32> to vector<5xf32>
    %197 = vector.shape_cast %196 : vector<5xf32> to vector<5x1xf32>
    %198 = tpu.reciprocal %197 {approx = true} : vector<5x1xf32> -> vector<5x1xf32>
    %199 = vector.broadcast %198 : vector<5x1xf32> to vector<5x5xf32>
    %200 = arith.mulf %195, %199 : vector<5x5xf32>
    %201 = arith.truncf %200 : vector<5x5xf32> to vector<5x5xbf16>
    %202 = arith.truncf %185 : vector<5x16xf32> to vector<5x16xbf16>
    %cst_157 = arith.constant dense<0.000000e+00> : vector<5x16xf32>
    %203 = tpu.matmul %201, %202, %cst_157 {dimension_numbers = #tpu.dot_dimension_numbers<[1], [0], [0], [1], [0, 0, 1, 1], [], []>} : vector<5x5xbf16>, vector<5x16xbf16>, vector<5x16xf32> -> vector<5x16xf32>
    %204 = arith.truncf %203 : vector<5x16xf32> to vector<5x16xbf16>
    %c0_158 = arith.constant 0 : index
    %c3_159 = arith.constant 3 : index
    %c0_160 = arith.constant 0 : index
    %c0_161 = arith.constant 0 : index
    %205 = vector.load %arg12[%c0_158, %c3_159, %c0_160, %c0_161] : memref<2x4x16x64xbf16, #tpu.memory_space<vmem>>, vector<1x1x16x64xbf16>
    %206 = vector.shape_cast %205 : vector<1x1x16x64xbf16> to vector<16x64xbf16>
    %cst_162 = arith.constant dense<0.000000e+00> : vector<5x64xf32>
    %207 = tpu.matmul %204, %206, %cst_162 {dimension_numbers = #tpu.dot_dimension_numbers<[1], [0], [0], [1], [0, 0, 1, 1], [], []>} : vector<5x16xbf16>, vector<16x64xbf16>, vector<5x64xf32> -> vector<5x64xf32>
    %208 = arith.addf %164, %207 : vector<5x64xf32>
    %209 = arith.addf %6, %208 : vector<5x64xf32>
    %c0_163 = arith.constant 0 : index
    %c0_164 = arith.constant 0 : index
    %c0_165 = arith.constant 0 : index
    %210 = vector.load %arg13[%c0_163, %c0_164, %c0_165] : memref<2x1x64xf32, #tpu.memory_space<vmem>>, vector<1x1x64xf32>
    %211 = vector.shape_cast %210 : vector<1x1x64xf32> to vector<1x64xf32>
    %212 = vector.broadcast %211 : vector<1x64xf32> to vector<5x64xf32>
    %213 = arith.addf %209, %212 : vector<5x64xf32>
    %c0_166 = arith.constant 0 : index
    %c0_167 = arith.constant 0 : index
    %c0_168 = arith.constant 0 : index
    %214 = vector.load %arg14[%c0_166, %c0_167, %c0_168] : memref<2x1x64xf32, #tpu.memory_space<vmem>>, vector<1x1x64xf32>
    %215 = vector.shape_cast %214 : vector<1x1x64xf32> to vector<1x64xf32>
    %c0_169 = arith.constant 0 : index
    %c0_170 = arith.constant 0 : index
    %c0_171 = arith.constant 0 : index
    %216 = vector.load %arg15[%c0_169, %c0_170, %c0_171] : memref<2x1x64xf32, #tpu.memory_space<vmem>>, vector<1x1x64xf32>
    %217 = vector.shape_cast %216 : vector<1x1x64xf32> to vector<1x64xf32>
    %cst_172 = arith.constant dense<0.000000e+00> : vector<5xf32>
    %218 = vector.multi_reduction <add>, %213, %cst_172 [1] : vector<5x64xf32> to vector<5xf32>
    %219 = vector.shape_cast %218 : vector<5xf32> to vector<5x1xf32>
    %cst_173 = arith.constant 6.400000e+01 : f32
    %220 = vector.broadcast %cst_173 : f32 to vector<5x1xf32>
    %221 = arith.divf %219, %220 : vector<5x1xf32>
    %222 = vector.broadcast %221 : vector<5x1xf32> to vector<5x64xf32>
    %223 = arith.subf %213, %222 : vector<5x64xf32>
    %224 = arith.mulf %223, %223 : vector<5x64xf32>
    %cst_174 = arith.constant dense<0.000000e+00> : vector<5xf32>
    %225 = vector.multi_reduction <add>, %224, %cst_174 [1] : vector<5x64xf32> to vector<5xf32>
    %226 = vector.shape_cast %225 : vector<5xf32> to vector<5x1xf32>
    %cst_175 = arith.constant 6.400000e+01 : f32
    %227 = vector.broadcast %cst_175 : f32 to vector<5x1xf32>
    %228 = arith.divf %226, %227 : vector<5x1xf32>
    %cst_176 = arith.constant 9.99999997E-7 : f32
    %229 = vector.broadcast %cst_176 : f32 to vector<5x1xf32>
    %230 = arith.addf %228, %229 : vector<5x1xf32>
    %231 = math.rsqrt %230 : vector<5x1xf32>
    %232 = vector.broadcast %231 : vector<5x1xf32> to vector<5x64xf32>
    %233 = arith.mulf %223, %232 : vector<5x64xf32>
    %234 = vector.broadcast %215 : vector<1x64xf32> to vector<5x64xf32>
    %235 = arith.mulf %233, %234 : vector<5x64xf32>
    %236 = vector.broadcast %217 : vector<1x64xf32> to vector<5x64xf32>
    %237 = arith.addf %235, %236 : vector<5x64xf32>
    %238 = arith.truncf %237 : vector<5x64xf32> to vector<5x64xbf16>
    %c0_177 = arith.constant 0 : index
    %c0_178 = arith.constant 0 : index
    %c0_179 = arith.constant 0 : index
    %239 = vector.load %arg16[%c0_177, %c0_178, %c0_179] : memref<2x64x256xbf16, #tpu.memory_space<vmem>>, vector<1x64x256xbf16>
    %240 = vector.shape_cast %239 : vector<1x64x256xbf16> to vector<64x256xbf16>
    %cst_180 = arith.constant dense<0.000000e+00> : vector<5x256xf32>
    %241 = tpu.matmul %238, %240, %cst_180 {dimension_numbers = #tpu.dot_dimension_numbers<[1], [0], [0], [1], [0, 0, 1, 1], [], []>} : vector<5x64xbf16>, vector<64x256xbf16>, vector<5x256xf32> -> vector<5x256xf32>
    %c0_181 = arith.constant 0 : index
    %c0_182 = arith.constant 0 : index
    %c0_183 = arith.constant 0 : index
    %242 = vector.load %arg17[%c0_181, %c0_182, %c0_183] : memref<2x1x256xf32, #tpu.memory_space<vmem>>, vector<1x1x256xf32>
    %243 = vector.shape_cast %242 : vector<1x1x256xf32> to vector<1x256xf32>
    %244 = vector.broadcast %243 : vector<1x256xf32> to vector<5x256xf32>
    %245 = arith.addf %241, %244 : vector<5x256xf32>
    %246 = arith.mulf %245, %245 : vector<5x256xf32>
    %247 = arith.mulf %245, %246 : vector<5x256xf32>
    %cst_184 = arith.constant 4.471500e-02 : f32
    %248 = vector.broadcast %cst_184 : f32 to vector<5x256xf32>
    %249 = arith.mulf %248, %247 : vector<5x256xf32>
    %250 = arith.addf %245, %249 : vector<5x256xf32>
    %cst_185 = arith.constant 0.797884583 : f32
    %251 = vector.broadcast %cst_185 : f32 to vector<5x256xf32>
    %252 = arith.mulf %251, %250 : vector<5x256xf32>
    %253 = math.tanh %252 : vector<5x256xf32>
    %cst_186 = arith.constant 1.000000e+00 : f32
    %254 = vector.broadcast %cst_186 : f32 to vector<5x256xf32>
    %255 = arith.addf %254, %253 : vector<5x256xf32>
    %cst_187 = arith.constant 5.000000e-01 : f32
    %256 = vector.broadcast %cst_187 : f32 to vector<5x256xf32>
    %257 = arith.mulf %256, %255 : vector<5x256xf32>
    %258 = arith.mulf %245, %257 : vector<5x256xf32>
    %259 = arith.truncf %258 : vector<5x256xf32> to vector<5x256xbf16>
    %c0_188 = arith.constant 0 : index
    %c0_189 = arith.constant 0 : index
    %c0_190 = arith.constant 0 : index
    %260 = vector.load %arg18[%c0_188, %c0_189, %c0_190] : memref<2x256x64xbf16, #tpu.memory_space<vmem>>, vector<1x256x64xbf16>
    %261 = vector.shape_cast %260 : vector<1x256x64xbf16> to vector<256x64xbf16>
    %cst_191 = arith.constant dense<0.000000e+00> : vector<5x64xf32>
    %262 = tpu.matmul %259, %261, %cst_191 {dimension_numbers = #tpu.dot_dimension_numbers<[1], [0], [0], [1], [0, 0, 1, 1], [], []>} : vector<5x256xbf16>, vector<256x64xbf16>, vector<5x64xf32> -> vector<5x64xf32>
    %263 = arith.addf %213, %262 : vector<5x64xf32>
    %c0_192 = arith.constant 0 : index
    %c0_193 = arith.constant 0 : index
    %c0_194 = arith.constant 0 : index
    %264 = vector.load %arg19[%c0_192, %c0_193, %c0_194] : memref<2x1x64xf32, #tpu.memory_space<vmem>>, vector<1x1x64xf32>
    %265 = vector.shape_cast %264 : vector<1x1x64xf32> to vector<1x64xf32>
    %266 = vector.broadcast %265 : vector<1x64xf32> to vector<5x64xf32>
    %267 = arith.addf %263, %266 : vector<5x64xf32>
    %c1_195 = arith.constant 1 : index
    %c0_196 = arith.constant 0 : index
    %c0_197 = arith.constant 0 : index
    %268 = vector.load %arg4[%c1_195, %c0_196, %c0_197] : memref<2x1x64xf32, #tpu.memory_space<vmem>>, vector<1x1x64xf32>
    %269 = vector.shape_cast %268 : vector<1x1x64xf32> to vector<1x64xf32>
    %c1_198 = arith.constant 1 : index
    %c0_199 = arith.constant 0 : index
    %c0_200 = arith.constant 0 : index
    %270 = vector.load %arg5[%c1_198, %c0_199, %c0_200] : memref<2x1x64xf32, #tpu.memory_space<vmem>>, vector<1x1x64xf32>
    %271 = vector.shape_cast %270 : vector<1x1x64xf32> to vector<1x64xf32>
    %cst_201 = arith.constant dense<0.000000e+00> : vector<5xf32>
    %272 = vector.multi_reduction <add>, %267, %cst_201 [1] : vector<5x64xf32> to vector<5xf32>
    %273 = vector.shape_cast %272 : vector<5xf32> to vector<5x1xf32>
    %cst_202 = arith.constant 6.400000e+01 : f32
    %274 = vector.broadcast %cst_202 : f32 to vector<5x1xf32>
    %275 = arith.divf %273, %274 : vector<5x1xf32>
    %276 = vector.broadcast %275 : vector<5x1xf32> to vector<5x64xf32>
    %277 = arith.subf %267, %276 : vector<5x64xf32>
    %278 = arith.mulf %277, %277 : vector<5x64xf32>
    %cst_203 = arith.constant dense<0.000000e+00> : vector<5xf32>
    %279 = vector.multi_reduction <add>, %278, %cst_203 [1] : vector<5x64xf32> to vector<5xf32>
    %280 = vector.shape_cast %279 : vector<5xf32> to vector<5x1xf32>
    %cst_204 = arith.constant 6.400000e+01 : f32
    %281 = vector.broadcast %cst_204 : f32 to vector<5x1xf32>
    %282 = arith.divf %280, %281 : vector<5x1xf32>
    %cst_205 = arith.constant 9.99999997E-7 : f32
    %283 = vector.broadcast %cst_205 : f32 to vector<5x1xf32>
    %284 = arith.addf %282, %283 : vector<5x1xf32>
    %285 = math.rsqrt %284 : vector<5x1xf32>
    %286 = vector.broadcast %285 : vector<5x1xf32> to vector<5x64xf32>
    %287 = arith.mulf %277, %286 : vector<5x64xf32>
    %288 = vector.broadcast %269 : vector<1x64xf32> to vector<5x64xf32>
    %289 = arith.mulf %287, %288 : vector<5x64xf32>
    %290 = vector.broadcast %271 : vector<1x64xf32> to vector<5x64xf32>
    %291 = arith.addf %289, %290 : vector<5x64xf32>
    %292 = arith.truncf %291 : vector<5x64xf32> to vector<5x64xbf16>
    %cst_206 = arith.constant 0.000000e+00 : f32
    %293 = vector.broadcast %cst_206 : f32 to vector<5x64xf32>
    %c1_207 = arith.constant 1 : index
    %c0_208 = arith.constant 0 : index
    %c0_209 = arith.constant 0 : index
    %c0_210 = arith.constant 0 : index
    %294 = vector.load %arg6[%c1_207, %c0_208, %c0_209, %c0_210] : memref<2x4x64x16xbf16, #tpu.memory_space<vmem>>, vector<1x1x64x16xbf16>
    %295 = vector.shape_cast %294 : vector<1x1x64x16xbf16> to vector<64x16xbf16>
    %cst_211 = arith.constant dense<0.000000e+00> : vector<5x16xf32>
    %296 = tpu.matmul %292, %295, %cst_211 {dimension_numbers = #tpu.dot_dimension_numbers<[1], [0], [0], [1], [0, 0, 1, 1], [], []>} : vector<5x64xbf16>, vector<64x16xbf16>, vector<5x16xf32> -> vector<5x16xf32>
    %c1_212 = arith.constant 1 : index
    %c0_213 = arith.constant 0 : index
    %c0_214 = arith.constant 0 : index
    %c0_215 = arith.constant 0 : index
    %297 = vector.load %arg9[%c1_212, %c0_213, %c0_214, %c0_215] : memref<2x4x1x16xf32, #tpu.memory_space<vmem>>, vector<1x1x1x16xf32>
    %298 = vector.shape_cast %297 : vector<1x1x1x16xf32> to vector<1x16xf32>
    %299 = vector.broadcast %298 : vector<1x16xf32> to vector<5x16xf32>
    %300 = arith.addf %296, %299 : vector<5x16xf32>
    %c1_216 = arith.constant 1 : index
    %c0_217 = arith.constant 0 : index
    %c0_218 = arith.constant 0 : index
    %c0_219 = arith.constant 0 : index
    %301 = vector.load %arg7[%c1_216, %c0_217, %c0_218, %c0_219] : memref<2x4x64x16xbf16, #tpu.memory_space<vmem>>, vector<1x1x64x16xbf16>
    %302 = vector.shape_cast %301 : vector<1x1x64x16xbf16> to vector<64x16xbf16>
    %cst_220 = arith.constant dense<0.000000e+00> : vector<5x16xf32>
    %303 = tpu.matmul %292, %302, %cst_220 {dimension_numbers = #tpu.dot_dimension_numbers<[1], [0], [0], [1], [0, 0, 1, 1], [], []>} : vector<5x64xbf16>, vector<64x16xbf16>, vector<5x16xf32> -> vector<5x16xf32>
    %c1_221 = arith.constant 1 : index
    %c0_222 = arith.constant 0 : index
    %c0_223 = arith.constant 0 : index
    %c0_224 = arith.constant 0 : index
    %304 = vector.load %arg10[%c1_221, %c0_222, %c0_223, %c0_224] : memref<2x4x1x16xf32, #tpu.memory_space<vmem>>, vector<1x1x1x16xf32>
    %305 = vector.shape_cast %304 : vector<1x1x1x16xf32> to vector<1x16xf32>
    %306 = vector.broadcast %305 : vector<1x16xf32> to vector<5x16xf32>
    %307 = arith.addf %303, %306 : vector<5x16xf32>
    %c1_225 = arith.constant 1 : index
    %c0_226 = arith.constant 0 : index
    %c0_227 = arith.constant 0 : index
    %c0_228 = arith.constant 0 : index
    %308 = vector.load %arg8[%c1_225, %c0_226, %c0_227, %c0_228] : memref<2x4x64x16xbf16, #tpu.memory_space<vmem>>, vector<1x1x64x16xbf16>
    %309 = vector.shape_cast %308 : vector<1x1x64x16xbf16> to vector<64x16xbf16>
    %cst_229 = arith.constant dense<0.000000e+00> : vector<5x16xf32>
    %310 = tpu.matmul %292, %309, %cst_229 {dimension_numbers = #tpu.dot_dimension_numbers<[1], [0], [0], [1], [0, 0, 1, 1], [], []>} : vector<5x64xbf16>, vector<64x16xbf16>, vector<5x16xf32> -> vector<5x16xf32>
    %c1_230 = arith.constant 1 : index
    %c0_231 = arith.constant 0 : index
    %c0_232 = arith.constant 0 : index
    %c0_233 = arith.constant 0 : index
    %311 = vector.load %arg11[%c1_230, %c0_231, %c0_232, %c0_233] : memref<2x4x1x16xf32, #tpu.memory_space<vmem>>, vector<1x1x1x16xf32>
    %312 = vector.shape_cast %311 : vector<1x1x1x16xf32> to vector<1x16xf32>
    %313 = vector.broadcast %312 : vector<1x16xf32> to vector<5x16xf32>
    %314 = arith.addf %310, %313 : vector<5x16xf32>
    %315 = arith.truncf %300 : vector<5x16xf32> to vector<5x16xbf16>
    %316 = arith.truncf %307 : vector<5x16xf32> to vector<5x16xbf16>
    %cst_234 = arith.constant dense<0.000000e+00> : vector<5x5xf32>
    %317 = tpu.matmul %315, %316, %cst_234 {dimension_numbers = #tpu.dot_dimension_numbers<[1], [1], [0], [0], [0, 0, 1, 0], [], []>} : vector<5x16xbf16>, vector<5x16xbf16>, vector<5x5xf32> -> vector<5x5xf32>
    %cst_235 = arith.constant 2.500000e-01 : f32
    %318 = vector.broadcast %cst_235 : f32 to vector<5x5xf32>
    %319 = arith.mulf %317, %318 : vector<5x5xf32>
    %cst_236 = arith.constant dense<0xFF800000> : vector<5xf32>
    %320 = vector.multi_reduction <maximumf>, %319, %cst_236 [1] : vector<5x5xf32> to vector<5xf32>
    %321 = vector.shape_cast %320 : vector<5xf32> to vector<5x1xf32>
    %322 = vector.broadcast %321 : vector<5x1xf32> to vector<5x5xf32>
    %323 = arith.subf %319, %322 : vector<5x5xf32>
    %324 = math.exp %323 : vector<5x5xf32>
    %cst_237 = arith.constant dense<0.000000e+00> : vector<5xf32>
    %325 = vector.multi_reduction <add>, %324, %cst_237 [1] : vector<5x5xf32> to vector<5xf32>
    %326 = vector.shape_cast %325 : vector<5xf32> to vector<5x1xf32>
    %327 = tpu.reciprocal %326 {approx = true} : vector<5x1xf32> -> vector<5x1xf32>
    %328 = vector.broadcast %327 : vector<5x1xf32> to vector<5x5xf32>
    %329 = arith.mulf %324, %328 : vector<5x5xf32>
    %330 = arith.truncf %329 : vector<5x5xf32> to vector<5x5xbf16>
    %331 = arith.truncf %314 : vector<5x16xf32> to vector<5x16xbf16>
    %cst_238 = arith.constant dense<0.000000e+00> : vector<5x16xf32>
    %332 = tpu.matmul %330, %331, %cst_238 {dimension_numbers = #tpu.dot_dimension_numbers<[1], [0], [0], [1], [0, 0, 1, 1], [], []>} : vector<5x5xbf16>, vector<5x16xbf16>, vector<5x16xf32> -> vector<5x16xf32>
    %333 = arith.truncf %332 : vector<5x16xf32> to vector<5x16xbf16>
    %c1_239 = arith.constant 1 : index
    %c0_240 = arith.constant 0 : index
    %c0_241 = arith.constant 0 : index
    %c0_242 = arith.constant 0 : index
    %334 = vector.load %arg12[%c1_239, %c0_240, %c0_241, %c0_242] : memref<2x4x16x64xbf16, #tpu.memory_space<vmem>>, vector<1x1x16x64xbf16>
    %335 = vector.shape_cast %334 : vector<1x1x16x64xbf16> to vector<16x64xbf16>
    %cst_243 = arith.constant dense<0.000000e+00> : vector<5x64xf32>
    %336 = tpu.matmul %333, %335, %cst_243 {dimension_numbers = #tpu.dot_dimension_numbers<[1], [0], [0], [1], [0, 0, 1, 1], [], []>} : vector<5x16xbf16>, vector<16x64xbf16>, vector<5x64xf32> -> vector<5x64xf32>
    %337 = arith.addf %293, %336 : vector<5x64xf32>
    %c1_244 = arith.constant 1 : index
    %c1_245 = arith.constant 1 : index
    %c0_246 = arith.constant 0 : index
    %c0_247 = arith.constant 0 : index
    %338 = vector.load %arg6[%c1_244, %c1_245, %c0_246, %c0_247] : memref<2x4x64x16xbf16, #tpu.memory_space<vmem>>, vector<1x1x64x16xbf16>
    %339 = vector.shape_cast %338 : vector<1x1x64x16xbf16> to vector<64x16xbf16>
    %cst_248 = arith.constant dense<0.000000e+00> : vector<5x16xf32>
    %340 = tpu.matmul %292, %339, %cst_248 {dimension_numbers = #tpu.dot_dimension_numbers<[1], [0], [0], [1], [0, 0, 1, 1], [], []>} : vector<5x64xbf16>, vector<64x16xbf16>, vector<5x16xf32> -> vector<5x16xf32>
    %c1_249 = arith.constant 1 : index
    %c1_250 = arith.constant 1 : index
    %c0_251 = arith.constant 0 : index
    %c0_252 = arith.constant 0 : index
    %341 = vector.load %arg9[%c1_249, %c1_250, %c0_251, %c0_252] : memref<2x4x1x16xf32, #tpu.memory_space<vmem>>, vector<1x1x1x16xf32>
    %342 = vector.shape_cast %341 : vector<1x1x1x16xf32> to vector<1x16xf32>
    %343 = vector.broadcast %342 : vector<1x16xf32> to vector<5x16xf32>
    %344 = arith.addf %340, %343 : vector<5x16xf32>
    %c1_253 = arith.constant 1 : index
    %c1_254 = arith.constant 1 : index
    %c0_255 = arith.constant 0 : index
    %c0_256 = arith.constant 0 : index
    %345 = vector.load %arg7[%c1_253, %c1_254, %c0_255, %c0_256] : memref<2x4x64x16xbf16, #tpu.memory_space<vmem>>, vector<1x1x64x16xbf16>
    %346 = vector.shape_cast %345 : vector<1x1x64x16xbf16> to vector<64x16xbf16>
    %cst_257 = arith.constant dense<0.000000e+00> : vector<5x16xf32>
    %347 = tpu.matmul %292, %346, %cst_257 {dimension_numbers = #tpu.dot_dimension_numbers<[1], [0], [0], [1], [0, 0, 1, 1], [], []>} : vector<5x64xbf16>, vector<64x16xbf16>, vector<5x16xf32> -> vector<5x16xf32>
    %c1_258 = arith.constant 1 : index
    %c1_259 = arith.constant 1 : index
    %c0_260 = arith.constant 0 : index
    %c0_261 = arith.constant 0 : index
    %348 = vector.load %arg10[%c1_258, %c1_259, %c0_260, %c0_261] : memref<2x4x1x16xf32, #tpu.memory_space<vmem>>, vector<1x1x1x16xf32>
    %349 = vector.shape_cast %348 : vector<1x1x1x16xf32> to vector<1x16xf32>
    %350 = vector.broadcast %349 : vector<1x16xf32> to vector<5x16xf32>
    %351 = arith.addf %347, %350 : vector<5x16xf32>
    %c1_262 = arith.constant 1 : index
    %c1_263 = arith.constant 1 : index
    %c0_264 = arith.constant 0 : index
    %c0_265 = arith.constant 0 : index
    %352 = vector.load %arg8[%c1_262, %c1_263, %c0_264, %c0_265] : memref<2x4x64x16xbf16, #tpu.memory_space<vmem>>, vector<1x1x64x16xbf16>
    %353 = vector.shape_cast %352 : vector<1x1x64x16xbf16> to vector<64x16xbf16>
    %cst_266 = arith.constant dense<0.000000e+00> : vector<5x16xf32>
    %354 = tpu.matmul %292, %353, %cst_266 {dimension_numbers = #tpu.dot_dimension_numbers<[1], [0], [0], [1], [0, 0, 1, 1], [], []>} : vector<5x64xbf16>, vector<64x16xbf16>, vector<5x16xf32> -> vector<5x16xf32>
    %c1_267 = arith.constant 1 : index
    %c1_268 = arith.constant 1 : index
    %c0_269 = arith.constant 0 : index
    %c0_270 = arith.constant 0 : index
    %355 = vector.load %arg11[%c1_267, %c1_268, %c0_269, %c0_270] : memref<2x4x1x16xf32, #tpu.memory_space<vmem>>, vector<1x1x1x16xf32>
    %356 = vector.shape_cast %355 : vector<1x1x1x16xf32> to vector<1x16xf32>
    %357 = vector.broadcast %356 : vector<1x16xf32> to vector<5x16xf32>
    %358 = arith.addf %354, %357 : vector<5x16xf32>
    %359 = arith.truncf %344 : vector<5x16xf32> to vector<5x16xbf16>
    %360 = arith.truncf %351 : vector<5x16xf32> to vector<5x16xbf16>
    %cst_271 = arith.constant dense<0.000000e+00> : vector<5x5xf32>
    %361 = tpu.matmul %359, %360, %cst_271 {dimension_numbers = #tpu.dot_dimension_numbers<[1], [1], [0], [0], [0, 0, 1, 0], [], []>} : vector<5x16xbf16>, vector<5x16xbf16>, vector<5x5xf32> -> vector<5x5xf32>
    %cst_272 = arith.constant 2.500000e-01 : f32
    %362 = vector.broadcast %cst_272 : f32 to vector<5x5xf32>
    %363 = arith.mulf %361, %362 : vector<5x5xf32>
    %cst_273 = arith.constant dense<0xFF800000> : vector<5xf32>
    %364 = vector.multi_reduction <maximumf>, %363, %cst_273 [1] : vector<5x5xf32> to vector<5xf32>
    %365 = vector.shape_cast %364 : vector<5xf32> to vector<5x1xf32>
    %366 = vector.broadcast %365 : vector<5x1xf32> to vector<5x5xf32>
    %367 = arith.subf %363, %366 : vector<5x5xf32>
    %368 = math.exp %367 : vector<5x5xf32>
    %cst_274 = arith.constant dense<0.000000e+00> : vector<5xf32>
    %369 = vector.multi_reduction <add>, %368, %cst_274 [1] : vector<5x5xf32> to vector<5xf32>
    %370 = vector.shape_cast %369 : vector<5xf32> to vector<5x1xf32>
    %371 = tpu.reciprocal %370 {approx = true} : vector<5x1xf32> -> vector<5x1xf32>
    %372 = vector.broadcast %371 : vector<5x1xf32> to vector<5x5xf32>
    %373 = arith.mulf %368, %372 : vector<5x5xf32>
    %374 = arith.truncf %373 : vector<5x5xf32> to vector<5x5xbf16>
    %375 = arith.truncf %358 : vector<5x16xf32> to vector<5x16xbf16>
    %cst_275 = arith.constant dense<0.000000e+00> : vector<5x16xf32>
    %376 = tpu.matmul %374, %375, %cst_275 {dimension_numbers = #tpu.dot_dimension_numbers<[1], [0], [0], [1], [0, 0, 1, 1], [], []>} : vector<5x5xbf16>, vector<5x16xbf16>, vector<5x16xf32> -> vector<5x16xf32>
    %377 = arith.truncf %376 : vector<5x16xf32> to vector<5x16xbf16>
    %c1_276 = arith.constant 1 : index
    %c1_277 = arith.constant 1 : index
    %c0_278 = arith.constant 0 : index
    %c0_279 = arith.constant 0 : index
    %378 = vector.load %arg12[%c1_276, %c1_277, %c0_278, %c0_279] : memref<2x4x16x64xbf16, #tpu.memory_space<vmem>>, vector<1x1x16x64xbf16>
    %379 = vector.shape_cast %378 : vector<1x1x16x64xbf16> to vector<16x64xbf16>
    %cst_280 = arith.constant dense<0.000000e+00> : vector<5x64xf32>
    %380 = tpu.matmul %377, %379, %cst_280 {dimension_numbers = #tpu.dot_dimension_numbers<[1], [0], [0], [1], [0, 0, 1, 1], [], []>} : vector<5x16xbf16>, vector<16x64xbf16>, vector<5x64xf32> -> vector<5x64xf32>
    %381 = arith.addf %337, %380 : vector<5x64xf32>
    %c1_281 = arith.constant 1 : index
    %c2_282 = arith.constant 2 : index
    %c0_283 = arith.constant 0 : index
    %c0_284 = arith.constant 0 : index
    %382 = vector.load %arg6[%c1_281, %c2_282, %c0_283, %c0_284] : memref<2x4x64x16xbf16, #tpu.memory_space<vmem>>, vector<1x1x64x16xbf16>
    %383 = vector.shape_cast %382 : vector<1x1x64x16xbf16> to vector<64x16xbf16>
    %cst_285 = arith.constant dense<0.000000e+00> : vector<5x16xf32>
    %384 = tpu.matmul %292, %383, %cst_285 {dimension_numbers = #tpu.dot_dimension_numbers<[1], [0], [0], [1], [0, 0, 1, 1], [], []>} : vector<5x64xbf16>, vector<64x16xbf16>, vector<5x16xf32> -> vector<5x16xf32>
    %c1_286 = arith.constant 1 : index
    %c2_287 = arith.constant 2 : index
    %c0_288 = arith.constant 0 : index
    %c0_289 = arith.constant 0 : index
    %385 = vector.load %arg9[%c1_286, %c2_287, %c0_288, %c0_289] : memref<2x4x1x16xf32, #tpu.memory_space<vmem>>, vector<1x1x1x16xf32>
    %386 = vector.shape_cast %385 : vector<1x1x1x16xf32> to vector<1x16xf32>
    %387 = vector.broadcast %386 : vector<1x16xf32> to vector<5x16xf32>
    %388 = arith.addf %384, %387 : vector<5x16xf32>
    %c1_290 = arith.constant 1 : index
    %c2_291 = arith.constant 2 : index
    %c0_292 = arith.constant 0 : index
    %c0_293 = arith.constant 0 : index
    %389 = vector.load %arg7[%c1_290, %c2_291, %c0_292, %c0_293] : memref<2x4x64x16xbf16, #tpu.memory_space<vmem>>, vector<1x1x64x16xbf16>
    %390 = vector.shape_cast %389 : vector<1x1x64x16xbf16> to vector<64x16xbf16>
    %cst_294 = arith.constant dense<0.000000e+00> : vector<5x16xf32>
    %391 = tpu.matmul %292, %390, %cst_294 {dimension_numbers = #tpu.dot_dimension_numbers<[1], [0], [0], [1], [0, 0, 1, 1], [], []>} : vector<5x64xbf16>, vector<64x16xbf16>, vector<5x16xf32> -> vector<5x16xf32>
    %c1_295 = arith.constant 1 : index
    %c2_296 = arith.constant 2 : index
    %c0_297 = arith.constant 0 : index
    %c0_298 = arith.constant 0 : index
    %392 = vector.load %arg10[%c1_295, %c2_296, %c0_297, %c0_298] : memref<2x4x1x16xf32, #tpu.memory_space<vmem>>, vector<1x1x1x16xf32>
    %393 = vector.shape_cast %392 : vector<1x1x1x16xf32> to vector<1x16xf32>
    %394 = vector.broadcast %393 : vector<1x16xf32> to vector<5x16xf32>
    %395 = arith.addf %391, %394 : vector<5x16xf32>
    %c1_299 = arith.constant 1 : index
    %c2_300 = arith.constant 2 : index
    %c0_301 = arith.constant 0 : index
    %c0_302 = arith.constant 0 : index
    %396 = vector.load %arg8[%c1_299, %c2_300, %c0_301, %c0_302] : memref<2x4x64x16xbf16, #tpu.memory_space<vmem>>, vector<1x1x64x16xbf16>
    %397 = vector.shape_cast %396 : vector<1x1x64x16xbf16> to vector<64x16xbf16>
    %cst_303 = arith.constant dense<0.000000e+00> : vector<5x16xf32>
    %398 = tpu.matmul %292, %397, %cst_303 {dimension_numbers = #tpu.dot_dimension_numbers<[1], [0], [0], [1], [0, 0, 1, 1], [], []>} : vector<5x64xbf16>, vector<64x16xbf16>, vector<5x16xf32> -> vector<5x16xf32>
    %c1_304 = arith.constant 1 : index
    %c2_305 = arith.constant 2 : index
    %c0_306 = arith.constant 0 : index
    %c0_307 = arith.constant 0 : index
    %399 = vector.load %arg11[%c1_304, %c2_305, %c0_306, %c0_307] : memref<2x4x1x16xf32, #tpu.memory_space<vmem>>, vector<1x1x1x16xf32>
    %400 = vector.shape_cast %399 : vector<1x1x1x16xf32> to vector<1x16xf32>
    %401 = vector.broadcast %400 : vector<1x16xf32> to vector<5x16xf32>
    %402 = arith.addf %398, %401 : vector<5x16xf32>
    %403 = arith.truncf %388 : vector<5x16xf32> to vector<5x16xbf16>
    %404 = arith.truncf %395 : vector<5x16xf32> to vector<5x16xbf16>
    %cst_308 = arith.constant dense<0.000000e+00> : vector<5x5xf32>
    %405 = tpu.matmul %403, %404, %cst_308 {dimension_numbers = #tpu.dot_dimension_numbers<[1], [1], [0], [0], [0, 0, 1, 0], [], []>} : vector<5x16xbf16>, vector<5x16xbf16>, vector<5x5xf32> -> vector<5x5xf32>
    %cst_309 = arith.constant 2.500000e-01 : f32
    %406 = vector.broadcast %cst_309 : f32 to vector<5x5xf32>
    %407 = arith.mulf %405, %406 : vector<5x5xf32>
    %cst_310 = arith.constant dense<0xFF800000> : vector<5xf32>
    %408 = vector.multi_reduction <maximumf>, %407, %cst_310 [1] : vector<5x5xf32> to vector<5xf32>
    %409 = vector.shape_cast %408 : vector<5xf32> to vector<5x1xf32>
    %410 = vector.broadcast %409 : vector<5x1xf32> to vector<5x5xf32>
    %411 = arith.subf %407, %410 : vector<5x5xf32>
    %412 = math.exp %411 : vector<5x5xf32>
    %cst_311 = arith.constant dense<0.000000e+00> : vector<5xf32>
    %413 = vector.multi_reduction <add>, %412, %cst_311 [1] : vector<5x5xf32> to vector<5xf32>
    %414 = vector.shape_cast %413 : vector<5xf32> to vector<5x1xf32>
    %415 = tpu.reciprocal %414 {approx = true} : vector<5x1xf32> -> vector<5x1xf32>
    %416 = vector.broadcast %415 : vector<5x1xf32> to vector<5x5xf32>
    %417 = arith.mulf %412, %416 : vector<5x5xf32>
    %418 = arith.truncf %417 : vector<5x5xf32> to vector<5x5xbf16>
    %419 = arith.truncf %402 : vector<5x16xf32> to vector<5x16xbf16>
    %cst_312 = arith.constant dense<0.000000e+00> : vector<5x16xf32>
    %420 = tpu.matmul %418, %419, %cst_312 {dimension_numbers = #tpu.dot_dimension_numbers<[1], [0], [0], [1], [0, 0, 1, 1], [], []>} : vector<5x5xbf16>, vector<5x16xbf16>, vector<5x16xf32> -> vector<5x16xf32>
    %421 = arith.truncf %420 : vector<5x16xf32> to vector<5x16xbf16>
    %c1_313 = arith.constant 1 : index
    %c2_314 = arith.constant 2 : index
    %c0_315 = arith.constant 0 : index
    %c0_316 = arith.constant 0 : index
    %422 = vector.load %arg12[%c1_313, %c2_314, %c0_315, %c0_316] : memref<2x4x16x64xbf16, #tpu.memory_space<vmem>>, vector<1x1x16x64xbf16>
    %423 = vector.shape_cast %422 : vector<1x1x16x64xbf16> to vector<16x64xbf16>
    %cst_317 = arith.constant dense<0.000000e+00> : vector<5x64xf32>
    %424 = tpu.matmul %421, %423, %cst_317 {dimension_numbers = #tpu.dot_dimension_numbers<[1], [0], [0], [1], [0, 0, 1, 1], [], []>} : vector<5x16xbf16>, vector<16x64xbf16>, vector<5x64xf32> -> vector<5x64xf32>
    %425 = arith.addf %381, %424 : vector<5x64xf32>
    %c1_318 = arith.constant 1 : index
    %c3_319 = arith.constant 3 : index
    %c0_320 = arith.constant 0 : index
    %c0_321 = arith.constant 0 : index
    %426 = vector.load %arg6[%c1_318, %c3_319, %c0_320, %c0_321] : memref<2x4x64x16xbf16, #tpu.memory_space<vmem>>, vector<1x1x64x16xbf16>
    %427 = vector.shape_cast %426 : vector<1x1x64x16xbf16> to vector<64x16xbf16>
    %cst_322 = arith.constant dense<0.000000e+00> : vector<5x16xf32>
    %428 = tpu.matmul %292, %427, %cst_322 {dimension_numbers = #tpu.dot_dimension_numbers<[1], [0], [0], [1], [0, 0, 1, 1], [], []>} : vector<5x64xbf16>, vector<64x16xbf16>, vector<5x16xf32> -> vector<5x16xf32>
    %c1_323 = arith.constant 1 : index
    %c3_324 = arith.constant 3 : index
    %c0_325 = arith.constant 0 : index
    %c0_326 = arith.constant 0 : index
    %429 = vector.load %arg9[%c1_323, %c3_324, %c0_325, %c0_326] : memref<2x4x1x16xf32, #tpu.memory_space<vmem>>, vector<1x1x1x16xf32>
    %430 = vector.shape_cast %429 : vector<1x1x1x16xf32> to vector<1x16xf32>
    %431 = vector.broadcast %430 : vector<1x16xf32> to vector<5x16xf32>
    %432 = arith.addf %428, %431 : vector<5x16xf32>
    %c1_327 = arith.constant 1 : index
    %c3_328 = arith.constant 3 : index
    %c0_329 = arith.constant 0 : index
    %c0_330 = arith.constant 0 : index
    %433 = vector.load %arg7[%c1_327, %c3_328, %c0_329, %c0_330] : memref<2x4x64x16xbf16, #tpu.memory_space<vmem>>, vector<1x1x64x16xbf16>
    %434 = vector.shape_cast %433 : vector<1x1x64x16xbf16> to vector<64x16xbf16>
    %cst_331 = arith.constant dense<0.000000e+00> : vector<5x16xf32>
    %435 = tpu.matmul %292, %434, %cst_331 {dimension_numbers = #tpu.dot_dimension_numbers<[1], [0], [0], [1], [0, 0, 1, 1], [], []>} : vector<5x64xbf16>, vector<64x16xbf16>, vector<5x16xf32> -> vector<5x16xf32>
    %c1_332 = arith.constant 1 : index
    %c3_333 = arith.constant 3 : index
    %c0_334 = arith.constant 0 : index
    %c0_335 = arith.constant 0 : index
    %436 = vector.load %arg10[%c1_332, %c3_333, %c0_334, %c0_335] : memref<2x4x1x16xf32, #tpu.memory_space<vmem>>, vector<1x1x1x16xf32>
    %437 = vector.shape_cast %436 : vector<1x1x1x16xf32> to vector<1x16xf32>
    %438 = vector.broadcast %437 : vector<1x16xf32> to vector<5x16xf32>
    %439 = arith.addf %435, %438 : vector<5x16xf32>
    %c1_336 = arith.constant 1 : index
    %c3_337 = arith.constant 3 : index
    %c0_338 = arith.constant 0 : index
    %c0_339 = arith.constant 0 : index
    %440 = vector.load %arg8[%c1_336, %c3_337, %c0_338, %c0_339] : memref<2x4x64x16xbf16, #tpu.memory_space<vmem>>, vector<1x1x64x16xbf16>
    %441 = vector.shape_cast %440 : vector<1x1x64x16xbf16> to vector<64x16xbf16>
    %cst_340 = arith.constant dense<0.000000e+00> : vector<5x16xf32>
    %442 = tpu.matmul %292, %441, %cst_340 {dimension_numbers = #tpu.dot_dimension_numbers<[1], [0], [0], [1], [0, 0, 1, 1], [], []>} : vector<5x64xbf16>, vector<64x16xbf16>, vector<5x16xf32> -> vector<5x16xf32>
    %c1_341 = arith.constant 1 : index
    %c3_342 = arith.constant 3 : index
    %c0_343 = arith.constant 0 : index
    %c0_344 = arith.constant 0 : index
    %443 = vector.load %arg11[%c1_341, %c3_342, %c0_343, %c0_344] : memref<2x4x1x16xf32, #tpu.memory_space<vmem>>, vector<1x1x1x16xf32>
    %444 = vector.shape_cast %443 : vector<1x1x1x16xf32> to vector<1x16xf32>
    %445 = vector.broadcast %444 : vector<1x16xf32> to vector<5x16xf32>
    %446 = arith.addf %442, %445 : vector<5x16xf32>
    %447 = arith.truncf %432 : vector<5x16xf32> to vector<5x16xbf16>
    %448 = arith.truncf %439 : vector<5x16xf32> to vector<5x16xbf16>
    %cst_345 = arith.constant dense<0.000000e+00> : vector<5x5xf32>
    %449 = tpu.matmul %447, %448, %cst_345 {dimension_numbers = #tpu.dot_dimension_numbers<[1], [1], [0], [0], [0, 0, 1, 0], [], []>} : vector<5x16xbf16>, vector<5x16xbf16>, vector<5x5xf32> -> vector<5x5xf32>
    %cst_346 = arith.constant 2.500000e-01 : f32
    %450 = vector.broadcast %cst_346 : f32 to vector<5x5xf32>
    %451 = arith.mulf %449, %450 : vector<5x5xf32>
    %cst_347 = arith.constant dense<0xFF800000> : vector<5xf32>
    %452 = vector.multi_reduction <maximumf>, %451, %cst_347 [1] : vector<5x5xf32> to vector<5xf32>
    %453 = vector.shape_cast %452 : vector<5xf32> to vector<5x1xf32>
    %454 = vector.broadcast %453 : vector<5x1xf32> to vector<5x5xf32>
    %455 = arith.subf %451, %454 : vector<5x5xf32>
    %456 = math.exp %455 : vector<5x5xf32>
    %cst_348 = arith.constant dense<0.000000e+00> : vector<5xf32>
    %457 = vector.multi_reduction <add>, %456, %cst_348 [1] : vector<5x5xf32> to vector<5xf32>
    %458 = vector.shape_cast %457 : vector<5xf32> to vector<5x1xf32>
    %459 = tpu.reciprocal %458 {approx = true} : vector<5x1xf32> -> vector<5x1xf32>
    %460 = vector.broadcast %459 : vector<5x1xf32> to vector<5x5xf32>
    %461 = arith.mulf %456, %460 : vector<5x5xf32>
    %462 = arith.truncf %461 : vector<5x5xf32> to vector<5x5xbf16>
    %463 = arith.truncf %446 : vector<5x16xf32> to vector<5x16xbf16>
    %cst_349 = arith.constant dense<0.000000e+00> : vector<5x16xf32>
    %464 = tpu.matmul %462, %463, %cst_349 {dimension_numbers = #tpu.dot_dimension_numbers<[1], [0], [0], [1], [0, 0, 1, 1], [], []>} : vector<5x5xbf16>, vector<5x16xbf16>, vector<5x16xf32> -> vector<5x16xf32>
    %465 = arith.truncf %464 : vector<5x16xf32> to vector<5x16xbf16>
    %c1_350 = arith.constant 1 : index
    %c3_351 = arith.constant 3 : index
    %c0_352 = arith.constant 0 : index
    %c0_353 = arith.constant 0 : index
    %466 = vector.load %arg12[%c1_350, %c3_351, %c0_352, %c0_353] : memref<2x4x16x64xbf16, #tpu.memory_space<vmem>>, vector<1x1x16x64xbf16>
    %467 = vector.shape_cast %466 : vector<1x1x16x64xbf16> to vector<16x64xbf16>
    %cst_354 = arith.constant dense<0.000000e+00> : vector<5x64xf32>
    %468 = tpu.matmul %465, %467, %cst_354 {dimension_numbers = #tpu.dot_dimension_numbers<[1], [0], [0], [1], [0, 0, 1, 1], [], []>} : vector<5x16xbf16>, vector<16x64xbf16>, vector<5x64xf32> -> vector<5x64xf32>
    %469 = arith.addf %425, %468 : vector<5x64xf32>
    %470 = arith.addf %267, %469 : vector<5x64xf32>
    %c1_355 = arith.constant 1 : index
    %c0_356 = arith.constant 0 : index
    %c0_357 = arith.constant 0 : index
    %471 = vector.load %arg13[%c1_355, %c0_356, %c0_357] : memref<2x1x64xf32, #tpu.memory_space<vmem>>, vector<1x1x64xf32>
    %472 = vector.shape_cast %471 : vector<1x1x64xf32> to vector<1x64xf32>
    %473 = vector.broadcast %472 : vector<1x64xf32> to vector<5x64xf32>
    %474 = arith.addf %470, %473 : vector<5x64xf32>
    %c1_358 = arith.constant 1 : index
    %c0_359 = arith.constant 0 : index
    %c0_360 = arith.constant 0 : index
    %475 = vector.load %arg14[%c1_358, %c0_359, %c0_360] : memref<2x1x64xf32, #tpu.memory_space<vmem>>, vector<1x1x64xf32>
    %476 = vector.shape_cast %475 : vector<1x1x64xf32> to vector<1x64xf32>
    %c1_361 = arith.constant 1 : index
    %c0_362 = arith.constant 0 : index
    %c0_363 = arith.constant 0 : index
    %477 = vector.load %arg15[%c1_361, %c0_362, %c0_363] : memref<2x1x64xf32, #tpu.memory_space<vmem>>, vector<1x1x64xf32>
    %478 = vector.shape_cast %477 : vector<1x1x64xf32> to vector<1x64xf32>
    %cst_364 = arith.constant dense<0.000000e+00> : vector<5xf32>
    %479 = vector.multi_reduction <add>, %474, %cst_364 [1] : vector<5x64xf32> to vector<5xf32>
    %480 = vector.shape_cast %479 : vector<5xf32> to vector<5x1xf32>
    %cst_365 = arith.constant 6.400000e+01 : f32
    %481 = vector.broadcast %cst_365 : f32 to vector<5x1xf32>
    %482 = arith.divf %480, %481 : vector<5x1xf32>
    %483 = vector.broadcast %482 : vector<5x1xf32> to vector<5x64xf32>
    %484 = arith.subf %474, %483 : vector<5x64xf32>
    %485 = arith.mulf %484, %484 : vector<5x64xf32>
    %cst_366 = arith.constant dense<0.000000e+00> : vector<5xf32>
    %486 = vector.multi_reduction <add>, %485, %cst_366 [1] : vector<5x64xf32> to vector<5xf32>
    %487 = vector.shape_cast %486 : vector<5xf32> to vector<5x1xf32>
    %cst_367 = arith.constant 6.400000e+01 : f32
    %488 = vector.broadcast %cst_367 : f32 to vector<5x1xf32>
    %489 = arith.divf %487, %488 : vector<5x1xf32>
    %cst_368 = arith.constant 9.99999997E-7 : f32
    %490 = vector.broadcast %cst_368 : f32 to vector<5x1xf32>
    %491 = arith.addf %489, %490 : vector<5x1xf32>
    %492 = math.rsqrt %491 : vector<5x1xf32>
    %493 = vector.broadcast %492 : vector<5x1xf32> to vector<5x64xf32>
    %494 = arith.mulf %484, %493 : vector<5x64xf32>
    %495 = vector.broadcast %476 : vector<1x64xf32> to vector<5x64xf32>
    %496 = arith.mulf %494, %495 : vector<5x64xf32>
    %497 = vector.broadcast %478 : vector<1x64xf32> to vector<5x64xf32>
    %498 = arith.addf %496, %497 : vector<5x64xf32>
    %499 = arith.truncf %498 : vector<5x64xf32> to vector<5x64xbf16>
    %c1_369 = arith.constant 1 : index
    %c0_370 = arith.constant 0 : index
    %c0_371 = arith.constant 0 : index
    %500 = vector.load %arg16[%c1_369, %c0_370, %c0_371] : memref<2x64x256xbf16, #tpu.memory_space<vmem>>, vector<1x64x256xbf16>
    %501 = vector.shape_cast %500 : vector<1x64x256xbf16> to vector<64x256xbf16>
    %cst_372 = arith.constant dense<0.000000e+00> : vector<5x256xf32>
    %502 = tpu.matmul %499, %501, %cst_372 {dimension_numbers = #tpu.dot_dimension_numbers<[1], [0], [0], [1], [0, 0, 1, 1], [], []>} : vector<5x64xbf16>, vector<64x256xbf16>, vector<5x256xf32> -> vector<5x256xf32>
    %c1_373 = arith.constant 1 : index
    %c0_374 = arith.constant 0 : index
    %c0_375 = arith.constant 0 : index
    %503 = vector.load %arg17[%c1_373, %c0_374, %c0_375] : memref<2x1x256xf32, #tpu.memory_space<vmem>>, vector<1x1x256xf32>
    %504 = vector.shape_cast %503 : vector<1x1x256xf32> to vector<1x256xf32>
    %505 = vector.broadcast %504 : vector<1x256xf32> to vector<5x256xf32>
    %506 = arith.addf %502, %505 : vector<5x256xf32>
    %507 = arith.mulf %506, %506 : vector<5x256xf32>
    %508 = arith.mulf %506, %507 : vector<5x256xf32>
    %cst_376 = arith.constant 4.471500e-02 : f32
    %509 = vector.broadcast %cst_376 : f32 to vector<5x256xf32>
    %510 = arith.mulf %509, %508 : vector<5x256xf32>
    %511 = arith.addf %506, %510 : vector<5x256xf32>
    %cst_377 = arith.constant 0.797884583 : f32
    %512 = vector.broadcast %cst_377 : f32 to vector<5x256xf32>
    %513 = arith.mulf %512, %511 : vector<5x256xf32>
    %514 = math.tanh %513 : vector<5x256xf32>
    %cst_378 = arith.constant 1.000000e+00 : f32
    %515 = vector.broadcast %cst_378 : f32 to vector<5x256xf32>
    %516 = arith.addf %515, %514 : vector<5x256xf32>
    %cst_379 = arith.constant 5.000000e-01 : f32
    %517 = vector.broadcast %cst_379 : f32 to vector<5x256xf32>
    %518 = arith.mulf %517, %516 : vector<5x256xf32>
    %519 = arith.mulf %506, %518 : vector<5x256xf32>
    %520 = arith.truncf %519 : vector<5x256xf32> to vector<5x256xbf16>
    %c1_380 = arith.constant 1 : index
    %c0_381 = arith.constant 0 : index
    %c0_382 = arith.constant 0 : index
    %521 = vector.load %arg18[%c1_380, %c0_381, %c0_382] : memref<2x256x64xbf16, #tpu.memory_space<vmem>>, vector<1x256x64xbf16>
    %522 = vector.shape_cast %521 : vector<1x256x64xbf16> to vector<256x64xbf16>
    %cst_383 = arith.constant dense<0.000000e+00> : vector<5x64xf32>
    %523 = tpu.matmul %520, %522, %cst_383 {dimension_numbers = #tpu.dot_dimension_numbers<[1], [0], [0], [1], [0, 0, 1, 1], [], []>} : vector<5x256xbf16>, vector<256x64xbf16>, vector<5x64xf32> -> vector<5x64xf32>
    %524 = arith.addf %474, %523 : vector<5x64xf32>
    %c1_384 = arith.constant 1 : index
    %c0_385 = arith.constant 0 : index
    %c0_386 = arith.constant 0 : index
    %525 = vector.load %arg19[%c1_384, %c0_385, %c0_386] : memref<2x1x64xf32, #tpu.memory_space<vmem>>, vector<1x1x64xf32>
    %526 = vector.shape_cast %525 : vector<1x1x64xf32> to vector<1x64xf32>
    %527 = vector.broadcast %526 : vector<1x64xf32> to vector<5x64xf32>
    %528 = arith.addf %524, %527 : vector<5x64xf32>
    %c0_387 = arith.constant 0 : index
    %c0_388 = arith.constant 0 : index
    %529 = vector.load %arg20[%c0_387, %c0_388] : memref<1x64xf32, #tpu.memory_space<vmem>>, vector<1x64xf32>
    %c0_389 = arith.constant 0 : index
    %c0_390 = arith.constant 0 : index
    %530 = vector.load %arg21[%c0_389, %c0_390] : memref<1x64xf32, #tpu.memory_space<vmem>>, vector<1x64xf32>
    %cst_391 = arith.constant dense<0.000000e+00> : vector<5xf32>
    %531 = vector.multi_reduction <add>, %528, %cst_391 [1] : vector<5x64xf32> to vector<5xf32>
    %532 = vector.shape_cast %531 : vector<5xf32> to vector<5x1xf32>
    %cst_392 = arith.constant 6.400000e+01 : f32
    %533 = vector.broadcast %cst_392 : f32 to vector<5x1xf32>
    %534 = arith.divf %532, %533 : vector<5x1xf32>
    %535 = vector.broadcast %534 : vector<5x1xf32> to vector<5x64xf32>
    %536 = arith.subf %528, %535 : vector<5x64xf32>
    %537 = arith.mulf %536, %536 : vector<5x64xf32>
    %cst_393 = arith.constant dense<0.000000e+00> : vector<5xf32>
    %538 = vector.multi_reduction <add>, %537, %cst_393 [1] : vector<5x64xf32> to vector<5xf32>
    %539 = vector.shape_cast %538 : vector<5xf32> to vector<5x1xf32>
    %cst_394 = arith.constant 6.400000e+01 : f32
    %540 = vector.broadcast %cst_394 : f32 to vector<5x1xf32>
    %541 = arith.divf %539, %540 : vector<5x1xf32>
    %cst_395 = arith.constant 9.99999997E-7 : f32
    %542 = vector.broadcast %cst_395 : f32 to vector<5x1xf32>
    %543 = arith.addf %541, %542 : vector<5x1xf32>
    %544 = math.rsqrt %543 : vector<5x1xf32>
    %545 = vector.broadcast %544 : vector<5x1xf32> to vector<5x64xf32>
    %546 = arith.mulf %536, %545 : vector<5x64xf32>
    %547 = vector.broadcast %529 : vector<1x64xf32> to vector<5x64xf32>
    %548 = arith.mulf %546, %547 : vector<5x64xf32>
    %549 = vector.broadcast %530 : vector<1x64xf32> to vector<5x64xf32>
    %550 = arith.addf %548, %549 : vector<5x64xf32>
    %c0_396 = arith.constant 0 : index
    %c0_397 = arith.constant 0 : index
    %c0_398 = arith.constant 0 : index
    %551 = vector.load %arg22[%c0_396, %c0_397, %c0_398] : memref<1x5x64xf32, #tpu.memory_space<vmem>>, vector<1x5x64xf32>
    %552 = vector.shape_cast %551 : vector<1x5x64xf32> to vector<5x64xf32>
    %553 = vector.shape_cast %550 : vector<5x64xf32> to vector<1x5x64xf32>
    tpu.vector_store %arg22[%c0_396, %c0_397, %c0_398], %553 {strides = array<i32>} : memref<1x5x64xf32, #tpu.memory_space<vmem>>, vector<1x5x64xf32>,
    return
  }
  func.func @transform_0(%arg0: i32) -> (i32, i32, i32) {
    %c0_i32 = arith.constant 0 : i32
    %c0_i32_0 = arith.constant 0 : i32
    %c0_i32_1 = arith.constant 0 : i32
    return %arg0, %c0_i32, %c0_i32_0 : i32, i32, i32
  }
  func.func @transform_1(%arg0: i32) -> (i32, i32) {
    %c0_i32 = arith.constant 0 : i32
    %c0_i32_0 = arith.constant 0 : i32
    %c0_i32_1 = arith.constant 0 : i32
    return %c0_i32, %c0_i32_0 : i32, i32
  }
  func.func @transform_2(%arg0: i32) -> (i32, i32) {
    %c0_i32 = arith.constant 0 : i32
    %c0_i32_0 = arith.constant 0 : i32
    %c0_i32_1 = arith.constant 0 : i32
    return %c0_i32, %c0_i32_0 : i32, i32
  }
  func.func @transform_3(%arg0: i32) -> (i32, i32, i32) {
    %c0_i32 = arith.constant 0 : i32
    %c0_i32_0 = arith.constant 0 : i32
    %c0_i32_1 = arith.constant 0 : i32
    %c0_i32_2 = arith.constant 0 : i32
    return %c0_i32, %c0_i32_0, %c0_i32_1 : i32, i32, i32
  }
  func.func @transform_4(%arg0: i32) -> (i32, i32, i32) {
    %c0_i32 = arith.constant 0 : i32
    %c0_i32_0 = arith.constant 0 : i32
    %c0_i32_1 = arith.constant 0 : i32
    %c0_i32_2 = arith.constant 0 : i32
    return %c0_i32, %c0_i32_0, %c0_i32_1 : i32, i32, i32
  }
  func.func @transform_5(%arg0: i32) -> (i32, i32, i32, i32) {
    %c0_i32 = arith.constant 0 : i32
    %c0_i32_0 = arith.constant 0 : i32
    %c0_i32_1 = arith.constant 0 : i32
    %c0_i32_2 = arith.constant 0 : i32
    %c0_i32_3 = arith.constant 0 : i32
    return %c0_i32, %c0_i32_0, %c0_i32_1, %c0_i32_2 : i32, i32, i32, i32
  }
  func.func @transform_6(%arg0: i32) -> (i32, i32, i32, i32) {
    %c0_i32 = arith.constant 0 : i32
    %c0_i32_0 = arith.constant 0 : i32
    %c0_i32_1 = arith.constant 0 : i32
    %c0_i32_2 = arith.constant 0 : i32
    %c0_i32_3 = arith.constant 0 : i32
    return %c0_i32, %c0_i32_0, %c0_i32_1, %c0_i32_2 : i32, i32, i32, i32
  }
  func.func @transform_7(%arg0: i32) -> (i32, i32, i32, i32) {
    %c0_i32 = arith.constant 0 : i32
    %c0_i32_0 = arith.constant 0 : i32
    %c0_i32_1 = arith.constant 0 : i32
    %c0_i32_2 = arith.constant 0 : i32
    %c0_i32_3 = arith.constant 0 : i32
    return %c0_i32, %c0_i32_0, %c0_i32_1, %c0_i32_2 : i32, i32, i32, i32
  }
  func.func @transform_8(%arg0: i32) -> (i32, i32, i32, i32) {
    %c0_i32 = arith.constant 0 : i32
    %c0_i32_0 = arith.constant 0 : i32
    %c0_i32_1 = arith.constant 0 : i32
    %c0_i32_2 = arith.constant 0 : i32
    %c0_i32_3 = arith.constant 0 : i32
    return %c0_i32, %c0_i32_0, %c0_i32_1, %c0_i32_2 : i32, i32, i32, i32
  }
  func.func @transform_9(%arg0: i32) -> (i32, i32, i32, i32) {
    %c0_i32 = arith.constant 0 : i32
    %c0_i32_0 = arith.constant 0 : i32
    %c0_i32_1 = arith.constant 0 : i32
    %c0_i32_2 = arith.constant 0 : i32
    %c0_i32_3 = arith.constant 0 : i32
    return %c0_i32, %c0_i32_0, %c0_i32_1, %c0_i32_2 : i32, i32, i32, i32
  }
  func.func @transform_10(%arg0: i32) -> (i32, i32, i32, i32) {
    %c0_i32 = arith.constant 0 : i32
    %c0_i32_0 = arith.constant 0 : i32
    %c0_i32_1 = arith.constant 0 : i32
    %c0_i32_2 = arith.constant 0 : i32
    %c0_i32_3 = arith.constant 0 : i32
    return %c0_i32, %c0_i32_0, %c0_i32_1, %c0_i32_2 : i32, i32, i32, i32
  }
  func.func @transform_11(%arg0: i32) -> (i32, i32, i32, i32) {
    %c0_i32 = arith.constant 0 : i32
    %c0_i32_0 = arith.constant 0 : i32
    %c0_i32_1 = arith.constant 0 : i32
    %c0_i32_2 = arith.constant 0 : i32
    %c0_i32_3 = arith.constant 0 : i32
    return %c0_i32, %c0_i32_0, %c0_i32_1, %c0_i32_2 : i32, i32, i32, i32
  }
  func.func @transform_12(%arg0: i32) -> (i32, i32, i32) {
    %c0_i32 = arith.constant 0 : i32
    %c0_i32_0 = arith.constant 0 : i32
    %c0_i32_1 = arith.constant 0 : i32
    %c0_i32_2 = arith.constant 0 : i32
    return %c0_i32, %c0_i32_0, %c0_i32_1 : i32, i32, i32
  }
  func.func @transform_13(%arg0: i32) -> (i32, i32, i32) {
    %c0_i32 = arith.constant 0 : i32
    %c0_i32_0 = arith.constant 0 : i32
    %c0_i32_1 = arith.constant 0 : i32
    %c0_i32_2 = arith.constant 0 : i32
    return %c0_i32, %c0_i32_0, %c0_i32_1 : i32, i32, i32
  }
  func.func @transform_14(%arg0: i32) -> (i32, i32, i32) {
    %c0_i32 = arith.constant 0 : i32
    %c0_i32_0 = arith.constant 0 : i32
    %c0_i32_1 = arith.constant 0 : i32
    %c0_i32_2 = arith.constant 0 : i32
    return %c0_i32, %c0_i32_0, %c0_i32_1 : i32, i32, i32
  }
  func.func @transform_15(%arg0: i32) -> (i32, i32, i32) {
    %c0_i32 = arith.constant 0 : i32
    %c0_i32_0 = arith.constant 0 : i32
    %c0_i32_1 = arith.constant 0 : i32
    %c0_i32_2 = arith.constant 0 : i32
    return %c0_i32, %c0_i32_0, %c0_i32_1 : i32, i32, i32
  }
  func.func @transform_16(%arg0: i32) -> (i32, i32, i32) {
    %c0_i32 = arith.constant 0 : i32
    %c0_i32_0 = arith.constant 0 : i32
    %c0_i32_1 = arith.constant 0 : i32
    %c0_i32_2 = arith.constant 0 : i32
    return %c0_i32, %c0_i32_0, %c0_i32_1 : i32, i32, i32
  }
  func.func @transform_17(%arg0: i32) -> (i32, i32, i32) {
    %c0_i32 = arith.constant 0 : i32
    %c0_i32_0 = arith.constant 0 : i32
    %c0_i32_1 = arith.constant 0 : i32
    %c0_i32_2 = arith.constant 0 : i32
    return %c0_i32, %c0_i32_0, %c0_i32_1 : i32, i32, i32
  }
  func.func @transform_18(%arg0: i32) -> (i32, i32, i32) {
    %c0_i32 = arith.constant 0 : i32
    %c0_i32_0 = arith.constant 0 : i32
    %c0_i32_1 = arith.constant 0 : i32
    %c0_i32_2 = arith.constant 0 : i32
    return %c0_i32, %c0_i32_0, %c0_i32_1 : i32, i32, i32
  }
  func.func @transform_19(%arg0: i32) -> (i32, i32) {
    %c0_i32 = arith.constant 0 : i32
    %c0_i32_0 = arith.constant 0 : i32
    %c0_i32_1 = arith.constant 0 : i32
    return %c0_i32, %c0_i32_0 : i32, i32
  }
  func.func @transform_20(%arg0: i32) -> (i32, i32) {
    %c0_i32 = arith.constant 0 : i32
    %c0_i32_0 = arith.constant 0 : i32
    %c0_i32_1 = arith.constant 0 : i32
    return %c0_i32, %c0_i32_0 : i32, i32
  }
  func.func @transform_21(%arg0: i32) -> (i32, i32, i32) {
    %c0_i32 = arith.constant 0 : i32
    %c0_i32_0 = arith.constant 0 : i32
    %c0_i32_1 = arith.constant 0 : i32
    return %arg0, %c0_i32, %c0_i32_0 : i32, i32, i32
  }
}

</mosaic_0001>

<llo_original>
// kernel: _lambda_.3
$region0: #{_lambda_.3}
  #allocation0 [shape = 'u32[]', space=smem, size = 0x4, offset = 0x4, fixed_abs, tag = 'smem constant byte address 0x4 - core index']
  #allocation1 [shape = 'u32[72,128]{1,0:T(1,128)}', space=vmem, size = 0x9000, scoped, tag = 'internal scratch']
  %s0 = inlined_call_operand.vmem [shape: f32[2,5,64], index: 0, kind: input, shape index: {}]
  %s1 = inlined_call_operand.vmem [shape: bf16[9,32,64], index: 1, kind: input, shape index: {}]
  %s2 = inlined_call_operand.vmem [shape: f32[32,1], index: 2, kind: input, shape index: {}]
  %s3 = inlined_call_operand.vmem [shape: bf16[9,5,1024], index: 3, kind: input, shape index: {}]
  %s4 = inlined_call_operand.vmem [shape: bf16[3,32], index: 4, kind: input, shape index: {}]
  %s5 = inlined_call_operand.vmem [shape: f32[3,1], index: 5, kind: input, shape index: {}]
  %s6 = inlined_call_operand.vmem [shape: f32[2,3,1024], index: 6, kind: output, shape index: {}]
  %s7 = sld [smem:[#allocation0]]
  $region57: #{_lambda_.3} parent=0
    _
  %s9 = ssub.s32 1, %s7
  %s10 = scalar_select 0, %s9, %s7
  loop: start=0, step=1, limit=4
  $region2: #{_lambda_.3} parent=0 // loop_pre_header
    _
  $region3: #{_lambda_.3} parent=0 // loop_header
    %s12 = sphi 0, %s16
    %p13 = scmp.ge.s32.totalorder %s12, 4
    %s22 = sphi 0, %s24
    %s25 = sphi 0, %s22
    %s26 = sphi 0, %s25
    %s42 = sphi 0, %s26
    %s46 = sphi 0, %s46
    %s48 = sphi 0, %s46
    %s49 = sphi 0, %s48
    %s63 = sphi 0, %s49
    %s67 = sphi 0, %s67
    %s69 = sphi 0, %s67
    %s70 = sphi 0, %s69
    %s84 = sphi 0, %s70
    %s88 = sphi 0, %s88
    %s90 = sphi 0, %s88
    %s91 = sphi 0, %s90
    %s105 = sphi 0, %s91
    %s109 = sphi 0, %s109
    %s111 = sphi 0, %s109
    %s112 = sphi 0, %s111
    %s126 = sphi 0, %s112
    %s130 = sphi 0, %s130
    %s132 = sphi 0, %s130
    %s133 = sphi 0, %s132
    %s147 = sphi 0, %s133
    %s153 = sphi 0, %s155
    %s156 = sphi 0, %s153
    %s157 = sphi 0, %s156
    %s173 = sphi 0, %s157
  $region4: #{_lambda_.3} parent=0 // loop_header_branch
    %15 = sbr.rel (%p13) target = $region8
  $region5: #{_lambda_.3} parent=0 // loop_body
    %s17 = ssub.s32 %s12, 1
    %s18 = ssub.s32 %s12, 2
    %s19 = sadd.s32 %s12, 1
    %s20 = ssub.s32 %s12, %s19
    %p21 = scmp.eq.s32.totalorder %s20, 0
    %s23 = sadd.s32 %s22, 1
    %s24 = scalar_select %p21, %s22, %s23
    %p27 = pneg %p21
    %p28 = scmp.eq.s32.totalorder %s12, 1
    %p29 = por %p27, %p28
    %p30 = scmp.ne.s32.totalorder %s22, %s25
    %p31 = scmp.eq.s32.totalorder %s12, 0
    %p32 = por %p30, %p31
    %p33 = scmp.ne.s32.totalorder %s22, %s25
    %p34 = scmp.eq.s32.totalorder %s17, 1
    %p35 = por %p33, %p34
    %p36 = scmp.ne.s32.totalorder %s25, %s26
    %p37 = scmp.eq.s32.totalorder %s17, 0
    %p38 = por %p36, %p37
    %p39 = scmp.ne.s32.totalorder %s25, %s26
    %p40 = scmp.eq.s32.totalorder %s18, 1
    %p41 = por %p39, %p40
    %p43 = scmp.ne.s32.totalorder %s26, %s42
    %p44 = scmp.eq.s32.totalorder %s18, 0
    %p45 = por %p43, %p44
    %s47 = sadd.s32 %s46, 1
    %p50 = scmp.eq.s32.totalorder %s12, 1
    %p51 = scmp.ne.s32.totalorder %s46, %s48
    %p52 = scmp.eq.s32.totalorder %s12, 0
    %p53 = por %p51, %p52
    %p54 = scmp.ne.s32.totalorder %s46, %s48
    %p55 = scmp.eq.s32.totalorder %s17, 1
    %p56 = por %p54, %p55
    %p57 = scmp.ne.s32.totalorder %s48, %s49
    %p58 = scmp.eq.s32.totalorder %s17, 0
    %p59 = por %p57, %p58
    %p60 = scmp.ne.s32.totalorder %s48, %s49
    %p61 = scmp.eq.s32.totalorder %s18, 1
    %p62 = por %p60, %p61
    %p64 = scmp.ne.s32.totalorder %s49, %s63
    %p65 = scmp.eq.s32.totalorder %s18, 0
    %p66 = por %p64, %p65
    %s68 = sadd.s32 %s67, 1
    %p71 = scmp.eq.s32.totalorder %s12, 1
    %p72 = scmp.ne.s32.totalorder %s67, %s69
    %p73 = scmp.eq.s32.totalorder %s12, 0
    %p74 = por %p72, %p73
    %p75 = scmp.ne.s32.totalorder %s67, %s69
    %p76 = scmp.eq.s32.totalorder %s17, 1
    %p77 = por %p75, %p76
    %p78 = scmp.ne.s32.totalorder %s69, %s70
    %p79 = scmp.eq.s32.totalorder %s17, 0
    %p80 = por %p78, %p79
    %p81 = scmp.ne.s32.totalorder %s69, %s70
    %p82 = scmp.eq.s32.totalorder %s18, 1
    %p83 = por %p81, %p82
    %p85 = scmp.ne.s32.totalorder %s70, %s84
    %p86 = scmp.eq.s32.totalorder %s18, 0
    %p87 = por %p85, %p86
    %s89 = sadd.s32 %s88, 1
    %p92 = scmp.eq.s32.totalorder %s12, 1
    %p93 = scmp.ne.s32.totalorder %s88, %s90
    %p94 = scmp.eq.s32.totalorder %s12, 0
    %p95 = por %p93, %p94
    %p96 = scmp.ne.s32.totalorder %s88, %s90
    %p97 = scmp.eq.s32.totalorder %s17, 1
    %p98 = por %p96, %p97
    %p99 = scmp.ne.s32.totalorder %s90, %s91
    %p100 = scmp.eq.s32.totalorder %s17, 0
    %p101 = por %p99, %p100
    %p102 = scmp.ne.s32.totalorder %s90, %s91
    %p103 = scmp.eq.s32.totalorder %s18, 1
    %p104 = por %p102, %p103
    %p106 = scmp.ne.s32.totalorder %s91, %s105
    %p107 = scmp.eq.s32.totalorder %s18, 0
    %p108 = por %p106, %p107
    %s110 = sadd.s32 %s109, 1
    %p113 = scmp.eq.s32.totalorder %s12, 1
    %p114 = scmp.ne.s32.totalorder %s109, %s111
    %p115 = scmp.eq.s32.totalorder %s12, 0
    %p116 = por %p114, %p115
    %p117 = scmp.ne.s32.totalorder %s109, %s111
    %p118 = scmp.eq.s32.totalorder %s17, 1
    %p119 = por %p117, %p118
    %p120 = scmp.ne.s32.totalorder %s111, %s112
    %p121 = scmp.eq.s32.totalorder %s17, 0
    %p122 = por %p120, %p121
    %p123 = scmp.ne.s32.totalorder %s111, %s112
    %p124 = scmp.eq.s32.totalorder %s18, 1
    %p125 = por %p123, %p124
    %p127 = scmp.ne.s32.totalorder %s112, %s126
    %p128 = scmp.eq.s32.totalorder %s18, 0
    %p129 = por %p127, %p128
    %s131 = sadd.s32 %s130, 1
    %p134 = scmp.eq.s32.totalorder %s12, 1
    %p135 = scmp.ne.s32.totalorder %s130, %s132
    %p136 = scmp.eq.s32.totalorder %s12, 0
    %p137 = por %p135, %p136
    %p138 = scmp.ne.s32.totalorder %s130, %s132
    %p139 = scmp.eq.s32.totalorder %s17, 1
    %p140 = por %p138, %p139
    %p141 = scmp.ne.s32.totalorder %s132, %s133
    %p142 = scmp.eq.s32.totalorder %s17, 0
    %p143 = por %p141, %p142
    %p144 = scmp.ne.s32.totalorder %s132, %s133
    %p145 = scmp.eq.s32.totalorder %s18, 1
    %p146 = por %p144, %p145
    %p148 = scmp.ne.s32.totalorder %s133, %s147
    %p149 = scmp.eq.s32.totalorder %s18, 0
    %p150 = por %p148, %p149
    %s151 = ssub.s32 %s12, %s19
    %p152 = scmp.eq.s32.totalorder %s151, 0
    %s154 = sadd.s32 %s153, 1
    %s155 = scalar_select %p152, %s153, %s154
    %p158 = pneg %p152
    %p159 = scmp.eq.s32.totalorder %s12, 1
    %p160 = por %p158, %p159
    %p161 = scmp.ne.s32.totalorder %s153, %s156
    %p162 = scmp.eq.s32.totalorder %s12, 0
    %p163 = por %p161, %p162
    %p164 = scmp.ne.s32.totalorder %s153, %s156
    %p165 = scmp.eq.s32.totalorder %s17, 1
    %p166 = por %p164, %p165
    %p167 = scmp.ne.s32.totalorder %s156, %s157
    %p168 = scmp.eq.s32.totalorder %s17, 0
    %p169 = por %p167, %p168
    %p170 = scmp.ne.s32.totalorder %s156, %s157
    %p171 = scmp.eq.s32.totalorder %s18, 1
    %p172 = por %p170, %p171
    %p174 = scmp.ne.s32.totalorder %s157, %s173
    %p175 = scmp.eq.s32.totalorder %s18, 0
    %p176 = por %p174, %p175
    %p177 = scmp.le.s32.totalorder 1, %s12
    %p178 = scmp.lt.s32.totalorder %s12, 3
    %p179 = pnand %p177, %p178
    %p180 = pneg %p179
    // Predicated region
    $region9: #{_lambda_.3} parent=5 // pred_check
      _
    $region10: #{_lambda_.3} parent=5 // pred_check_branch
      %182 = sbr.rel (%p179) target = $region12
    $region11: #{_lambda_.3} parent=5 // pred_region
      %s183 = ssub.s32 %s12, 1
      // Predicated region
      $region13: #{_lambda_.3} parent=11 // pred_check
        %p184 = pneg %p59
      $region14: #{_lambda_.3} parent=11 // pred_check_branch
        %186 = sbr.rel (%p184) target = $region16
      $region15: #{_lambda_.3} parent=11 // pred_region
        _
      $region16: #{_lambda_.3} parent=11 // pred_fallthru
        _
      // Predicated region
      $region17: #{_lambda_.3} parent=11 // pred_check
        %p187 = pneg %p80
      $region18: #{_lambda_.3} parent=11 // pred_check_branch
        %189 = sbr.rel (%p187) target = $region20
      $region19: #{_lambda_.3} parent=11 // pred_region
        _
      $region20: #{_lambda_.3} parent=11 // pred_fallthru
        _
      // Predicated region
      $region21: #{_lambda_.3} parent=11 // pred_check
        %p190 = pneg %p101
      $region22: #{_lambda_.3} parent=11 // pred_check_branch
        %192 = sbr.rel (%p190) target = $region24
      $region23: #{_lambda_.3} parent=11 // pred_region
        _
      $region24: #{_lambda_.3} parent=11 // pred_fallthru
        _
      // Predicated region
      $region25: #{_lambda_.3} parent=11 // pred_check
        %p193 = pneg %p122
      $region26: #{_lambda_.3} parent=11 // pred_check_branch
        %195 = sbr.rel (%p193) target = $region28
      $region27: #{_lambda_.3} parent=11 // pred_region
        _
      $region28: #{_lambda_.3} parent=11 // pred_fallthru
        _
      // Predicated region
      $region29: #{_lambda_.3} parent=11 // pred_check
        %p196 = pneg %p143
      $region30: #{_lambda_.3} parent=11 // pred_check_branch
        %198 = sbr.rel (%p196) target = $region32
      $region31: #{_lambda_.3} parent=11 // pred_region
        _
      $region32: #{_lambda_.3} parent=11 // pred_fallthru
        _
    $region12: #{_lambda_.3} parent=5 // pred_fallthru
      _
    %p199 = scmp.lt.s32.totalorder %s12, 2
    // Predicated region
    $region33: #{_lambda_.3} parent=5 // pred_check
      %p200 = pneg %p199
    $region34: #{_lambda_.3} parent=5 // pred_check_branch
      %202 = sbr.rel (%p200) target = $region36
    $region35: #{_lambda_.3} parent=5 // pred_region
      // Predicated region
      $region37: #{_lambda_.3} parent=35 // pred_check
        %p203 = pneg %p32
      $region38: #{_lambda_.3} parent=35 // pred_check_branch
        %205 = sbr.rel (%p203) target = $region40
      $region39: #{_lambda_.3} parent=35 // pred_region
        %p206 = scmp.lt.s32.totalorder %s12, 1
        %s207 = scalar_select %p206, %s12, 1
        %s208 = smul.addr %s207, 8
        %s209 = scalar_lea.vmem %s0, %s208
      $region40: #{_lambda_.3} parent=35 // pred_fallthru
        _
    $region36: #{_lambda_.3} parent=5 // pred_fallthru
      _
    %p210 = scmp.le.s32.totalorder 1, %s12
    %p211 = scmp.lt.s32.totalorder %s12, 3
    %p212 = pnand %p210, %p211
    %p213 = pneg %p212
    // Predicated region
    $region41: #{_lambda_.3} parent=5 // pred_check
      _
    $region42: #{_lambda_.3} parent=5 // pred_check_branch
      %215 = sbr.rel (%p212) target = $region44
    $region43: #{_lambda_.3} parent=5 // pred_region
      %s216 = ssub.s32 %s12, 1
      %p217 = scmp.lt.s32.totalorder %s17, 1
      %s218 = scalar_select %p217, %s17, 1
      %s219 = smul.addr %s218, 8
      %s220 = scalar_lea.vmem %s0, %s219
      %p221 = pneg %p38
      %p222 = pneg %p35
      %p223 = pneg %p59
      %p224 = pneg %p56
      %p225 = pneg %p80
      %p226 = pneg %p77
      %p227 = pneg %p101
      %p228 = pneg %p98
      %p229 = pneg %p122
      %p230 = pneg %p119
      %p231 = pneg %p143
      %p232 = pneg %p140
      %p233 = pneg %p169
      %p234 = pneg %p166
      %p235 = scmp.lt.s32.totalorder %s17, 1
      %s236 = scalar_select %p235, %s17, 1
      %s237 = smul.addr %s236, 8
      %s238 = smul.addr %s237, 4
      %s239 = scalar_lea.vmem %s6, %s238
      %p240 = scmp.lt.s32.totalorder %s17, 1
      %s241 = scalar_select %p240, %s17, 1
      %s242 = smul.addr %s241, 8
      %s243 = scalar_lea.vmem %s0, %s242
      %p244 = scmp.lt.s32.totalorder %s17, 1
      %s245 = scalar_select %p244, %s17, 1
      %s246 = smul.addr %s245, 8
      %s247 = smul.addr %s246, 4
      %s248 = scalar_lea.vmem %s6, %s247
      %v250 = vld [vmem:[%s243] sm:$0x1f]
      %v251 = vpack.c.bf16 %v250, %v250
      %v252 = vld [vmem:[%s1] sm:$0xf]
      %v253 = vld [vmem:[%s1 + $0x4] sm:$0xf]
      %v254 = vld [vmem:[%s1 + $0x8] sm:$0xf]
      %v255 = vld [vmem:[%s1 + $0xc] sm:$0xf]
      %v260 = vunpack.c.l.b16 %v252
      %v261 = vunpack.c.l.b16 %v253
      %v262 = vunpack.c.l.b16 %v254
      %v263 = vunpack.c.l.b16 %v255
      %v264 = vpack.c.b16 %v261, %v260
      %v265 = vpack.c.b16 %v263, %v262
      %vm266 = vcmask 523264
      %v268 = vsel %vm266, %v264, 0
      %v271 = vsel %vm266, %v265, 0
      %v274 = vsel %vm266, %v251, 0
      %276 = vmatpush.bf16.xpose.msra.mxu0 0
      %277 = vmatpush.bf16.xpose.msra.mxu0 0
      %278 = vmatpush.bf16.xpose.msra.mxu0 0
      %279 = vmatpush.bf16.xpose.msra.mxu0 0
      %280 = vmatpush.bf16.xpose.msra.mxu0 0
      %281 = vmatpush.bf16.xpose.msra.mxu0 0
      %282 = vmatpush.bf16.xpose.msra.mxu0 0
      %283 = vmatpush.bf16.xpose.msra.mxu0 %v274
      %284 = vmatmul.bf16.gmra.mxu0 %v268
      %v285 = vpop.f32.mrf.mxu0
      %v286 = vadd.f32 0.0, %v285
      %v287 = vpop.f32.mrf.mxu0
      %v288 = vadd.f32 0.0, %v287
      %289 = vmatmul.bf16.gmra.mxu0 %v271
      %v290 = vpop.f32.mrf.mxu0
      %v291 = vadd.f32 0.0, %v290
      %v292 = vpop.f32.mrf.mxu0
      %v293 = vadd.f32 0.0, %v292
      %294 = vdwg.mxu0
      %v295 = vpack.c.bf16 %v288, %v286
      %v296 = vpack.c.bf16 %v293, %v291
      %v297 = vld [vmem:[%s3] sm:$0x77]
      %v298 = vld [vmem:[%s3 + $0x8] sm:$0x77]
      %v299 = vld [vmem:[%s3 + $0x10] sm:$0x77]
      %v300 = vld [vmem:[%s3 + $0x18] sm:$0x77]
      %s301 = scalar_lea.vmem %s1, 16
      %v302 = vld [vmem:[%s301] sm:$0xf]
      %v303 = vld [vmem:[%s301 + $0x4] sm:$0xf]
      %v304 = vld [vmem:[%s301 + $0x8] sm:$0xf]
      %v305 = vld [vmem:[%s301 + $0xc] sm:$0xf]
      %v310 = vunpack.c.l.b16 %v302
      %v311 = vunpack.c.l.b16 %v303
      %v312 = vunpack.c.l.b16 %v304
      %v313 = vunpack.c.l.b16 %v305
      %v314 = vpack.c.b16 %v311, %v310
      %v315 = vpack.c.b16 %v313, %v312
      %v317 = vsel %vm266, %v314, 0
      %v320 = vsel %vm266, %v315, 0
      %322 = vmatpush.bf16.xpose.msra.mxu0 0
      %323 = vmatpush.bf16.xpose.msra.mxu0 0
      %324 = vmatpush.bf16.xpose.msra.mxu0 0
      %325 = vmatpush.bf16.xpose.msra.mxu0 0
      %326 = vmatpush.bf16.xpose.msra.mxu0 0
      %327 = vmatpush.bf16.xpose.msra.mxu0 0
      %328 = vmatpush.bf16.xpose.msra.mxu0 0
      %329 = vmatpush.bf16.xpose.msra.mxu0 %v274
      %330 = vmatmul.bf16.gmra.mxu0 %v317
      %v331 = vpop.f32.mrf.mxu0
      %v332 = vadd.f32 0.0, %v331
      %v333 = vpop.f32.mrf.mxu0
      %v334 = vadd.f32 0.0, %v333
      %335 = vmatmul.bf16.gmra.mxu0 %v320
      %v336 = vpop.f32.mrf.mxu0
      %v337 = vadd.f32 0.0, %v336
      %v338 = vpop.f32.mrf.mxu0
      %v339 = vadd.f32 0.0, %v338
      %340 = vdwg.mxu0
      %v341 = vpack.c.bf16 %v334, %v332
      %v342 = vpack.c.bf16 %v339, %v337
      %s343 = scalar_lea.vmem %s3, 32
      %v344 = vld [vmem:[%s343] sm:$0x77]
      %v345 = vld [vmem:[%s343 + $0x8] sm:$0x77]
      %v346 = vld [vmem:[%s343 + $0x10] sm:$0x77]
      %v347 = vld [vmem:[%s343 + $0x18] sm:$0x77]
      %v352 = vunpack.c.l.b16 %v344
      %v353 = vunpack.c.h.b16 %v344
      %v354 = vunpack.c.l.b16 %v345
      %v355 = vunpack.c.h.b16 %v345
      %v356 = vunpack.c.l.b16 %v346
      %v357 = vunpack.c.h.b16 %v346
      %v358 = vunpack.c.l.b16 %v347
      %v359 = vunpack.c.h.b16 %v347
      %v360 = vpack.c.b16 %v352, %v352
      %v361 = vpack.c.b16 %v353, %v353
      %v362 = vpack.c.b16 %v354, %v354
      %v363 = vpack.c.b16 %v355, %v355
      %v364 = vpack.c.b16 %v356, %v356
      %v365 = vpack.c.b16 %v357, %v357
      %v366 = vpack.c.b16 %v358, %v358
      %v367 = vpack.c.b16 %v359, %v359
      %vm368 = vcmask 39936
      %v370 = vsel %vm368, %v341, 0
      %v373 = vsel %vm368, %v342, 0
      %vm375 = vcmask 1041408
      %vm376 = vcmask 1042432
      %v377 = vsel %vm375, 4294967295, 65535
      %v378 = vsel %vm376, %v377, 0
      %v380 = vand.u32 %v360, %v378
      %v383 = vand.u32 %v361, %v378
      %v386 = vand.u32 %v362, %v378
      %v389 = vand.u32 %v363, %v378
      %v392 = vand.u32 %v364, %v378
      %v395 = vand.u32 %v365, %v378
      %v398 = vand.u32 %v366, %v378
      %v401 = vand.u32 %v367, %v378
      %403 = vmatpush.bf16.msra.mxu0 0
      %404 = vmatpush.bf16.msra.mxu0 0
      %405 = vmatpush.bf16.msra.mxu0 0
      %406 = vmatpush.bf16.msra.mxu0 0
      %407 = vmatpush.bf16.msra.mxu0 0
      %408 = vmatpush.bf16.msra.mxu0 0
      %409 = vmatpush.bf16.msra.mxu0 0
      %410 = vmatpush.bf16.msra.mxu0 %v380
      %411 = vmatmul.bf16.gmra.mxu0 %v370
      %v412 = vpop.f32.mrf.mxu0
      %v413 = vadd.f32 0.0, %v412
      %v414 = vpop.f32.mrf.mxu0
      %v415 = vadd.f32 0.0, %v414
      %416 = vmatmul.bf16.gmra.mxu0 %v373
      %v417 = vpop.f32.mrf.mxu0
      %v418 = vadd.f32 0.0, %v417
      %v419 = vpop.f32.mrf.mxu0
      %v420 = vadd.f32 0.0, %v419
      %421 = vdwg.mxu0
      %422 = vmatpush.bf16.msra.mxu0 0
      %423 = vmatpush.bf16.msra.mxu0 0
      %424 = vmatpush.bf16.msra.mxu0 0
      %425 = vmatpush.bf16.msra.mxu0 0
      %426 = vmatpush.bf16.msra.mxu0 0
      %427 = vmatpush.bf16.msra.mxu0 0
      %428 = vmatpush.bf16.msra.mxu0 0
      %429 = vmatpush.bf16.msra.mxu0 %v383
      %430 = vmatmul.bf16.gmra.mxu0 %v370
      %v431 = vpop.f32.mrf.mxu0
      %v432 = vadd.f32 0.0, %v431
      %v433 = vpop.f32.mrf.mxu0
      %v434 = vadd.f32 0.0, %v433
      %435 = vmatmul.bf16.gmra.mxu0 %v373
      %v436 = vpop.f32.mrf.mxu0
      %v437 = vadd.f32 0.0, %v436
      %v438 = vpop.f32.mrf.mxu0
      %v439 = vadd.f32 0.0, %v438
      %440 = vdwg.mxu0
      %441 = vmatpush.bf16.msra.mxu0 0
      %442 = vmatpush.bf16.msra.mxu0 0
      %443 = vmatpush.bf16.msra.mxu0 0
      %444 = vmatpush.bf16.msra.mxu0 0
      %445 = vmatpush.bf16.msra.mxu0 0
      %446 = vmatpush.bf16.msra.mxu0 0
      %447 = vmatpush.bf16.msra.mxu0 0
      %448 = vmatpush.bf16.msra.mxu0 %v386
      %449 = vmatmul.bf16.gmra.mxu0 %v370
      %v450 = vpop.f32.mrf.mxu0
      %v451 = vadd.f32 0.0, %v450
      %v452 = vpop.f32.mrf.mxu0
      %v453 = vadd.f32 0.0, %v452
      %454 = vmatmul.bf16.gmra.mxu0 %v373
      %v455 = vpop.f32.mrf.mxu0
      %v456 = vadd.f32 0.0, %v455
      %v457 = vpop.f32.mrf.mxu0
      %v458 = vadd.f32 0.0, %v457
      %459 = vdwg.mxu0
      %460 = vmatpush.bf16.msra.mxu0 0
      %461 = vmatpush.bf16.msra.mxu0 0
      %462 = vmatpush.bf16.msra.mxu0 0
      %463 = vmatpush.bf16.msra.mxu0 0
      %464 = vmatpush.bf16.msra.mxu0 0
      %465 = vmatpush.bf16.msra.mxu0 0
      %466 = vmatpush.bf16.msra.mxu0 0
      %467 = vmatpush.bf16.msra.mxu0 %v389
      %468 = vmatmul.bf16.gmra.mxu0 %v370
      %v469 = vpop.f32.mrf.mxu0
      %v470 = vadd.f32 0.0, %v469
      %v471 = vpop.f32.mrf.mxu0
      %v472 = vadd.f32 0.0, %v471
      %473 = vmatmul.bf16.gmra.mxu0 %v373
      %v474 = vpop.f32.mrf.mxu0
      %v475 = vadd.f32 0.0, %v474
      %v476 = vpop.f32.mrf.mxu0
      %v477 = vadd.f32 0.0, %v476
      %478 = vdwg.mxu0
      %479 = vmatpush.bf16.msra.mxu0 0
      %480 = vmatpush.bf16.msra.mxu0 0
      %481 = vmatpush.bf16.msra.mxu0 0
      %482 = vmatpush.bf16.msra.mxu0 0
      %483 = vmatpush.bf16.msra.mxu0 0
      %484 = vmatpush.bf16.msra.mxu0 0
      %485 = vmatpush.bf16.msra.mxu0 0
      %486 = vmatpush.bf16.msra.mxu0 %v392
      %487 = vmatmul.bf16.gmra.mxu0 %v370
      %v488 = vpop.f32.mrf.mxu0
      %v489 = vadd.f32 0.0, %v488
      %v490 = vpop.f32.mrf.mxu0
      %v491 = vadd.f32 0.0, %v490
      %492 = vmatmul.bf16.gmra.mxu0 %v373
      %v493 = vpop.f32.mrf.mxu0
      %v494 = vadd.f32 0.0, %v493
      %v495 = vpop.f32.mrf.mxu0
      %v496 = vadd.f32 0.0, %v495
      %497 = vdwg.mxu0
      %498 = vmatpush.bf16.msra.mxu0 0
      %499 = vmatpush.bf16.msra.mxu0 0
      %500 = vmatpush.bf16.msra.mxu0 0
      %501 = vmatpush.bf16.msra.mxu0 0
      %502 = vmatpush.bf16.msra.mxu0 0
      %503 = vmatpush.bf16.msra.mxu0 0
      %504 = vmatpush.bf16.msra.mxu0 0
      %505 = vmatpush.bf16.msra.mxu0 %v395
      %506 = vmatmul.bf16.gmra.mxu0 %v370
      %v507 = vpop.f32.mrf.mxu0
      %v508 = vadd.f32 0.0, %v507
      %v509 = vpop.f32.mrf.mxu0
      %v510 = vadd.f32 0.0, %v509
      %511 = vmatmul.bf16.gmra.mxu0 %v373
      %v512 = vpop.f32.mrf.mxu0
      %v513 = vadd.f32 0.0, %v512
      %v514 = vpop.f32.mrf.mxu0
      %v515 = vadd.f32 0.0, %v514
      %516 = vdwg.mxu0
      %517 = vmatpush.bf16.msra.mxu0 0
      %518 = vmatpush.bf16.msra.mxu0 0
      %519 = vmatpush.bf16.msra.mxu0 0
      %520 = vmatpush.bf16.msra.mxu0 0
      %521 = vmatpush.bf16.msra.mxu0 0
      %522 = vmatpush.bf16.msra.mxu0 0
      %523 = vmatpush.bf16.msra.mxu0 0
      %524 = vmatpush.bf16.msra.mxu0 %v398
      %525 = vmatmul.bf16.gmra.mxu0 %v370
      %v526 = vpop.f32.mrf.mxu0
      %v527 = vadd.f32 0.0, %v526
      %v528 = vpop.f32.mrf.mxu0
      %v529 = vadd.f32 0.0, %v528
      %530 = vmatmul.bf16.gmra.mxu0 %v373
      %v531 = vpop.f32.mrf.mxu0
      %v532 = vadd.f32 0.0, %v531
      %v533 = vpop.f32.mrf.mxu0
      %v534 = vadd.f32 0.0, %v533
      %535 = vdwg.mxu0
      %536 = vmatpush.bf16.msra.mxu0 0
      %537 = vmatpush.bf16.msra.mxu0 0
      %538 = vmatpush.bf16.msra.mxu0 0
      %539 = vmatpush.bf16.msra.mxu0 0
      %540 = vmatpush.bf16.msra.mxu0 0
      %541 = vmatpush.bf16.msra.mxu0 0
      %542 = vmatpush.bf16.msra.mxu0 0
      %543 = vmatpush.bf16.msra.mxu0 %v401
      %544 = vmatmul.bf16.gmra.mxu0 %v370
      %v545 = vpop.f32.mrf.mxu0
      %v546 = vadd.f32 0.0, %v545
      %v547 = vpop.f32.mrf.mxu0
      %v548 = vadd.f32 0.0, %v547
      %549 = vmatmul.bf16.gmra.mxu0 %v373
      %v550 = vpop.f32.mrf.mxu0
      %v551 = vadd.f32 0.0, %v550
      %v552 = vpop.f32.mrf.mxu0
      %v553 = vadd.f32 0.0, %v552
      %554 = vdwg.mxu0
      %v559 = vunpack.c.l.b16 %v297
      %v560 = vunpack.c.h.b16 %v297
      %v561 = vunpack.c.l.b16 %v298
      %v562 = vunpack.c.h.b16 %v298
      %v563 = vunpack.c.l.b16 %v299
      %v564 = vunpack.c.h.b16 %v299
      %v565 = vunpack.c.l.b16 %v300
      %v566 = vunpack.c.h.b16 %v300
      %v567 = vpack.c.b16 %v559, %v559
      %v568 = vpack.c.b16 %v560, %v560
      %v569 = vpack.c.b16 %v561, %v561
      %v570 = vpack.c.b16 %v562, %v562
      %v571 = vpack.c.b16 %v563, %v563
      %v572 = vpack.c.b16 %v564, %v564
      %v573 = vpack.c.b16 %v565, %v565
      %v574 = vpack.c.b16 %v566, %v566
      %v576 = vsel %vm368, %v295, 0
      %v579 = vsel %vm368, %v296, 0
      %v582 = vand.u32 %v567, %v378
      %v585 = vand.u32 %v568, %v378
      %v588 = vand.u32 %v569, %v378
      %v591 = vand.u32 %v570, %v378
      %v594 = vand.u32 %v571, %v378
      %v597 = vand.u32 %v572, %v378
      %v600 = vand.u32 %v573, %v378
      %v603 = vand.u32 %v574, %v378
      %605 = vmatpush.bf16.msra.mxu0 0
      %606 = vmatpush.bf16.msra.mxu0 0
      %607 = vmatpush.bf16.msra.mxu0 0
      %608 = vmatpush.bf16.msra.mxu0 0
      %609 = vmatpush.bf16.msra.mxu0 0
      %610 = vmatpush.bf16.msra.mxu0 0
      %611 = vmatpush.bf16.msra.mxu0 0
      %612 = vmatpush.bf16.msra.mxu0 %v582
      %613 = vmatmul.bf16.gmra.mxu0 %v576
      %v614 = vpop.f32.mrf.mxu0
      %v615 = vadd.f32 %v413, %v614
      %v616 = vpop.f32.mrf.mxu0
      %v617 = vadd.f32 %v415, %v616
      %618 = vmatmul.bf16.gmra.mxu0 %v579
      %v619 = vpop.f32.mrf.mxu0
      %v620 = vadd.f32 %v418, %v619
      %v621 = vpop.f32.mrf.mxu0
      %v622 = vadd.f32 %v420, %v621
      %623 = vdwg.mxu0
      %624 = vmatpush.bf16.msra.mxu0 0
      %625 = vmatpush.bf16.msra.mxu0 0
      %626 = vmatpush.bf16.msra.mxu0 0
      %627 = vmatpush.bf16.msra.mxu0 0
      %628 = vmatpush.bf16.msra.mxu0 0
      %629 = vmatpush.bf16.msra.mxu0 0
      %630 = vmatpush.bf16.msra.mxu0 0
      %631 = vmatpush.bf16.msra.mxu0 %v585
      %632 = vmatmul.bf16.gmra.mxu0 %v576
      %v633 = vpop.f32.mrf.mxu0
      %v634 = vadd.f32 %v432, %v633
      %v635 = vpop.f32.mrf.mxu0
      %v636 = vadd.f32 %v434, %v635
      %637 = vmatmul.bf16.gmra.mxu0 %v579
      %v638 = vpop.f32.mrf.mxu0
      %v639 = vadd.f32 %v437, %v638
      %v640 = vpop.f32.mrf.mxu0
      %v641 = vadd.f32 %v439, %v640
      %642 = vdwg.mxu0
      %643 = vmatpush.bf16.msra.mxu0 0
      %644 = vmatpush.bf16.msra.mxu0 0
      %645 = vmatpush.bf16.msra.mxu0 0
      %646 = vmatpush.bf16.msra.mxu0 0
      %647 = vmatpush.bf16.msra.mxu0 0
      %648 = vmatpush.bf16.msra.mxu0 0
      %649 = vmatpush.bf16.msra.mxu0 0
      %650 = vmatpush.bf16.msra.mxu0 %v588
      %651 = vmatmul.bf16.gmra.mxu0 %v576
      %v652 = vpop.f32.mrf.mxu0
      %v653 = vadd.f32 %v451, %v652
      %v654 = vpop.f32.mrf.mxu0
      %v655 = vadd.f32 %v453, %v654
      %656 = vmatmul.bf16.gmra.mxu0 %v579
      %v657 = vpop.f32.mrf.mxu0
      %v658 = vadd.f32 %v456, %v657
      %v659 = vpop.f32.mrf.mxu0
      %v660 = vadd.f32 %v458, %v659
      %661 = vdwg.mxu0
      %662 = vmatpush.bf16.msra.mxu0 0
      %663 = vmatpush.bf16.msra.mxu0 0
      %664 = vmatpush.bf16.msra.mxu0 0
      %665 = vmatpush.bf16.msra.mxu0 0
      %666 = vmatpush.bf16.msra.mxu0 0
      %667 = vmatpush.bf16.msra.mxu0 0
      %668 = vmatpush.bf16.msra.mxu0 0
      %669 = vmatpush.bf16.msra.mxu0 %v591
      %670 = vmatmul.bf16.gmra.mxu0 %v576
      %v671 = vpop.f32.mrf.mxu0
      %v672 = vadd.f32 %v470, %v671
      %v673 = vpop.f32.mrf.mxu0
      %v674 = vadd.f32 %v472, %v673
      %675 = vmatmul.bf16.gmra.mxu0 %v579
      %v676 = vpop.f32.mrf.mxu0
      %v677 = vadd.f32 %v475, %v676
      %v678 = vpop.f32.mrf.mxu0
      %v679 = vadd.f32 %v477, %v678
      %680 = vdwg.mxu0
      %681 = vmatpush.bf16.msra.mxu0 0
      %682 = vmatpush.bf16.msra.mxu0 0
      %683 = vmatpush.bf16.msra.mxu0 0
      %684 = vmatpush.bf16.msra.mxu0 0
      %685 = vmatpush.bf16.msra.mxu0 0
      %686 = vmatpush.bf16.msra.mxu0 0
      %687 = vmatpush.bf16.msra.mxu0 0
      %688 = vmatpush.bf16.msra.mxu0 %v594
      %689 = vmatmul.bf16.gmra.mxu0 %v576
      %v690 = vpop.f32.mrf.mxu0
      %v691 = vadd.f32 %v489, %v690
      %v692 = vpop.f32.mrf.mxu0
      %v693 = vadd.f32 %v491, %v692
      %694 = vmatmul.bf16.gmra.mxu0 %v579
      %v695 = vpop.f32.mrf.mxu0
      %v696 = vadd.f32 %v494, %v695
      %v697 = vpop.f32.mrf.mxu0
      %v698 = vadd.f32 %v496, %v697
      %699 = vdwg.mxu0
      %700 = vmatpush.bf16.msra.mxu0 0
      %701 = vmatpush.bf16.msra.mxu0 0
      %702 = vmatpush.bf16.msra.mxu0 0
      %703 = vmatpush.bf16.msra.mxu0 0
      %704 = vmatpush.bf16.msra.mxu0 0
      %705 = vmatpush.bf16.msra.mxu0 0
      %706 = vmatpush.bf16.msra.mxu0 0
      %707 = vmatpush.bf16.msra.mxu0 %v597
      %708 = vmatmul.bf16.gmra.mxu0 %v576
      %v709 = vpop.f32.mrf.mxu0
      %v710 = vadd.f32 %v508, %v709
      %v711 = vpop.f32.mrf.mxu0
      %v712 = vadd.f32 %v510, %v711
      %713 = vmatmul.bf16.gmra.mxu0 %v579
      %v714 = vpop.f32.mrf.mxu0
      %v715 = vadd.f32 %v513, %v714
      %v716 = vpop.f32.mrf.mxu0
      %v717 = vadd.f32 %v515, %v716
      %718 = vdwg.mxu0
      %719 = vmatpush.bf16.msra.mxu0 0
      %720 = vmatpush.bf16.msra.mxu0 0
      %721 = vmatpush.bf16.msra.mxu0 0
      %722 = vmatpush.bf16.msra.mxu0 0
      %723 = vmatpush.bf16.msra.mxu0 0
      %724 = vmatpush.bf16.msra.mxu0 0
      %725 = vmatpush.bf16.msra.mxu0 0
      %726 = vmatpush.bf16.msra.mxu0 %v600
      %727 = vmatmul.bf16.gmra.mxu0 %v576
      %v728 = vpop.f32.mrf.mxu0
      %v729 = vadd.f32 %v527, %v728
      %v730 = vpop.f32.mrf.mxu0
      %v731 = vadd.f32 %v529, %v730
      %732 = vmatmul.bf16.gmra.mxu0 %v579
      %v733 = vpop.f32.mrf.mxu0
      %v734 = vadd.f32 %v532, %v733
      %v735 = vpop.f32.mrf.mxu0
      %v736 = vadd.f32 %v534, %v735
      %737 = vdwg.mxu0
      %738 = vmatpush.bf16.msra.mxu0 0
      %739 = vmatpush.bf16.msra.mxu0 0
      %740 = vmatpush.bf16.msra.mxu0 0
      %741 = vmatpush.bf16.msra.mxu0 0
      %742 = vmatpush.bf16.msra.mxu0 0
      %743 = vmatpush.bf16.msra.mxu0 0
      %744 = vmatpush.bf16.msra.mxu0 0
      %745 = vmatpush.bf16.msra.mxu0 %v603
      %746 = vmatmul.bf16.gmra.mxu0 %v576
      %v747 = vpop.f32.mrf.mxu0
      %v748 = vadd.f32 %v546, %v747
      %v749 = vpop.f32.mrf.mxu0
      %v750 = vadd.f32 %v548, %v749
      %751 = vmatmul.bf16.gmra.mxu0 %v579
      %v752 = vpop.f32.mrf.mxu0
      %v753 = vadd.f32 %v551, %v752
      %v754 = vpop.f32.mrf.mxu0
      %v755 = vadd.f32 %v553, %v754
      %756 = vdwg.mxu0
      %s757 = scalar_lea.vmem %s1, 32
      %v758 = vld [vmem:[%s757] sm:$0xf]
      %v759 = vld [vmem:[%s757 + $0x4] sm:$0xf]
      %v760 = vld [vmem:[%s757 + $0x8] sm:$0xf]
      %v761 = vld [vmem:[%s757 + $0xc] sm:$0xf]
      %v766 = vunpack.c.l.b16 %v758
      %v767 = vunpack.c.l.b16 %v759
      %v768 = vunpack.c.l.b16 %v760
      %v769 = vunpack.c.l.b16 %v761
      %v770 = vpack.c.b16 %v767, %v766
      %v771 = vpack.c.b16 %v769, %v768
      %v773 = vsel %vm266, %v770, 0
      %v776 = vsel %vm266, %v771, 0
      %778 = vmatpush.bf16.xpose.msra.mxu0 0
      %779 = vmatpush.bf16.xpose.msra.mxu0 0
      %780 = vmatpush.bf16.xpose.msra.mxu0 0
      %781 = vmatpush.bf16.xpose.msra.mxu0 0
      %782 = vmatpush.bf16.xpose.msra.mxu0 0
      %783 = vmatpush.bf16.xpose.msra.mxu0 0
      %784 = vmatpush.bf16.xpose.msra.mxu0 0
      %785 = vmatpush.bf16.xpose.msra.mxu0 %v274
      %786 = vmatmul.bf16.gmra.mxu0 %v773
      %v787 = vpop.f32.mrf.mxu0
      %v788 = vadd.f32 0.0, %v787
      %v789 = vpop.f32.mrf.mxu0
      %v790 = vadd.f32 0.0, %v789
      %791 = vmatmul.bf16.gmra.mxu0 %v776
      %v792 = vpop.f32.mrf.mxu0
      %v793 = vadd.f32 0.0, %v792
      %v794 = vpop.f32.mrf.mxu0
      %v795 = vadd.f32 0.0, %v794
      %796 = vdwg.mxu0
      %v797 = vpack.c.bf16 %v790, %v788
      %v798 = vpack.c.bf16 %v795, %v793
      %s799 = scalar_lea.vmem %s3, 64
      %v800 = vld [vmem:[%s799] sm:$0x77]
      %v801 = vld [vmem:[%s799 + $0x8] sm:$0x77]
      %v802 = vld [vmem:[%s799 + $0x10] sm:$0x77]
      %v803 = vld [vmem:[%s799 + $0x18] sm:$0x77]
      %v808 = vunpack.c.l.b16 %v800
      %v809 = vunpack.c.h.b16 %v800
      %v810 = vunpack.c.l.b16 %v801
      %v811 = vunpack.c.h.b16 %v801
      %v812 = vunpack.c.l.b16 %v802
      %v813 = vunpack.c.h.b16 %v802
      %v814 = vunpack.c.l.b16 %v803
      %v815 = vunpack.c.h.b16 %v803
      %v816 = vpack.c.b16 %v808, %v808
      %v817 = vpack.c.b16 %v809, %v809
      %v818 = vpack.c.b16 %v810, %v810
      %v819 = vpack.c.b16 %v811, %v811
      %v820 = vpack.c.b16 %v812, %v812
      %v821 = vpack.c.b16 %v813, %v813
      %v822 = vpack.c.b16 %v814, %v814
      %v823 = vpack.c.b16 %v815, %v815
      %v825 = vsel %vm368, %v797, 0
      %v828 = vsel %vm368, %v798, 0
      %v831 = vand.u32 %v816, %v378
      %v834 = vand.u32 %v817, %v378
      %v837 = vand.u32 %v818, %v378
      %v840 = vand.u32 %v819, %v378
      %v843 = vand.u32 %v820, %v378
      %v846 = vand.u32 %v821, %v378
      %v849 = vand.u32 %v822, %v378
      %v852 = vand.u32 %v823, %v378
      %854 = vmatpush.bf16.msra.mxu0 0
      %855 = vmatpush.bf16.msra.mxu0 0
      %856 = vmatpush.bf16.msra.mxu0 0
      %857 = vmatpush.bf16.msra.mxu0 0
      %858 = vmatpush.bf16.msra.mxu0 0
      %859 = vmatpush.bf16.msra.mxu0 0
      %860 = vmatpush.bf16.msra.mxu0 0
      %861 = vmatpush.bf16.msra.mxu0 %v831
      %862 = vmatmul.bf16.gmra.mxu0 %v825
      %v863 = vpop.f32.mrf.mxu0
      %v864 = vadd.f32 0.0, %v863
      %v865 = vpop.f32.mrf.mxu0
      %v866 = vadd.f32 0.0, %v865
      %867 = vmatmul.bf16.gmra.mxu0 %v828
      %v868 = vpop.f32.mrf.mxu0
      %v869 = vadd.f32 0.0, %v868
      %v870 = vpop.f32.mrf.mxu0
      %v871 = vadd.f32 0.0, %v870
      %872 = vdwg.mxu0
      %873 = vmatpush.bf16.msra.mxu0 0
      %874 = vmatpush.bf16.msra.mxu0 0
      %875 = vmatpush.bf16.msra.mxu0 0
      %876 = vmatpush.bf16.msra.mxu0 0
      %877 = vmatpush.bf16.msra.mxu0 0
      %878 = vmatpush.bf16.msra.mxu0 0
      %879 = vmatpush.bf16.msra.mxu0 0
      %880 = vmatpush.bf16.msra.mxu0 %v834
      %881 = vmatmul.bf16.gmra.mxu0 %v825
      %v882 = vpop.f32.mrf.mxu0
      %v883 = vadd.f32 0.0, %v882
      %v884 = vpop.f32.mrf.mxu0
      %v885 = vadd.f32 0.0, %v884
      %886 = vmatmul.bf16.gmra.mxu0 %v828
      %v887 = vpop.f32.mrf.mxu0
      %v888 = vadd.f32 0.0, %v887
      %v889 = vpop.f32.mrf.mxu0
      %v890 = vadd.f32 0.0, %v889
      %891 = vdwg.mxu0
      %892 = vmatpush.bf16.msra.mxu0 0
      %893 = vmatpush.bf16.msra.mxu0 0
      %894 = vmatpush.bf16.msra.mxu0 0
      %895 = vmatpush.bf16.msra.mxu0 0
      %896 = vmatpush.bf16.msra.mxu0 0
      %897 = vmatpush.bf16.msra.mxu0 0
      %898 = vmatpush.bf16.msra.mxu0 0
      %899 = vmatpush.bf16.msra.mxu0 %v837
      %900 = vmatmul.bf16.gmra.mxu0 %v825
      %v901 = vpop.f32.mrf.mxu0
      %v902 = vadd.f32 0.0, %v901
      %v903 = vpop.f32.mrf.mxu0
      %v904 = vadd.f32 0.0, %v903
      %905 = vmatmul.bf16.gmra.mxu0 %v828
      %v906 = vpop.f32.mrf.mxu0
      %v907 = vadd.f32 0.0, %v906
      %v908 = vpop.f32.mrf.mxu0
      %v909 = vadd.f32 0.0, %v908
      %910 = vdwg.mxu0
      %911 = vmatpush.bf16.msra.mxu0 0
      %912 = vmatpush.bf16.msra.mxu0 0
      %913 = vmatpush.bf16.msra.mxu0 0
      %914 = vmatpush.bf16.msra.mxu0 0
      %915 = vmatpush.bf16.msra.mxu0 0
      %916 = vmatpush.bf16.msra.mxu0 0
      %917 = vmatpush.bf16.msra.mxu0 0
      %918 = vmatpush.bf16.msra.mxu0 %v840
      %919 = vmatmul.bf16.gmra.mxu0 %v825
      %v920 = vpop.f32.mrf.mxu0
      %v921 = vadd.f32 0.0, %v920
      %v922 = vpop.f32.mrf.mxu0
      %v923 = vadd.f32 0.0, %v922
      %924 = vmatmul.bf16.gmra.mxu0 %v828
      %v925 = vpop.f32.mrf.mxu0
      %v926 = vadd.f32 0.0, %v925
      %v927 = vpop.f32.mrf.mxu0
      %v928 = vadd.f32 0.0, %v927
      %929 = vdwg.mxu0
      %930 = vmatpush.bf16.msra.mxu0 0
      %931 = vmatpush.bf16.msra.mxu0 0
      %932 = vmatpush.bf16.msra.mxu0 0
      %933 = vmatpush.bf16.msra.mxu0 0
      %934 = vmatpush.bf16.msra.mxu0 0
      %935 = vmatpush.bf16.msra.mxu0 0
      %936 = vmatpush.bf16.msra.mxu0 0
      %937 = vmatpush.bf16.msra.mxu0 %v843
      %938 = vmatmul.bf16.gmra.mxu0 %v825
      %v939 = vpop.f32.mrf.mxu0
      %v940 = vadd.f32 0.0, %v939
      %v941 = vpop.f32.mrf.mxu0
      %v942 = vadd.f32 0.0, %v941
      %943 = vmatmul.bf16.gmra.mxu0 %v828
      %v944 = vpop.f32.mrf.mxu0
      %v945 = vadd.f32 0.0, %v944
      %v946 = vpop.f32.mrf.mxu0
      %v947 = vadd.f32 0.0, %v946
      %948 = vdwg.mxu0
      %949 = vmatpush.bf16.msra.mxu0 0
      %950 = vmatpush.bf16.msra.mxu0 0
      %951 = vmatpush.bf16.msra.mxu0 0
      %952 = vmatpush.bf16.msra.mxu0 0
      %953 = vmatpush.bf16.msra.mxu0 0
      %954 = vmatpush.bf16.msra.mxu0 0
      %955 = vmatpush.bf16.msra.mxu0 0
      %956 = vmatpush.bf16.msra.mxu0 %v846
      %957 = vmatmul.bf16.gmra.mxu0 %v825
      %v958 = vpop.f32.mrf.mxu0
      %v959 = vadd.f32 0.0, %v958
      %v960 = vpop.f32.mrf.mxu0
      %v961 = vadd.f32 0.0, %v960
      %962 = vmatmul.bf16.gmra.mxu0 %v828
      %v963 = vpop.f32.mrf.mxu0
      %v964 = vadd.f32 0.0, %v963
      %v965 = vpop.f32.mrf.mxu0
      %v966 = vadd.f32 0.0, %v965
      %967 = vdwg.mxu0
      %968 = vmatpush.bf16.msra.mxu0 0
      %969 = vmatpush.bf16.msra.mxu0 0
      %970 = vmatpush.bf16.msra.mxu0 0
      %971 = vmatpush.bf16.msra.mxu0 0
      %972 = vmatpush.bf16.msra.mxu0 0
      %973 = vmatpush.bf16.msra.mxu0 0
      %974 = vmatpush.bf16.msra.mxu0 0
      %975 = vmatpush.bf16.msra.mxu0 %v849
      %976 = vmatmul.bf16.gmra.mxu0 %v825
      %v977 = vpop.f32.mrf.mxu0
      %v978 = vadd.f32 0.0, %v977
      %v979 = vpop.f32.mrf.mxu0
      %v980 = vadd.f32 0.0, %v979
      %981 = vmatmul.bf16.gmra.mxu0 %v828
      %v982 = vpop.f32.mrf.mxu0
      %v983 = vadd.f32 0.0, %v982
      %v984 = vpop.f32.mrf.mxu0
      %v985 = vadd.f32 0.0, %v984
      %986 = vdwg.mxu0
      %987 = vmatpush.bf16.msra.mxu0 0
      %988 = vmatpush.bf16.msra.mxu0 0
      %989 = vmatpush.bf16.msra.mxu0 0
      %990 = vmatpush.bf16.msra.mxu0 0
      %991 = vmatpush.bf16.msra.mxu0 0
      %992 = vmatpush.bf16.msra.mxu0 0
      %993 = vmatpush.bf16.msra.mxu0 0
      %994 = vmatpush.bf16.msra.mxu0 %v852
      %995 = vmatmul.bf16.gmra.mxu0 %v825
      %v996 = vpop.f32.mrf.mxu0
      %v997 = vadd.f32 0.0, %v996
      %v998 = vpop.f32.mrf.mxu0
      %v999 = vadd.f32 0.0, %v998
      %1000 = vmatmul.bf16.gmra.mxu0 %v828
      %v1001 = vpop.f32.mrf.mxu0
      %v1002 = vadd.f32 0.0, %v1001
      %v1003 = vpop.f32.mrf.mxu0
      %v1004 = vadd.f32 0.0, %v1003
      %1005 = vdwg.mxu0
      %v1006 = vadd.f32 %v615, %v864
      %v1007 = vadd.f32 %v634, %v883
      %v1008 = vadd.f32 %v653, %v902
      %v1009 = vadd.f32 %v672, %v921
      %v1010 = vadd.f32 %v691, %v940
      %v1011 = vadd.f32 %v710, %v959
      %v1012 = vadd.f32 %v729, %v978
      %v1013 = vadd.f32 %v748, %v997
      %v1014 = vadd.f32 %v617, %v866
      %v1015 = vadd.f32 %v636, %v885
      %v1016 = vadd.f32 %v655, %v904
      %v1017 = vadd.f32 %v674, %v923
      %v1018 = vadd.f32 %v693, %v942
      %v1019 = vadd.f32 %v712, %v961
      %v1020 = vadd.f32 %v731, %v980
      %v1021 = vadd.f32 %v750, %v999
      %v1022 = vadd.f32 %v620, %v869
      %v1023 = vadd.f32 %v639, %v888
      %v1024 = vadd.f32 %v658, %v907
      %v1025 = vadd.f32 %v677, %v926
      %v1026 = vadd.f32 %v696, %v945
      %v1027 = vadd.f32 %v715, %v964
      %v1028 = vadd.f32 %v734, %v983
      %v1029 = vadd.f32 %v753, %v1002
      %v1030 = vadd.f32 %v622, %v871
      %v1031 = vadd.f32 %v641, %v890
      %v1032 = vadd.f32 %v660, %v909
      %v1033 = vadd.f32 %v679, %v928
      %v1034 = vadd.f32 %v698, %v947
      %v1035 = vadd.f32 %v717, %v966
      %v1036 = vadd.f32 %v736, %v985
      %v1037 = vadd.f32 %v755, %v1004
      %s1038 = scalar_lea.vmem %s1, 48
      %v1039 = vld [vmem:[%s1038] sm:$0xf]
      %v1040 = vld [vmem:[%s1038 + $0x4] sm:$0xf]
      %v1041 = vld [vmem:[%s1038 + $0x8] sm:$0xf]
      %v1042 = vld [vmem:[%s1038 + $0xc] sm:$0xf]
      %v1047 = vunpack.c.l.b16 %v1039
      %v1048 = vunpack.c.l.b16 %v1040
      %v1049 = vunpack.c.l.b16 %v1041
      %v1050 = vunpack.c.l.b16 %v1042
      %v1051 = vpack.c.b16 %v1048, %v1047
      %v1052 = vpack.c.b16 %v1050, %v1049
      %v1054 = vsel %vm266, %v1051, 0
      %v1057 = vsel %vm266, %v1052, 0
      %1059 = vmatpush.bf16.xpose.msra.mxu0 0
      %1060 = vmatpush.bf16.xpose.msra.mxu0 0
      %1061 = vmatpush.bf16.xpose.msra.mxu0 0
      %1062 = vmatpush.bf16.xpose.msra.mxu0 0
      %1063 = vmatpush.bf16.xpose.msra.mxu0 0
      %1064 = vmatpush.bf16.xpose.msra.mxu0 0
      %1065 = vmatpush.bf16.xpose.msra.mxu0 0
      %1066 = vmatpush.bf16.xpose.msra.mxu0 %v274
      %1067 = vmatmul.bf16.gmra.mxu0 %v1054
      %v1068 = vpop.f32.mrf.mxu0
      %v1069 = vadd.f32 0.0, %v1068
      %v1070 = vpop.f32.mrf.mxu0
      %v1071 = vadd.f32 0.0, %v1070
      %1072 = vmatmul.bf16.gmra.mxu0 %v1057
      %v1073 = vpop.f32.mrf.mxu0
      %v1074 = vadd.f32 0.0, %v1073
      %v1075 = vpop.f32.mrf.mxu0
      %v1076 = vadd.f32 0.0, %v1075
      %1077 = vdwg.mxu0
      %v1078 = vpack.c.bf16 %v1071, %v1069
      %v1079 = vpack.c.bf16 %v1076, %v1074
      %s1080 = scalar_lea.vmem %s3, 96
      %v1081 = vld [vmem:[%s1080] sm:$0x77]
      %v1082 = vld [vmem:[%s1080 + $0x8] sm:$0x77]
      %v1083 = vld [vmem:[%s1080 + $0x10] sm:$0x77]
      %v1084 = vld [vmem:[%s1080 + $0x18] sm:$0x77]
      %v1089 = vunpack.c.l.b16 %v1081
      %v1090 = vunpack.c.h.b16 %v1081
      %v1091 = vunpack.c.l.b16 %v1082
      %v1092 = vunpack.c.h.b16 %v1082
      %v1093 = vunpack.c.l.b16 %v1083
      %v1094 = vunpack.c.h.b16 %v1083
      %v1095 = vunpack.c.l.b16 %v1084
      %v1096 = vunpack.c.h.b16 %v1084
      %v1097 = vpack.c.b16 %v1089, %v1089
      %v1098 = vpack.c.b16 %v1090, %v1090
      %v1099 = vpack.c.b16 %v1091, %v1091
      %v1100 = vpack.c.b16 %v1092, %v1092
      %v1101 = vpack.c.b16 %v1093, %v1093
      %v1102 = vpack.c.b16 %v1094, %v1094
      %v1103 = vpack.c.b16 %v1095, %v1095
      %v1104 = vpack.c.b16 %v1096, %v1096
      %v1106 = vsel %vm368, %v1078, 0
      %v1109 = vsel %vm368, %v1079, 0
      %v1112 = vand.u32 %v1097, %v378
      %v1115 = vand.u32 %v1098, %v378
      %v1118 = vand.u32 %v1099, %v378
      %v1121 = vand.u32 %v1100, %v378
      %v1124 = vand.u32 %v1101, %v378
      %v1127 = vand.u32 %v1102, %v378
      %v1130 = vand.u32 %v1103, %v378
      %v1133 = vand.u32 %v1104, %v378
      %1135 = vmatpush.bf16.msra.mxu0 0
      %1136 = vmatpush.bf16.msra.mxu0 0
      %1137 = vmatpush.bf16.msra.mxu0 0
      %1138 = vmatpush.bf16.msra.mxu0 0
      %1139 = vmatpush.bf16.msra.mxu0 0
      %1140 = vmatpush.bf16.msra.mxu0 0
      %1141 = vmatpush.bf16.msra.mxu0 0
      %1142 = vmatpush.bf16.msra.mxu0 %v1112
      %1143 = vmatmul.bf16.gmra.mxu0 %v1106
      %v1144 = vpop.f32.mrf.mxu0
      %v1145 = vadd.f32 0.0, %v1144
      %v1146 = vpop.f32.mrf.mxu0
      %v1147 = vadd.f32 0.0, %v1146
      %1148 = vmatmul.bf16.gmra.mxu0 %v1109
      %v1149 = vpop.f32.mrf.mxu0
      %v1150 = vadd.f32 0.0, %v1149
      %v1151 = vpop.f32.mrf.mxu0
      %v1152 = vadd.f32 0.0, %v1151
      %1153 = vdwg.mxu0
      %1154 = vmatpush.bf16.msra.mxu0 0
      %1155 = vmatpush.bf16.msra.mxu0 0
      %1156 = vmatpush.bf16.msra.mxu0 0
      %1157 = vmatpush.bf16.msra.mxu0 0
      %1158 = vmatpush.bf16.msra.mxu0 0
      %1159 = vmatpush.bf16.msra.mxu0 0
      %1160 = vmatpush.bf16.msra.mxu0 0
      %1161 = vmatpush.bf16.msra.mxu0 %v1115
      %1162 = vmatmul.bf16.gmra.mxu0 %v1106
      %v1163 = vpop.f32.mrf.mxu0
      %v1164 = vadd.f32 0.0, %v1163
      %v1165 = vpop.f32.mrf.mxu0
      %v1166 = vadd.f32 0.0, %v1165
      %1167 = vmatmul.bf16.gmra.mxu0 %v1109
      %v1168 = vpop.f32.mrf.mxu0
      %v1169 = vadd.f32 0.0, %v1168
      %v1170 = vpop.f32.mrf.mxu0
      %v1171 = vadd.f32 0.0, %v1170
      %1172 = vdwg.mxu0
      %1173 = vmatpush.bf16.msra.mxu0 0
      %1174 = vmatpush.bf16.msra.mxu0 0
      %1175 = vmatpush.bf16.msra.mxu0 0
      %1176 = vmatpush.bf16.msra.mxu0 0
      %1177 = vmatpush.bf16.msra.mxu0 0
      %1178 = vmatpush.bf16.msra.mxu0 0
      %1179 = vmatpush.bf16.msra.mxu0 0
      %1180 = vmatpush.bf16.msra.mxu0 %v1118
      %1181 = vmatmul.bf16.gmra.mxu0 %v1106
      %v1182 = vpop.f32.mrf.mxu0
      %v1183 = vadd.f32 0.0, %v1182
      %v1184 = vpop.f32.mrf.mxu0
      %v1185 = vadd.f32 0.0, %v1184
      %1186 = vmatmul.bf16.gmra.mxu0 %v1109
      %v1187 = vpop.f32.mrf.mxu0
      %v1188 = vadd.f32 0.0, %v1187
      %v1189 = vpop.f32.mrf.mxu0
      %v1190 = vadd.f32 0.0, %v1189
      %1191 = vdwg.mxu0
      %1192 = vmatpush.bf16.msra.mxu0 0
      %1193 = vmatpush.bf16.msra.mxu0 0
      %1194 = vmatpush.bf16.msra.mxu0 0
      %1195 = vmatpush.bf16.msra.mxu0 0
      %1196 = vmatpush.bf16.msra.mxu0 0
      %1197 = vmatpush.bf16.msra.mxu0 0
      %1198 = vmatpush.bf16.msra.mxu0 0
      %1199 = vmatpush.bf16.msra.mxu0 %v1121
      %1200 = vmatmul.bf16.gmra.mxu0 %v1106
      %v1201 = vpop.f32.mrf.mxu0
      %v1202 = vadd.f32 0.0, %v1201
      %v1203 = vpop.f32.mrf.mxu0
      %v1204 = vadd.f32 0.0, %v1203
      %1205 = vmatmul.bf16.gmra.mxu0 %v1109
      %v1206 = vpop.f32.mrf.mxu0
      %v1207 = vadd.f32 0.0, %v1206
      %v1208 = vpop.f32.mrf.mxu0
      %v1209 = vadd.f32 0.0, %v1208
      %1210 = vdwg.mxu0
      %1211 = vmatpush.bf16.msra.mxu0 0
      %1212 = vmatpush.bf16.msra.mxu0 0
      %1213 = vmatpush.bf16.msra.mxu0 0
      %1214 = vmatpush.bf16.msra.mxu0 0
      %1215 = vmatpush.bf16.msra.mxu0 0
      %1216 = vmatpush.bf16.msra.mxu0 0
      %1217 = vmatpush.bf16.msra.mxu0 0
      %1218 = vmatpush.bf16.msra.mxu0 %v1124
      %1219 = vmatmul.bf16.gmra.mxu0 %v1106
      %v1220 = vpop.f32.mrf.mxu0
      %v1221 = vadd.f32 0.0, %v1220
      %v1222 = vpop.f32.mrf.mxu0
      %v1223 = vadd.f32 0.0, %v1222
      %1224 = vmatmul.bf16.gmra.mxu0 %v1109
      %v1225 = vpop.f32.mrf.mxu0
      %v1226 = vadd.f32 0.0, %v1225
      %v1227 = vpop.f32.mrf.mxu0
      %v1228 = vadd.f32 0.0, %v1227
      %1229 = vdwg.mxu0
      %1230 = vmatpush.bf16.msra.mxu0 0
      %1231 = vmatpush.bf16.msra.mxu0 0
      %1232 = vmatpush.bf16.msra.mxu0 0
      %1233 = vmatpush.bf16.msra.mxu0 0
      %1234 = vmatpush.bf16.msra.mxu0 0
      %1235 = vmatpush.bf16.msra.mxu0 0
      %1236 = vmatpush.bf16.msra.mxu0 0
      %1237 = vmatpush.bf16.msra.mxu0 %v1127
      %1238 = vmatmul.bf16.gmra.mxu0 %v1106
      %v1239 = vpop.f32.mrf.mxu0
      %v1240 = vadd.f32 0.0, %v1239
      %v1241 = vpop.f32.mrf.mxu0
      %v1242 = vadd.f32 0.0, %v1241
      %1243 = vmatmul.bf16.gmra.mxu0 %v1109
      %v1244 = vpop.f32.mrf.mxu0
      %v1245 = vadd.f32 0.0, %v1244
      %v1246 = vpop.f32.mrf.mxu0
      %v1247 = vadd.f32 0.0, %v1246
      %1248 = vdwg.mxu0
      %1249 = vmatpush.bf16.msra.mxu0 0
      %1250 = vmatpush.bf16.msra.mxu0 0
      %1251 = vmatpush.bf16.msra.mxu0 0
      %1252 = vmatpush.bf16.msra.mxu0 0
      %1253 = vmatpush.bf16.msra.mxu0 0
      %1254 = vmatpush.bf16.msra.mxu0 0
      %1255 = vmatpush.bf16.msra.mxu0 0
      %1256 = vmatpush.bf16.msra.mxu0 %v1130
      %1257 = vmatmul.bf16.gmra.mxu0 %v1106
      %v1258 = vpop.f32.mrf.mxu0
      %v1259 = vadd.f32 0.0, %v1258
      %v1260 = vpop.f32.mrf.mxu0
      %v1261 = vadd.f32 0.0, %v1260
      %1262 = vmatmul.bf16.gmra.mxu0 %v1109
      %v1263 = vpop.f32.mrf.mxu0
      %v1264 = vadd.f32 0.0, %v1263
      %v1265 = vpop.f32.mrf.mxu0
      %v1266 = vadd.f32 0.0, %v1265
      %1267 = vdwg.mxu0
      %1268 = vmatpush.bf16.msra.mxu0 0
      %1269 = vmatpush.bf16.msra.mxu0 0
      %1270 = vmatpush.bf16.msra.mxu0 0
      %1271 = vmatpush.bf16.msra.mxu0 0
      %1272 = vmatpush.bf16.msra.mxu0 0
      %1273 = vmatpush.bf16.msra.mxu0 0
      %1274 = vmatpush.bf16.msra.mxu0 0
      %1275 = vmatpush.bf16.msra.mxu0 %v1133
      %1276 = vmatmul.bf16.gmra.mxu0 %v1106
      %v1277 = vpop.f32.mrf.mxu0
      %v1278 = vadd.f32 0.0, %v1277
      %v1279 = vpop.f32.mrf.mxu0
      %v1280 = vadd.f32 0.0, %v1279
      %1281 = vmatmul.bf16.gmra.mxu0 %v1109
      %v1282 = vpop.f32.mrf.mxu0
      %v1283 = vadd.f32 0.0, %v1282
      %v1284 = vpop.f32.mrf.mxu0
      %v1285 = vadd.f32 0.0, %v1284
      %1286 = vdwg.mxu0
      %v1287 = vadd.f32 %v1006, %v1145
      %v1288 = vadd.f32 %v1007, %v1164
      %v1289 = vadd.f32 %v1008, %v1183
      %v1290 = vadd.f32 %v1009, %v1202
      %v1291 = vadd.f32 %v1010, %v1221
      %v1292 = vadd.f32 %v1011, %v1240
      %v1293 = vadd.f32 %v1012, %v1259
      %v1294 = vadd.f32 %v1013, %v1278
      %v1295 = vadd.f32 %v1014, %v1147
      %v1296 = vadd.f32 %v1015, %v1166
      %v1297 = vadd.f32 %v1016, %v1185
      %v1298 = vadd.f32 %v1017, %v1204
      %v1299 = vadd.f32 %v1018, %v1223
      %v1300 = vadd.f32 %v1019, %v1242
      %v1301 = vadd.f32 %v1020, %v1261
      %v1302 = vadd.f32 %v1021, %v1280
      %v1303 = vadd.f32 %v1022, %v1150
      %v1304 = vadd.f32 %v1023, %v1169
      %v1305 = vadd.f32 %v1024, %v1188
      %v1306 = vadd.f32 %v1025, %v1207
      %v1307 = vadd.f32 %v1026, %v1226
      %v1308 = vadd.f32 %v1027, %v1245
      %v1309 = vadd.f32 %v1028, %v1264
      %v1310 = vadd.f32 %v1029, %v1283
      %v1311 = vadd.f32 %v1030, %v1152
      %v1312 = vadd.f32 %v1031, %v1171
      %v1313 = vadd.f32 %v1032, %v1190
      %v1314 = vadd.f32 %v1033, %v1209
      %v1315 = vadd.f32 %v1034, %v1228
      %v1316 = vadd.f32 %v1035, %v1247
      %v1317 = vadd.f32 %v1036, %v1266
      %v1318 = vadd.f32 %v1037, %v1285
      %s1319 = scalar_lea.vmem %s1, 64
      %v1320 = vld [vmem:[%s1319] sm:$0xf]
      %v1321 = vld [vmem:[%s1319 + $0x4] sm:$0xf]
      %v1322 = vld [vmem:[%s1319 + $0x8] sm:$0xf]
      %v1323 = vld [vmem:[%s1319 + $0xc] sm:$0xf]
      %v1328 = vunpack.c.l.b16 %v1320
      %v1329 = vunpack.c.l.b16 %v1321
      %v1330 = vunpack.c.l.b16 %v1322
      %v1331 = vunpack.c.l.b16 %v1323
      %v1332 = vpack.c.b16 %v1329, %v1328
      %v1333 = vpack.c.b16 %v1331, %v1330
      %v1335 = vsel %vm266, %v1332, 0
      %v1338 = vsel %vm266, %v1333, 0
      %1340 = vmatpush.bf16.xpose.msra.mxu0 0
      %1341 = vmatpush.bf16.xpose.msra.mxu0 0
      %1342 = vmatpush.bf16.xpose.msra.mxu0 0
      %1343 = vmatpush.bf16.xpose.msra.mxu0 0
      %1344 = vmatpush.bf16.xpose.msra.mxu0 0
      %1345 = vmatpush.bf16.xpose.msra.mxu0 0
      %1346 = vmatpush.bf16.xpose.msra.mxu0 0
      %1347 = vmatpush.bf16.xpose.msra.mxu0 %v274
      %1348 = vmatmul.bf16.gmra.mxu0 %v1335
      %v1349 = vpop.f32.mrf.mxu0
      %v1350 = vadd.f32 0.0, %v1349
      %v1351 = vpop.f32.mrf.mxu0
      %v1352 = vadd.f32 0.0, %v1351
      %1353 = vmatmul.bf16.gmra.mxu0 %v1338
      %v1354 = vpop.f32.mrf.mxu0
      %v1355 = vadd.f32 0.0, %v1354
      %v1356 = vpop.f32.mrf.mxu0
      %v1357 = vadd.f32 0.0, %v1356
      %1358 = vdwg.mxu0
      %v1359 = vpack.c.bf16 %v1352, %v1350
      %v1360 = vpack.c.bf16 %v1357, %v1355
      %s1361 = scalar_lea.vmem %s3, 128
      %v1362 = vld [vmem:[%s1361] sm:$0x77]
      %v1363 = vld [vmem:[%s1361 + $0x8] sm:$0x77]
      %v1364 = vld [vmem:[%s1361 + $0x10] sm:$0x77]
      %v1365 = vld [vmem:[%s1361 + $0x18] sm:$0x77]
      %v1370 = vunpack.c.l.b16 %v1362
      %v1371 = vunpack.c.h.b16 %v1362
      %v1372 = vunpack.c.l.b16 %v1363
      %v1373 = vunpack.c.h.b16 %v1363
      %v1374 = vunpack.c.l.b16 %v1364
      %v1375 = vunpack.c.h.b16 %v1364
      %v1376 = vunpack.c.l.b16 %v1365
      %v1377 = vunpack.c.h.b16 %v1365
      %v1378 = vpack.c.b16 %v1370, %v1370
      %v1379 = vpack.c.b16 %v1371, %v1371
      %v1380 = vpack.c.b16 %v1372, %v1372
      %v1381 = vpack.c.b16 %v1373, %v1373
      %v1382 = vpack.c.b16 %v1374, %v1374
      %v1383 = vpack.c.b16 %v1375, %v1375
      %v1384 = vpack.c.b16 %v1376, %v1376
      %v1385 = vpack.c.b16 %v1377, %v1377
      %v1387 = vsel %vm368, %v1359, 0
      %v1390 = vsel %vm368, %v1360, 0
      %v1393 = vand.u32 %v1378, %v378
      %v1396 = vand.u32 %v1379, %v378
      %v1399 = vand.u32 %v1380, %v378
      %v1402 = vand.u32 %v1381, %v378
      %v1405 = vand.u32 %v1382, %v378
      %v1408 = vand.u32 %v1383, %v378
      %v1411 = vand.u32 %v1384, %v378
      %v1414 = vand.u32 %v1385, %v378
      %1416 = vmatpush.bf16.msra.mxu0 0
      %1417 = vmatpush.bf16.msra.mxu0 0
      %1418 = vmatpush.bf16.msra.mxu0 0
      %1419 = vmatpush.bf16.msra.mxu0 0
      %1420 = vmatpush.bf16.msra.mxu0 0
      %1421 = vmatpush.bf16.msra.mxu0 0
      %1422 = vmatpush.bf16.msra.mxu0 0
      %1423 = vmatpush.bf16.msra.mxu0 %v1393
      %1424 = vmatmul.bf16.gmra.mxu0 %v1387
      %v1425 = vpop.f32.mrf.mxu0
      %v1426 = vadd.f32 0.0, %v1425
      %v1427 = vpop.f32.mrf.mxu0
      %v1428 = vadd.f32 0.0, %v1427
      %1429 = vmatmul.bf16.gmra.mxu0 %v1390
      %v1430 = vpop.f32.mrf.mxu0
      %v1431 = vadd.f32 0.0, %v1430
      %v1432 = vpop.f32.mrf.mxu0
      %v1433 = vadd.f32 0.0, %v1432
      %1434 = vdwg.mxu0
      %1435 = vmatpush.bf16.msra.mxu0 0
      %1436 = vmatpush.bf16.msra.mxu0 0
      %1437 = vmatpush.bf16.msra.mxu0 0
      %1438 = vmatpush.bf16.msra.mxu0 0
      %1439 = vmatpush.bf16.msra.mxu0 0
      %1440 = vmatpush.bf16.msra.mxu0 0
      %1441 = vmatpush.bf16.msra.mxu0 0
      %1442 = vmatpush.bf16.msra.mxu0 %v1396
      %1443 = vmatmul.bf16.gmra.mxu0 %v1387
      %v1444 = vpop.f32.mrf.mxu0
      %v1445 = vadd.f32 0.0, %v1444
      %v1446 = vpop.f32.mrf.mxu0
      %v1447 = vadd.f32 0.0, %v1446
      %1448 = vmatmul.bf16.gmra.mxu0 %v1390
      %v1449 = vpop.f32.mrf.mxu0
      %v1450 = vadd.f32 0.0, %v1449
      %v1451 = vpop.f32.mrf.mxu0
      %v1452 = vadd.f32 0.0, %v1451
      %1453 = vdwg.mxu0
      %1454 = vmatpush.bf16.msra.mxu0 0
      %1455 = vmatpush.bf16.msra.mxu0 0
      %1456 = vmatpush.bf16.msra.mxu0 0
      %1457 = vmatpush.bf16.msra.mxu0 0
      %1458 = vmatpush.bf16.msra.mxu0 0
      %1459 = vmatpush.bf16.msra.mxu0 0
      %1460 = vmatpush.bf16.msra.mxu0 0
      %1461 = vmatpush.bf16.msra.mxu0 %v1399
      %1462 = vmatmul.bf16.gmra.mxu0 %v1387
      %v1463 = vpop.f32.mrf.mxu0
      %v1464 = vadd.f32 0.0, %v1463
      %v1465 = vpop.f32.mrf.mxu0
      %v1466 = vadd.f32 0.0, %v1465
      %1467 = vmatmul.bf16.gmra.mxu0 %v1390
      %v1468 = vpop.f32.mrf.mxu0
      %v1469 = vadd.f32 0.0, %v1468
      %v1470 = vpop.f32.mrf.mxu0
      %v1471 = vadd.f32 0.0, %v1470
      %1472 = vdwg.mxu0
      %1473 = vmatpush.bf16.msra.mxu0 0
      %1474 = vmatpush.bf16.msra.mxu0 0
      %1475 = vmatpush.bf16.msra.mxu0 0
      %1476 = vmatpush.bf16.msra.mxu0 0
      %1477 = vmatpush.bf16.msra.mxu0 0
      %1478 = vmatpush.bf16.msra.mxu0 0
      %1479 = vmatpush.bf16.msra.mxu0 0
      %1480 = vmatpush.bf16.msra.mxu0 %v1402
      %1481 = vmatmul.bf16.gmra.mxu0 %v1387
      %v1482 = vpop.f32.mrf.mxu0
      %v1483 = vadd.f32 0.0, %v1482
      %v1484 = vpop.f32.mrf.mxu0
      %v1485 = vadd.f32 0.0, %v1484
      %1486 = vmatmul.bf16.gmra.mxu0 %v1390
      %v1487 = vpop.f32.mrf.mxu0
      %v1488 = vadd.f32 0.0, %v1487
      %v1489 = vpop.f32.mrf.mxu0
      %v1490 = vadd.f32 0.0, %v1489
      %1491 = vdwg.mxu0
      %1492 = vmatpush.bf16.msra.mxu0 0
      %1493 = vmatpush.bf16.msra.mxu0 0
      %1494 = vmatpush.bf16.msra.mxu0 0
      %1495 = vmatpush.bf16.msra.mxu0 0
      %1496 = vmatpush.bf16.msra.mxu0 0
      %1497 = vmatpush.bf16.msra.mxu0 0
      %1498 = vmatpush.bf16.msra.mxu0 0
      %1499 = vmatpush.bf16.msra.mxu0 %v1405
      %1500 = vmatmul.bf16.gmra.mxu0 %v1387
      %v1501 = vpop.f32.mrf.mxu0
      %v1502 = vadd.f32 0.0, %v1501
      %v1503 = vpop.f32.mrf.mxu0
      %v1504 = vadd.f32 0.0, %v1503
      %1505 = vmatmul.bf16.gmra.mxu0 %v1390
      %v1506 = vpop.f32.mrf.mxu0
      %v1507 = vadd.f32 0.0, %v1506
      %v1508 = vpop.f32.mrf.mxu0
      %v1509 = vadd.f32 0.0, %v1508
      %1510 = vdwg.mxu0
      %1511 = vmatpush.bf16.msra.mxu0 0
      %1512 = vmatpush.bf16.msra.mxu0 0
      %1513 = vmatpush.bf16.msra.mxu0 0
      %1514 = vmatpush.bf16.msra.mxu0 0
      %1515 = vmatpush.bf16.msra.mxu0 0
      %1516 = vmatpush.bf16.msra.mxu0 0
      %1517 = vmatpush.bf16.msra.mxu0 0
      %1518 = vmatpush.bf16.msra.mxu0 %v1408
      %1519 = vmatmul.bf16.gmra.mxu0 %v1387
      %v1520 = vpop.f32.mrf.mxu0
      %v1521 = vadd.f32 0.0, %v1520
      %v1522 = vpop.f32.mrf.mxu0
      %v1523 = vadd.f32 0.0, %v1522
      %1524 = vmatmul.bf16.gmra.mxu0 %v1390
      %v1525 = vpop.f32.mrf.mxu0
      %v1526 = vadd.f32 0.0, %v1525
      %v1527 = vpop.f32.mrf.mxu0
      %v1528 = vadd.f32 0.0, %v1527
      %1529 = vdwg.mxu0
      %1530 = vmatpush.bf16.msra.mxu0 0
      %1531 = vmatpush.bf16.msra.mxu0 0
      %1532 = vmatpush.bf16.msra.mxu0 0
      %1533 = vmatpush.bf16.msra.mxu0 0
      %1534 = vmatpush.bf16.msra.mxu0 0
      %1535 = vmatpush.bf16.msra.mxu0 0
      %1536 = vmatpush.bf16.msra.mxu0 0
      %1537 = vmatpush.bf16.msra.mxu0 %v1411
      %1538 = vmatmul.bf16.gmra.mxu0 %v1387
      %v1539 = vpop.f32.mrf.mxu0
      %v1540 = vadd.f32 0.0, %v1539
      %v1541 = vpop.f32.mrf.mxu0
      %v1542 = vadd.f32 0.0, %v1541
      %1543 = vmatmul.bf16.gmra.mxu0 %v1390
      %v1544 = vpop.f32.mrf.mxu0
      %v1545 = vadd.f32 0.0, %v1544
      %v1546 = vpop.f32.mrf.mxu0
      %v1547 = vadd.f32 0.0, %v1546
      %1548 = vdwg.mxu0
      %1549 = vmatpush.bf16.msra.mxu0 0
      %1550 = vmatpush.bf16.msra.mxu0 0
      %1551 = vmatpush.bf16.msra.mxu0 0
      %1552 = vmatpush.bf16.msra.mxu0 0
      %1553 = vmatpush.bf16.msra.mxu0 0
      %1554 = vmatpush.bf16.msra.mxu0 0
      %1555 = vmatpush.bf16.msra.mxu0 0
      %1556 = vmatpush.bf16.msra.mxu0 %v1414
      %1557 = vmatmul.bf16.gmra.mxu0 %v1387
      %v1558 = vpop.f32.mrf.mxu0
      %v1559 = vadd.f32 0.0, %v1558
      %v1560 = vpop.f32.mrf.mxu0
      %v1561 = vadd.f32 0.0, %v1560
      %1562 = vmatmul.bf16.gmra.mxu0 %v1390
      %v1563 = vpop.f32.mrf.mxu0
      %v1564 = vadd.f32 0.0, %v1563
      %v1565 = vpop.f32.mrf.mxu0
      %v1566 = vadd.f32 0.0, %v1565
      %1567 = vdwg.mxu0
      %v1568 = vadd.f32 %v1287, %v1426
      %v1569 = vadd.f32 %v1288, %v1445
      %v1570 = vadd.f32 %v1289, %v1464
      %v1571 = vadd.f32 %v1290, %v1483
      %v1572 = vadd.f32 %v1291, %v1502
      %v1573 = vadd.f32 %v1292, %v1521
      %v1574 = vadd.f32 %v1293, %v1540
      %v1575 = vadd.f32 %v1294, %v1559
      %v1576 = vadd.f32 %v1295, %v1428
      %v1577 = vadd.f32 %v1296, %v1447
      %v1578 = vadd.f32 %v1297, %v1466
      %v1579 = vadd.f32 %v1298, %v1485
      %v1580 = vadd.f32 %v1299, %v1504
      %v1581 = vadd.f32 %v1300, %v1523
      %v1582 = vadd.f32 %v1301, %v1542
      %v1583 = vadd.f32 %v1302, %v1561
      %v1584 = vadd.f32 %v1303, %v1431
      %v1585 = vadd.f32 %v1304, %v1450
      %v1586 = vadd.f32 %v1305, %v1469
      %v1587 = vadd.f32 %v1306, %v1488
      %v1588 = vadd.f32 %v1307, %v1507
      %v1589 = vadd.f32 %v1308, %v1526
      %v1590 = vadd.f32 %v1309, %v1545
      %v1591 = vadd.f32 %v1310, %v1564
      %v1592 = vadd.f32 %v1311, %v1433
      %v1593 = vadd.f32 %v1312, %v1452
      %v1594 = vadd.f32 %v1313, %v1471
      %v1595 = vadd.f32 %v1314, %v1490
      %v1596 = vadd.f32 %v1315, %v1509
      %v1597 = vadd.f32 %v1316, %v1528
      %v1598 = vadd.f32 %v1317, %v1547
      %v1599 = vadd.f32 %v1318, %v1566
      %s1600 = scalar_lea.vmem %s1, 80
      %v1601 = vld [vmem:[%s1600] sm:$0xf]
      %v1602 = vld [vmem:[%s1600 + $0x4] sm:$0xf]
      %v1603 = vld [vmem:[%s1600 + $0x8] sm:$0xf]
      %v1604 = vld [vmem:[%s1600 + $0xc] sm:$0xf]
      %v1609 = vunpack.c.l.b16 %v1601
      %v1610 = vunpack.c.l.b16 %v1602
      %v1611 = vunpack.c.l.b16 %v1603
      %v1612 = vunpack.c.l.b16 %v1604
      %v1613 = vpack.c.b16 %v1610, %v1609
      %v1614 = vpack.c.b16 %v1612, %v1611
      %v1616 = vsel %vm266, %v1613, 0
      %v1619 = vsel %vm266, %v1614, 0
      %1621 = vmatpush.bf16.xpose.msra.mxu0 0
      %1622 = vmatpush.bf16.xpose.msra.mxu0 0
      %1623 = vmatpush.bf16.xpose.msra.mxu0 0
      %1624 = vmatpush.bf16.xpose.msra.mxu0 0
      %1625 = vmatpush.bf16.xpose.msra.mxu0 0
      %1626 = vmatpush.bf16.xpose.msra.mxu0 0
      %1627 = vmatpush.bf16.xpose.msra.mxu0 0
      %1628 = vmatpush.bf16.xpose.msra.mxu0 %v274
      %1629 = vmatmul.bf16.gmra.mxu0 %v1616
      %v1630 = vpop.f32.mrf.mxu0
      %v1631 = vadd.f32 0.0, %v1630
      %v1632 = vpop.f32.mrf.mxu0
      %v1633 = vadd.f32 0.0, %v1632
      %1634 = vmatmul.bf16.gmra.mxu0 %v1619
      %v1635 = vpop.f32.mrf.mxu0
      %v1636 = vadd.f32 0.0, %v1635
      %v1637 = vpop.f32.mrf.mxu0
      %v1638 = vadd.f32 0.0, %v1637
      %1639 = vdwg.mxu0
      %v1640 = vpack.c.bf16 %v1633, %v1631
      %v1641 = vpack.c.bf16 %v1638, %v1636
      %s1642 = scalar_lea.vmem %s3, 160
      %v1643 = vld [vmem:[%s1642] sm:$0x77]
      %v1644 = vld [vmem:[%s1642 + $0x8] sm:$0x77]
      %v1645 = vld [vmem:[%s1642 + $0x10] sm:$0x77]
      %v1646 = vld [vmem:[%s1642 + $0x18] sm:$0x77]
      %v1651 = vunpack.c.l.b16 %v1643
      %v1652 = vunpack.c.h.b16 %v1643
      %v1653 = vunpack.c.l.b16 %v1644
      %v1654 = vunpack.c.h.b16 %v1644
      %v1655 = vunpack.c.l.b16 %v1645
      %v1656 = vunpack.c.h.b16 %v1645
      %v1657 = vunpack.c.l.b16 %v1646
      %v1658 = vunpack.c.h.b16 %v1646
      %v1659 = vpack.c.b16 %v1651, %v1651
      %v1660 = vpack.c.b16 %v1652, %v1652
      %v1661 = vpack.c.b16 %v1653, %v1653
      %v1662 = vpack.c.b16 %v1654, %v1654
      %v1663 = vpack.c.b16 %v1655, %v1655
      %v1664 = vpack.c.b16 %v1656, %v1656
      %v1665 = vpack.c.b16 %v1657, %v1657
      %v1666 = vpack.c.b16 %v1658, %v1658
      %v1668 = vsel %vm368, %v1640, 0
      %v1671 = vsel %vm368, %v1641, 0
      %v1674 = vand.u32 %v1659, %v378
      %v1677 = vand.u32 %v1660, %v378
      %v1680 = vand.u32 %v1661, %v378
      %v1683 = vand.u32 %v1662, %v378
      %v1686 = vand.u32 %v1663, %v378
      %v1689 = vand.u32 %v1664, %v378
      %v1692 = vand.u32 %v1665, %v378
      %v1695 = vand.u32 %v1666, %v378
      %1697 = vmatpush.bf16.msra.mxu0 0
      %1698 = vmatpush.bf16.msra.mxu0 0
      %1699 = vmatpush.bf16.msra.mxu0 0
      %1700 = vmatpush.bf16.msra.mxu0 0
      %1701 = vmatpush.bf16.msra.mxu0 0
      %1702 = vmatpush.bf16.msra.mxu0 0
      %1703 = vmatpush.bf16.msra.mxu0 0
      %1704 = vmatpush.bf16.msra.mxu0 %v1674
      %1705 = vmatmul.bf16.gmra.mxu0 %v1668
      %v1706 = vpop.f32.mrf.mxu0
      %v1707 = vadd.f32 0.0, %v1706
      %v1708 = vpop.f32.mrf.mxu0
      %v1709 = vadd.f32 0.0, %v1708
      %1710 = vmatmul.bf16.gmra.mxu0 %v1671
      %v1711 = vpop.f32.mrf.mxu0
      %v1712 = vadd.f32 0.0, %v1711
      %v1713 = vpop.f32.mrf.mxu0
      %v1714 = vadd.f32 0.0, %v1713
      %1715 = vdwg.mxu0
      %1716 = vmatpush.bf16.msra.mxu0 0
      %1717 = vmatpush.bf16.msra.mxu0 0
      %1718 = vmatpush.bf16.msra.mxu0 0
      %1719 = vmatpush.bf16.msra.mxu0 0
      %1720 = vmatpush.bf16.msra.mxu0 0
      %1721 = vmatpush.bf16.msra.mxu0 0
      %1722 = vmatpush.bf16.msra.mxu0 0
      %1723 = vmatpush.bf16.msra.mxu0 %v1677
      %1724 = vmatmul.bf16.gmra.mxu0 %v1668
      %v1725 = vpop.f32.mrf.mxu0
      %v1726 = vadd.f32 0.0, %v1725
      %v1727 = vpop.f32.mrf.mxu0
      %v1728 = vadd.f32 0.0, %v1727
      %1729 = vmatmul.bf16.gmra.mxu0 %v1671
      %v1730 = vpop.f32.mrf.mxu0
      %v1731 = vadd.f32 0.0, %v1730
      %v1732 = vpop.f32.mrf.mxu0
      %v1733 = vadd.f32 0.0, %v1732
      %1734 = vdwg.mxu0
      %1735 = vmatpush.bf16.msra.mxu0 0
      %1736 = vmatpush.bf16.msra.mxu0 0
      %1737 = vmatpush.bf16.msra.mxu0 0
      %1738 = vmatpush.bf16.msra.mxu0 0
      %1739 = vmatpush.bf16.msra.mxu0 0
      %1740 = vmatpush.bf16.msra.mxu0 0
      %1741 = vmatpush.bf16.msra.mxu0 0
      %1742 = vmatpush.bf16.msra.mxu0 %v1680
      %1743 = vmatmul.bf16.gmra.mxu0 %v1668
      %v1744 = vpop.f32.mrf.mxu0
      %v1745 = vadd.f32 0.0, %v1744
      %v1746 = vpop.f32.mrf.mxu0
      %v1747 = vadd.f32 0.0, %v1746
      %1748 = vmatmul.bf16.gmra.mxu0 %v1671
      %v1749 = vpop.f32.mrf.mxu0
      %v1750 = vadd.f32 0.0, %v1749
      %v1751 = vpop.f32.mrf.mxu0
      %v1752 = vadd.f32 0.0, %v1751
      %1753 = vdwg.mxu0
      %1754 = vmatpush.bf16.msra.mxu0 0
      %1755 = vmatpush.bf16.msra.mxu0 0
      %1756 = vmatpush.bf16.msra.mxu0 0
      %1757 = vmatpush.bf16.msra.mxu0 0
      %1758 = vmatpush.bf16.msra.mxu0 0
      %1759 = vmatpush.bf16.msra.mxu0 0
      %1760 = vmatpush.bf16.msra.mxu0 0
      %1761 = vmatpush.bf16.msra.mxu0 %v1683
      %1762 = vmatmul.bf16.gmra.mxu0 %v1668
      %v1763 = vpop.f32.mrf.mxu0
      %v1764 = vadd.f32 0.0, %v1763
      %v1765 = vpop.f32.mrf.mxu0
      %v1766 = vadd.f32 0.0, %v1765
      %1767 = vmatmul.bf16.gmra.mxu0 %v1671
      %v1768 = vpop.f32.mrf.mxu0
      %v1769 = vadd.f32 0.0, %v1768
      %v1770 = vpop.f32.mrf.mxu0
      %v1771 = vadd.f32 0.0, %v1770
      %1772 = vdwg.mxu0
      %1773 = vmatpush.bf16.msra.mxu0 0
      %1774 = vmatpush.bf16.msra.mxu0 0
      %1775 = vmatpush.bf16.msra.mxu0 0
      %1776 = vmatpush.bf16.msra.mxu0 0
      %1777 = vmatpush.bf16.msra.mxu0 0
      %1778 = vmatpush.bf16.msra.mxu0 0
      %1779 = vmatpush.bf16.msra.mxu0 0
      %1780 = vmatpush.bf16.msra.mxu0 %v1686
      %1781 = vmatmul.bf16.gmra.mxu0 %v1668
      %v1782 = vpop.f32.mrf.mxu0
      %v1783 = vadd.f32 0.0, %v1782
      %v1784 = vpop.f32.mrf.mxu0
      %v1785 = vadd.f32 0.0, %v1784
      %1786 = vmatmul.bf16.gmra.mxu0 %v1671
      %v1787 = vpop.f32.mrf.mxu0
      %v1788 = vadd.f32 0.0, %v1787
      %v1789 = vpop.f32.mrf.mxu0
      %v1790 = vadd.f32 0.0, %v1789
      %1791 = vdwg.mxu0
      %1792 = vmatpush.bf16.msra.mxu0 0
      %1793 = vmatpush.bf16.msra.mxu0 0
      %1794 = vmatpush.bf16.msra.mxu0 0
      %1795 = vmatpush.bf16.msra.mxu0 0
      %1796 = vmatpush.bf16.msra.mxu0 0
      %1797 = vmatpush.bf16.msra.mxu0 0
      %1798 = vmatpush.bf16.msra.mxu0 0
      %1799 = vmatpush.bf16.msra.mxu0 %v1689
      %1800 = vmatmul.bf16.gmra.mxu0 %v1668
      %v1801 = vpop.f32.mrf.mxu0
      %v1802 = vadd.f32 0.0, %v1801
      %v1803 = vpop.f32.mrf.mxu0
      %v1804 = vadd.f32 0.0, %v1803
      %1805 = vmatmul.bf16.gmra.mxu0 %v1671
      %v1806 = vpop.f32.mrf.mxu0
      %v1807 = vadd.f32 0.0, %v1806
      %v1808 = vpop.f32.mrf.mxu0
      %v1809 = vadd.f32 0.0, %v1808
      %1810 = vdwg.mxu0
      %1811 = vmatpush.bf16.msra.mxu0 0
      %1812 = vmatpush.bf16.msra.mxu0 0
      %1813 = vmatpush.bf16.msra.mxu0 0
      %1814 = vmatpush.bf16.msra.mxu0 0
      %1815 = vmatpush.bf16.msra.mxu0 0
      %1816 = vmatpush.bf16.msra.mxu0 0
      %1817 = vmatpush.bf16.msra.mxu0 0
      %1818 = vmatpush.bf16.msra.mxu0 %v1692
      %1819 = vmatmul.bf16.gmra.mxu0 %v1668
      %v1820 = vpop.f32.mrf.mxu0
      %v1821 = vadd.f32 0.0, %v1820
      %v1822 = vpop.f32.mrf.mxu0
      %v1823 = vadd.f32 0.0, %v1822
      %1824 = vmatmul.bf16.gmra.mxu0 %v1671
      %v1825 = vpop.f32.mrf.mxu0
      %v1826 = vadd.f32 0.0, %v1825
      %v1827 = vpop.f32.mrf.mxu0
      %v1828 = vadd.f32 0.0, %v1827
      %1829 = vdwg.mxu0
      %1830 = vmatpush.bf16.msra.mxu0 0
      %1831 = vmatpush.bf16.msra.mxu0 0
      %1832 = vmatpush.bf16.msra.mxu0 0
      %1833 = vmatpush.bf16.msra.mxu0 0
      %1834 = vmatpush.bf16.msra.mxu0 0
      %1835 = vmatpush.bf16.msra.mxu0 0
      %1836 = vmatpush.bf16.msra.mxu0 0
      %1837 = vmatpush.bf16.msra.mxu0 %v1695
      %1838 = vmatmul.bf16.gmra.mxu0 %v1668
      %v1839 = vpop.f32.mrf.mxu0
      %v1840 = vadd.f32 0.0, %v1839
      %v1841 = vpop.f32.mrf.mxu0
      %v1842 = vadd.f32 0.0, %v1841
      %1843 = vmatmul.bf16.gmra.mxu0 %v1671
      %v1844 = vpop.f32.mrf.mxu0
      %v1845 = vadd.f32 0.0, %v1844
      %v1846 = vpop.f32.mrf.mxu0
      %v1847 = vadd.f32 0.0, %v1846
      %1848 = vdwg.mxu0
      %v1849 = vadd.f32 %v1568, %v1707
      %v1850 = vadd.f32 %v1569, %v1726
      %v1851 = vadd.f32 %v1570, %v1745
      %v1852 = vadd.f32 %v1571, %v1764
      %v1853 = vadd.f32 %v1572, %v1783
      %v1854 = vadd.f32 %v1573, %v1802
      %v1855 = vadd.f32 %v1574, %v1821
      %v1856 = vadd.f32 %v1575, %v1840
      %v1857 = vadd.f32 %v1576, %v1709
      %v1858 = vadd.f32 %v1577, %v1728
      %v1859 = vadd.f32 %v1578, %v1747
      %v1860 = vadd.f32 %v1579, %v1766
      %v1861 = vadd.f32 %v1580, %v1785
      %v1862 = vadd.f32 %v1581, %v1804
      %v1863 = vadd.f32 %v1582, %v1823
      %v1864 = vadd.f32 %v1583, %v1842
      %v1865 = vadd.f32 %v1584, %v1712
      %v1866 = vadd.f32 %v1585, %v1731
      %v1867 = vadd.f32 %v1586, %v1750
      %v1868 = vadd.f32 %v1587, %v1769
      %v1869 = vadd.f32 %v1588, %v1788
      %v1870 = vadd.f32 %v1589, %v1807
      %v1871 = vadd.f32 %v1590, %v1826
      %v1872 = vadd.f32 %v1591, %v1845
      %v1873 = vadd.f32 %v1592, %v1714
      %v1874 = vadd.f32 %v1593, %v1733
      %v1875 = vadd.f32 %v1594, %v1752
      %v1876 = vadd.f32 %v1595, %v1771
      %v1877 = vadd.f32 %v1596, %v1790
      %v1878 = vadd.f32 %v1597, %v1809
      %v1879 = vadd.f32 %v1598, %v1828
      %v1880 = vadd.f32 %v1599, %v1847
      %s1881 = scalar_lea.vmem %s1, 96
      %v1882 = vld [vmem:[%s1881] sm:$0xf]
      %v1883 = vld [vmem:[%s1881 + $0x4] sm:$0xf]
      %v1884 = vld [vmem:[%s1881 + $0x8] sm:$0xf]
      %v1885 = vld [vmem:[%s1881 + $0xc] sm:$0xf]
      %v1890 = vunpack.c.l.b16 %v1882
      %v1891 = vunpack.c.l.b16 %v1883
      %v1892 = vunpack.c.l.b16 %v1884
      %v1893 = vunpack.c.l.b16 %v1885
      %v1894 = vpack.c.b16 %v1891, %v1890
      %v1895 = vpack.c.b16 %v1893, %v1892
      %v1897 = vsel %vm266, %v1894, 0
      %v1900 = vsel %vm266, %v1895, 0
      %1902 = vmatpush.bf16.xpose.msra.mxu0 0
      %1903 = vmatpush.bf16.xpose.msra.mxu0 0
      %1904 = vmatpush.bf16.xpose.msra.mxu0 0
      %1905 = vmatpush.bf16.xpose.msra.mxu0 0
      %1906 = vmatpush.bf16.xpose.msra.mxu0 0
      %1907 = vmatpush.bf16.xpose.msra.mxu0 0
      %1908 = vmatpush.bf16.xpose.msra.mxu0 0
      %1909 = vmatpush.bf16.xpose.msra.mxu0 %v274
      %1910 = vmatmul.bf16.gmra.mxu0 %v1897
      %v1911 = vpop.f32.mrf.mxu0
      %v1912 = vadd.f32 0.0, %v1911
      %v1913 = vpop.f32.mrf.mxu0
      %v1914 = vadd.f32 0.0, %v1913
      %1915 = vmatmul.bf16.gmra.mxu0 %v1900
      %v1916 = vpop.f32.mrf.mxu0
      %v1917 = vadd.f32 0.0, %v1916
      %v1918 = vpop.f32.mrf.mxu0
      %v1919 = vadd.f32 0.0, %v1918
      %1920 = vdwg.mxu0
      %v1921 = vpack.c.bf16 %v1914, %v1912
      %v1922 = vpack.c.bf16 %v1919, %v1917
      %s1923 = scalar_lea.vmem %s3, 192
      %v1924 = vld [vmem:[%s1923] sm:$0x77]
      %v1925 = vld [vmem:[%s1923 + $0x8] sm:$0x77]
      %v1926 = vld [vmem:[%s1923 + $0x10] sm:$0x77]
      %v1927 = vld [vmem:[%s1923 + $0x18] sm:$0x77]
      %v1932 = vunpack.c.l.b16 %v1924
      %v1933 = vunpack.c.h.b16 %v1924
      %v1934 = vunpack.c.l.b16 %v1925
      %v1935 = vunpack.c.h.b16 %v1925
      %v1936 = vunpack.c.l.b16 %v1926
      %v1937 = vunpack.c.h.b16 %v1926
      %v1938 = vunpack.c.l.b16 %v1927
      %v1939 = vunpack.c.h.b16 %v1927
      %v1940 = vpack.c.b16 %v1932, %v1932
      %v1941 = vpack.c.b16 %v1933, %v1933
      %v1942 = vpack.c.b16 %v1934, %v1934
      %v1943 = vpack.c.b16 %v1935, %v1935
      %v1944 = vpack.c.b16 %v1936, %v1936
      %v1945 = vpack.c.b16 %v1937, %v1937
      %v1946 = vpack.c.b16 %v1938, %v1938
      %v1947 = vpack.c.b16 %v1939, %v1939
      %v1949 = vsel %vm368, %v1921, 0
      %v1952 = vsel %vm368, %v1922, 0
      %v1955 = vand.u32 %v1940, %v378
      %v1958 = vand.u32 %v1941, %v378
      %v1961 = vand.u32 %v1942, %v378
      %v1964 = vand.u32 %v1943, %v378
      %v1967 = vand.u32 %v1944, %v378
      %v1970 = vand.u32 %v1945, %v378
      %v1973 = vand.u32 %v1946, %v378
      %v1976 = vand.u32 %v1947, %v378
      %1978 = vmatpush.bf16.msra.mxu0 0
      %1979 = vmatpush.bf16.msra.mxu0 0
      %1980 = vmatpush.bf16.msra.mxu0 0
      %1981 = vmatpush.bf16.msra.mxu0 0
      %1982 = vmatpush.bf16.msra.mxu0 0
      %1983 = vmatpush.bf16.msra.mxu0 0
      %1984 = vmatpush.bf16.msra.mxu0 0
      %1985 = vmatpush.bf16.msra.mxu0 %v1955
      %1986 = vmatmul.bf16.gmra.mxu0 %v1949
      %v1987 = vpop.f32.mrf.mxu0
      %v1988 = vadd.f32 0.0, %v1987
      %v1989 = vpop.f32.mrf.mxu0
      %v1990 = vadd.f32 0.0, %v1989
      %1991 = vmatmul.bf16.gmra.mxu0 %v1952
      %v1992 = vpop.f32.mrf.mxu0
      %v1993 = vadd.f32 0.0, %v1992
      %v1994 = vpop.f32.mrf.mxu0
      %v1995 = vadd.f32 0.0, %v1994
      %1996 = vdwg.mxu0
      %1997 = vmatpush.bf16.msra.mxu0 0
      %1998 = vmatpush.bf16.msra.mxu0 0
      %1999 = vmatpush.bf16.msra.mxu0 0
      %2000 = vmatpush.bf16.msra.mxu0 0
      %2001 = vmatpush.bf16.msra.mxu0 0
      %2002 = vmatpush.bf16.msra.mxu0 0
      %2003 = vmatpush.bf16.msra.mxu0 0
      %2004 = vmatpush.bf16.msra.mxu0 %v1958
      %2005 = vmatmul.bf16.gmra.mxu0 %v1949
      %v2006 = vpop.f32.mrf.mxu0
      %v2007 = vadd.f32 0.0, %v2006
      %v2008 = vpop.f32.mrf.mxu0
      %v2009 = vadd.f32 0.0, %v2008
      %2010 = vmatmul.bf16.gmra.mxu0 %v1952
      %v2011 = vpop.f32.mrf.mxu0
      %v2012 = vadd.f32 0.0, %v2011
      %v2013 = vpop.f32.mrf.mxu0
      %v2014 = vadd.f32 0.0, %v2013
      %2015 = vdwg.mxu0
      %2016 = vmatpush.bf16.msra.mxu0 0
      %2017 = vmatpush.bf16.msra.mxu0 0
      %2018 = vmatpush.bf16.msra.mxu0 0
      %2019 = vmatpush.bf16.msra.mxu0 0
      %2020 = vmatpush.bf16.msra.mxu0 0
      %2021 = vmatpush.bf16.msra.mxu0 0
      %2022 = vmatpush.bf16.msra.mxu0 0
      %2023 = vmatpush.bf16.msra.mxu0 %v1961
      %2024 = vmatmul.bf16.gmra.mxu0 %v1949
      %v2025 = vpop.f32.mrf.mxu0
      %v2026 = vadd.f32 0.0, %v2025
      %v2027 = vpop.f32.mrf.mxu0
      %v2028 = vadd.f32 0.0, %v2027
      %2029 = vmatmul.bf16.gmra.mxu0 %v1952
      %v2030 = vpop.f32.mrf.mxu0
      %v2031 = vadd.f32 0.0, %v2030
      %v2032 = vpop.f32.mrf.mxu0
      %v2033 = vadd.f32 0.0, %v2032
      %2034 = vdwg.mxu0
      %2035 = vmatpush.bf16.msra.mxu0 0
      %2036 = vmatpush.bf16.msra.mxu0 0
      %2037 = vmatpush.bf16.msra.mxu0 0
      %2038 = vmatpush.bf16.msra.mxu0 0
      %2039 = vmatpush.bf16.msra.mxu0 0
      %2040 = vmatpush.bf16.msra.mxu0 0
      %2041 = vmatpush.bf16.msra.mxu0 0
      %2042 = vmatpush.bf16.msra.mxu0 %v1964
      %2043 = vmatmul.bf16.gmra.mxu0 %v1949
      %v2044 = vpop.f32.mrf.mxu0
      %v2045 = vadd.f32 0.0, %v2044
      %v2046 = vpop.f32.mrf.mxu0
      %v2047 = vadd.f32 0.0, %v2046
      %2048 = vmatmul.bf16.gmra.mxu0 %v1952
      %v2049 = vpop.f32.mrf.mxu0
      %v2050 = vadd.f32 0.0, %v2049
      %v2051 = vpop.f32.mrf.mxu0
      %v2052 = vadd.f32 0.0, %v2051
      %2053 = vdwg.mxu0
      %2054 = vmatpush.bf16.msra.mxu0 0
      %2055 = vmatpush.bf16.msra.mxu0 0
      %2056 = vmatpush.bf16.msra.mxu0 0
      %2057 = vmatpush.bf16.msra.mxu0 0
      %2058 = vmatpush.bf16.msra.mxu0 0
      %2059 = vmatpush.bf16.msra.mxu0 0
      %2060 = vmatpush.bf16.msra.mxu0 0
      %2061 = vmatpush.bf16.msra.mxu0 %v1967
      %2062 = vmatmul.bf16.gmra.mxu0 %v1949
      %v2063 = vpop.f32.mrf.mxu0
      %v2064 = vadd.f32 0.0, %v2063
      %v2065 = vpop.f32.mrf.mxu0
      %v2066 = vadd.f32 0.0, %v2065
      %2067 = vmatmul.bf16.gmra.mxu0 %v1952
      %v2068 = vpop.f32.mrf.mxu0
      %v2069 = vadd.f32 0.0, %v2068
      %v2070 = vpop.f32.mrf.mxu0
      %v2071 = vadd.f32 0.0, %v2070
      %2072 = vdwg.mxu0
      %2073 = vmatpush.bf16.msra.mxu0 0
      %2074 = vmatpush.bf16.msra.mxu0 0
      %2075 = vmatpush.bf16.msra.mxu0 0
      %2076 = vmatpush.bf16.msra.mxu0 0
      %2077 = vmatpush.bf16.msra.mxu0 0
      %2078 = vmatpush.bf16.msra.mxu0 0
      %2079 = vmatpush.bf16.msra.mxu0 0
      %2080 = vmatpush.bf16.msra.mxu0 %v1970
      %2081 = vmatmul.bf16.gmra.mxu0 %v1949
      %v2082 = vpop.f32.mrf.mxu0
      %v2083 = vadd.f32 0.0, %v2082
      %v2084 = vpop.f32.mrf.mxu0
      %v2085 = vadd.f32 0.0, %v2084
      %2086 = vmatmul.bf16.gmra.mxu0 %v1952
      %v2087 = vpop.f32.mrf.mxu0
      %v2088 = vadd.f32 0.0, %v2087
      %v2089 = vpop.f32.mrf.mxu0
      %v2090 = vadd.f32 0.0, %v2089
      %2091 = vdwg.mxu0
      %2092 = vmatpush.bf16.msra.mxu0 0
      %2093 = vmatpush.bf16.msra.mxu0 0
      %2094 = vmatpush.bf16.msra.mxu0 0
      %2095 = vmatpush.bf16.msra.mxu0 0
      %2096 = vmatpush.bf16.msra.mxu0 0
      %2097 = vmatpush.bf16.msra.mxu0 0
      %2098 = vmatpush.bf16.msra.mxu0 0
      %2099 = vmatpush.bf16.msra.mxu0 %v1973
      %2100 = vmatmul.bf16.gmra.mxu0 %v1949
      %v2101 = vpop.f32.mrf.mxu0
      %v2102 = vadd.f32 0.0, %v2101
      %v2103 = vpop.f32.mrf.mxu0
      %v2104 = vadd.f32 0.0, %v2103
      %2105 = vmatmul.bf16.gmra.mxu0 %v1952
      %v2106 = vpop.f32.mrf.mxu0
      %v2107 = vadd.f32 0.0, %v2106
      %v2108 = vpop.f32.mrf.mxu0
      %v2109 = vadd.f32 0.0, %v2108
      %2110 = vdwg.mxu0
      %2111 = vmatpush.bf16.msra.mxu0 0
      %2112 = vmatpush.bf16.msra.mxu0 0
      %2113 = vmatpush.bf16.msra.mxu0 0
      %2114 = vmatpush.bf16.msra.mxu0 0
      %2115 = vmatpush.bf16.msra.mxu0 0
      %2116 = vmatpush.bf16.msra.mxu0 0
      %2117 = vmatpush.bf16.msra.mxu0 0
      %2118 = vmatpush.bf16.msra.mxu0 %v1976
      %2119 = vmatmul.bf16.gmra.mxu0 %v1949
      %v2120 = vpop.f32.mrf.mxu0
      %v2121 = vadd.f32 0.0, %v2120
      %v2122 = vpop.f32.mrf.mxu0
      %v2123 = vadd.f32 0.0, %v2122
      %2124 = vmatmul.bf16.gmra.mxu0 %v1952
      %v2125 = vpop.f32.mrf.mxu0
      %v2126 = vadd.f32 0.0, %v2125
      %v2127 = vpop.f32.mrf.mxu0
      %v2128 = vadd.f32 0.0, %v2127
      %2129 = vdwg.mxu0
      %v2130 = vadd.f32 %v1849, %v1988
      %v2131 = vadd.f32 %v1850, %v2007
      %v2132 = vadd.f32 %v1851, %v2026
      %v2133 = vadd.f32 %v1852, %v2045
      %v2134 = vadd.f32 %v1853, %v2064
      %v2135 = vadd.f32 %v1854, %v2083
      %v2136 = vadd.f32 %v1855, %v2102
      %v2137 = vadd.f32 %v1856, %v2121
      %v2138 = vadd.f32 %v1857, %v1990
      %v2139 = vadd.f32 %v1858, %v2009
      %v2140 = vadd.f32 %v1859, %v2028
      %v2141 = vadd.f32 %v1860, %v2047
      %v2142 = vadd.f32 %v1861, %v2066
      %v2143 = vadd.f32 %v1862, %v2085
      %v2144 = vadd.f32 %v1863, %v2104
      %v2145 = vadd.f32 %v1864, %v2123
      %v2146 = vadd.f32 %v1865, %v1993
      %v2147 = vadd.f32 %v1866, %v2012
      %v2148 = vadd.f32 %v1867, %v2031
      %v2149 = vadd.f32 %v1868, %v2050
      %v2150 = vadd.f32 %v1869, %v2069
      %v2151 = vadd.f32 %v1870, %v2088
      %v2152 = vadd.f32 %v1871, %v2107
      %v2153 = vadd.f32 %v1872, %v2126
      %v2154 = vadd.f32 %v1873, %v1995
      %v2155 = vadd.f32 %v1874, %v2014
      %v2156 = vadd.f32 %v1875, %v2033
      %v2157 = vadd.f32 %v1876, %v2052
      %v2158 = vadd.f32 %v1877, %v2071
      %v2159 = vadd.f32 %v1878, %v2090
      %v2160 = vadd.f32 %v1879, %v2109
      %v2161 = vadd.f32 %v1880, %v2128
      %s2162 = scalar_lea.vmem %s1, 112
      %v2163 = vld [vmem:[%s2162] sm:$0xf]
      %v2164 = vld [vmem:[%s2162 + $0x4] sm:$0xf]
      %v2165 = vld [vmem:[%s2162 + $0x8] sm:$0xf]
      %v2166 = vld [vmem:[%s2162 + $0xc] sm:$0xf]
      %v2171 = vunpack.c.l.b16 %v2163
      %v2172 = vunpack.c.l.b16 %v2164
      %v2173 = vunpack.c.l.b16 %v2165
      %v2174 = vunpack.c.l.b16 %v2166
      %v2175 = vpack.c.b16 %v2172, %v2171
      %v2176 = vpack.c.b16 %v2174, %v2173
      %v2178 = vsel %vm266, %v2175, 0
      %v2181 = vsel %vm266, %v2176, 0
      %2183 = vmatpush.bf16.xpose.msra.mxu0 0
      %2184 = vmatpush.bf16.xpose.msra.mxu0 0
      %2185 = vmatpush.bf16.xpose.msra.mxu0 0
      %2186 = vmatpush.bf16.xpose.msra.mxu0 0
      %2187 = vmatpush.bf16.xpose.msra.mxu0 0
      %2188 = vmatpush.bf16.xpose.msra.mxu0 0
      %2189 = vmatpush.bf16.xpose.msra.mxu0 0
      %2190 = vmatpush.bf16.xpose.msra.mxu0 %v274
      %2191 = vmatmul.bf16.gmra.mxu0 %v2178
      %v2192 = vpop.f32.mrf.mxu0
      %v2193 = vadd.f32 0.0, %v2192
      %v2194 = vpop.f32.mrf.mxu0
      %v2195 = vadd.f32 0.0, %v2194
      %2196 = vmatmul.bf16.gmra.mxu0 %v2181
      %v2197 = vpop.f32.mrf.mxu0
      %v2198 = vadd.f32 0.0, %v2197
      %v2199 = vpop.f32.mrf.mxu0
      %v2200 = vadd.f32 0.0, %v2199
      %2201 = vdwg.mxu0
      %v2202 = vpack.c.bf16 %v2195, %v2193
      %v2203 = vpack.c.bf16 %v2200, %v2198
      %s2204 = scalar_lea.vmem %s3, 224
      %v2205 = vld [vmem:[%s2204] sm:$0x77]
      %v2206 = vld [vmem:[%s2204 + $0x8] sm:$0x77]
      %v2207 = vld [vmem:[%s2204 + $0x10] sm:$0x77]
      %v2208 = vld [vmem:[%s2204 + $0x18] sm:$0x77]
      %v2213 = vunpack.c.l.b16 %v2205
      %v2214 = vunpack.c.h.b16 %v2205
      %v2215 = vunpack.c.l.b16 %v2206
      %v2216 = vunpack.c.h.b16 %v2206
      %v2217 = vunpack.c.l.b16 %v2207
      %v2218 = vunpack.c.h.b16 %v2207
      %v2219 = vunpack.c.l.b16 %v2208
      %v2220 = vunpack.c.h.b16 %v2208
      %v2221 = vpack.c.b16 %v2213, %v2213
      %v2222 = vpack.c.b16 %v2214, %v2214
      %v2223 = vpack.c.b16 %v2215, %v2215
      %v2224 = vpack.c.b16 %v2216, %v2216
      %v2225 = vpack.c.b16 %v2217, %v2217
      %v2226 = vpack.c.b16 %v2218, %v2218
      %v2227 = vpack.c.b16 %v2219, %v2219
      %v2228 = vpack.c.b16 %v2220, %v2220
      %v2230 = vsel %vm368, %v2202, 0
      %v2233 = vsel %vm368, %v2203, 0
      %v2236 = vand.u32 %v2221, %v378
      %v2239 = vand.u32 %v2222, %v378
      %v2242 = vand.u32 %v2223, %v378
      %v2245 = vand.u32 %v2224, %v378
      %v2248 = vand.u32 %v2225, %v378
      %v2251 = vand.u32 %v2226, %v378
      %v2254 = vand.u32 %v2227, %v378
      %v2257 = vand.u32 %v2228, %v378
      %2259 = vmatpush.bf16.msra.mxu0 0
      %2260 = vmatpush.bf16.msra.mxu0 0
      %2261 = vmatpush.bf16.msra.mxu0 0
      %2262 = vmatpush.bf16.msra.mxu0 0
      %2263 = vmatpush.bf16.msra.mxu0 0
      %2264 = vmatpush.bf16.msra.mxu0 0
      %2265 = vmatpush.bf16.msra.mxu0 0
      %2266 = vmatpush.bf16.msra.mxu0 %v2236
      %2267 = vmatmul.bf16.gmra.mxu0 %v2230
      %v2268 = vpop.f32.mrf.mxu0
      %v2269 = vadd.f32 0.0, %v2268
      %v2270 = vpop.f32.mrf.mxu0
      %v2271 = vadd.f32 0.0, %v2270
      %2272 = vmatmul.bf16.gmra.mxu0 %v2233
      %v2273 = vpop.f32.mrf.mxu0
      %v2274 = vadd.f32 0.0, %v2273
      %v2275 = vpop.f32.mrf.mxu0
      %v2276 = vadd.f32 0.0, %v2275
      %2277 = vdwg.mxu0
      %2278 = vmatpush.bf16.msra.mxu0 0
      %2279 = vmatpush.bf16.msra.mxu0 0
      %2280 = vmatpush.bf16.msra.mxu0 0
      %2281 = vmatpush.bf16.msra.mxu0 0
      %2282 = vmatpush.bf16.msra.mxu0 0
      %2283 = vmatpush.bf16.msra.mxu0 0
      %2284 = vmatpush.bf16.msra.mxu0 0
      %2285 = vmatpush.bf16.msra.mxu0 %v2239
      %2286 = vmatmul.bf16.gmra.mxu0 %v2230
      %v2287 = vpop.f32.mrf.mxu0
      %v2288 = vadd.f32 0.0, %v2287
      %v2289 = vpop.f32.mrf.mxu0
      %v2290 = vadd.f32 0.0, %v2289
      %2291 = vmatmul.bf16.gmra.mxu0 %v2233
      %v2292 = vpop.f32.mrf.mxu0
      %v2293 = vadd.f32 0.0, %v2292
      %v2294 = vpop.f32.mrf.mxu0
      %v2295 = vadd.f32 0.0, %v2294
      %2296 = vdwg.mxu0
      %2297 = vmatpush.bf16.msra.mxu0 0
      %2298 = vmatpush.bf16.msra.mxu0 0
      %2299 = vmatpush.bf16.msra.mxu0 0
      %2300 = vmatpush.bf16.msra.mxu0 0
      %2301 = vmatpush.bf16.msra.mxu0 0
      %2302 = vmatpush.bf16.msra.mxu0 0
      %2303 = vmatpush.bf16.msra.mxu0 0
      %2304 = vmatpush.bf16.msra.mxu0 %v2242
      %2305 = vmatmul.bf16.gmra.mxu0 %v2230
      %v2306 = vpop.f32.mrf.mxu0
      %v2307 = vadd.f32 0.0, %v2306
      %v2308 = vpop.f32.mrf.mxu0
      %v2309 = vadd.f32 0.0, %v2308
      %2310 = vmatmul.bf16.gmra.mxu0 %v2233
      %v2311 = vpop.f32.mrf.mxu0
      %v2312 = vadd.f32 0.0, %v2311
      %v2313 = vpop.f32.mrf.mxu0
      %v2314 = vadd.f32 0.0, %v2313
      %2315 = vdwg.mxu0
      %2316 = vmatpush.bf16.msra.mxu0 0
      %2317 = vmatpush.bf16.msra.mxu0 0
      %2318 = vmatpush.bf16.msra.mxu0 0
      %2319 = vmatpush.bf16.msra.mxu0 0
      %2320 = vmatpush.bf16.msra.mxu0 0
      %2321 = vmatpush.bf16.msra.mxu0 0
      %2322 = vmatpush.bf16.msra.mxu0 0
      %2323 = vmatpush.bf16.msra.mxu0 %v2245
      %2324 = vmatmul.bf16.gmra.mxu0 %v2230
      %v2325 = vpop.f32.mrf.mxu0
      %v2326 = vadd.f32 0.0, %v2325
      %v2327 = vpop.f32.mrf.mxu0
      %v2328 = vadd.f32 0.0, %v2327
      %2329 = vmatmul.bf16.gmra.mxu0 %v2233
      %v2330 = vpop.f32.mrf.mxu0
      %v2331 = vadd.f32 0.0, %v2330
      %v2332 = vpop.f32.mrf.mxu0
      %v2333 = vadd.f32 0.0, %v2332
      %2334 = vdwg.mxu0
      %2335 = vmatpush.bf16.msra.mxu0 0
      %2336 = vmatpush.bf16.msra.mxu0 0
      %2337 = vmatpush.bf16.msra.mxu0 0
      %2338 = vmatpush.bf16.msra.mxu0 0
      %2339 = vmatpush.bf16.msra.mxu0 0
      %2340 = vmatpush.bf16.msra.mxu0 0
      %2341 = vmatpush.bf16.msra.mxu0 0
      %2342 = vmatpush.bf16.msra.mxu0 %v2248
      %2343 = vmatmul.bf16.gmra.mxu0 %v2230
      %v2344 = vpop.f32.mrf.mxu0
      %v2345 = vadd.f32 0.0, %v2344
      %v2346 = vpop.f32.mrf.mxu0
      %v2347 = vadd.f32 0.0, %v2346
      %2348 = vmatmul.bf16.gmra.mxu0 %v2233
      %v2349 = vpop.f32.mrf.mxu0
      %v2350 = vadd.f32 0.0, %v2349
      %v2351 = vpop.f32.mrf.mxu0
      %v2352 = vadd.f32 0.0, %v2351
      %2353 = vdwg.mxu0
      %2354 = vmatpush.bf16.msra.mxu0 0
      %2355 = vmatpush.bf16.msra.mxu0 0
      %2356 = vmatpush.bf16.msra.mxu0 0
      %2357 = vmatpush.bf16.msra.mxu0 0
      %2358 = vmatpush.bf16.msra.mxu0 0
      %2359 = vmatpush.bf16.msra.mxu0 0
      %2360 = vmatpush.bf16.msra.mxu0 0
      %2361 = vmatpush.bf16.msra.mxu0 %v2251
      %2362 = vmatmul.bf16.gmra.mxu0 %v2230
      %v2363 = vpop.f32.mrf.mxu0
      %v2364 = vadd.f32 0.0, %v2363
      %v2365 = vpop.f32.mrf.mxu0
      %v2366 = vadd.f32 0.0, %v2365
      %2367 = vmatmul.bf16.gmra.mxu0 %v2233
      %v2368 = vpop.f32.mrf.mxu0
      %v2369 = vadd.f32 0.0, %v2368
      %v2370 = vpop.f32.mrf.mxu0
      %v2371 = vadd.f32 0.0, %v2370
      %2372 = vdwg.mxu0
      %2373 = vmatpush.bf16.msra.mxu0 0
      %2374 = vmatpush.bf16.msra.mxu0 0
      %2375 = vmatpush.bf16.msra.mxu0 0
      %2376 = vmatpush.bf16.msra.mxu0 0
      %2377 = vmatpush.bf16.msra.mxu0 0
      %2378 = vmatpush.bf16.msra.mxu0 0
      %2379 = vmatpush.bf16.msra.mxu0 0
      %2380 = vmatpush.bf16.msra.mxu0 %v2254
      %2381 = vmatmul.bf16.gmra.mxu0 %v2230
      %v2382 = vpop.f32.mrf.mxu0
      %v2383 = vadd.f32 0.0, %v2382
      %v2384 = vpop.f32.mrf.mxu0
      %v2385 = vadd.f32 0.0, %v2384
      %2386 = vmatmul.bf16.gmra.mxu0 %v2233
      %v2387 = vpop.f32.mrf.mxu0
      %v2388 = vadd.f32 0.0, %v2387
      %v2389 = vpop.f32.mrf.mxu0
      %v2390 = vadd.f32 0.0, %v2389
      %2391 = vdwg.mxu0
      %2392 = vmatpush.bf16.msra.mxu0 0
      %2393 = vmatpush.bf16.msra.mxu0 0
      %2394 = vmatpush.bf16.msra.mxu0 0
      %2395 = vmatpush.bf16.msra.mxu0 0
      %2396 = vmatpush.bf16.msra.mxu0 0
      %2397 = vmatpush.bf16.msra.mxu0 0
      %2398 = vmatpush.bf16.msra.mxu0 0
      %2399 = vmatpush.bf16.msra.mxu0 %v2257
      %2400 = vmatmul.bf16.gmra.mxu0 %v2230
      %v2401 = vpop.f32.mrf.mxu0
      %v2402 = vadd.f32 0.0, %v2401
      %v2403 = vpop.f32.mrf.mxu0
      %v2404 = vadd.f32 0.0, %v2403
      %2405 = vmatmul.bf16.gmra.mxu0 %v2233
      %v2406 = vpop.f32.mrf.mxu0
      %v2407 = vadd.f32 0.0, %v2406
      %v2408 = vpop.f32.mrf.mxu0
      %v2409 = vadd.f32 0.0, %v2408
      %2410 = vdwg.mxu0
      %v2411 = vadd.f32 %v2130, %v2269
      %v2412 = vadd.f32 %v2131, %v2288
      %v2413 = vadd.f32 %v2132, %v2307
      %v2414 = vadd.f32 %v2133, %v2326
      %v2415 = vadd.f32 %v2134, %v2345
      %v2416 = vadd.f32 %v2135, %v2364
      %v2417 = vadd.f32 %v2136, %v2383
      %v2418 = vadd.f32 %v2137, %v2402
      %v2419 = vadd.f32 %v2138, %v2271
      %v2420 = vadd.f32 %v2139, %v2290
      %v2421 = vadd.f32 %v2140, %v2309
      %v2422 = vadd.f32 %v2141, %v2328
      %v2423 = vadd.f32 %v2142, %v2347
      %v2424 = vadd.f32 %v2143, %v2366
      %v2425 = vadd.f32 %v2144, %v2385
      %v2426 = vadd.f32 %v2145, %v2404
      %v2427 = vadd.f32 %v2146, %v2274
      %v2428 = vadd.f32 %v2147, %v2293
      %v2429 = vadd.f32 %v2148, %v2312
      %v2430 = vadd.f32 %v2149, %v2331
      %v2431 = vadd.f32 %v2150, %v2350
      %v2432 = vadd.f32 %v2151, %v2369
      %v2433 = vadd.f32 %v2152, %v2388
      %v2434 = vadd.f32 %v2153, %v2407
      %v2435 = vadd.f32 %v2154, %v2276
      %v2436 = vadd.f32 %v2155, %v2295
      %v2437 = vadd.f32 %v2156, %v2314
      %v2438 = vadd.f32 %v2157, %v2333
      %v2439 = vadd.f32 %v2158, %v2352
      %v2440 = vadd.f32 %v2159, %v2371
      %v2441 = vadd.f32 %v2160, %v2390
      %v2442 = vadd.f32 %v2161, %v2409
      %s2443 = scalar_lea.vmem %s1, 128
      %v2444 = vld [vmem:[%s2443] sm:$0xf]
      %v2445 = vld [vmem:[%s2443 + $0x4] sm:$0xf]
      %v2446 = vld [vmem:[%s2443 + $0x8] sm:$0xf]
      %v2447 = vld [vmem:[%s2443 + $0xc] sm:$0xf]
      %v2452 = vunpack.c.l.b16 %v2444
      %v2453 = vunpack.c.l.b16 %v2445
      %v2454 = vunpack.c.l.b16 %v2446
      %v2455 = vunpack.c.l.b16 %v2447
      %v2456 = vpack.c.b16 %v2453, %v2452
      %v2457 = vpack.c.b16 %v2455, %v2454
      %v2459 = vsel %vm266, %v2456, 0
      %v2462 = vsel %vm266, %v2457, 0
      %2464 = vmatpush.bf16.xpose.msra.mxu0 0
      %2465 = vmatpush.bf16.xpose.msra.mxu0 0
      %2466 = vmatpush.bf16.xpose.msra.mxu0 0
      %2467 = vmatpush.bf16.xpose.msra.mxu0 0
      %2468 = vmatpush.bf16.xpose.msra.mxu0 0
      %2469 = vmatpush.bf16.xpose.msra.mxu0 0
      %2470 = vmatpush.bf16.xpose.msra.mxu0 0
      %2471 = vmatpush.bf16.xpose.msra.mxu0 %v274
      %2472 = vmatmul.bf16.gmra.mxu0 %v2459
      %v2473 = vpop.f32.mrf.mxu0
      %v2474 = vadd.f32 0.0, %v2473
      %v2475 = vpop.f32.mrf.mxu0
      %v2476 = vadd.f32 0.0, %v2475
      %2477 = vmatmul.bf16.gmra.mxu0 %v2462
      %v2478 = vpop.f32.mrf.mxu0
      %v2479 = vadd.f32 0.0, %v2478
      %v2480 = vpop.f32.mrf.mxu0
      %v2481 = vadd.f32 0.0, %v2480
      %2482 = vdwg.mxu0
      %v2483 = vpack.c.bf16 %v2476, %v2474
      %v2484 = vpack.c.bf16 %v2481, %v2479
      %s2485 = scalar_lea.vmem %s3, 256
      %v2486 = vld [vmem:[%s2485] sm:$0x77]
      %v2487 = vld [vmem:[%s2485 + $0x8] sm:$0x77]
      %v2488 = vld [vmem:[%s2485 + $0x10] sm:$0x77]
      %v2489 = vld [vmem:[%s2485 + $0x18] sm:$0x77]
      %v2494 = vunpack.c.l.b16 %v2486
      %v2495 = vunpack.c.h.b16 %v2486
      %v2496 = vunpack.c.l.b16 %v2487
      %v2497 = vunpack.c.h.b16 %v2487
      %v2498 = vunpack.c.l.b16 %v2488
      %v2499 = vunpack.c.h.b16 %v2488
      %v2500 = vunpack.c.l.b16 %v2489
      %v2501 = vunpack.c.h.b16 %v2489
      %v2502 = vpack.c.b16 %v2494, %v2494
      %v2503 = vpack.c.b16 %v2495, %v2495
      %v2504 = vpack.c.b16 %v2496, %v2496
      %v2505 = vpack.c.b16 %v2497, %v2497
      %v2506 = vpack.c.b16 %v2498, %v2498
      %v2507 = vpack.c.b16 %v2499, %v2499
      %v2508 = vpack.c.b16 %v2500, %v2500
      %v2509 = vpack.c.b16 %v2501, %v2501
      %v2511 = vsel %vm368, %v2483, 0
      %v2514 = vsel %vm368, %v2484, 0
      %v2517 = vand.u32 %v2502, %v378
      %v2520 = vand.u32 %v2503, %v378
      %v2523 = vand.u32 %v2504, %v378
      %v2526 = vand.u32 %v2505, %v378
      %v2529 = vand.u32 %v2506, %v378
      %v2532 = vand.u32 %v2507, %v378
      %v2535 = vand.u32 %v2508, %v378
      %v2538 = vand.u32 %v2509, %v378
      %2540 = vmatpush.bf16.msra.mxu0 0
      %2541 = vmatpush.bf16.msra.mxu0 0
      %2542 = vmatpush.bf16.msra.mxu0 0
      %2543 = vmatpush.bf16.msra.mxu0 0
      %2544 = vmatpush.bf16.msra.mxu0 0
      %2545 = vmatpush.bf16.msra.mxu0 0
      %2546 = vmatpush.bf16.msra.mxu0 0
      %2547 = vmatpush.bf16.msra.mxu0 %v2517
      %2548 = vmatmul.bf16.gmra.mxu0 %v2511
      %v2549 = vpop.f32.mrf.mxu0
      %v2550 = vadd.f32 0.0, %v2549
      %v2551 = vpop.f32.mrf.mxu0
      %v2552 = vadd.f32 0.0, %v2551
      %2553 = vmatmul.bf16.gmra.mxu0 %v2514
      %v2554 = vpop.f32.mrf.mxu0
      %v2555 = vadd.f32 0.0, %v2554
      %v2556 = vpop.f32.mrf.mxu0
      %v2557 = vadd.f32 0.0, %v2556
      %2558 = vdwg.mxu0
      %2559 = vmatpush.bf16.msra.mxu0 0
      %2560 = vmatpush.bf16.msra.mxu0 0
      %2561 = vmatpush.bf16.msra.mxu0 0
      %2562 = vmatpush.bf16.msra.mxu0 0
      %2563 = vmatpush.bf16.msra.mxu0 0
      %2564 = vmatpush.bf16.msra.mxu0 0
      %2565 = vmatpush.bf16.msra.mxu0 0
      %2566 = vmatpush.bf16.msra.mxu0 %v2520
      %2567 = vmatmul.bf16.gmra.mxu0 %v2511
      %v2568 = vpop.f32.mrf.mxu0
      %v2569 = vadd.f32 0.0, %v2568
      %v2570 = vpop.f32.mrf.mxu0
      %v2571 = vadd.f32 0.0, %v2570
      %2572 = vmatmul.bf16.gmra.mxu0 %v2514
      %v2573 = vpop.f32.mrf.mxu0
      %v2574 = vadd.f32 0.0, %v2573
      %v2575 = vpop.f32.mrf.mxu0
      %v2576 = vadd.f32 0.0, %v2575
      %2577 = vdwg.mxu0
      %2578 = vmatpush.bf16.msra.mxu0 0
      %2579 = vmatpush.bf16.msra.mxu0 0
      %2580 = vmatpush.bf16.msra.mxu0 0
      %2581 = vmatpush.bf16.msra.mxu0 0
      %2582 = vmatpush.bf16.msra.mxu0 0
      %2583 = vmatpush.bf16.msra.mxu0 0
      %2584 = vmatpush.bf16.msra.mxu0 0
      %2585 = vmatpush.bf16.msra.mxu0 %v2523
      %2586 = vmatmul.bf16.gmra.mxu0 %v2511
      %v2587 = vpop.f32.mrf.mxu0
      %v2588 = vadd.f32 0.0, %v2587
      %v2589 = vpop.f32.mrf.mxu0
      %v2590 = vadd.f32 0.0, %v2589
      %2591 = vmatmul.bf16.gmra.mxu0 %v2514
      %v2592 = vpop.f32.mrf.mxu0
      %v2593 = vadd.f32 0.0, %v2592
      %v2594 = vpop.f32.mrf.mxu0
      %v2595 = vadd.f32 0.0, %v2594
      %2596 = vdwg.mxu0
      %2597 = vmatpush.bf16.msra.mxu0 0
      %2598 = vmatpush.bf16.msra.mxu0 0
      %2599 = vmatpush.bf16.msra.mxu0 0
      %2600 = vmatpush.bf16.msra.mxu0 0
      %2601 = vmatpush.bf16.msra.mxu0 0
      %2602 = vmatpush.bf16.msra.mxu0 0
      %2603 = vmatpush.bf16.msra.mxu0 0
      %2604 = vmatpush.bf16.msra.mxu0 %v2526
      %2605 = vmatmul.bf16.gmra.mxu0 %v2511
      %v2606 = vpop.f32.mrf.mxu0
      %v2607 = vadd.f32 0.0, %v2606
      %v2608 = vpop.f32.mrf.mxu0
      %v2609 = vadd.f32 0.0, %v2608
      %2610 = vmatmul.bf16.gmra.mxu0 %v2514
      %v2611 = vpop.f32.mrf.mxu0
      %v2612 = vadd.f32 0.0, %v2611
      %v2613 = vpop.f32.mrf.mxu0
      %v2614 = vadd.f32 0.0, %v2613
      %2615 = vdwg.mxu0
      %2616 = vmatpush.bf16.msra.mxu0 0
      %2617 = vmatpush.bf16.msra.mxu0 0
      %2618 = vmatpush.bf16.msra.mxu0 0
      %2619 = vmatpush.bf16.msra.mxu0 0
      %2620 = vmatpush.bf16.msra.mxu0 0
      %2621 = vmatpush.bf16.msra.mxu0 0
      %2622 = vmatpush.bf16.msra.mxu0 0
      %2623 = vmatpush.bf16.msra.mxu0 %v2529
      %2624 = vmatmul.bf16.gmra.mxu0 %v2511
      %v2625 = vpop.f32.mrf.mxu0
      %v2626 = vadd.f32 0.0, %v2625
      %v2627 = vpop.f32.mrf.mxu0
      %v2628 = vadd.f32 0.0, %v2627
      %2629 = vmatmul.bf16.gmra.mxu0 %v2514
      %v2630 = vpop.f32.mrf.mxu0
      %v2631 = vadd.f32 0.0, %v2630
      %v2632 = vpop.f32.mrf.mxu0
      %v2633 = vadd.f32 0.0, %v2632
      %2634 = vdwg.mxu0
      %2635 = vmatpush.bf16.msra.mxu0 0
      %2636 = vmatpush.bf16.msra.mxu0 0
      %2637 = vmatpush.bf16.msra.mxu0 0
      %2638 = vmatpush.bf16.msra.mxu0 0
      %2639 = vmatpush.bf16.msra.mxu0 0
      %2640 = vmatpush.bf16.msra.mxu0 0
      %2641 = vmatpush.bf16.msra.mxu0 0
      %2642 = vmatpush.bf16.msra.mxu0 %v2532
      %2643 = vmatmul.bf16.gmra.mxu0 %v2511
      %v2644 = vpop.f32.mrf.mxu0
      %v2645 = vadd.f32 0.0, %v2644
      %v2646 = vpop.f32.mrf.mxu0
      %v2647 = vadd.f32 0.0, %v2646
      %2648 = vmatmul.bf16.gmra.mxu0 %v2514
      %v2649 = vpop.f32.mrf.mxu0
      %v2650 = vadd.f32 0.0, %v2649
      %v2651 = vpop.f32.mrf.mxu0
      %v2652 = vadd.f32 0.0, %v2651
      %2653 = vdwg.mxu0
      %2654 = vmatpush.bf16.msra.mxu0 0
      %2655 = vmatpush.bf16.msra.mxu0 0
      %2656 = vmatpush.bf16.msra.mxu0 0
      %2657 = vmatpush.bf16.msra.mxu0 0
      %2658 = vmatpush.bf16.msra.mxu0 0
      %2659 = vmatpush.bf16.msra.mxu0 0
      %2660 = vmatpush.bf16.msra.mxu0 0
      %2661 = vmatpush.bf16.msra.mxu0 %v2535
      %2662 = vmatmul.bf16.gmra.mxu0 %v2511
      %v2663 = vpop.f32.mrf.mxu0
      %v2664 = vadd.f32 0.0, %v2663
      %v2665 = vpop.f32.mrf.mxu0
      %v2666 = vadd.f32 0.0, %v2665
      %2667 = vmatmul.bf16.gmra.mxu0 %v2514
      %v2668 = vpop.f32.mrf.mxu0
      %v2669 = vadd.f32 0.0, %v2668
      %v2670 = vpop.f32.mrf.mxu0
      %v2671 = vadd.f32 0.0, %v2670
      %2672 = vdwg.mxu0
      %2673 = vmatpush.bf16.msra.mxu0 0
      %2674 = vmatpush.bf16.msra.mxu0 0
      %2675 = vmatpush.bf16.msra.mxu0 0
      %2676 = vmatpush.bf16.msra.mxu0 0
      %2677 = vmatpush.bf16.msra.mxu0 0
      %2678 = vmatpush.bf16.msra.mxu0 0
      %2679 = vmatpush.bf16.msra.mxu0 0
      %2680 = vmatpush.bf16.msra.mxu0 %v2538
      %2681 = vmatmul.bf16.gmra.mxu0 %v2511
      %v2682 = vpop.f32.mrf.mxu0
      %v2683 = vadd.f32 0.0, %v2682
      %v2684 = vpop.f32.mrf.mxu0
      %v2685 = vadd.f32 0.0, %v2684
      %2686 = vmatmul.bf16.gmra.mxu0 %v2514
      %v2687 = vpop.f32.mrf.mxu0
      %v2688 = vadd.f32 0.0, %v2687
      %v2689 = vpop.f32.mrf.mxu0
      %v2690 = vadd.f32 0.0, %v2689
      %2691 = vdwg.mxu0
      %v2692 = vadd.f32 %v2411, %v2550
      %v2693 = vadd.f32 %v2412, %v2569
      %v2694 = vadd.f32 %v2413, %v2588
      %v2695 = vadd.f32 %v2414, %v2607
      %v2696 = vadd.f32 %v2415, %v2626
      %v2697 = vadd.f32 %v2416, %v2645
      %v2698 = vadd.f32 %v2417, %v2664
      %v2699 = vadd.f32 %v2418, %v2683
      %v2700 = vadd.f32 %v2419, %v2552
      %v2701 = vadd.f32 %v2420, %v2571
      %v2702 = vadd.f32 %v2421, %v2590
      %v2703 = vadd.f32 %v2422, %v2609
      %v2704 = vadd.f32 %v2423, %v2628
      %v2705 = vadd.f32 %v2424, %v2647
      %v2706 = vadd.f32 %v2425, %v2666
      %v2707 = vadd.f32 %v2426, %v2685
      %v2708 = vadd.f32 %v2427, %v2555
      %v2709 = vadd.f32 %v2428, %v2574
      %v2710 = vadd.f32 %v2429, %v2593
      %v2711 = vadd.f32 %v2430, %v2612
      %v2712 = vadd.f32 %v2431, %v2631
      %v2713 = vadd.f32 %v2432, %v2650
      %v2714 = vadd.f32 %v2433, %v2669
      %v2715 = vadd.f32 %v2434, %v2688
      %v2716 = vadd.f32 %v2435, %v2557
      %v2717 = vadd.f32 %v2436, %v2576
      %v2718 = vadd.f32 %v2437, %v2595
      %v2719 = vadd.f32 %v2438, %v2614
      %v2720 = vadd.f32 %v2439, %v2633
      %v2721 = vadd.f32 %v2440, %v2652
      %v2722 = vadd.f32 %v2441, %v2671
      %v2723 = vadd.f32 %v2442, %v2690
      %v2724 = vld [vmem:[%s2] sm:$0xff]
      %v2725 = vld [vmem:[%s2 + $0x8] sm:$0xff]
      %v2726 = vld [vmem:[%s2 + $0x10] sm:$0xff]
      %v2727 = vld [vmem:[%s2 + $0x18] sm:$0xff]
      %2729 = vset.pattern.permute.xlu0 0
      %2730 = vperm.xlu0 %2729, %v2724
      %v2731 = vpop.permute.xlu0 %2730
      %2734 = vset.pattern.permute.xlu0 0
      %2735 = vperm.xlu0 %2734, %v2725
      %v2736 = vpop.permute.xlu0 %2735
      %2739 = vset.pattern.permute.xlu0 0
      %2740 = vperm.xlu0 %2739, %v2726
      %v2741 = vpop.permute.xlu0 %2740
      %2744 = vset.pattern.permute.xlu0 0
      %2745 = vperm.xlu0 %2744, %v2727
      %v2746 = vpop.permute.xlu0 %2745
      %v2748 = vadd.f32 %v2692, %v2731
      %v2749 = vadd.f32 %v2693, %v2731
      %v2750 = vadd.f32 %v2694, %v2731
      %v2751 = vadd.f32 %v2695, %v2731
      %v2752 = vadd.f32 %v2696, %v2731
      %v2753 = vadd.f32 %v2697, %v2731
      %v2754 = vadd.f32 %v2698, %v2731
      %v2755 = vadd.f32 %v2699, %v2731
      %v2756 = vadd.f32 %v2700, %v2736
      %v2757 = vadd.f32 %v2701, %v2736
      %v2758 = vadd.f32 %v2702, %v2736
      %v2759 = vadd.f32 %v2703, %v2736
      %v2760 = vadd.f32 %v2704, %v2736
      %v2761 = vadd.f32 %v2705, %v2736
      %v2762 = vadd.f32 %v2706, %v2736
      %v2763 = vadd.f32 %v2707, %v2736
      %v2764 = vadd.f32 %v2708, %v2741
      %v2765 = vadd.f32 %v2709, %v2741
      %v2766 = vadd.f32 %v2710, %v2741
      %v2767 = vadd.f32 %v2711, %v2741
      %v2768 = vadd.f32 %v2712, %v2741
      %v2769 = vadd.f32 %v2713, %v2741
      %v2770 = vadd.f32 %v2714, %v2741
      %v2771 = vadd.f32 %v2715, %v2741
      %v2772 = vadd.f32 %v2716, %v2746
      %v2773 = vadd.f32 %v2717, %v2746
      %v2774 = vadd.f32 %v2718, %v2746
      %v2775 = vadd.f32 %v2719, %v2746
      %v2776 = vadd.f32 %v2720, %v2746
      %v2777 = vadd.f32 %v2721, %v2746
      %v2778 = vadd.f32 %v2722, %v2746
      %v2779 = vadd.f32 %v2723, %v2746
      %v2780 = vmax.f32 %v2748, 0.0
      %v2781 = vmax.f32 %v2749, 0.0
      %v2782 = vmax.f32 %v2750, 0.0
      %v2783 = vmax.f32 %v2751, 0.0
      %v2784 = vmax.f32 %v2752, 0.0
      %v2785 = vmax.f32 %v2753, 0.0
      %v2786 = vmax.f32 %v2754, 0.0
      %v2787 = vmax.f32 %v2755, 0.0
      %v2788 = vmax.f32 %v2756, 0.0
      %v2789 = vmax.f32 %v2757, 0.0
      %v2790 = vmax.f32 %v2758, 0.0
      %v2791 = vmax.f32 %v2759, 0.0
      %v2792 = vmax.f32 %v2760, 0.0
      %v2793 = vmax.f32 %v2761, 0.0
      %v2794 = vmax.f32 %v2762, 0.0
      %v2795 = vmax.f32 %v2763, 0.0
      %v2796 = vmax.f32 %v2764, 0.0
      %v2797 = vmax.f32 %v2765, 0.0
      %v2798 = vmax.f32 %v2766, 0.0
      %v2799 = vmax.f32 %v2767, 0.0
      %v2800 = vmax.f32 %v2768, 0.0
      %v2801 = vmax.f32 %v2769, 0.0
      %v2802 = vmax.f32 %v2770, 0.0
      %v2803 = vmax.f32 %v2771, 0.0
      %v2804 = vmax.f32 %v2772, 0.0
      %v2805 = vmax.f32 %v2773, 0.0
      %v2806 = vmax.f32 %v2774, 0.0
      %v2807 = vmax.f32 %v2775, 0.0
      %v2808 = vmax.f32 %v2776, 0.0
      %v2809 = vmax.f32 %v2777, 0.0
      %v2810 = vmax.f32 %v2778, 0.0
      %v2811 = vmax.f32 %v2779, 0.0
      %v2812 = vld [vmem:[%s4] sm:$0x3]
      %v2813 = vpack.c.bf16 %v2788, %v2780
      %v2814 = vpack.c.bf16 %v2789, %v2781
      %v2815 = vpack.c.bf16 %v2790, %v2782
      %v2816 = vpack.c.bf16 %v2791, %v2783
      %v2817 = vpack.c.bf16 %v2792, %v2784
      %v2818 = vpack.c.bf16 %v2793, %v2785
      %v2819 = vpack.c.bf16 %v2794, %v2786
      %v2820 = vpack.c.bf16 %v2795, %v2787
      %v2821 = vpack.c.bf16 %v2804, %v2796
      %v2822 = vpack.c.bf16 %v2805, %v2797
      %v2823 = vpack.c.bf16 %v2806, %v2798
      %v2824 = vpack.c.bf16 %v2807, %v2799
      %v2825 = vpack.c.bf16 %v2808, %v2800
      %v2826 = vpack.c.bf16 %v2809, %v2801
      %v2827 = vpack.c.bf16 %v2810, %v2802
      %v2828 = vpack.c.bf16 %v2811, %v2803
      %v2829 = vld [vmem:[%s5] sm:$0x7]
      %2831 = vset.pattern.permute.xlu0 0
      %2832 = vperm.xlu0 %2831, %v2829
      %v2833 = vpop.permute.xlu0 %2832
      %vm2835 = vcmask 261120
      %v2837 = vsel %vm2835, %v2812, 0
      %2839 = vmatpush.bf16.msra.mxu0 0
      %2840 = vmatpush.bf16.msra.mxu0 0
      %2841 = vmatpush.bf16.msra.mxu0 0
      %2842 = vmatpush.bf16.msra.mxu0 0
      %2843 = vmatpush.bf16.msra.mxu0 0
      %2844 = vmatpush.bf16.msra.mxu0 0
      %2845 = vmatpush.bf16.msra.mxu0 %v2821
      %2846 = vmatpush.bf16.msra.mxu0 %v2813
      %2847 = vmatmul.bf16.gmra.mxu0 %v2837
      %v2848 = vpop.f32.mrf.mxu0
      %v2849 = vadd.f32 %v2833, %v2848
      %v2850 = vpop.f32.mrf.mxu0
      %2851 = vdwg.mxu0
      %2852 = vmatpush.bf16.msra.mxu0 0
      %2853 = vmatpush.bf16.msra.mxu0 0
      %2854 = vmatpush.bf16.msra.mxu0 0
      %2855 = vmatpush.bf16.msra.mxu0 0
      %2856 = vmatpush.bf16.msra.mxu0 0
      %2857 = vmatpush.bf16.msra.mxu0 0
      %2858 = vmatpush.bf16.msra.mxu0 %v2822
      %2859 = vmatpush.bf16.msra.mxu0 %v2814
      %2860 = vmatmul.bf16.gmra.mxu0 %v2837
      %v2861 = vpop.f32.mrf.mxu0
      %v2862 = vadd.f32 %v2833, %v2861
      %v2863 = vpop.f32.mrf.mxu0
      %2864 = vdwg.mxu0
      %2865 = vmatpush.bf16.msra.mxu0 0
      %2866 = vmatpush.bf16.msra.mxu0 0
      %2867 = vmatpush.bf16.msra.mxu0 0
      %2868 = vmatpush.bf16.msra.mxu0 0
      %2869 = vmatpush.bf16.msra.mxu0 0
      %2870 = vmatpush.bf16.msra.mxu0 0
      %2871 = vmatpush.bf16.msra.mxu0 %v2823
      %2872 = vmatpush.bf16.msra.mxu0 %v2815
      %2873 = vmatmul.bf16.gmra.mxu0 %v2837
      %v2874 = vpop.f32.mrf.mxu0
      %v2875 = vadd.f32 %v2833, %v2874
      %v2876 = vpop.f32.mrf.mxu0
      %2877 = vdwg.mxu0
      %2878 = vmatpush.bf16.msra.mxu0 0
      %2879 = vmatpush.bf16.msra.mxu0 0
      %2880 = vmatpush.bf16.msra.mxu0 0
      %2881 = vmatpush.bf16.msra.mxu0 0
      %2882 = vmatpush.bf16.msra.mxu0 0
      %2883 = vmatpush.bf16.msra.mxu0 0
      %2884 = vmatpush.bf16.msra.mxu0 %v2824
      %2885 = vmatpush.bf16.msra.mxu0 %v2816
      %2886 = vmatmul.bf16.gmra.mxu0 %v2837
      %v2887 = vpop.f32.mrf.mxu0
      %v2888 = vadd.f32 %v2833, %v2887
      %v2889 = vpop.f32.mrf.mxu0
      %2890 = vdwg.mxu0
      %2891 = vmatpush.bf16.msra.mxu0 0
      %2892 = vmatpush.bf16.msra.mxu0 0
      %2893 = vmatpush.bf16.msra.mxu0 0
      %2894 = vmatpush.bf16.msra.mxu0 0
      %2895 = vmatpush.bf16.msra.mxu0 0
      %2896 = vmatpush.bf16.msra.mxu0 0
      %2897 = vmatpush.bf16.msra.mxu0 %v2825
      %2898 = vmatpush.bf16.msra.mxu0 %v2817
      %2899 = vmatmul.bf16.gmra.mxu0 %v2837
      %v2900 = vpop.f32.mrf.mxu0
      %v2901 = vadd.f32 %v2833, %v2900
      %v2902 = vpop.f32.mrf.mxu0
      %2903 = vdwg.mxu0
      %2904 = vmatpush.bf16.msra.mxu0 0
      %2905 = vmatpush.bf16.msra.mxu0 0
      %2906 = vmatpush.bf16.msra.mxu0 0
      %2907 = vmatpush.bf16.msra.mxu0 0
      %2908 = vmatpush.bf16.msra.mxu0 0
      %2909 = vmatpush.bf16.msra.mxu0 0
      %2910 = vmatpush.bf16.msra.mxu0 %v2826
      %2911 = vmatpush.bf16.msra.mxu0 %v2818
      %2912 = vmatmul.bf16.gmra.mxu0 %v2837
      %v2913 = vpop.f32.mrf.mxu0
      %v2914 = vadd.f32 %v2833, %v2913
      %v2915 = vpop.f32.mrf.mxu0
      %2916 = vdwg.mxu0
      %2917 = vmatpush.bf16.msra.mxu0 0
      %2918 = vmatpush.bf16.msra.mxu0 0
      %2919 = vmatpush.bf16.msra.mxu0 0
      %2920 = vmatpush.bf16.msra.mxu0 0
      %2921 = vmatpush.bf16.msra.mxu0 0
      %2922 = vmatpush.bf16.msra.mxu0 0
      %2923 = vmatpush.bf16.msra.mxu0 %v2827
      %2924 = vmatpush.bf16.msra.mxu0 %v2819
      %2925 = vmatmul.bf16.gmra.mxu0 %v2837
      %v2926 = vpop.f32.mrf.mxu0
      %v2927 = vadd.f32 %v2833, %v2926
      %v2928 = vpop.f32.mrf.mxu0
      %2929 = vdwg.mxu0
      %2930 = vmatpush.bf16.msra.mxu0 0
      %2931 = vmatpush.bf16.msra.mxu0 0
      %2932 = vmatpush.bf16.msra.mxu0 0
      %2933 = vmatpush.bf16.msra.mxu0 0
      %2934 = vmatpush.bf16.msra.mxu0 0
      %2935 = vmatpush.bf16.msra.mxu0 0
      %2936 = vmatpush.bf16.msra.mxu0 %v2828
      %2937 = vmatpush.bf16.msra.mxu0 %v2820
      %2938 = vmatmul.bf16.gmra.mxu0 %v2837
      %v2939 = vpop.f32.mrf.mxu0
      %v2940 = vadd.f32 %v2833, %v2939
      %v2941 = vpop.f32.mrf.mxu0
      %2942 = vdwg.mxu0
      %v2951 = vrot.slane %v2862, 4
      %v2952 = vrot.slane %v2888, 4
      %v2953 = vrot.slane %v2914, 4
      %v2954 = vrot.slane %v2940, 4
      %vm2955 = vcmask 1043456
      %v2956 = vsel %vm2955, %v2849, %v2951
      %v2957 = vsel %vm2955, %v2875, %v2952
      %v2958 = vsel %vm2955, %v2901, %v2953
      %v2959 = vsel %vm2955, %v2927, %v2954
      %2964 = vst [vmem:[%s248] sm:$0x77] %v2956
      %2965 = vst [vmem:[%s248 + $0x8] sm:$0x77] %v2957
      %2966 = vst [vmem:[%s248 + $0x10] sm:$0x77] %v2958
      %2967 = vst [vmem:[%s248 + $0x18] sm:$0x77] %v2959
      %p2968 = scmp.lt.s32.totalorder %s17, 1
      %s2969 = scalar_select %p2968, %s17, 1
      %s2970 = smul.addr %s2969, 8
      %s2971 = smul.addr %s2970, 4
      %s2972 = scalar_lea.vmem %s6, %s2971
      // Predicated region
      $region45: #{_lambda_.3} parent=43 // pred_check
        %p2973 = pneg %p166
      $region46: #{_lambda_.3} parent=43 // pred_check_branch
        %2975 = sbr.rel (%p2973) target = $region48
      $region47: #{_lambda_.3} parent=43 // pred_region
        _
      $region48: #{_lambda_.3} parent=43 // pred_fallthru
        _
    $region44: #{_lambda_.3} parent=5 // pred_fallthru
      _
    %p2976 = scmp.le.s32.totalorder 2, %s12
    // Predicated region
    $region49: #{_lambda_.3} parent=5 // pred_check
      %p2977 = pneg %p2976
    $region50: #{_lambda_.3} parent=5 // pred_check_branch
      %2979 = sbr.rel (%p2977) target = $region52
    $region51: #{_lambda_.3} parent=5 // pred_region
      %s2980 = ssub.s32 %s12, 2
      // Predicated region
      $region53: #{_lambda_.3} parent=51 // pred_check
        %p2981 = pneg %p172
      $region54: #{_lambda_.3} parent=51 // pred_check_branch
        %2983 = sbr.rel (%p2981) target = $region56
      $region55: #{_lambda_.3} parent=51 // pred_region
        %p2984 = scmp.lt.s32.totalorder %s18, 1
        %s2985 = scalar_select %p2984, %s18, 1
        %s2986 = smul.addr %s2985, 8
        %s2987 = smul.addr %s2986, 4
        %s2988 = scalar_lea.vmem %s6, %s2987
      $region56: #{_lambda_.3} parent=51 // pred_fallthru
        _
    $region52: #{_lambda_.3} parent=5 // pred_fallthru
      _
  $region6: #{_lambda_.3} parent=0 // loop_footer
    %s16 = sadd.s32 1, %s12
  $region7: #{_lambda_.3} parent=0 // loop_footer_branch
    %11 = sbr.rel target = $region3
  $region8: #{_lambda_.3} parent=0 // loop_exit
    _

// kernel: _lambda_.2
$region0: #{_lambda_.2}
  #allocation0 [shape = 'u32[]', space=smem, size = 0x4, offset = 0x4, fixed_abs, tag = 'smem constant byte address 0x4 - core index']
  #allocation1 [shape = 'u32[72,128]{1,0:T(1,128)}', space=vmem, size = 0x9000, scoped, tag = 'internal scratch']
  %s0 = inlined_call_operand.vmem [shape: f32[2,5,768], index: 0, kind: input, shape index: {}]
  %s1 = inlined_call_operand.vmem [shape: bf16[768,64], index: 1, kind: input, shape index: {}]
  %s2 = inlined_call_operand.vmem [shape: f32[5,64], index: 2, kind: input, shape index: {}]
  %s3 = inlined_call_operand.vmem [shape: f32[2,1,64], index: 3, kind: input, shape index: {}]
  %s4 = inlined_call_operand.vmem [shape: f32[2,1,64], index: 4, kind: input, shape index: {}]
  %s5 = inlined_call_operand.vmem [shape: bf16[2,4,64,16], index: 5, kind: input, shape index: {}]
  %s6 = inlined_call_operand.vmem [shape: bf16[2,4,64,16], index: 6, kind: input, shape index: {}]
  %s7 = inlined_call_operand.vmem [shape: bf16[2,4,64,16], index: 7, kind: input, shape index: {}]
  %s8 = inlined_call_operand.vmem [shape: f32[2,4,1,16], index: 8, kind: input, shape index: {}]
  %s9 = inlined_call_operand.vmem [shape: f32[2,4,1,16], index: 9, kind: input, shape index: {}]
  %s10 = inlined_call_operand.vmem [shape: f32[2,4,1,16], index: 10, kind: input, shape index: {}]
  %s11 = inlined_call_operand.vmem [shape: bf16[2,4,16,64], index: 11, kind: input, shape index: {}]
  %s12 = inlined_call_operand.vmem [shape: f32[2,1,64], index: 12, kind: input, shape index: {}]
  %s13 = inlined_call_operand.vmem [shape: f32[2,1,64], index: 13, kind: input, shape index: {}]
  %s14 = inlined_call_operand.vmem [shape: f32[2,1,64], index: 14, kind: input, shape index: {}]
  %s15 = inlined_call_operand.vmem [shape: bf16[2,64,256], index: 15, kind: input, shape index: {}]
  %s16 = inlined_call_operand.vmem [shape: f32[2,1,256], index: 16, kind: input, shape index: {}]
  %s17 = inlined_call_operand.vmem [shape: bf16[2,256,64], index: 17, kind: input, shape index: {}]
  %s18 = inlined_call_operand.vmem [shape: f32[2,1,64], index: 18, kind: input, shape index: {}]
  %s19 = inlined_call_operand.vmem [shape: f32[1,64], index: 19, kind: input, shape index: {}]
  %s20 = inlined_call_operand.vmem [shape: f32[1,64], index: 20, kind: input, shape index: {}]
  %s21 = inlined_call_operand.vmem [shape: f32[2,5,64], index: 21, kind: output, shape index: {}]
  %s22 = sld [smem:[#allocation0]]
  $region117: #{_lambda_.2} parent=0
    _
  %s24 = ssub.s32 1, %s22
  %s25 = scalar_select 0, %s24, %s22
  loop: start=0, step=1, limit=4
  $region2: #{_lambda_.2} parent=0 // loop_pre_header
    _
  $region3: #{_lambda_.2} parent=0 // loop_header
    %s27 = sphi 0, %s31
    %p28 = scmp.ge.s32.totalorder %s27, 4
    %s37 = sphi 0, %s39
    %s40 = sphi 0, %s37
    %s41 = sphi 0, %s40
    %s57 = sphi 0, %s41
    %s61 = sphi 0, %s61
    %s63 = sphi 0, %s61
    %s64 = sphi 0, %s63
    %s78 = sphi 0, %s64
    %s82 = sphi 0, %s82
    %s84 = sphi 0, %s82
    %s85 = sphi 0, %s84
    %s99 = sphi 0, %s85
    %s103 = sphi 0, %s103
    %s105 = sphi 0, %s103
    %s106 = sphi 0, %s105
    %s120 = sphi 0, %s106
    %s124 = sphi 0, %s124
    %s126 = sphi 0, %s124
    %s127 = sphi 0, %s126
    %s141 = sphi 0, %s127
    %s145 = sphi 0, %s145
    %s147 = sphi 0, %s145
    %s148 = sphi 0, %s147
    %s162 = sphi 0, %s148
    %s166 = sphi 0, %s166
    %s168 = sphi 0, %s166
    %s169 = sphi 0, %s168
    %s183 = sphi 0, %s169
    %s187 = sphi 0, %s187
    %s189 = sphi 0, %s187
    %s190 = sphi 0, %s189
    %s204 = sphi 0, %s190
    %s208 = sphi 0, %s208
    %s210 = sphi 0, %s208
    %s211 = sphi 0, %s210
    %s225 = sphi 0, %s211
    %s229 = sphi 0, %s229
    %s231 = sphi 0, %s229
    %s232 = sphi 0, %s231
    %s246 = sphi 0, %s232
    %s250 = sphi 0, %s250
    %s252 = sphi 0, %s250
    %s253 = sphi 0, %s252
    %s267 = sphi 0, %s253
    %s271 = sphi 0, %s271
    %s273 = sphi 0, %s271
    %s274 = sphi 0, %s273
    %s288 = sphi 0, %s274
    %s292 = sphi 0, %s292
    %s294 = sphi 0, %s292
    %s295 = sphi 0, %s294
    %s309 = sphi 0, %s295
    %s313 = sphi 0, %s313
    %s315 = sphi 0, %s313
    %s316 = sphi 0, %s315
    %s330 = sphi 0, %s316
    %s334 = sphi 0, %s334
    %s336 = sphi 0, %s334
    %s337 = sphi 0, %s336
    %s351 = sphi 0, %s337
    %s355 = sphi 0, %s355
    %s357 = sphi 0, %s355
    %s358 = sphi 0, %s357
    %s372 = sphi 0, %s358
    %s376 = sphi 0, %s376
    %s378 = sphi 0, %s376
    %s379 = sphi 0, %s378
    %s393 = sphi 0, %s379
    %s397 = sphi 0, %s397
    %s399 = sphi 0, %s397
    %s400 = sphi 0, %s399
    %s414 = sphi 0, %s400
    %s418 = sphi 0, %s418
    %s420 = sphi 0, %s418
    %s421 = sphi 0, %s420
    %s435 = sphi 0, %s421
    %s439 = sphi 0, %s439
    %s441 = sphi 0, %s439
    %s442 = sphi 0, %s441
    %s456 = sphi 0, %s442
    %s460 = sphi 0, %s460
    %s462 = sphi 0, %s460
    %s463 = sphi 0, %s462
    %s477 = sphi 0, %s463
    %s483 = sphi 0, %s485
    %s486 = sphi 0, %s483
    %s487 = sphi 0, %s486
    %s503 = sphi 0, %s487
  $region4: #{_lambda_.2} parent=0 // loop_header_branch
    %30 = sbr.rel (%p28) target = $region8
  $region5: #{_lambda_.2} parent=0 // loop_body
    %s32 = ssub.s32 %s27, 1
    %s33 = ssub.s32 %s27, 2
    %s34 = sadd.s32 %s27, 1
    %s35 = ssub.s32 %s27, %s34
    %p36 = scmp.eq.s32.totalorder %s35, 0
    %s38 = sadd.s32 %s37, 1
    %s39 = scalar_select %p36, %s37, %s38
    %p42 = pneg %p36
    %p43 = scmp.eq.s32.totalorder %s27, 1
    %p44 = por %p42, %p43
    %p45 = scmp.ne.s32.totalorder %s37, %s40
    %p46 = scmp.eq.s32.totalorder %s27, 0
    %p47 = por %p45, %p46
    %p48 = scmp.ne.s32.totalorder %s37, %s40
    %p49 = scmp.eq.s32.totalorder %s32, 1
    %p50 = por %p48, %p49
    %p51 = scmp.ne.s32.totalorder %s40, %s41
    %p52 = scmp.eq.s32.totalorder %s32, 0
    %p53 = por %p51, %p52
    %p54 = scmp.ne.s32.totalorder %s40, %s41
    %p55 = scmp.eq.s32.totalorder %s33, 1
    %p56 = por %p54, %p55
    %p58 = scmp.ne.s32.totalorder %s41, %s57
    %p59 = scmp.eq.s32.totalorder %s33, 0
    %p60 = por %p58, %p59
    %s62 = sadd.s32 %s61, 1
    %p65 = scmp.eq.s32.totalorder %s27, 1
    %p66 = scmp.ne.s32.totalorder %s61, %s63
    %p67 = scmp.eq.s32.totalorder %s27, 0
    %p68 = por %p66, %p67
    %p69 = scmp.ne.s32.totalorder %s61, %s63
    %p70 = scmp.eq.s32.totalorder %s32, 1
    %p71 = por %p69, %p70
    %p72 = scmp.ne.s32.totalorder %s63, %s64
    %p73 = scmp.eq.s32.totalorder %s32, 0
    %p74 = por %p72, %p73
    %p75 = scmp.ne.s32.totalorder %s63, %s64
    %p76 = scmp.eq.s32.totalorder %s33, 1
    %p77 = por %p75, %p76
    %p79 = scmp.ne.s32.totalorder %s64, %s78
    %p80 = scmp.eq.s32.totalorder %s33, 0
    %p81 = por %p79, %p80
    %s83 = sadd.s32 %s82, 1
    %p86 = scmp.eq.s32.totalorder %s27, 1
    %p87 = scmp.ne.s32.totalorder %s82, %s84
    %p88 = scmp.eq.s32.totalorder %s27, 0
    %p89 = por %p87, %p88
    %p90 = scmp.ne.s32.totalorder %s82, %s84
    %p91 = scmp.eq.s32.totalorder %s32, 1
    %p92 = por %p90, %p91
    %p93 = scmp.ne.s32.totalorder %s84, %s85
    %p94 = scmp.eq.s32.totalorder %s32, 0
    %p95 = por %p93, %p94
    %p96 = scmp.ne.s32.totalorder %s84, %s85
    %p97 = scmp.eq.s32.totalorder %s33, 1
    %p98 = por %p96, %p97
    %p100 = scmp.ne.s32.totalorder %s85, %s99
    %p101 = scmp.eq.s32.totalorder %s33, 0
    %p102 = por %p100, %p101
    %s104 = sadd.s32 %s103, 1
    %p107 = scmp.eq.s32.totalorder %s27, 1
    %p108 = scmp.ne.s32.totalorder %s103, %s105
    %p109 = scmp.eq.s32.totalorder %s27, 0
    %p110 = por %p108, %p109
    %p111 = scmp.ne.s32.totalorder %s103, %s105
    %p112 = scmp.eq.s32.totalorder %s32, 1
    %p113 = por %p111, %p112
    %p114 = scmp.ne.s32.totalorder %s105, %s106
    %p115 = scmp.eq.s32.totalorder %s32, 0
    %p116 = por %p114, %p115
    %p117 = scmp.ne.s32.totalorder %s105, %s106
    %p118 = scmp.eq.s32.totalorder %s33, 1
    %p119 = por %p117, %p118
    %p121 = scmp.ne.s32.totalorder %s106, %s120
    %p122 = scmp.eq.s32.totalorder %s33, 0
    %p123 = por %p121, %p122
    %s125 = sadd.s32 %s124, 1
    %p128 = scmp.eq.s32.totalorder %s27, 1
    %p129 = scmp.ne.s32.totalorder %s124, %s126
    %p130 = scmp.eq.s32.totalorder %s27, 0
    %p131 = por %p129, %p130
    %p132 = scmp.ne.s32.totalorder %s124, %s126
    %p133 = scmp.eq.s32.totalorder %s32, 1
    %p134 = por %p132, %p133
    %p135 = scmp.ne.s32.totalorder %s126, %s127
    %p136 = scmp.eq.s32.totalorder %s32, 0
    %p137 = por %p135, %p136
    %p138 = scmp.ne.s32.totalorder %s126, %s127
    %p139 = scmp.eq.s32.totalorder %s33, 1
    %p140 = por %p138, %p139
    %p142 = scmp.ne.s32.totalorder %s127, %s141
    %p143 = scmp.eq.s32.totalorder %s33, 0
    %p144 = por %p142, %p143
    %s146 = sadd.s32 %s145, 1
    %p149 = scmp.eq.s32.totalorder %s27, 1
    %p150 = scmp.ne.s32.totalorder %s145, %s147
    %p151 = scmp.eq.s32.totalorder %s27, 0
    %p152 = por %p150, %p151
    %p153 = scmp.ne.s32.totalorder %s145, %s147
    %p154 = scmp.eq.s32.totalorder %s32, 1
    %p155 = por %p153, %p154
    %p156 = scmp.ne.s32.totalorder %s147, %s148
    %p157 = scmp.eq.s32.totalorder %s32, 0
    %p158 = por %p156, %p157
    %p159 = scmp.ne.s32.totalorder %s147, %s148
    %p160 = scmp.eq.s32.totalorder %s33, 1
    %p161 = por %p159, %p160
    %p163 = scmp.ne.s32.totalorder %s148, %s162
    %p164 = scmp.eq.s32.totalorder %s33, 0
    %p165 = por %p163, %p164
    %s167 = sadd.s32 %s166, 1
    %p170 = scmp.eq.s32.totalorder %s27, 1
    %p171 = scmp.ne.s32.totalorder %s166, %s168
    %p172 = scmp.eq.s32.totalorder %s27, 0
    %p173 = por %p171, %p172
    %p174 = scmp.ne.s32.totalorder %s166, %s168
    %p175 = scmp.eq.s32.totalorder %s32, 1
    %p176 = por %p174, %p175
    %p177 = scmp.ne.s32.totalorder %s168, %s169
    %p178 = scmp.eq.s32.totalorder %s32, 0
    %p179 = por %p177, %p178
    %p180 = scmp.ne.s32.totalorder %s168, %s169
    %p181 = scmp.eq.s32.totalorder %s33, 1
    %p182 = por %p180, %p181
    %p184 = scmp.ne.s32.totalorder %s169, %s183
    %p185 = scmp.eq.s32.totalorder %s33, 0
    %p186 = por %p184, %p185
    %s188 = sadd.s32 %s187, 1
    %p191 = scmp.eq.s32.totalorder %s27, 1
    %p192 = scmp.ne.s32.totalorder %s187, %s189
    %p193 = scmp.eq.s32.totalorder %s27, 0
    %p194 = por %p192, %p193
    %p195 = scmp.ne.s32.totalorder %s187, %s189
    %p196 = scmp.eq.s32.totalorder %s32, 1
    %p197 = por %p195, %p196
    %p198 = scmp.ne.s32.totalorder %s189, %s190
    %p199 = scmp.eq.s32.totalorder %s32, 0
    %p200 = por %p198, %p199
    %p201 = scmp.ne.s32.totalorder %s189, %s190
    %p202 = scmp.eq.s32.totalorder %s33, 1
    %p203 = por %p201, %p202
    %p205 = scmp.ne.s32.totalorder %s190, %s204
    %p206 = scmp.eq.s32.totalorder %s33, 0
    %p207 = por %p205, %p206
    %s209 = sadd.s32 %s208, 1
    %p212 = scmp.eq.s32.totalorder %s27, 1
    %p213 = scmp.ne.s32.totalorder %s208, %s210
    %p214 = scmp.eq.s32.totalorder %s27, 0
    %p215 = por %p213, %p214
    %p216 = scmp.ne.s32.totalorder %s208, %s210
    %p217 = scmp.eq.s32.totalorder %s32, 1
    %p218 = por %p216, %p217
    %p219 = scmp.ne.s32.totalorder %s210, %s211
    %p220 = scmp.eq.s32.totalorder %s32, 0
    %p221 = por %p219, %p220
    %p222 = scmp.ne.s32.totalorder %s210, %s211
    %p223 = scmp.eq.s32.totalorder %s33, 1
    %p224 = por %p222, %p223
    %p226 = scmp.ne.s32.totalorder %s211, %s225
    %p227 = scmp.eq.s32.totalorder %s33, 0
    %p228 = por %p226, %p227
    %s230 = sadd.s32 %s229, 1
    %p233 = scmp.eq.s32.totalorder %s27, 1
    %p234 = scmp.ne.s32.totalorder %s229, %s231
    %p235 = scmp.eq.s32.totalorder %s27, 0
    %p236 = por %p234, %p235
    %p237 = scmp.ne.s32.totalorder %s229, %s231
    %p238 = scmp.eq.s32.totalorder %s32, 1
    %p239 = por %p237, %p238
    %p240 = scmp.ne.s32.totalorder %s231, %s232
    %p241 = scmp.eq.s32.totalorder %s32, 0
    %p242 = por %p240, %p241
    %p243 = scmp.ne.s32.totalorder %s231, %s232
    %p244 = scmp.eq.s32.totalorder %s33, 1
    %p245 = por %p243, %p244
    %p247 = scmp.ne.s32.totalorder %s232, %s246
    %p248 = scmp.eq.s32.totalorder %s33, 0
    %p249 = por %p247, %p248
    %s251 = sadd.s32 %s250, 1
    %p254 = scmp.eq.s32.totalorder %s27, 1
    %p255 = scmp.ne.s32.totalorder %s250, %s252
    %p256 = scmp.eq.s32.totalorder %s27, 0
    %p257 = por %p255, %p256
    %p258 = scmp.ne.s32.totalorder %s250, %s252
    %p259 = scmp.eq.s32.totalorder %s32, 1
    %p260 = por %p258, %p259
    %p261 = scmp.ne.s32.totalorder %s252, %s253
    %p262 = scmp.eq.s32.totalorder %s32, 0
    %p263 = por %p261, %p262
    %p264 = scmp.ne.s32.totalorder %s252, %s253
    %p265 = scmp.eq.s32.totalorder %s33, 1
    %p266 = por %p264, %p265
    %p268 = scmp.ne.s32.totalorder %s253, %s267
    %p269 = scmp.eq.s32.totalorder %s33, 0
    %p270 = por %p268, %p269
    %s272 = sadd.s32 %s271, 1
    %p275 = scmp.eq.s32.totalorder %s27, 1
    %p276 = scmp.ne.s32.totalorder %s271, %s273
    %p277 = scmp.eq.s32.totalorder %s27, 0
    %p278 = por %p276, %p277
    %p279 = scmp.ne.s32.totalorder %s271, %s273
    %p280 = scmp.eq.s32.totalorder %s32, 1
    %p281 = por %p279, %p280
    %p282 = scmp.ne.s32.totalorder %s273, %s274
    %p283 = scmp.eq.s32.totalorder %s32, 0
    %p284 = por %p282, %p283
    %p285 = scmp.ne.s32.totalorder %s273, %s274
    %p286 = scmp.eq.s32.totalorder %s33, 1
    %p287 = por %p285, %p286
    %p289 = scmp.ne.s32.totalorder %s274, %s288
    %p290 = scmp.eq.s32.totalorder %s33, 0
    %p291 = por %p289, %p290
    %s293 = sadd.s32 %s292, 1
    %p296 = scmp.eq.s32.totalorder %s27, 1
    %p297 = scmp.ne.s32.totalorder %s292, %s294
    %p298 = scmp.eq.s32.totalorder %s27, 0
    %p299 = por %p297, %p298
    %p300 = scmp.ne.s32.totalorder %s292, %s294
    %p301 = scmp.eq.s32.totalorder %s32, 1
    %p302 = por %p300, %p301
    %p303 = scmp.ne.s32.totalorder %s294, %s295
    %p304 = scmp.eq.s32.totalorder %s32, 0
    %p305 = por %p303, %p304
    %p306 = scmp.ne.s32.totalorder %s294, %s295
    %p307 = scmp.eq.s32.totalorder %s33, 1
    %p308 = por %p306, %p307
    %p310 = scmp.ne.s32.totalorder %s295, %s309
    %p311 = scmp.eq.s32.totalorder %s33, 0
    %p312 = por %p310, %p311
    %s314 = sadd.s32 %s313, 1
    %p317 = scmp.eq.s32.totalorder %s27, 1
    %p318 = scmp.ne.s32.totalorder %s313, %s315
    %p319 = scmp.eq.s32.totalorder %s27, 0
    %p320 = por %p318, %p319
    %p321 = scmp.ne.s32.totalorder %s313, %s315
    %p322 = scmp.eq.s32.totalorder %s32, 1
    %p323 = por %p321, %p322
    %p324 = scmp.ne.s32.totalorder %s315, %s316
    %p325 = scmp.eq.s32.totalorder %s32, 0
    %p326 = por %p324, %p325
    %p327 = scmp.ne.s32.totalorder %s315, %s316
    %p328 = scmp.eq.s32.totalorder %s33, 1
    %p329 = por %p327, %p328
    %p331 = scmp.ne.s32.totalorder %s316, %s330
    %p332 = scmp.eq.s32.totalorder %s33, 0
    %p333 = por %p331, %p332
    %s335 = sadd.s32 %s334, 1
    %p338 = scmp.eq.s32.totalorder %s27, 1
    %p339 = scmp.ne.s32.totalorder %s334, %s336
    %p340 = scmp.eq.s32.totalorder %s27, 0
    %p341 = por %p339, %p340
    %p342 = scmp.ne.s32.totalorder %s334, %s336
    %p343 = scmp.eq.s32.totalorder %s32, 1
    %p344 = por %p342, %p343
    %p345 = scmp.ne.s32.totalorder %s336, %s337
    %p346 = scmp.eq.s32.totalorder %s32, 0
    %p347 = por %p345, %p346
    %p348 = scmp.ne.s32.totalorder %s336, %s337
    %p349 = scmp.eq.s32.totalorder %s33, 1
    %p350 = por %p348, %p349
    %p352 = scmp.ne.s32.totalorder %s337, %s351
    %p353 = scmp.eq.s32.totalorder %s33, 0
    %p354 = por %p352, %p353
    %s356 = sadd.s32 %s355, 1
    %p359 = scmp.eq.s32.totalorder %s27, 1
    %p360 = scmp.ne.s32.totalorder %s355, %s357
    %p361 = scmp.eq.s32.totalorder %s27, 0
    %p362 = por %p360, %p361
    %p363 = scmp.ne.s32.totalorder %s355, %s357
    %p364 = scmp.eq.s32.totalorder %s32, 1
    %p365 = por %p363, %p364
    %p366 = scmp.ne.s32.totalorder %s357, %s358
    %p367 = scmp.eq.s32.totalorder %s32, 0
    %p368 = por %p366, %p367
    %p369 = scmp.ne.s32.totalorder %s357, %s358
    %p370 = scmp.eq.s32.totalorder %s33, 1
    %p371 = por %p369, %p370
    %p373 = scmp.ne.s32.totalorder %s358, %s372
    %p374 = scmp.eq.s32.totalorder %s33, 0
    %p375 = por %p373, %p374
    %s377 = sadd.s32 %s376, 1
    %p380 = scmp.eq.s32.totalorder %s27, 1
    %p381 = scmp.ne.s32.totalorder %s376, %s378
    %p382 = scmp.eq.s32.totalorder %s27, 0
    %p383 = por %p381, %p382
    %p384 = scmp.ne.s32.totalorder %s376, %s378
    %p385 = scmp.eq.s32.totalorder %s32, 1
    %p386 = por %p384, %p385
    %p387 = scmp.ne.s32.totalorder %s378, %s379
    %p388 = scmp.eq.s32.totalorder %s32, 0
    %p389 = por %p387, %p388
    %p390 = scmp.ne.s32.totalorder %s378, %s379
    %p391 = scmp.eq.s32.totalorder %s33, 1
    %p392 = por %p390, %p391
    %p394 = scmp.ne.s32.totalorder %s379, %s393
    %p395 = scmp.eq.s32.totalorder %s33, 0
    %p396 = por %p394, %p395
    %s398 = sadd.s32 %s397, 1
    %p401 = scmp.eq.s32.totalorder %s27, 1
    %p402 = scmp.ne.s32.totalorder %s397, %s399
    %p403 = scmp.eq.s32.totalorder %s27, 0
    %p404 = por %p402, %p403
    %p405 = scmp.ne.s32.totalorder %s397, %s399
    %p406 = scmp.eq.s32.totalorder %s32, 1
    %p407 = por %p405, %p406
    %p408 = scmp.ne.s32.totalorder %s399, %s400
    %p409 = scmp.eq.s32.totalorder %s32, 0
    %p410 = por %p408, %p409
    %p411 = scmp.ne.s32.totalorder %s399, %s400
    %p412 = scmp.eq.s32.totalorder %s33, 1
    %p413 = por %p411, %p412
    %p415 = scmp.ne.s32.totalorder %s400, %s414
    %p416 = scmp.eq.s32.totalorder %s33, 0
    %p417 = por %p415, %p416
    %s419 = sadd.s32 %s418, 1
    %p422 = scmp.eq.s32.totalorder %s27, 1
    %p423 = scmp.ne.s32.totalorder %s418, %s420
    %p424 = scmp.eq.s32.totalorder %s27, 0
    %p425 = por %p423, %p424
    %p426 = scmp.ne.s32.totalorder %s418, %s420
    %p427 = scmp.eq.s32.totalorder %s32, 1
    %p428 = por %p426, %p427
    %p429 = scmp.ne.s32.totalorder %s420, %s421
    %p430 = scmp.eq.s32.totalorder %s32, 0
    %p431 = por %p429, %p430
    %p432 = scmp.ne.s32.totalorder %s420, %s421
    %p433 = scmp.eq.s32.totalorder %s33, 1
    %p434 = por %p432, %p433
    %p436 = scmp.ne.s32.totalorder %s421, %s435
    %p437 = scmp.eq.s32.totalorder %s33, 0
    %p438 = por %p436, %p437
    %s440 = sadd.s32 %s439, 1
    %p443 = scmp.eq.s32.totalorder %s27, 1
    %p444 = scmp.ne.s32.totalorder %s439, %s441
    %p445 = scmp.eq.s32.totalorder %s27, 0
    %p446 = por %p444, %p445
    %p447 = scmp.ne.s32.totalorder %s439, %s441
    %p448 = scmp.eq.s32.totalorder %s32, 1
    %p449 = por %p447, %p448
    %p450 = scmp.ne.s32.totalorder %s441, %s442
    %p451 = scmp.eq.s32.totalorder %s32, 0
    %p452 = por %p450, %p451
    %p453 = scmp.ne.s32.totalorder %s441, %s442
    %p454 = scmp.eq.s32.totalorder %s33, 1
    %p455 = por %p453, %p454
    %p457 = scmp.ne.s32.totalorder %s442, %s456
    %p458 = scmp.eq.s32.totalorder %s33, 0
    %p459 = por %p457, %p458
    %s461 = sadd.s32 %s460, 1
    %p464 = scmp.eq.s32.totalorder %s27, 1
    %p465 = scmp.ne.s32.totalorder %s460, %s462
    %p466 = scmp.eq.s32.totalorder %s27, 0
    %p467 = por %p465, %p466
    %p468 = scmp.ne.s32.totalorder %s460, %s462
    %p469 = scmp.eq.s32.totalorder %s32, 1
    %p470 = por %p468, %p469
    %p471 = scmp.ne.s32.totalorder %s462, %s463
    %p472 = scmp.eq.s32.totalorder %s32, 0
    %p473 = por %p471, %p472
    %p474 = scmp.ne.s32.totalorder %s462, %s463
    %p475 = scmp.eq.s32.totalorder %s33, 1
    %p476 = por %p474, %p475
    %p478 = scmp.ne.s32.totalorder %s463, %s477
    %p479 = scmp.eq.s32.totalorder %s33, 0
    %p480 = por %p478, %p479
    %s481 = ssub.s32 %s27, %s34
    %p482 = scmp.eq.s32.totalorder %s481, 0
    %s484 = sadd.s32 %s483, 1
    %s485 = scalar_select %p482, %s483, %s484
    %p488 = pneg %p482
    %p489 = scmp.eq.s32.totalorder %s27, 1
    %p490 = por %p488, %p489
    %p491 = scmp.ne.s32.totalorder %s483, %s486
    %p492 = scmp.eq.s32.totalorder %s27, 0
    %p493 = por %p491, %p492
    %p494 = scmp.ne.s32.totalorder %s483, %s486
    %p495 = scmp.eq.s32.totalorder %s32, 1
    %p496 = por %p494, %p495
    %p497 = scmp.ne.s32.totalorder %s486, %s487
    %p498 = scmp.eq.s32.totalorder %s32, 0
    %p499 = por %p497, %p498
    %p500 = scmp.ne.s32.totalorder %s486, %s487
    %p501 = scmp.eq.s32.totalorder %s33, 1
    %p502 = por %p500, %p501
    %p504 = scmp.ne.s32.totalorder %s487, %s503
    %p505 = scmp.eq.s32.totalorder %s33, 0
    %p506 = por %p504, %p505
    %p507 = scmp.le.s32.totalorder 1, %s27
    %p508 = scmp.lt.s32.totalorder %s27, 3
    %p509 = pnand %p507, %p508
    %p510 = pneg %p509
    // Predicated region
    $region9: #{_lambda_.2} parent=5 // pred_check
      _
    $region10: #{_lambda_.2} parent=5 // pred_check_branch
      %512 = sbr.rel (%p509) target = $region12
    $region11: #{_lambda_.2} parent=5 // pred_region
      %s513 = ssub.s32 %s27, 1
      // Predicated region
      $region13: #{_lambda_.2} parent=11 // pred_check
        %p514 = pneg %p74
      $region14: #{_lambda_.2} parent=11 // pred_check_branch
        %516 = sbr.rel (%p514) target = $region16
      $region15: #{_lambda_.2} parent=11 // pred_region
        _
      $region16: #{_lambda_.2} parent=11 // pred_fallthru
        _
      // Predicated region
      $region17: #{_lambda_.2} parent=11 // pred_check
        %p517 = pneg %p95
      $region18: #{_lambda_.2} parent=11 // pred_check_branch
        %519 = sbr.rel (%p517) target = $region20
      $region19: #{_lambda_.2} parent=11 // pred_region
        _
      $region20: #{_lambda_.2} parent=11 // pred_fallthru
        _
      // Predicated region
      $region21: #{_lambda_.2} parent=11 // pred_check
        %p520 = pneg %p116
      $region22: #{_lambda_.2} parent=11 // pred_check_branch
        %522 = sbr.rel (%p520) target = $region24
      $region23: #{_lambda_.2} parent=11 // pred_region
        _
      $region24: #{_lambda_.2} parent=11 // pred_fallthru
        _
      // Predicated region
      $region25: #{_lambda_.2} parent=11 // pred_check
        %p523 = pneg %p137
      $region26: #{_lambda_.2} parent=11 // pred_check_branch
        %525 = sbr.rel (%p523) target = $region28
      $region27: #{_lambda_.2} parent=11 // pred_region
        _
      $region28: #{_lambda_.2} parent=11 // pred_fallthru
        _
      // Predicated region
      $region29: #{_lambda_.2} parent=11 // pred_check
        %p526 = pneg %p158
      $region30: #{_lambda_.2} parent=11 // pred_check_branch
        %528 = sbr.rel (%p526) target = $region32
      $region31: #{_lambda_.2} parent=11 // pred_region
        _
      $region32: #{_lambda_.2} parent=11 // pred_fallthru
        _
      // Predicated region
      $region33: #{_lambda_.2} parent=11 // pred_check
        %p529 = pneg %p179
      $region34: #{_lambda_.2} parent=11 // pred_check_branch
        %531 = sbr.rel (%p529) target = $region36
      $region35: #{_lambda_.2} parent=11 // pred_region
        _
      $region36: #{_lambda_.2} parent=11 // pred_fallthru
        _
      // Predicated region
      $region37: #{_lambda_.2} parent=11 // pred_check
        %p532 = pneg %p200
      $region38: #{_lambda_.2} parent=11 // pred_check_branch
        %534 = sbr.rel (%p532) target = $region40
      $region39: #{_lambda_.2} parent=11 // pred_region
        _
      $region40: #{_lambda_.2} parent=11 // pred_fallthru
        _
      // Predicated region
      $region41: #{_lambda_.2} parent=11 // pred_check
        %p535 = pneg %p221
      $region42: #{_lambda_.2} parent=11 // pred_check_branch
        %537 = sbr.rel (%p535) target = $region44
      $region43: #{_lambda_.2} parent=11 // pred_region
        _
      $region44: #{_lambda_.2} parent=11 // pred_fallthru
        _
      // Predicated region
      $region45: #{_lambda_.2} parent=11 // pred_check
        %p538 = pneg %p242
      $region46: #{_lambda_.2} parent=11 // pred_check_branch
        %540 = sbr.rel (%p538) target = $region48
      $region47: #{_lambda_.2} parent=11 // pred_region
        _
      $region48: #{_lambda_.2} parent=11 // pred_fallthru
        _
      // Predicated region
      $region49: #{_lambda_.2} parent=11 // pred_check
        %p541 = pneg %p263
      $region50: #{_lambda_.2} parent=11 // pred_check_branch
        %543 = sbr.rel (%p541) target = $region52
      $region51: #{_lambda_.2} parent=11 // pred_region
        _
      $region52: #{_lambda_.2} parent=11 // pred_fallthru
        _
      // Predicated region
      $region53: #{_lambda_.2} parent=11 // pred_check
        %p544 = pneg %p284
      $region54: #{_lambda_.2} parent=11 // pred_check_branch
        %546 = sbr.rel (%p544) target = $region56
      $region55: #{_lambda_.2} parent=11 // pred_region
        _
      $region56: #{_lambda_.2} parent=11 // pred_fallthru
        _
      // Predicated region
      $region57: #{_lambda_.2} parent=11 // pred_check
        %p547 = pneg %p305
      $region58: #{_lambda_.2} parent=11 // pred_check_branch
        %549 = sbr.rel (%p547) target = $region60
      $region59: #{_lambda_.2} parent=11 // pred_region
        _
      $region60: #{_lambda_.2} parent=11 // pred_fallthru
        _
      // Predicated region
      $region61: #{_lambda_.2} parent=11 // pred_check
        %p550 = pneg %p326
      $region62: #{_lambda_.2} parent=11 // pred_check_branch
        %552 = sbr.rel (%p550) target = $region64
      $region63: #{_lambda_.2} parent=11 // pred_region
        _
      $region64: #{_lambda_.2} parent=11 // pred_fallthru
        _
      // Predicated region
      $region65: #{_lambda_.2} parent=11 // pred_check
        %p553 = pneg %p347
      $region66: #{_lambda_.2} parent=11 // pred_check_branch
        %555 = sbr.rel (%p553) target = $region68
      $region67: #{_lambda_.2} parent=11 // pred_region
        _
      $region68: #{_lambda_.2} parent=11 // pred_fallthru
        _
      // Predicated region
      $region69: #{_lambda_.2} parent=11 // pred_check
        %p556 = pneg %p368
      $region70: #{_lambda_.2} parent=11 // pred_check_branch
        %558 = sbr.rel (%p556) target = $region72
      $region71: #{_lambda_.2} parent=11 // pred_region
        _
      $region72: #{_lambda_.2} parent=11 // pred_fallthru
        _
      // Predicated region
      $region73: #{_lambda_.2} parent=11 // pred_check
        %p559 = pneg %p389
      $region74: #{_lambda_.2} parent=11 // pred_check_branch
        %561 = sbr.rel (%p559) target = $region76
      $region75: #{_lambda_.2} parent=11 // pred_region
        _
      $region76: #{_lambda_.2} parent=11 // pred_fallthru
        _
      // Predicated region
      $region77: #{_lambda_.2} parent=11 // pred_check
        %p562 = pneg %p410
      $region78: #{_lambda_.2} parent=11 // pred_check_branch
        %564 = sbr.rel (%p562) target = $region80
      $region79: #{_lambda_.2} parent=11 // pred_region
        _
      $region80: #{_lambda_.2} parent=11 // pred_fallthru
        _
      // Predicated region
      $region81: #{_lambda_.2} parent=11 // pred_check
        %p565 = pneg %p431
      $region82: #{_lambda_.2} parent=11 // pred_check_branch
        %567 = sbr.rel (%p565) target = $region84
      $region83: #{_lambda_.2} parent=11 // pred_region
        _
      $region84: #{_lambda_.2} parent=11 // pred_fallthru
        _
      // Predicated region
      $region85: #{_lambda_.2} parent=11 // pred_check
        %p568 = pneg %p452
      $region86: #{_lambda_.2} parent=11 // pred_check_branch
        %570 = sbr.rel (%p568) target = $region88
      $region87: #{_lambda_.2} parent=11 // pred_region
        _
      $region88: #{_lambda_.2} parent=11 // pred_fallthru
        _
      // Predicated region
      $region89: #{_lambda_.2} parent=11 // pred_check
        %p571 = pneg %p473
      $region90: #{_lambda_.2} parent=11 // pred_check_branch
        %573 = sbr.rel (%p571) target = $region92
      $region91: #{_lambda_.2} parent=11 // pred_region
        _
      $region92: #{_lambda_.2} parent=11 // pred_fallthru
        _
    $region12: #{_lambda_.2} parent=5 // pred_fallthru
      _
    %p574 = scmp.lt.s32.totalorder %s27, 2
    // Predicated region
    $region93: #{_lambda_.2} parent=5 // pred_check
      %p575 = pneg %p574
    $region94: #{_lambda_.2} parent=5 // pred_check_branch
      %577 = sbr.rel (%p575) target = $region96
    $region95: #{_lambda_.2} parent=5 // pred_region
      // Predicated region
      $region97: #{_lambda_.2} parent=95 // pred_check
        %p578 = pneg %p47
      $region98: #{_lambda_.2} parent=95 // pred_check_branch
        %580 = sbr.rel (%p578) target = $region100
      $region99: #{_lambda_.2} parent=95 // pred_region
        %p581 = scmp.lt.s32.totalorder %s27, 1
        %s582 = scalar_select %p581, %s27, 1
        %s583 = smul.addr %s582, 6
        %s584 = smul.addr %s583, 8
        %s585 = scalar_lea.vmem %s0, %s584
      $region100: #{_lambda_.2} parent=95 // pred_fallthru
        _
    $region96: #{_lambda_.2} parent=5 // pred_fallthru
      _
    %p586 = scmp.le.s32.totalorder 1, %s27
    %p587 = scmp.lt.s32.totalorder %s27, 3
    %p588 = pnand %p586, %p587
    %p589 = pneg %p588
    // Predicated region
    $region101: #{_lambda_.2} parent=5 // pred_check
      _
    $region102: #{_lambda_.2} parent=5 // pred_check_branch
      %591 = sbr.rel (%p588) target = $region104
    $region103: #{_lambda_.2} parent=5 // pred_region
      %s592 = ssub.s32 %s27, 1
      %p593 = scmp.lt.s32.totalorder %s32, 1
      %s594 = scalar_select %p593, %s32, 1
      %s595 = smul.addr %s594, 6
      %s596 = smul.addr %s595, 8
      %s597 = scalar_lea.vmem %s0, %s596
      %p598 = pneg %p53
      %p599 = pneg %p50
      %p600 = pneg %p74
      %p601 = pneg %p71
      %p602 = pneg %p95
      %p603 = pneg %p92
      %p604 = pneg %p116
      %p605 = pneg %p113
      %p606 = pneg %p137
      %p607 = pneg %p134
      %p608 = pneg %p158
      %p609 = pneg %p155
      %p610 = pneg %p179
      %p611 = pneg %p176
      %p612 = pneg %p200
      %p613 = pneg %p197
      %p614 = pneg %p221
      %p615 = pneg %p218
      %p616 = pneg %p242
      %p617 = pneg %p239
      %p618 = pneg %p263
      %p619 = pneg %p260
      %p620 = pneg %p284
      %p621 = pneg %p281
      %p622 = pneg %p305
      %p623 = pneg %p302
      %p624 = pneg %p326
      %p625 = pneg %p323
      %p626 = pneg %p347
      %p627 = pneg %p344
      %p628 = pneg %p368
      %p629 = pneg %p365
      %p630 = pneg %p389
      %p631 = pneg %p386
      %p632 = pneg %p410
      %p633 = pneg %p407
      %p634 = pneg %p431
      %p635 = pneg %p428
      %p636 = pneg %p452
      %p637 = pneg %p449
      %p638 = pneg %p473
      %p639 = pneg %p470
      %p640 = pneg %p499
      %p641 = pneg %p496
      %p642 = scmp.lt.s32.totalorder %s32, 1
      %s643 = scalar_select %p642, %s32, 1
      %s644 = smul.addr %s643, 8
      %s645 = scalar_lea.vmem %s21, %s644
      %p646 = scmp.lt.s32.totalorder %s32, 1
      %s647 = scalar_select %p646, %s32, 1
      %s648 = smul.addr %s647, 6
      %s649 = smul.addr %s648, 8
      %s650 = scalar_lea.vmem %s0, %s649
      %p651 = scmp.lt.s32.totalorder %s32, 1
      %s652 = scalar_select %p651, %s32, 1
      %s653 = smul.addr %s652, 8
      %s654 = scalar_lea.vmem %s21, %s653
      %v656 = vld [vmem:[%s650] sm:$0x1f]
      %v657 = vld [vmem:[%s650 + $0x8] sm:$0x1f]
      %v658 = vld [vmem:[%s650 + $0x10] sm:$0x1f]
      %v659 = vld [vmem:[%s650 + $0x18] sm:$0x1f]
      %v660 = vld [vmem:[%s650 + $0x20] sm:$0x1f]
      %v661 = vld [vmem:[%s650 + $0x28] sm:$0x1f]
      %v662 = vpack.c.bf16 %v656, %v656
      %v663 = vpack.c.bf16 %v657, %v657
      %v664 = vpack.c.bf16 %v658, %v658
      %v665 = vpack.c.bf16 %v659, %v659
      %v666 = vpack.c.bf16 %v660, %v660
      %v667 = vpack.c.bf16 %v661, %v661
      %v668 = vld [vmem:[%s1] sm:$0xf]
      %v669 = vld [vmem:[%s1 + $0x4] sm:$0xf]
      %v670 = vld [vmem:[%s1 + $0x8] sm:$0xf]
      %v671 = vld [vmem:[%s1 + $0xc] sm:$0xf]
      %v672 = vld [vmem:[%s1 + $0x10] sm:$0xf]
      %v673 = vld [vmem:[%s1 + $0x14] sm:$0xf]
      %v674 = vld [vmem:[%s1 + $0x18] sm:$0xf]
      %v675 = vld [vmem:[%s1 + $0x1c] sm:$0xf]
      %v676 = vld [vmem:[%s1 + $0x20] sm:$0xf]
      %v677 = vld [vmem:[%s1 + $0x24] sm:$0xf]
      %v678 = vld [vmem:[%s1 + $0x28] sm:$0xf]
      %v679 = vld [vmem:[%s1 + $0x2c] sm:$0xf]
      %v680 = vld [vmem:[%s1 + $0x30] sm:$0xf]
      %v681 = vld [vmem:[%s1 + $0x34] sm:$0xf]
      %v682 = vld [vmem:[%s1 + $0x38] sm:$0xf]
      %v683 = vld [vmem:[%s1 + $0x3c] sm:$0xf]
      %v684 = vld [vmem:[%s1 + $0x40] sm:$0xf]
      %v685 = vld [vmem:[%s1 + $0x44] sm:$0xf]
      %v686 = vld [vmem:[%s1 + $0x48] sm:$0xf]
      %v687 = vld [vmem:[%s1 + $0x4c] sm:$0xf]
      %v688 = vld [vmem:[%s1 + $0x50] sm:$0xf]
      %v689 = vld [vmem:[%s1 + $0x54] sm:$0xf]
      %v690 = vld [vmem:[%s1 + $0x58] sm:$0xf]
      %v691 = vld [vmem:[%s1 + $0x5c] sm:$0xf]
      %v692 = vld [vmem:[%s1 + $0x60] sm:$0xf]
      %v693 = vld [vmem:[%s1 + $0x64] sm:$0xf]
      %v694 = vld [vmem:[%s1 + $0x68] sm:$0xf]
      %v695 = vld [vmem:[%s1 + $0x6c] sm:$0xf]
      %v696 = vld [vmem:[%s1 + $0x70] sm:$0xf]
      %v697 = vld [vmem:[%s1 + $0x74] sm:$0xf]
      %v698 = vld [vmem:[%s1 + $0x78] sm:$0xf]
      %v699 = vld [vmem:[%s1 + $0x7c] sm:$0xf]
      %v700 = vld [vmem:[%s1 + $0x80] sm:$0xf]
      %v701 = vld [vmem:[%s1 + $0x84] sm:$0xf]
      %v702 = vld [vmem:[%s1 + $0x88] sm:$0xf]
      %v703 = vld [vmem:[%s1 + $0x8c] sm:$0xf]
      %v704 = vld [vmem:[%s1 + $0x90] sm:$0xf]
      %v705 = vld [vmem:[%s1 + $0x94] sm:$0xf]
      %v706 = vld [vmem:[%s1 + $0x98] sm:$0xf]
      %v707 = vld [vmem:[%s1 + $0x9c] sm:$0xf]
      %v708 = vld [vmem:[%s1 + $0xa0] sm:$0xf]
      %v709 = vld [vmem:[%s1 + $0xa4] sm:$0xf]
      %v710 = vld [vmem:[%s1 + $0xa8] sm:$0xf]
      %v711 = vld [vmem:[%s1 + $0xac] sm:$0xf]
      %v712 = vld [vmem:[%s1 + $0xb0] sm:$0xf]
      %v713 = vld [vmem:[%s1 + $0xb4] sm:$0xf]
      %v714 = vld [vmem:[%s1 + $0xb8] sm:$0xf]
      %v715 = vld [vmem:[%s1 + $0xbc] sm:$0xf]
      %v716 = vld [vmem:[%s1 + $0xc0] sm:$0xf]
      %v717 = vld [vmem:[%s1 + $0xc4] sm:$0xf]
      %v718 = vld [vmem:[%s1 + $0xc8] sm:$0xf]
      %v719 = vld [vmem:[%s1 + $0xcc] sm:$0xf]
      %v720 = vld [vmem:[%s1 + $0xd0] sm:$0xf]
      %v721 = vld [vmem:[%s1 + $0xd4] sm:$0xf]
      %v722 = vld [vmem:[%s1 + $0xd8] sm:$0xf]
      %v723 = vld [vmem:[%s1 + $0xdc] sm:$0xf]
      %v724 = vld [vmem:[%s1 + $0xe0] sm:$0xf]
      %v725 = vld [vmem:[%s1 + $0xe4] sm:$0xf]
      %v726 = vld [vmem:[%s1 + $0xe8] sm:$0xf]
      %v727 = vld [vmem:[%s1 + $0xec] sm:$0xf]
      %v728 = vld [vmem:[%s1 + $0xf0] sm:$0xf]
      %v729 = vld [vmem:[%s1 + $0xf4] sm:$0xf]
      %v730 = vld [vmem:[%s1 + $0xf8] sm:$0xf]
      %v731 = vld [vmem:[%s1 + $0xfc] sm:$0xf]
      %v732 = vld [vmem:[%s1 + $0x100] sm:$0xf]
      %v733 = vld [vmem:[%s1 + $0x104] sm:$0xf]
      %v734 = vld [vmem:[%s1 + $0x108] sm:$0xf]
      %v735 = vld [vmem:[%s1 + $0x10c] sm:$0xf]
      %v736 = vld [vmem:[%s1 + $0x110] sm:$0xf]
      %v737 = vld [vmem:[%s1 + $0x114] sm:$0xf]
      %v738 = vld [vmem:[%s1 + $0x118] sm:$0xf]
      %v739 = vld [vmem:[%s1 + $0x11c] sm:$0xf]
      %v740 = vld [vmem:[%s1 + $0x120] sm:$0xf]
      %v741 = vld [vmem:[%s1 + $0x124] sm:$0xf]
      %v742 = vld [vmem:[%s1 + $0x128] sm:$0xf]
      %v743 = vld [vmem:[%s1 + $0x12c] sm:$0xf]
      %v744 = vld [vmem:[%s1 + $0x130] sm:$0xf]
      %v745 = vld [vmem:[%s1 + $0x134] sm:$0xf]
      %v746 = vld [vmem:[%s1 + $0x138] sm:$0xf]
      %v747 = vld [vmem:[%s1 + $0x13c] sm:$0xf]
      %v748 = vld [vmem:[%s1 + $0x140] sm:$0xf]
      %v749 = vld [vmem:[%s1 + $0x144] sm:$0xf]
      %v750 = vld [vmem:[%s1 + $0x148] sm:$0xf]
      %v751 = vld [vmem:[%s1 + $0x14c] sm:$0xf]
      %v752 = vld [vmem:[%s1 + $0x150] sm:$0xf]
      %v753 = vld [vmem:[%s1 + $0x154] sm:$0xf]
      %v754 = vld [vmem:[%s1 + $0x158] sm:$0xf]
      %v755 = vld [vmem:[%s1 + $0x15c] sm:$0xf]
      %v756 = vld [vmem:[%s1 + $0x160] sm:$0xf]
      %v757 = vld [vmem:[%s1 + $0x164] sm:$0xf]
      %v758 = vld [vmem:[%s1 + $0x168] sm:$0xf]
      %v759 = vld [vmem:[%s1 + $0x16c] sm:$0xf]
      %v760 = vld [vmem:[%s1 + $0x170] sm:$0xf]
      %v761 = vld [vmem:[%s1 + $0x174] sm:$0xf]
      %v762 = vld [vmem:[%s1 + $0x178] sm:$0xf]
      %v763 = vld [vmem:[%s1 + $0x17c] sm:$0xf]
      %v764 = vld [vmem:[%s2] sm:$0x1f]
      %v861 = vunpack.c.l.b16 %v668
      %v862 = vunpack.c.l.b16 %v669
      %v863 = vunpack.c.l.b16 %v670
      %v864 = vunpack.c.l.b16 %v671
      %v865 = vunpack.c.l.b16 %v672
      %v866 = vunpack.c.l.b16 %v673
      %v867 = vunpack.c.l.b16 %v674
      %v868 = vunpack.c.l.b16 %v675
      %v869 = vunpack.c.l.b16 %v676
      %v870 = vunpack.c.l.b16 %v677
      %v871 = vunpack.c.l.b16 %v678
      %v872 = vunpack.c.l.b16 %v679
      %v873 = vunpack.c.l.b16 %v680
      %v874 = vunpack.c.l.b16 %v681
      %v875 = vunpack.c.l.b16 %v682
      %v876 = vunpack.c.l.b16 %v683
      %v877 = vunpack.c.l.b16 %v684
      %v878 = vunpack.c.l.b16 %v685
      %v879 = vunpack.c.l.b16 %v686
      %v880 = vunpack.c.l.b16 %v687
      %v881 = vunpack.c.l.b16 %v688
      %v882 = vunpack.c.l.b16 %v689
      %v883 = vunpack.c.l.b16 %v690
      %v884 = vunpack.c.l.b16 %v691
      %v885 = vunpack.c.l.b16 %v692
      %v886 = vunpack.c.l.b16 %v693
      %v887 = vunpack.c.l.b16 %v694
      %v888 = vunpack.c.l.b16 %v695
      %v889 = vunpack.c.l.b16 %v696
      %v890 = vunpack.c.l.b16 %v697
      %v891 = vunpack.c.l.b16 %v698
      %v892 = vunpack.c.l.b16 %v699
      %v893 = vunpack.c.l.b16 %v700
      %v894 = vunpack.c.l.b16 %v701
      %v895 = vunpack.c.l.b16 %v702
      %v896 = vunpack.c.l.b16 %v703
      %v897 = vunpack.c.l.b16 %v704
      %v898 = vunpack.c.l.b16 %v705
      %v899 = vunpack.c.l.b16 %v706
      %v900 = vunpack.c.l.b16 %v707
      %v901 = vunpack.c.l.b16 %v708
      %v902 = vunpack.c.l.b16 %v709
      %v903 = vunpack.c.l.b16 %v710
      %v904 = vunpack.c.l.b16 %v711
      %v905 = vunpack.c.l.b16 %v712
      %v906 = vunpack.c.l.b16 %v713
      %v907 = vunpack.c.l.b16 %v714
      %v908 = vunpack.c.l.b16 %v715
      %v909 = vunpack.c.l.b16 %v716
      %v910 = vunpack.c.l.b16 %v717
      %v911 = vunpack.c.l.b16 %v718
      %v912 = vunpack.c.l.b16 %v719
      %v913 = vunpack.c.l.b16 %v720
      %v914 = vunpack.c.l.b16 %v721
      %v915 = vunpack.c.l.b16 %v722
      %v916 = vunpack.c.l.b16 %v723
      %v917 = vunpack.c.l.b16 %v724
      %v918 = vunpack.c.l.b16 %v725
      %v919 = vunpack.c.l.b16 %v726
      %v920 = vunpack.c.l.b16 %v727
      %v921 = vunpack.c.l.b16 %v728
      %v922 = vunpack.c.l.b16 %v729
      %v923 = vunpack.c.l.b16 %v730
      %v924 = vunpack.c.l.b16 %v731
      %v925 = vunpack.c.l.b16 %v732
      %v926 = vunpack.c.l.b16 %v733
      %v927 = vunpack.c.l.b16 %v734
      %v928 = vunpack.c.l.b16 %v735
      %v929 = vunpack.c.l.b16 %v736
      %v930 = vunpack.c.l.b16 %v737
      %v931 = vunpack.c.l.b16 %v738
      %v932 = vunpack.c.l.b16 %v739
      %v933 = vunpack.c.l.b16 %v740
      %v934 = vunpack.c.l.b16 %v741
      %v935 = vunpack.c.l.b16 %v742
      %v936 = vunpack.c.l.b16 %v743
      %v937 = vunpack.c.l.b16 %v744
      %v938 = vunpack.c.l.b16 %v745
      %v939 = vunpack.c.l.b16 %v746
      %v940 = vunpack.c.l.b16 %v747
      %v941 = vunpack.c.l.b16 %v748
      %v942 = vunpack.c.l.b16 %v749
      %v943 = vunpack.c.l.b16 %v750
      %v944 = vunpack.c.l.b16 %v751
      %v945 = vunpack.c.l.b16 %v752
      %v946 = vunpack.c.l.b16 %v753
      %v947 = vunpack.c.l.b16 %v754
      %v948 = vunpack.c.l.b16 %v755
      %v949 = vunpack.c.l.b16 %v756
      %v950 = vunpack.c.l.b16 %v757
      %v951 = vunpack.c.l.b16 %v758
      %v952 = vunpack.c.l.b16 %v759
      %v953 = vunpack.c.l.b16 %v760
      %v954 = vunpack.c.l.b16 %v761
      %v955 = vunpack.c.l.b16 %v762
      %v956 = vunpack.c.l.b16 %v763
      %v957 = vpack.c.b16 %v862, %v861
      %v958 = vpack.c.b16 %v864, %v863
      %v959 = vpack.c.b16 %v866, %v865
      %v960 = vpack.c.b16 %v868, %v867
      %v961 = vpack.c.b16 %v870, %v869
      %v962 = vpack.c.b16 %v872, %v871
      %v963 = vpack.c.b16 %v874, %v873
      %v964 = vpack.c.b16 %v876, %v875
      %v965 = vpack.c.b16 %v878, %v877
      %v966 = vpack.c.b16 %v880, %v879
      %v967 = vpack.c.b16 %v882, %v881
      %v968 = vpack.c.b16 %v884, %v883
      %v969 = vpack.c.b16 %v886, %v885
      %v970 = vpack.c.b16 %v888, %v887
      %v971 = vpack.c.b16 %v890, %v889
      %v972 = vpack.c.b16 %v892, %v891
      %v973 = vpack.c.b16 %v894, %v893
      %v974 = vpack.c.b16 %v896, %v895
      %v975 = vpack.c.b16 %v898, %v897
      %v976 = vpack.c.b16 %v900, %v899
      %v977 = vpack.c.b16 %v902, %v901
      %v978 = vpack.c.b16 %v904, %v903
      %v979 = vpack.c.b16 %v906, %v905
      %v980 = vpack.c.b16 %v908, %v907
      %v981 = vpack.c.b16 %v910, %v909
      %v982 = vpack.c.b16 %v912, %v911
      %v983 = vpack.c.b16 %v914, %v913
      %v984 = vpack.c.b16 %v916, %v915
      %v985 = vpack.c.b16 %v918, %v917
      %v986 = vpack.c.b16 %v920, %v919
      %v987 = vpack.c.b16 %v922, %v921
      %v988 = vpack.c.b16 %v924, %v923
      %v989 = vpack.c.b16 %v926, %v925
      %v990 = vpack.c.b16 %v928, %v927
      %v991 = vpack.c.b16 %v930, %v929
      %v992 = vpack.c.b16 %v932, %v931
      %v993 = vpack.c.b16 %v934, %v933
      %v994 = vpack.c.b16 %v936, %v935
      %v995 = vpack.c.b16 %v938, %v937
      %v996 = vpack.c.b16 %v940, %v939
      %v997 = vpack.c.b16 %v942, %v941
      %v998 = vpack.c.b16 %v944, %v943
      %v999 = vpack.c.b16 %v946, %v945
      %v1000 = vpack.c.b16 %v948, %v947
      %v1001 = vpack.c.b16 %v950, %v949
      %v1002 = vpack.c.b16 %v952, %v951
      %v1003 = vpack.c.b16 %v954, %v953
      %v1004 = vpack.c.b16 %v956, %v955
      %1053 = vmatpush.bf16.msra.mxu0 %v964
      %1054 = vmatpush.bf16.msra.mxu0 %v963
      %1055 = vmatpush.bf16.msra.mxu0 %v962
      %1056 = vmatpush.bf16.msra.mxu0 %v961
      %1057 = vmatpush.bf16.msra.mxu0 %v960
      %1058 = vmatpush.bf16.msra.mxu0 %v959
      %1059 = vmatpush.bf16.msra.mxu0 %v958
      %1060 = vmatpush.bf16.msra.mxu0 %v957
      %1061 = vmatmul.bf16.gmra.mxu0 %v662
      %v1062 = vpop.f32.mrf.mxu0
      %v1063 = vadd.f32 %v764, %v1062
      %v1064 = vpop.f32.mrf.mxu0
      %1065 = vdwg.mxu0
      %1066 = vmatpush.bf16.msra.mxu0 %v972
      %1067 = vmatpush.bf16.msra.mxu0 %v971
      %1068 = vmatpush.bf16.msra.mxu0 %v970
      %1069 = vmatpush.bf16.msra.mxu0 %v969
      %1070 = vmatpush.bf16.msra.mxu0 %v968
      %1071 = vmatpush.bf16.msra.mxu0 %v967
      %1072 = vmatpush.bf16.msra.mxu0 %v966
      %1073 = vmatpush.bf16.msra.mxu0 %v965
      %1074 = vmatmul.bf16.gmra.mxu0 %v663
      %v1075 = vpop.f32.mrf.mxu0
      %v1076 = vadd.f32 %v1063, %v1075
      %v1077 = vpop.f32.mrf.mxu0
      %1078 = vdwg.mxu0
      %1079 = vmatpush.bf16.msra.mxu0 %v980
      %1080 = vmatpush.bf16.msra.mxu0 %v979
      %1081 = vmatpush.bf16.msra.mxu0 %v978
      %1082 = vmatpush.bf16.msra.mxu0 %v977
      %1083 = vmatpush.bf16.msra.mxu0 %v976
      %1084 = vmatpush.bf16.msra.mxu0 %v975
      %1085 = vmatpush.bf16.msra.mxu0 %v974
      %1086 = vmatpush.bf16.msra.mxu0 %v973
      %1087 = vmatmul.bf16.gmra.mxu0 %v664
      %v1088 = vpop.f32.mrf.mxu0
      %v1089 = vadd.f32 %v1076, %v1088
      %v1090 = vpop.f32.mrf.mxu0
      %1091 = vdwg.mxu0
      %1092 = vmatpush.bf16.msra.mxu0 %v988
      %1093 = vmatpush.bf16.msra.mxu0 %v987
      %1094 = vmatpush.bf16.msra.mxu0 %v986
      %1095 = vmatpush.bf16.msra.mxu0 %v985
      %1096 = vmatpush.bf16.msra.mxu0 %v984
      %1097 = vmatpush.bf16.msra.mxu0 %v983
      %1098 = vmatpush.bf16.msra.mxu0 %v982
      %1099 = vmatpush.bf16.msra.mxu0 %v981
      %1100 = vmatmul.bf16.gmra.mxu0 %v665
      %v1101 = vpop.f32.mrf.mxu0
      %v1102 = vadd.f32 %v1089, %v1101
      %v1103 = vpop.f32.mrf.mxu0
      %1104 = vdwg.mxu0
      %1105 = vmatpush.bf16.msra.mxu0 %v996
      %1106 = vmatpush.bf16.msra.mxu0 %v995
      %1107 = vmatpush.bf16.msra.mxu0 %v994
      %1108 = vmatpush.bf16.msra.mxu0 %v993
      %1109 = vmatpush.bf16.msra.mxu0 %v992
      %1110 = vmatpush.bf16.msra.mxu0 %v991
      %1111 = vmatpush.bf16.msra.mxu0 %v990
      %1112 = vmatpush.bf16.msra.mxu0 %v989
      %1113 = vmatmul.bf16.gmra.mxu0 %v666
      %v1114 = vpop.f32.mrf.mxu0
      %v1115 = vadd.f32 %v1102, %v1114
      %v1116 = vpop.f32.mrf.mxu0
      %1117 = vdwg.mxu0
      %1118 = vmatpush.bf16.msra.mxu0 %v1004
      %1119 = vmatpush.bf16.msra.mxu0 %v1003
      %1120 = vmatpush.bf16.msra.mxu0 %v1002
      %1121 = vmatpush.bf16.msra.mxu0 %v1001
      %1122 = vmatpush.bf16.msra.mxu0 %v1000
      %1123 = vmatpush.bf16.msra.mxu0 %v999
      %1124 = vmatpush.bf16.msra.mxu0 %v998
      %1125 = vmatpush.bf16.msra.mxu0 %v997
      %1126 = vmatmul.bf16.gmra.mxu0 %v667
      %v1127 = vpop.f32.mrf.mxu0
      %v1128 = vadd.f32 %v1115, %v1127
      %v1129 = vpop.f32.mrf.mxu0
      %1130 = vdwg.mxu0
      %v1131 = vld [vmem:[%s3] sm:$0x1]
      %v1132 = vld [vmem:[%s4] sm:$0x1]
      %vm1133 = vcmask 520192
      %v1134 = vsel %vm1133, %v1128, 0.0
      %1135 = vadd.xlane.f32.xlu0 %v1134
      %v1136 = vpop.xlane.xlu0 %1135
      %v1137 = vrcp.pop 64.0
      %v1138 = vmul.f32 64.0, %v1137
      %v1139 = vsub.f32 1.0, %v1138
      %v1140 = vmul.f32 %v1137, %v1139
      %v1141 = vadd.f32 %v1137, %v1140
      %vm1142 = vweird.f32 %v1137
      %v1143 = vsel %vm1142, %v1137, %v1141
      %v1144 = vmul.f32 %v1136, %v1143
      %v1145 = vsub.f32 %v1128, %v1144
      %v1146 = vmul.f32 %v1145, %v1145
      %v1147 = vsel %vm1133, %v1146, 0.0
      %1148 = vadd.xlane.f32.xlu0 %v1147
      %v1149 = vpop.xlane.xlu0 %1148
      %v1150 = vmul.f32 %v1149, %v1143
      %v1151 = vadd.f32 %v1150, 1e-06
      %v1152 = vrsqrt.pop %v1151
      %v1153 = vmul.f32 %v1152, %v1151
      %v1154 = vmul.f32 %v1153, %v1152
      %v1155 = vmul.f32 0.5, %v1154
      %v1156 = vsub.f32 1.5, %v1155
      %v1157 = vmul.f32 %v1152, %v1156
      %vm1158 = vweird.f32 %v1151
      %vm1159 = vweird.f32 %v1152
      %vm1160 = vmor %vm1158, %vm1159
      %v1161 = vsel %vm1160, %v1152, %v1157
      %v1162 = vmul.f32 %v1145, %v1161
      %v1164 = vperm.slane %v1131, 0
      %v1166 = vmul.f32 %v1162, %v1164
      %v1168 = vperm.slane %v1132, 0
      %v1170 = vadd.f32 %v1166, %v1168
      %v1171 = vpack.c.bf16 %v1170, %v1170
      %v1172 = vld [vmem:[%s5] sm:$0xf]
      %v1173 = vld [vmem:[%s5 + $0x4] sm:$0xf]
      %v1174 = vld [vmem:[%s5 + $0x8] sm:$0xf]
      %v1175 = vld [vmem:[%s5 + $0xc] sm:$0xf]
      %v1176 = vld [vmem:[%s5 + $0x10] sm:$0xf]
      %v1177 = vld [vmem:[%s5 + $0x14] sm:$0xf]
      %v1178 = vld [vmem:[%s5 + $0x18] sm:$0xf]
      %v1179 = vld [vmem:[%s5 + $0x1c] sm:$0xf]
      %v1180 = vld [vmem:[%s8] sm:$0x1]
      %v1182 = vperm.slane %v1180, 0
      %v1192 = vunpack.c.l.b16 %v1172
      %v1193 = vunpack.c.l.b16 %v1173
      %v1194 = vunpack.c.l.b16 %v1174
      %v1195 = vunpack.c.l.b16 %v1175
      %v1196 = vunpack.c.l.b16 %v1176
      %v1197 = vunpack.c.l.b16 %v1177
      %v1198 = vunpack.c.l.b16 %v1178
      %v1199 = vunpack.c.l.b16 %v1179
      %v1200 = vpack.c.b16 %v1193, %v1192
      %v1201 = vpack.c.b16 %v1195, %v1194
      %v1202 = vpack.c.b16 %v1197, %v1196
      %v1203 = vpack.c.b16 %v1199, %v1198
      %vm1208 = vcmask 523264
      %v1210 = vsel %vm1208, %v1171, 0
      %1212 = vmatpush.bf16.msra.mxu0 0
      %1213 = vmatpush.bf16.msra.mxu0 0
      %1214 = vmatpush.bf16.msra.mxu0 0
      %1215 = vmatpush.bf16.msra.mxu0 0
      %1216 = vmatpush.bf16.msra.mxu0 %v1203
      %1217 = vmatpush.bf16.msra.mxu0 %v1202
      %1218 = vmatpush.bf16.msra.mxu0 %v1201
      %1219 = vmatpush.bf16.msra.mxu0 %v1200
      %1220 = vmatmul.bf16.gmra.mxu0 %v1210
      %v1221 = vpop.f32.mrf.mxu0
      %v1222 = vadd.f32 %v1182, %v1221
      %v1223 = vpop.f32.mrf.mxu0
      %1224 = vdwg.mxu0
      %v1225 = vld [vmem:[%s6] sm:$0xf]
      %v1226 = vld [vmem:[%s6 + $0x4] sm:$0xf]
      %v1227 = vld [vmem:[%s6 + $0x8] sm:$0xf]
      %v1228 = vld [vmem:[%s6 + $0xc] sm:$0xf]
      %v1229 = vld [vmem:[%s6 + $0x10] sm:$0xf]
      %v1230 = vld [vmem:[%s6 + $0x14] sm:$0xf]
      %v1231 = vld [vmem:[%s6 + $0x18] sm:$0xf]
      %v1232 = vld [vmem:[%s6 + $0x1c] sm:$0xf]
      %v1233 = vld [vmem:[%s9] sm:$0x1]
      %v1235 = vperm.slane %v1233, 0
      %v1245 = vunpack.c.l.b16 %v1225
      %v1246 = vunpack.c.l.b16 %v1226
      %v1247 = vunpack.c.l.b16 %v1227
      %v1248 = vunpack.c.l.b16 %v1228
      %v1249 = vunpack.c.l.b16 %v1229
      %v1250 = vunpack.c.l.b16 %v1230
      %v1251 = vunpack.c.l.b16 %v1231
      %v1252 = vunpack.c.l.b16 %v1232
      %v1253 = vpack.c.b16 %v1246, %v1245
      %v1254 = vpack.c.b16 %v1248, %v1247
      %v1255 = vpack.c.b16 %v1250, %v1249
      %v1256 = vpack.c.b16 %v1252, %v1251
      %1261 = vmatpush.bf16.msra.mxu0 0
      %1262 = vmatpush.bf16.msra.mxu0 0
      %1263 = vmatpush.bf16.msra.mxu0 0
      %1264 = vmatpush.bf16.msra.mxu0 0
      %1265 = vmatpush.bf16.msra.mxu0 %v1256
      %1266 = vmatpush.bf16.msra.mxu0 %v1255
      %1267 = vmatpush.bf16.msra.mxu0 %v1254
      %1268 = vmatpush.bf16.msra.mxu0 %v1253
      %1269 = vmatmul.bf16.gmra.mxu0 %v1210
      %v1270 = vpop.f32.mrf.mxu0
      %v1271 = vadd.f32 %v1235, %v1270
      %v1272 = vpop.f32.mrf.mxu0
      %1273 = vdwg.mxu0
      %v1274 = vld [vmem:[%s7] sm:$0xf]
      %v1275 = vld [vmem:[%s7 + $0x4] sm:$0xf]
      %v1276 = vld [vmem:[%s7 + $0x8] sm:$0xf]
      %v1277 = vld [vmem:[%s7 + $0xc] sm:$0xf]
      %v1278 = vld [vmem:[%s7 + $0x10] sm:$0xf]
      %v1279 = vld [vmem:[%s7 + $0x14] sm:$0xf]
      %v1280 = vld [vmem:[%s7 + $0x18] sm:$0xf]
      %v1281 = vld [vmem:[%s7 + $0x1c] sm:$0xf]
      %v1282 = vld [vmem:[%s10] sm:$0x1]
      %v1284 = vperm.slane %v1282, 0
      %v1294 = vunpack.c.l.b16 %v1274
      %v1295 = vunpack.c.l.b16 %v1275
      %v1296 = vunpack.c.l.b16 %v1276
      %v1297 = vunpack.c.l.b16 %v1277
      %v1298 = vunpack.c.l.b16 %v1278
      %v1299 = vunpack.c.l.b16 %v1279
      %v1300 = vunpack.c.l.b16 %v1280
      %v1301 = vunpack.c.l.b16 %v1281
      %v1302 = vpack.c.b16 %v1295, %v1294
      %v1303 = vpack.c.b16 %v1297, %v1296
      %v1304 = vpack.c.b16 %v1299, %v1298
      %v1305 = vpack.c.b16 %v1301, %v1300
      %1310 = vmatpush.bf16.msra.mxu0 0
      %1311 = vmatpush.bf16.msra.mxu0 0
      %1312 = vmatpush.bf16.msra.mxu0 0
      %1313 = vmatpush.bf16.msra.mxu0 0
      %1314 = vmatpush.bf16.msra.mxu0 %v1305
      %1315 = vmatpush.bf16.msra.mxu0 %v1304
      %1316 = vmatpush.bf16.msra.mxu0 %v1303
      %1317 = vmatpush.bf16.msra.mxu0 %v1302
      %1318 = vmatmul.bf16.gmra.mxu0 %v1210
      %v1319 = vpop.f32.mrf.mxu0
      %v1320 = vadd.f32 %v1284, %v1319
      %v1321 = vpop.f32.mrf.mxu0
      %1322 = vdwg.mxu0
      %v1323 = vpack.c.bf16 %v1222, %v1222
      %v1324 = vpack.c.bf16 %v1271, %v1271
      %vm1325 = vcmask 130048
      %v1327 = vsel %vm1325, %v1323, 0
      %v1330 = vsel %vm1325, %v1324, 0
      %1332 = vmatpush.bf16.xpose.msra.mxu0 0
      %1333 = vmatpush.bf16.xpose.msra.mxu0 0
      %1334 = vmatpush.bf16.xpose.msra.mxu0 0
      %1335 = vmatpush.bf16.xpose.msra.mxu0 0
      %1336 = vmatpush.bf16.xpose.msra.mxu0 0
      %1337 = vmatpush.bf16.xpose.msra.mxu0 0
      %1338 = vmatpush.bf16.xpose.msra.mxu0 0
      %1339 = vmatpush.bf16.xpose.msra.mxu0 %v1330
      %1340 = vmatmul.bf16.gmra.mxu0 %v1327
      %v1341 = vpop.f32.mrf.mxu0
      %v1342 = vadd.f32 0.0, %v1341
      %v1343 = vpop.f32.mrf.mxu0
      %1344 = vdwg.mxu0
      %v1345 = vmul.f32 %v1342, 0.25
      %vm1346 = vcmask 36864
      %v1347 = vsel %vm1346, %v1345, -inf
      %1348 = vmax.xlane.f32.xlu0 %v1347
      %v1349 = vpop.xlane.xlu0 %1348
      %v1350 = vsub.f32 %v1345, %v1349
      %v1351 = vmul.f32 %v1350, 1.442695
      %v1352 = vpow.pop %v1351
      %v1353 = vsel %vm1346, %v1352, 0.0
      %1354 = vadd.xlane.f32.xlu0 %v1353
      %v1355 = vpop.xlane.xlu0 %1354
      %v1356 = vrcp.pop %v1355
      %v1357 = vmul.f32 %v1352, %v1356
      %v1358 = vpack.c.bf16 %v1357, %v1357
      %v1359 = vpack.c.bf16 %v1320, %v1320
      %vm1360 = vcmask 39936
      %v1362 = vsel %vm1360, %v1358, 0
      %vm1364 = vcmask 1041408
      %vm1365 = vcmask 1042432
      %v1366 = vsel %vm1364, 4294967295, 65535
      %v1367 = vsel %vm1365, %v1366, 0
      %v1369 = vand.u32 %v1359, %v1367
      %1371 = vmatpush.bf16.msra.mxu0 0
      %1372 = vmatpush.bf16.msra.mxu0 0
      %1373 = vmatpush.bf16.msra.mxu0 0
      %1374 = vmatpush.bf16.msra.mxu0 0
      %1375 = vmatpush.bf16.msra.mxu0 0
      %1376 = vmatpush.bf16.msra.mxu0 0
      %1377 = vmatpush.bf16.msra.mxu0 0
      %1378 = vmatpush.bf16.msra.mxu0 %v1369
      %1379 = vmatmul.bf16.gmra.mxu0 %v1362
      %v1380 = vpop.f32.mrf.mxu0
      %v1381 = vadd.f32 0.0, %v1380
      %v1382 = vpop.f32.mrf.mxu0
      %1383 = vdwg.mxu0
      %v1384 = vpack.c.bf16 %v1381, %v1381
      %v1385 = vld [vmem:[%s11] sm:$0xf]
      %v1386 = vld [vmem:[%s11 + $0x4] sm:$0xf]
      %s1387 = scalar_lea.vmem %s5, 32
      %v1388 = vld [vmem:[%s1387] sm:$0xf]
      %v1389 = vld [vmem:[%s1387 + $0x4] sm:$0xf]
      %v1390 = vld [vmem:[%s1387 + $0x8] sm:$0xf]
      %v1391 = vld [vmem:[%s1387 + $0xc] sm:$0xf]
      %v1392 = vld [vmem:[%s1387 + $0x10] sm:$0xf]
      %v1393 = vld [vmem:[%s1387 + $0x14] sm:$0xf]
      %v1394 = vld [vmem:[%s1387 + $0x18] sm:$0xf]
      %v1395 = vld [vmem:[%s1387 + $0x1c] sm:$0xf]
      %s1396 = scalar_lea.vmem %s8, 1
      %v1397 = vld [vmem:[%s1396] sm:$0x1]
      %v1399 = vperm.slane %v1397, 0
      %v1409 = vunpack.c.l.b16 %v1388
      %v1410 = vunpack.c.l.b16 %v1389
      %v1411 = vunpack.c.l.b16 %v1390
      %v1412 = vunpack.c.l.b16 %v1391
      %v1413 = vunpack.c.l.b16 %v1392
      %v1414 = vunpack.c.l.b16 %v1393
      %v1415 = vunpack.c.l.b16 %v1394
      %v1416 = vunpack.c.l.b16 %v1395
      %v1417 = vpack.c.b16 %v1410, %v1409
      %v1418 = vpack.c.b16 %v1412, %v1411
      %v1419 = vpack.c.b16 %v1414, %v1413
      %v1420 = vpack.c.b16 %v1416, %v1415
      %1425 = vmatpush.bf16.msra.mxu0 0
      %1426 = vmatpush.bf16.msra.mxu0 0
      %1427 = vmatpush.bf16.msra.mxu0 0
      %1428 = vmatpush.bf16.msra.mxu0 0
      %1429 = vmatpush.bf16.msra.mxu0 %v1420
      %1430 = vmatpush.bf16.msra.mxu0 %v1419
      %1431 = vmatpush.bf16.msra.mxu0 %v1418
      %1432 = vmatpush.bf16.msra.mxu0 %v1417
      %1433 = vmatmul.bf16.gmra.mxu0 %v1210
      %v1434 = vpop.f32.mrf.mxu0
      %v1435 = vadd.f32 %v1399, %v1434
      %v1436 = vpop.f32.mrf.mxu0
      %1437 = vdwg.mxu0
      %s1438 = scalar_lea.vmem %s6, 32
      %v1439 = vld [vmem:[%s1438] sm:$0xf]
      %v1440 = vld [vmem:[%s1438 + $0x4] sm:$0xf]
      %v1441 = vld [vmem:[%s1438 + $0x8] sm:$0xf]
      %v1442 = vld [vmem:[%s1438 + $0xc] sm:$0xf]
      %v1443 = vld [vmem:[%s1438 + $0x10] sm:$0xf]
      %v1444 = vld [vmem:[%s1438 + $0x14] sm:$0xf]
      %v1445 = vld [vmem:[%s1438 + $0x18] sm:$0xf]
      %v1446 = vld [vmem:[%s1438 + $0x1c] sm:$0xf]
      %s1447 = scalar_lea.vmem %s9, 1
      %v1448 = vld [vmem:[%s1447] sm:$0x1]
      %v1450 = vperm.slane %v1448, 0
      %v1460 = vunpack.c.l.b16 %v1439
      %v1461 = vunpack.c.l.b16 %v1440
      %v1462 = vunpack.c.l.b16 %v1441
      %v1463 = vunpack.c.l.b16 %v1442
      %v1464 = vunpack.c.l.b16 %v1443
      %v1465 = vunpack.c.l.b16 %v1444
      %v1466 = vunpack.c.l.b16 %v1445
      %v1467 = vunpack.c.l.b16 %v1446
      %v1468 = vpack.c.b16 %v1461, %v1460
      %v1469 = vpack.c.b16 %v1463, %v1462
      %v1470 = vpack.c.b16 %v1465, %v1464
      %v1471 = vpack.c.b16 %v1467, %v1466
      %1476 = vmatpush.bf16.msra.mxu0 0
      %1477 = vmatpush.bf16.msra.mxu0 0
      %1478 = vmatpush.bf16.msra.mxu0 0
      %1479 = vmatpush.bf16.msra.mxu0 0
      %1480 = vmatpush.bf16.msra.mxu0 %v1471
      %1481 = vmatpush.bf16.msra.mxu0 %v1470
      %1482 = vmatpush.bf16.msra.mxu0 %v1469
      %1483 = vmatpush.bf16.msra.mxu0 %v1468
      %1484 = vmatmul.bf16.gmra.mxu0 %v1210
      %v1485 = vpop.f32.mrf.mxu0
      %v1486 = vadd.f32 %v1450, %v1485
      %v1487 = vpop.f32.mrf.mxu0
      %1488 = vdwg.mxu0
      %s1489 = scalar_lea.vmem %s7, 32
      %v1490 = vld [vmem:[%s1489] sm:$0xf]
      %v1491 = vld [vmem:[%s1489 + $0x4] sm:$0xf]
      %v1492 = vld [vmem:[%s1489 + $0x8] sm:$0xf]
      %v1493 = vld [vmem:[%s1489 + $0xc] sm:$0xf]
      %v1494 = vld [vmem:[%s1489 + $0x10] sm:$0xf]
      %v1495 = vld [vmem:[%s1489 + $0x14] sm:$0xf]
      %v1496 = vld [vmem:[%s1489 + $0x18] sm:$0xf]
      %v1497 = vld [vmem:[%s1489 + $0x1c] sm:$0xf]
      %s1498 = scalar_lea.vmem %s10, 1
      %v1499 = vld [vmem:[%s1498] sm:$0x1]
      %v1501 = vperm.slane %v1499, 0
      %v1511 = vunpack.c.l.b16 %v1490
      %v1512 = vunpack.c.l.b16 %v1491
      %v1513 = vunpack.c.l.b16 %v1492
      %v1514 = vunpack.c.l.b16 %v1493
      %v1515 = vunpack.c.l.b16 %v1494
      %v1516 = vunpack.c.l.b16 %v1495
      %v1517 = vunpack.c.l.b16 %v1496
      %v1518 = vunpack.c.l.b16 %v1497
      %v1519 = vpack.c.b16 %v1512, %v1511
      %v1520 = vpack.c.b16 %v1514, %v1513
      %v1521 = vpack.c.b16 %v1516, %v1515
      %v1522 = vpack.c.b16 %v1518, %v1517
      %1527 = vmatpush.bf16.msra.mxu0 0
      %1528 = vmatpush.bf16.msra.mxu0 0
      %1529 = vmatpush.bf16.msra.mxu0 0
      %1530 = vmatpush.bf16.msra.mxu0 0
      %1531 = vmatpush.bf16.msra.mxu0 %v1522
      %1532 = vmatpush.bf16.msra.mxu0 %v1521
      %1533 = vmatpush.bf16.msra.mxu0 %v1520
      %1534 = vmatpush.bf16.msra.mxu0 %v1519
      %1535 = vmatmul.bf16.gmra.mxu0 %v1210
      %v1536 = vpop.f32.mrf.mxu0
      %v1537 = vadd.f32 %v1501, %v1536
      %v1538 = vpop.f32.mrf.mxu0
      %1539 = vdwg.mxu0
      %v1540 = vpack.c.bf16 %v1435, %v1435
      %v1541 = vpack.c.bf16 %v1486, %v1486
      %v1543 = vsel %vm1325, %v1540, 0
      %v1546 = vsel %vm1325, %v1541, 0
      %1548 = vmatpush.bf16.xpose.msra.mxu0 0
      %1549 = vmatpush.bf16.xpose.msra.mxu0 0
      %1550 = vmatpush.bf16.xpose.msra.mxu0 0
      %1551 = vmatpush.bf16.xpose.msra.mxu0 0
      %1552 = vmatpush.bf16.xpose.msra.mxu0 0
      %1553 = vmatpush.bf16.xpose.msra.mxu0 0
      %1554 = vmatpush.bf16.xpose.msra.mxu0 0
      %1555 = vmatpush.bf16.xpose.msra.mxu0 %v1546
      %1556 = vmatmul.bf16.gmra.mxu0 %v1543
      %v1557 = vpop.f32.mrf.mxu0
      %v1558 = vadd.f32 0.0, %v1557
      %v1559 = vpop.f32.mrf.mxu0
      %1560 = vdwg.mxu0
      %v1561 = vmul.f32 %v1558, 0.25
      %v1562 = vsel %vm1346, %v1561, -inf
      %1563 = vmax.xlane.f32.xlu0 %v1562
      %v1564 = vpop.xlane.xlu0 %1563
      %v1565 = vsub.f32 %v1561, %v1564
      %v1566 = vmul.f32 %v1565, 1.442695
      %v1567 = vpow.pop %v1566
      %v1568 = vsel %vm1346, %v1567, 0.0
      %1569 = vadd.xlane.f32.xlu0 %v1568
      %v1570 = vpop.xlane.xlu0 %1569
      %v1571 = vrcp.pop %v1570
      %v1572 = vmul.f32 %v1567, %v1571
      %v1573 = vpack.c.bf16 %v1572, %v1572
      %v1574 = vpack.c.bf16 %v1537, %v1537
      %v1576 = vsel %vm1360, %v1573, 0
      %v1579 = vand.u32 %v1574, %v1367
      %1581 = vmatpush.bf16.msra.mxu0 0
      %1582 = vmatpush.bf16.msra.mxu0 0
      %1583 = vmatpush.bf16.msra.mxu0 0
      %1584 = vmatpush.bf16.msra.mxu0 0
      %1585 = vmatpush.bf16.msra.mxu0 0
      %1586 = vmatpush.bf16.msra.mxu0 0
      %1587 = vmatpush.bf16.msra.mxu0 0
      %1588 = vmatpush.bf16.msra.mxu0 %v1579
      %1589 = vmatmul.bf16.gmra.mxu0 %v1576
      %v1590 = vpop.f32.mrf.mxu0
      %v1591 = vadd.f32 0.0, %v1590
      %v1592 = vpop.f32.mrf.mxu0
      %1593 = vdwg.mxu0
      %v1594 = vpack.c.bf16 %v1591, %v1591
      %s1595 = scalar_lea.vmem %s11, 8
      %v1596 = vld [vmem:[%s1595] sm:$0xf]
      %v1597 = vld [vmem:[%s1595 + $0x4] sm:$0xf]
      %v1600 = vunpack.c.l.b16 %v1596
      %v1601 = vunpack.c.l.b16 %v1597
      %v1602 = vpack.c.b16 %v1601, %v1600
      %v1605 = vsel %vm1325, %v1594, 0
      %1607 = vmatpush.bf16.msra.mxu0 0
      %1608 = vmatpush.bf16.msra.mxu0 0
      %1609 = vmatpush.bf16.msra.mxu0 0
      %1610 = vmatpush.bf16.msra.mxu0 0
      %1611 = vmatpush.bf16.msra.mxu0 0
      %1612 = vmatpush.bf16.msra.mxu0 0
      %1613 = vmatpush.bf16.msra.mxu0 0
      %1614 = vmatpush.bf16.msra.mxu0 %v1602
      %1615 = vmatmul.bf16.gmra.mxu0 %v1605
      %v1616 = vpop.f32.mrf.mxu0
      %v1617 = vadd.f32 0.0, %v1616
      %v1618 = vpop.f32.mrf.mxu0
      %1619 = vdwg.mxu0
      %v1622 = vunpack.c.l.b16 %v1385
      %v1623 = vunpack.c.l.b16 %v1386
      %v1624 = vpack.c.b16 %v1623, %v1622
      %v1627 = vsel %vm1325, %v1384, 0
      %1629 = vmatpush.bf16.msra.mxu0 0
      %1630 = vmatpush.bf16.msra.mxu0 0
      %1631 = vmatpush.bf16.msra.mxu0 0
      %1632 = vmatpush.bf16.msra.mxu0 0
      %1633 = vmatpush.bf16.msra.mxu0 0
      %1634 = vmatpush.bf16.msra.mxu0 0
      %1635 = vmatpush.bf16.msra.mxu0 0
      %1636 = vmatpush.bf16.msra.mxu0 %v1624
      %1637 = vmatmul.bf16.gmra.mxu0 %v1627
      %v1638 = vpop.f32.mrf.mxu0
      %v1639 = vadd.f32 %v1617, %v1638
      %v1640 = vpop.f32.mrf.mxu0
      %1641 = vdwg.mxu0
      %s1642 = scalar_lea.vmem %s5, 64
      %v1643 = vld [vmem:[%s1642] sm:$0xf]
      %v1644 = vld [vmem:[%s1642 + $0x4] sm:$0xf]
      %v1645 = vld [vmem:[%s1642 + $0x8] sm:$0xf]
      %v1646 = vld [vmem:[%s1642 + $0xc] sm:$0xf]
      %v1647 = vld [vmem:[%s1642 + $0x10] sm:$0xf]
      %v1648 = vld [vmem:[%s1642 + $0x14] sm:$0xf]
      %v1649 = vld [vmem:[%s1642 + $0x18] sm:$0xf]
      %v1650 = vld [vmem:[%s1642 + $0x1c] sm:$0xf]
      %s1651 = scalar_lea.vmem %s8, 2
      %v1652 = vld [vmem:[%s1651] sm:$0x1]
      %v1654 = vperm.slane %v1652, 0
      %v1664 = vunpack.c.l.b16 %v1643
      %v1665 = vunpack.c.l.b16 %v1644
      %v1666 = vunpack.c.l.b16 %v1645
      %v1667 = vunpack.c.l.b16 %v1646
      %v1668 = vunpack.c.l.b16 %v1647
      %v1669 = vunpack.c.l.b16 %v1648
      %v1670 = vunpack.c.l.b16 %v1649
      %v1671 = vunpack.c.l.b16 %v1650
      %v1672 = vpack.c.b16 %v1665, %v1664
      %v1673 = vpack.c.b16 %v1667, %v1666
      %v1674 = vpack.c.b16 %v1669, %v1668
      %v1675 = vpack.c.b16 %v1671, %v1670
      %1680 = vmatpush.bf16.msra.mxu0 0
      %1681 = vmatpush.bf16.msra.mxu0 0
      %1682 = vmatpush.bf16.msra.mxu0 0
      %1683 = vmatpush.bf16.msra.mxu0 0
      %1684 = vmatpush.bf16.msra.mxu0 %v1675
      %1685 = vmatpush.bf16.msra.mxu0 %v1674
      %1686 = vmatpush.bf16.msra.mxu0 %v1673
      %1687 = vmatpush.bf16.msra.mxu0 %v1672
      %1688 = vmatmul.bf16.gmra.mxu0 %v1210
      %v1689 = vpop.f32.mrf.mxu0
      %v1690 = vadd.f32 %v1654, %v1689
      %v1691 = vpop.f32.mrf.mxu0
      %1692 = vdwg.mxu0
      %s1693 = scalar_lea.vmem %s6, 64
      %v1694 = vld [vmem:[%s1693] sm:$0xf]
      %v1695 = vld [vmem:[%s1693 + $0x4] sm:$0xf]
      %v1696 = vld [vmem:[%s1693 + $0x8] sm:$0xf]
      %v1697 = vld [vmem:[%s1693 + $0xc] sm:$0xf]
      %v1698 = vld [vmem:[%s1693 + $0x10] sm:$0xf]
      %v1699 = vld [vmem:[%s1693 + $0x14] sm:$0xf]
      %v1700 = vld [vmem:[%s1693 + $0x18] sm:$0xf]
      %v1701 = vld [vmem:[%s1693 + $0x1c] sm:$0xf]
      %s1702 = scalar_lea.vmem %s9, 2
      %v1703 = vld [vmem:[%s1702] sm:$0x1]
      %v1705 = vperm.slane %v1703, 0
      %v1715 = vunpack.c.l.b16 %v1694
      %v1716 = vunpack.c.l.b16 %v1695
      %v1717 = vunpack.c.l.b16 %v1696
      %v1718 = vunpack.c.l.b16 %v1697
      %v1719 = vunpack.c.l.b16 %v1698
      %v1720 = vunpack.c.l.b16 %v1699
      %v1721 = vunpack.c.l.b16 %v1700
      %v1722 = vunpack.c.l.b16 %v1701
      %v1723 = vpack.c.b16 %v1716, %v1715
      %v1724 = vpack.c.b16 %v1718, %v1717
      %v1725 = vpack.c.b16 %v1720, %v1719
      %v1726 = vpack.c.b16 %v1722, %v1721
      %1731 = vmatpush.bf16.msra.mxu0 0
      %1732 = vmatpush.bf16.msra.mxu0 0
      %1733 = vmatpush.bf16.msra.mxu0 0
      %1734 = vmatpush.bf16.msra.mxu0 0
      %1735 = vmatpush.bf16.msra.mxu0 %v1726
      %1736 = vmatpush.bf16.msra.mxu0 %v1725
      %1737 = vmatpush.bf16.msra.mxu0 %v1724
      %1738 = vmatpush.bf16.msra.mxu0 %v1723
      %1739 = vmatmul.bf16.gmra.mxu0 %v1210
      %v1740 = vpop.f32.mrf.mxu0
      %v1741 = vadd.f32 %v1705, %v1740
      %v1742 = vpop.f32.mrf.mxu0
      %1743 = vdwg.mxu0
      %s1744 = scalar_lea.vmem %s7, 64
      %v1745 = vld [vmem:[%s1744] sm:$0xf]
      %v1746 = vld [vmem:[%s1744 + $0x4] sm:$0xf]
      %v1747 = vld [vmem:[%s1744 + $0x8] sm:$0xf]
      %v1748 = vld [vmem:[%s1744 + $0xc] sm:$0xf]
      %v1749 = vld [vmem:[%s1744 + $0x10] sm:$0xf]
      %v1750 = vld [vmem:[%s1744 + $0x14] sm:$0xf]
      %v1751 = vld [vmem:[%s1744 + $0x18] sm:$0xf]
      %v1752 = vld [vmem:[%s1744 + $0x1c] sm:$0xf]
      %s1753 = scalar_lea.vmem %s10, 2
      %v1754 = vld [vmem:[%s1753] sm:$0x1]
      %v1756 = vperm.slane %v1754, 0
      %v1766 = vunpack.c.l.b16 %v1745
      %v1767 = vunpack.c.l.b16 %v1746
      %v1768 = vunpack.c.l.b16 %v1747
      %v1769 = vunpack.c.l.b16 %v1748
      %v1770 = vunpack.c.l.b16 %v1749
      %v1771 = vunpack.c.l.b16 %v1750
      %v1772 = vunpack.c.l.b16 %v1751
      %v1773 = vunpack.c.l.b16 %v1752
      %v1774 = vpack.c.b16 %v1767, %v1766
      %v1775 = vpack.c.b16 %v1769, %v1768
      %v1776 = vpack.c.b16 %v1771, %v1770
      %v1777 = vpack.c.b16 %v1773, %v1772
      %1782 = vmatpush.bf16.msra.mxu0 0
      %1783 = vmatpush.bf16.msra.mxu0 0
      %1784 = vmatpush.bf16.msra.mxu0 0
      %1785 = vmatpush.bf16.msra.mxu0 0
      %1786 = vmatpush.bf16.msra.mxu0 %v1777
      %1787 = vmatpush.bf16.msra.mxu0 %v1776
      %1788 = vmatpush.bf16.msra.mxu0 %v1775
      %1789 = vmatpush.bf16.msra.mxu0 %v1774
      %1790 = vmatmul.bf16.gmra.mxu0 %v1210
      %v1791 = vpop.f32.mrf.mxu0
      %v1792 = vadd.f32 %v1756, %v1791
      %v1793 = vpop.f32.mrf.mxu0
      %1794 = vdwg.mxu0
      %v1795 = vpack.c.bf16 %v1690, %v1690
      %v1796 = vpack.c.bf16 %v1741, %v1741
      %v1798 = vsel %vm1325, %v1795, 0
      %v1801 = vsel %vm1325, %v1796, 0
      %1803 = vmatpush.bf16.xpose.msra.mxu0 0
      %1804 = vmatpush.bf16.xpose.msra.mxu0 0
      %1805 = vmatpush.bf16.xpose.msra.mxu0 0
      %1806 = vmatpush.bf16.xpose.msra.mxu0 0
      %1807 = vmatpush.bf16.xpose.msra.mxu0 0
      %1808 = vmatpush.bf16.xpose.msra.mxu0 0
      %1809 = vmatpush.bf16.xpose.msra.mxu0 0
      %1810 = vmatpush.bf16.xpose.msra.mxu0 %v1801
      %1811 = vmatmul.bf16.gmra.mxu0 %v1798
      %v1812 = vpop.f32.mrf.mxu0
      %v1813 = vadd.f32 0.0, %v1812
      %v1814 = vpop.f32.mrf.mxu0
      %1815 = vdwg.mxu0
      %v1816 = vmul.f32 %v1813, 0.25
      %v1817 = vsel %vm1346, %v1816, -inf
      %1818 = vmax.xlane.f32.xlu0 %v1817
      %v1819 = vpop.xlane.xlu0 %1818
      %v1820 = vsub.f32 %v1816, %v1819
      %v1821 = vmul.f32 %v1820, 1.442695
      %v1822 = vpow.pop %v1821
      %v1823 = vsel %vm1346, %v1822, 0.0
      %1824 = vadd.xlane.f32.xlu0 %v1823
      %v1825 = vpop.xlane.xlu0 %1824
      %v1826 = vrcp.pop %v1825
      %v1827 = vmul.f32 %v1822, %v1826
      %v1828 = vpack.c.bf16 %v1827, %v1827
      %v1829 = vpack.c.bf16 %v1792, %v1792
      %v1831 = vsel %vm1360, %v1828, 0
      %v1834 = vand.u32 %v1829, %v1367
      %1836 = vmatpush.bf16.msra.mxu0 0
      %1837 = vmatpush.bf16.msra.mxu0 0
      %1838 = vmatpush.bf16.msra.mxu0 0
      %1839 = vmatpush.bf16.msra.mxu0 0
      %1840 = vmatpush.bf16.msra.mxu0 0
      %1841 = vmatpush.bf16.msra.mxu0 0
      %1842 = vmatpush.bf16.msra.mxu0 0
      %1843 = vmatpush.bf16.msra.mxu0 %v1834
      %1844 = vmatmul.bf16.gmra.mxu0 %v1831
      %v1845 = vpop.f32.mrf.mxu0
      %v1846 = vadd.f32 0.0, %v1845
      %v1847 = vpop.f32.mrf.mxu0
      %1848 = vdwg.mxu0
      %v1849 = vpack.c.bf16 %v1846, %v1846
      %s1850 = scalar_lea.vmem %s11, 16
      %v1851 = vld [vmem:[%s1850] sm:$0xf]
      %v1852 = vld [vmem:[%s1850 + $0x4] sm:$0xf]
      %v1855 = vunpack.c.l.b16 %v1851
      %v1856 = vunpack.c.l.b16 %v1852
      %v1857 = vpack.c.b16 %v1856, %v1855
      %v1860 = vsel %vm1325, %v1849, 0
      %1862 = vmatpush.bf16.msra.mxu0 0
      %1863 = vmatpush.bf16.msra.mxu0 0
      %1864 = vmatpush.bf16.msra.mxu0 0
      %1865 = vmatpush.bf16.msra.mxu0 0
      %1866 = vmatpush.bf16.msra.mxu0 0
      %1867 = vmatpush.bf16.msra.mxu0 0
      %1868 = vmatpush.bf16.msra.mxu0 0
      %1869 = vmatpush.bf16.msra.mxu0 %v1857
      %1870 = vmatmul.bf16.gmra.mxu0 %v1860
      %v1871 = vpop.f32.mrf.mxu0
      %v1872 = vadd.f32 0.0, %v1871
      %v1873 = vpop.f32.mrf.mxu0
      %1874 = vdwg.mxu0
      %v1875 = vadd.f32 %v1639, %v1872
      %s1876 = scalar_lea.vmem %s5, 96
      %v1877 = vld [vmem:[%s1876] sm:$0xf]
      %v1878 = vld [vmem:[%s1876 + $0x4] sm:$0xf]
      %v1879 = vld [vmem:[%s1876 + $0x8] sm:$0xf]
      %v1880 = vld [vmem:[%s1876 + $0xc] sm:$0xf]
      %v1881 = vld [vmem:[%s1876 + $0x10] sm:$0xf]
      %v1882 = vld [vmem:[%s1876 + $0x14] sm:$0xf]
      %v1883 = vld [vmem:[%s1876 + $0x18] sm:$0xf]
      %v1884 = vld [vmem:[%s1876 + $0x1c] sm:$0xf]
      %s1885 = scalar_lea.vmem %s8, 3
      %v1886 = vld [vmem:[%s1885] sm:$0x1]
      %v1888 = vperm.slane %v1886, 0
      %v1898 = vunpack.c.l.b16 %v1877
      %v1899 = vunpack.c.l.b16 %v1878
      %v1900 = vunpack.c.l.b16 %v1879
      %v1901 = vunpack.c.l.b16 %v1880
      %v1902 = vunpack.c.l.b16 %v1881
      %v1903 = vunpack.c.l.b16 %v1882
      %v1904 = vunpack.c.l.b16 %v1883
      %v1905 = vunpack.c.l.b16 %v1884
      %v1906 = vpack.c.b16 %v1899, %v1898
      %v1907 = vpack.c.b16 %v1901, %v1900
      %v1908 = vpack.c.b16 %v1903, %v1902
      %v1909 = vpack.c.b16 %v1905, %v1904
      %1914 = vmatpush.bf16.msra.mxu0 0
      %1915 = vmatpush.bf16.msra.mxu0 0
      %1916 = vmatpush.bf16.msra.mxu0 0
      %1917 = vmatpush.bf16.msra.mxu0 0
      %1918 = vmatpush.bf16.msra.mxu0 %v1909
      %1919 = vmatpush.bf16.msra.mxu0 %v1908
      %1920 = vmatpush.bf16.msra.mxu0 %v1907
      %1921 = vmatpush.bf16.msra.mxu0 %v1906
      %1922 = vmatmul.bf16.gmra.mxu0 %v1210
      %v1923 = vpop.f32.mrf.mxu0
      %v1924 = vadd.f32 %v1888, %v1923
      %v1925 = vpop.f32.mrf.mxu0
      %1926 = vdwg.mxu0
      %s1927 = scalar_lea.vmem %s6, 96
      %v1928 = vld [vmem:[%s1927] sm:$0xf]
      %v1929 = vld [vmem:[%s1927 + $0x4] sm:$0xf]
      %v1930 = vld [vmem:[%s1927 + $0x8] sm:$0xf]
      %v1931 = vld [vmem:[%s1927 + $0xc] sm:$0xf]
      %v1932 = vld [vmem:[%s1927 + $0x10] sm:$0xf]
      %v1933 = vld [vmem:[%s1927 + $0x14] sm:$0xf]
      %v1934 = vld [vmem:[%s1927 + $0x18] sm:$0xf]
      %v1935 = vld [vmem:[%s1927 + $0x1c] sm:$0xf]
      %s1936 = scalar_lea.vmem %s9, 3
      %v1937 = vld [vmem:[%s1936] sm:$0x1]
      %v1939 = vperm.slane %v1937, 0
      %v1949 = vunpack.c.l.b16 %v1928
      %v1950 = vunpack.c.l.b16 %v1929
      %v1951 = vunpack.c.l.b16 %v1930
      %v1952 = vunpack.c.l.b16 %v1931
      %v1953 = vunpack.c.l.b16 %v1932
      %v1954 = vunpack.c.l.b16 %v1933
      %v1955 = vunpack.c.l.b16 %v1934
      %v1956 = vunpack.c.l.b16 %v1935
      %v1957 = vpack.c.b16 %v1950, %v1949
      %v1958 = vpack.c.b16 %v1952, %v1951
      %v1959 = vpack.c.b16 %v1954, %v1953
      %v1960 = vpack.c.b16 %v1956, %v1955
      %1965 = vmatpush.bf16.msra.mxu0 0
      %1966 = vmatpush.bf16.msra.mxu0 0
      %1967 = vmatpush.bf16.msra.mxu0 0
      %1968 = vmatpush.bf16.msra.mxu0 0
      %1969 = vmatpush.bf16.msra.mxu0 %v1960
      %1970 = vmatpush.bf16.msra.mxu0 %v1959
      %1971 = vmatpush.bf16.msra.mxu0 %v1958
      %1972 = vmatpush.bf16.msra.mxu0 %v1957
      %1973 = vmatmul.bf16.gmra.mxu0 %v1210
      %v1974 = vpop.f32.mrf.mxu0
      %v1975 = vadd.f32 %v1939, %v1974
      %v1976 = vpop.f32.mrf.mxu0
      %1977 = vdwg.mxu0
      %s1978 = scalar_lea.vmem %s7, 96
      %v1979 = vld [vmem:[%s1978] sm:$0xf]
      %v1980 = vld [vmem:[%s1978 + $0x4] sm:$0xf]
      %v1981 = vld [vmem:[%s1978 + $0x8] sm:$0xf]
      %v1982 = vld [vmem:[%s1978 + $0xc] sm:$0xf]
      %v1983 = vld [vmem:[%s1978 + $0x10] sm:$0xf]
      %v1984 = vld [vmem:[%s1978 + $0x14] sm:$0xf]
      %v1985 = vld [vmem:[%s1978 + $0x18] sm:$0xf]
      %v1986 = vld [vmem:[%s1978 + $0x1c] sm:$0xf]
      %s1987 = scalar_lea.vmem %s10, 3
      %v1988 = vld [vmem:[%s1987] sm:$0x1]
      %v1990 = vperm.slane %v1988, 0
      %v2000 = vunpack.c.l.b16 %v1979
      %v2001 = vunpack.c.l.b16 %v1980
      %v2002 = vunpack.c.l.b16 %v1981
      %v2003 = vunpack.c.l.b16 %v1982
      %v2004 = vunpack.c.l.b16 %v1983
      %v2005 = vunpack.c.l.b16 %v1984
      %v2006 = vunpack.c.l.b16 %v1985
      %v2007 = vunpack.c.l.b16 %v1986
      %v2008 = vpack.c.b16 %v2001, %v2000
      %v2009 = vpack.c.b16 %v2003, %v2002
      %v2010 = vpack.c.b16 %v2005, %v2004
      %v2011 = vpack.c.b16 %v2007, %v2006
      %2016 = vmatpush.bf16.msra.mxu0 0
      %2017 = vmatpush.bf16.msra.mxu0 0
      %2018 = vmatpush.bf16.msra.mxu0 0
      %2019 = vmatpush.bf16.msra.mxu0 0
      %2020 = vmatpush.bf16.msra.mxu0 %v2011
      %2021 = vmatpush.bf16.msra.mxu0 %v2010
      %2022 = vmatpush.bf16.msra.mxu0 %v2009
      %2023 = vmatpush.bf16.msra.mxu0 %v2008
      %2024 = vmatmul.bf16.gmra.mxu0 %v1210
      %v2025 = vpop.f32.mrf.mxu0
      %v2026 = vadd.f32 %v1990, %v2025
      %v2027 = vpop.f32.mrf.mxu0
      %2028 = vdwg.mxu0
      %v2029 = vpack.c.bf16 %v1924, %v1924
      %v2030 = vpack.c.bf16 %v1975, %v1975
      %v2032 = vsel %vm1325, %v2029, 0
      %v2035 = vsel %vm1325, %v2030, 0
      %2037 = vmatpush.bf16.xpose.msra.mxu0 0
      %2038 = vmatpush.bf16.xpose.msra.mxu0 0
      %2039 = vmatpush.bf16.xpose.msra.mxu0 0
      %2040 = vmatpush.bf16.xpose.msra.mxu0 0
      %2041 = vmatpush.bf16.xpose.msra.mxu0 0
      %2042 = vmatpush.bf16.xpose.msra.mxu0 0
      %2043 = vmatpush.bf16.xpose.msra.mxu0 0
      %2044 = vmatpush.bf16.xpose.msra.mxu0 %v2035
      %2045 = vmatmul.bf16.gmra.mxu0 %v2032
      %v2046 = vpop.f32.mrf.mxu0
      %v2047 = vadd.f32 0.0, %v2046
      %v2048 = vpop.f32.mrf.mxu0
      %2049 = vdwg.mxu0
      %v2050 = vmul.f32 %v2047, 0.25
      %v2051 = vsel %vm1346, %v2050, -inf
      %2052 = vmax.xlane.f32.xlu0 %v2051
      %v2053 = vpop.xlane.xlu0 %2052
      %v2054 = vsub.f32 %v2050, %v2053
      %v2055 = vmul.f32 %v2054, 1.442695
      %v2056 = vpow.pop %v2055
      %v2057 = vsel %vm1346, %v2056, 0.0
      %2058 = vadd.xlane.f32.xlu0 %v2057
      %v2059 = vpop.xlane.xlu0 %2058
      %v2060 = vrcp.pop %v2059
      %v2061 = vmul.f32 %v2056, %v2060
      %v2062 = vpack.c.bf16 %v2061, %v2061
      %v2063 = vpack.c.bf16 %v2026, %v2026
      %v2065 = vsel %vm1360, %v2062, 0
      %v2068 = vand.u32 %v2063, %v1367
      %2070 = vmatpush.bf16.msra.mxu0 0
      %2071 = vmatpush.bf16.msra.mxu0 0
      %2072 = vmatpush.bf16.msra.mxu0 0
      %2073 = vmatpush.bf16.msra.mxu0 0
      %2074 = vmatpush.bf16.msra.mxu0 0
      %2075 = vmatpush.bf16.msra.mxu0 0
      %2076 = vmatpush.bf16.msra.mxu0 0
      %2077 = vmatpush.bf16.msra.mxu0 %v2068
      %2078 = vmatmul.bf16.gmra.mxu0 %v2065
      %v2079 = vpop.f32.mrf.mxu0
      %v2080 = vadd.f32 0.0, %v2079
      %v2081 = vpop.f32.mrf.mxu0
      %2082 = vdwg.mxu0
      %v2083 = vpack.c.bf16 %v2080, %v2080
      %s2084 = scalar_lea.vmem %s11, 24
      %v2085 = vld [vmem:[%s2084] sm:$0xf]
      %v2086 = vld [vmem:[%s2084 + $0x4] sm:$0xf]
      %v2089 = vunpack.c.l.b16 %v2085
      %v2090 = vunpack.c.l.b16 %v2086
      %v2091 = vpack.c.b16 %v2090, %v2089
      %v2094 = vsel %vm1325, %v2083, 0
      %2096 = vmatpush.bf16.msra.mxu0 0
      %2097 = vmatpush.bf16.msra.mxu0 0
      %2098 = vmatpush.bf16.msra.mxu0 0
      %2099 = vmatpush.bf16.msra.mxu0 0
      %2100 = vmatpush.bf16.msra.mxu0 0
      %2101 = vmatpush.bf16.msra.mxu0 0
      %2102 = vmatpush.bf16.msra.mxu0 0
      %2103 = vmatpush.bf16.msra.mxu0 %v2091
      %2104 = vmatmul.bf16.gmra.mxu0 %v2094
      %v2105 = vpop.f32.mrf.mxu0
      %v2106 = vadd.f32 0.0, %v2105
      %v2107 = vpop.f32.mrf.mxu0
      %2108 = vdwg.mxu0
      %v2109 = vadd.f32 %v1875, %v2106
      %v2110 = vadd.f32 %v1128, %v2109
      %v2111 = vld [vmem:[%s12] sm:$0x1]
      %v2113 = vperm.slane %v2111, 0
      %v2115 = vadd.f32 %v2110, %v2113
      %v2116 = vld [vmem:[%s13] sm:$0x1]
      %v2117 = vld [vmem:[%s14] sm:$0x1]
      %v2118 = vsel %vm1133, %v2115, 0.0
      %2119 = vadd.xlane.f32.xlu0 %v2118
      %v2120 = vpop.xlane.xlu0 %2119
      %v2121 = vmul.f32 %v2120, %v1143
      %v2122 = vsub.f32 %v2115, %v2121
      %v2123 = vmul.f32 %v2122, %v2122
      %v2124 = vsel %vm1133, %v2123, 0.0
      %2125 = vadd.xlane.f32.xlu0 %v2124
      %v2126 = vpop.xlane.xlu0 %2125
      %v2127 = vmul.f32 %v2126, %v1143
      %v2128 = vadd.f32 %v2127, 1e-06
      %v2129 = vrsqrt.pop %v2128
      %v2130 = vmul.f32 %v2129, %v2128
      %v2131 = vmul.f32 %v2130, %v2129
      %v2132 = vmul.f32 0.5, %v2131
      %v2133 = vsub.f32 1.5, %v2132
      %v2134 = vmul.f32 %v2129, %v2133
      %vm2135 = vweird.f32 %v2128
      %vm2136 = vweird.f32 %v2129
      %vm2137 = vmor %vm2135, %vm2136
      %v2138 = vsel %vm2137, %v2129, %v2134
      %v2139 = vmul.f32 %v2122, %v2138
      %v2141 = vperm.slane %v2116, 0
      %v2143 = vmul.f32 %v2139, %v2141
      %v2145 = vperm.slane %v2117, 0
      %v2147 = vadd.f32 %v2143, %v2145
      %v2148 = vpack.c.bf16 %v2147, %v2147
      %v2149 = vld [vmem:[%s15] sm:$0xff]
      %v2150 = vld [vmem:[%s15 + $0x8] sm:$0xff]
      %v2151 = vld [vmem:[%s15 + $0x10] sm:$0xff]
      %v2152 = vld [vmem:[%s15 + $0x18] sm:$0xff]
      %v2153 = vld [vmem:[%s15 + $0x20] sm:$0xff]
      %v2154 = vld [vmem:[%s15 + $0x28] sm:$0xff]
      %v2155 = vld [vmem:[%s15 + $0x30] sm:$0xff]
      %v2156 = vld [vmem:[%s15 + $0x38] sm:$0xff]
      %v2157 = vld [vmem:[%s16] sm:$0x3]
      %v2159 = vperm.slane %v2157, 0
      %v2160 = vperm.slane %v2157, 1
      %v2171 = vunpack.c.l.b16 %v2149
      %v2172 = vunpack.c.h.b16 %v2149
      %v2173 = vunpack.c.l.b16 %v2150
      %v2174 = vunpack.c.h.b16 %v2150
      %v2175 = vunpack.c.l.b16 %v2151
      %v2176 = vunpack.c.h.b16 %v2151
      %v2177 = vunpack.c.l.b16 %v2152
      %v2178 = vunpack.c.h.b16 %v2152
      %v2179 = vunpack.c.l.b16 %v2153
      %v2180 = vunpack.c.h.b16 %v2153
      %v2181 = vunpack.c.l.b16 %v2154
      %v2182 = vunpack.c.h.b16 %v2154
      %v2183 = vunpack.c.l.b16 %v2155
      %v2184 = vunpack.c.h.b16 %v2155
      %v2185 = vunpack.c.l.b16 %v2156
      %v2186 = vunpack.c.h.b16 %v2156
      %v2187 = vpack.c.b16 %v2173, %v2171
      %v2188 = vpack.c.b16 %v2174, %v2172
      %v2189 = vpack.c.b16 %v2177, %v2175
      %v2190 = vpack.c.b16 %v2178, %v2176
      %v2191 = vpack.c.b16 %v2181, %v2179
      %v2192 = vpack.c.b16 %v2182, %v2180
      %v2193 = vpack.c.b16 %v2185, %v2183
      %v2194 = vpack.c.b16 %v2186, %v2184
      %v2204 = vsel %vm1208, %v2148, 0
      %2206 = vmatpush.bf16.msra.mxu0 0
      %2207 = vmatpush.bf16.msra.mxu0 0
      %2208 = vmatpush.bf16.msra.mxu0 0
      %2209 = vmatpush.bf16.msra.mxu0 0
      %2210 = vmatpush.bf16.msra.mxu0 %v2193
      %2211 = vmatpush.bf16.msra.mxu0 %v2191
      %2212 = vmatpush.bf16.msra.mxu0 %v2189
      %2213 = vmatpush.bf16.msra.mxu0 %v2187
      %2214 = vmatmul.bf16.gmra.mxu0 %v2204
      %v2215 = vpop.f32.mrf.mxu0
      %v2216 = vadd.f32 %v2159, %v2215
      %v2217 = vpop.f32.mrf.mxu0
      %2218 = vdwg.mxu0
      %2219 = vmatpush.bf16.msra.mxu0 0
      %2220 = vmatpush.bf16.msra.mxu0 0
      %2221 = vmatpush.bf16.msra.mxu0 0
      %2222 = vmatpush.bf16.msra.mxu0 0
      %2223 = vmatpush.bf16.msra.mxu0 %v2194
      %2224 = vmatpush.bf16.msra.mxu0 %v2192
      %2225 = vmatpush.bf16.msra.mxu0 %v2190
      %2226 = vmatpush.bf16.msra.mxu0 %v2188
      %2227 = vmatmul.bf16.gmra.mxu0 %v2204
      %v2228 = vpop.f32.mrf.mxu0
      %v2229 = vadd.f32 %v2160, %v2228
      %v2230 = vpop.f32.mrf.mxu0
      %2231 = vdwg.mxu0
      %v2232 = vmul.f32 %v2216, %v2216
      %v2233 = vmul.f32 %v2229, %v2229
      %v2234 = vmul.f32 %v2216, %v2232
      %v2235 = vmul.f32 %v2229, %v2233
      %v2236 = vmul.f32 %v2234, 0.044715
      %v2237 = vmul.f32 %v2235, 0.044715
      %v2238 = vadd.f32 %v2216, %v2236
      %v2239 = vadd.f32 %v2229, %v2237
      %v2240 = vmul.f32 %v2238, 0.7978846
      %v2241 = vmul.f32 %v2239, 0.7978846
      %v2242 = vtanh.pop %v2240
      %v2243 = vtanh.pop %v2241
      %v2244 = vadd.f32 %v2242, 1.0
      %v2245 = vadd.f32 %v2243, 1.0
      %v2246 = vmul.f32 %v2244, 0.5
      %v2247 = vmul.f32 %v2245, 0.5
      %v2248 = vmul.f32 %v2216, %v2246
      %v2249 = vmul.f32 %v2229, %v2247
      %v2250 = vpack.c.bf16 %v2248, %v2248
      %v2251 = vpack.c.bf16 %v2249, %v2249
      %v2252 = vld [vmem:[%s17] sm:$0xf]
      %v2253 = vld [vmem:[%s17 + $0x4] sm:$0xf]
      %v2254 = vld [vmem:[%s17 + $0x8] sm:$0xf]
      %v2255 = vld [vmem:[%s17 + $0xc] sm:$0xf]
      %v2256 = vld [vmem:[%s17 + $0x10] sm:$0xf]
      %v2257 = vld [vmem:[%s17 + $0x14] sm:$0xf]
      %v2258 = vld [vmem:[%s17 + $0x18] sm:$0xf]
      %v2259 = vld [vmem:[%s17 + $0x1c] sm:$0xf]
      %v2260 = vld [vmem:[%s17 + $0x20] sm:$0xf]
      %v2261 = vld [vmem:[%s17 + $0x24] sm:$0xf]
      %v2262 = vld [vmem:[%s17 + $0x28] sm:$0xf]
      %v2263 = vld [vmem:[%s17 + $0x2c] sm:$0xf]
      %v2264 = vld [vmem:[%s17 + $0x30] sm:$0xf]
      %v2265 = vld [vmem:[%s17 + $0x34] sm:$0xf]
      %v2266 = vld [vmem:[%s17 + $0x38] sm:$0xf]
      %v2267 = vld [vmem:[%s17 + $0x3c] sm:$0xf]
      %v2268 = vld [vmem:[%s17 + $0x40] sm:$0xf]
      %v2269 = vld [vmem:[%s17 + $0x44] sm:$0xf]
      %v2270 = vld [vmem:[%s17 + $0x48] sm:$0xf]
      %v2271 = vld [vmem:[%s17 + $0x4c] sm:$0xf]
      %v2272 = vld [vmem:[%s17 + $0x50] sm:$0xf]
      %v2273 = vld [vmem:[%s17 + $0x54] sm:$0xf]
      %v2274 = vld [vmem:[%s17 + $0x58] sm:$0xf]
      %v2275 = vld [vmem:[%s17 + $0x5c] sm:$0xf]
      %v2276 = vld [vmem:[%s17 + $0x60] sm:$0xf]
      %v2277 = vld [vmem:[%s17 + $0x64] sm:$0xf]
      %v2278 = vld [vmem:[%s17 + $0x68] sm:$0xf]
      %v2279 = vld [vmem:[%s17 + $0x6c] sm:$0xf]
      %v2280 = vld [vmem:[%s17 + $0x70] sm:$0xf]
      %v2281 = vld [vmem:[%s17 + $0x74] sm:$0xf]
      %v2282 = vld [vmem:[%s17 + $0x78] sm:$0xf]
      %v2283 = vld [vmem:[%s17 + $0x7c] sm:$0xf]
      %v2316 = vunpack.c.l.b16 %v2252
      %v2317 = vunpack.c.l.b16 %v2253
      %v2318 = vunpack.c.l.b16 %v2254
      %v2319 = vunpack.c.l.b16 %v2255
      %v2320 = vunpack.c.l.b16 %v2256
      %v2321 = vunpack.c.l.b16 %v2257
      %v2322 = vunpack.c.l.b16 %v2258
      %v2323 = vunpack.c.l.b16 %v2259
      %v2324 = vunpack.c.l.b16 %v2260
      %v2325 = vunpack.c.l.b16 %v2261
      %v2326 = vunpack.c.l.b16 %v2262
      %v2327 = vunpack.c.l.b16 %v2263
      %v2328 = vunpack.c.l.b16 %v2264
      %v2329 = vunpack.c.l.b16 %v2265
      %v2330 = vunpack.c.l.b16 %v2266
      %v2331 = vunpack.c.l.b16 %v2267
      %v2332 = vunpack.c.l.b16 %v2268
      %v2333 = vunpack.c.l.b16 %v2269
      %v2334 = vunpack.c.l.b16 %v2270
      %v2335 = vunpack.c.l.b16 %v2271
      %v2336 = vunpack.c.l.b16 %v2272
      %v2337 = vunpack.c.l.b16 %v2273
      %v2338 = vunpack.c.l.b16 %v2274
      %v2339 = vunpack.c.l.b16 %v2275
      %v2340 = vunpack.c.l.b16 %v2276
      %v2341 = vunpack.c.l.b16 %v2277
      %v2342 = vunpack.c.l.b16 %v2278
      %v2343 = vunpack.c.l.b16 %v2279
      %v2344 = vunpack.c.l.b16 %v2280
      %v2345 = vunpack.c.l.b16 %v2281
      %v2346 = vunpack.c.l.b16 %v2282
      %v2347 = vunpack.c.l.b16 %v2283
      %v2348 = vpack.c.b16 %v2317, %v2316
      %v2349 = vpack.c.b16 %v2319, %v2318
      %v2350 = vpack.c.b16 %v2321, %v2320
      %v2351 = vpack.c.b16 %v2323, %v2322
      %v2352 = vpack.c.b16 %v2325, %v2324
      %v2353 = vpack.c.b16 %v2327, %v2326
      %v2354 = vpack.c.b16 %v2329, %v2328
      %v2355 = vpack.c.b16 %v2331, %v2330
      %v2356 = vpack.c.b16 %v2333, %v2332
      %v2357 = vpack.c.b16 %v2335, %v2334
      %v2358 = vpack.c.b16 %v2337, %v2336
      %v2359 = vpack.c.b16 %v2339, %v2338
      %v2360 = vpack.c.b16 %v2341, %v2340
      %v2361 = vpack.c.b16 %v2343, %v2342
      %v2362 = vpack.c.b16 %v2345, %v2344
      %v2363 = vpack.c.b16 %v2347, %v2346
      %2380 = vmatpush.bf16.msra.mxu0 %v2355
      %2381 = vmatpush.bf16.msra.mxu0 %v2354
      %2382 = vmatpush.bf16.msra.mxu0 %v2353
      %2383 = vmatpush.bf16.msra.mxu0 %v2352
      %2384 = vmatpush.bf16.msra.mxu0 %v2351
      %2385 = vmatpush.bf16.msra.mxu0 %v2350
      %2386 = vmatpush.bf16.msra.mxu0 %v2349
      %2387 = vmatpush.bf16.msra.mxu0 %v2348
      %2388 = vmatmul.bf16.gmra.mxu0 %v2250
      %v2389 = vpop.f32.mrf.mxu0
      %v2390 = vadd.f32 0.0, %v2389
      %v2391 = vpop.f32.mrf.mxu0
      %2392 = vdwg.mxu0
      %2393 = vmatpush.bf16.msra.mxu0 %v2363
      %2394 = vmatpush.bf16.msra.mxu0 %v2362
      %2395 = vmatpush.bf16.msra.mxu0 %v2361
      %2396 = vmatpush.bf16.msra.mxu0 %v2360
      %2397 = vmatpush.bf16.msra.mxu0 %v2359
      %2398 = vmatpush.bf16.msra.mxu0 %v2358
      %2399 = vmatpush.bf16.msra.mxu0 %v2357
      %2400 = vmatpush.bf16.msra.mxu0 %v2356
      %2401 = vmatmul.bf16.gmra.mxu0 %v2251
      %v2402 = vpop.f32.mrf.mxu0
      %v2403 = vadd.f32 %v2390, %v2402
      %v2404 = vpop.f32.mrf.mxu0
      %2405 = vdwg.mxu0
      %v2406 = vadd.f32 %v2115, %v2403
      %v2407 = vld [vmem:[%s18] sm:$0x1]
      %v2409 = vperm.slane %v2407, 0
      %v2411 = vadd.f32 %v2406, %v2409
      %s2412 = scalar_lea.vmem %s3, 1
      %v2413 = vld [vmem:[%s2412] sm:$0x1]
      %s2414 = scalar_lea.vmem %s4, 1
      %v2415 = vld [vmem:[%s2414] sm:$0x1]
      %v2416 = vsel %vm1133, %v2411, 0.0
      %2417 = vadd.xlane.f32.xlu0 %v2416
      %v2418 = vpop.xlane.xlu0 %2417
      %v2419 = vmul.f32 %v2418, %v1143
      %v2420 = vsub.f32 %v2411, %v2419
      %v2421 = vmul.f32 %v2420, %v2420
      %v2422 = vsel %vm1133, %v2421, 0.0
      %2423 = vadd.xlane.f32.xlu0 %v2422
      %v2424 = vpop.xlane.xlu0 %2423
      %v2425 = vmul.f32 %v2424, %v1143
      %v2426 = vadd.f32 %v2425, 1e-06
      %v2427 = vrsqrt.pop %v2426
      %v2428 = vmul.f32 %v2427, %v2426
      %v2429 = vmul.f32 %v2428, %v2427
      %v2430 = vmul.f32 0.5, %v2429
      %v2431 = vsub.f32 1.5, %v2430
      %v2432 = vmul.f32 %v2427, %v2431
      %vm2433 = vweird.f32 %v2426
      %vm2434 = vweird.f32 %v2427
      %vm2435 = vmor %vm2433, %vm2434
      %v2436 = vsel %vm2435, %v2427, %v2432
      %v2437 = vmul.f32 %v2420, %v2436
      %v2439 = vperm.slane %v2413, 0
      %v2441 = vmul.f32 %v2437, %v2439
      %v2443 = vperm.slane %v2415, 0
      %v2445 = vadd.f32 %v2441, %v2443
      %v2446 = vpack.c.bf16 %v2445, %v2445
      %s2447 = scalar_lea.vmem %s5, 128
      %v2448 = vld [vmem:[%s2447] sm:$0xf]
      %v2449 = vld [vmem:[%s2447 + $0x4] sm:$0xf]
      %v2450 = vld [vmem:[%s2447 + $0x8] sm:$0xf]
      %v2451 = vld [vmem:[%s2447 + $0xc] sm:$0xf]
      %v2452 = vld [vmem:[%s2447 + $0x10] sm:$0xf]
      %v2453 = vld [vmem:[%s2447 + $0x14] sm:$0xf]
      %v2454 = vld [vmem:[%s2447 + $0x18] sm:$0xf]
      %v2455 = vld [vmem:[%s2447 + $0x1c] sm:$0xf]
      %s2456 = scalar_lea.vmem %s8, 4
      %v2457 = vld [vmem:[%s2456] sm:$0x1]
      %v2459 = vperm.slane %v2457, 0
      %v2469 = vunpack.c.l.b16 %v2448
      %v2470 = vunpack.c.l.b16 %v2449
      %v2471 = vunpack.c.l.b16 %v2450
      %v2472 = vunpack.c.l.b16 %v2451
      %v2473 = vunpack.c.l.b16 %v2452
      %v2474 = vunpack.c.l.b16 %v2453
      %v2475 = vunpack.c.l.b16 %v2454
      %v2476 = vunpack.c.l.b16 %v2455
      %v2477 = vpack.c.b16 %v2470, %v2469
      %v2478 = vpack.c.b16 %v2472, %v2471
      %v2479 = vpack.c.b16 %v2474, %v2473
      %v2480 = vpack.c.b16 %v2476, %v2475
      %v2486 = vsel %vm1208, %v2446, 0
      %2488 = vmatpush.bf16.msra.mxu0 0
      %2489 = vmatpush.bf16.msra.mxu0 0
      %2490 = vmatpush.bf16.msra.mxu0 0
      %2491 = vmatpush.bf16.msra.mxu0 0
      %2492 = vmatpush.bf16.msra.mxu0 %v2480
      %2493 = vmatpush.bf16.msra.mxu0 %v2479
      %2494 = vmatpush.bf16.msra.mxu0 %v2478
      %2495 = vmatpush.bf16.msra.mxu0 %v2477
      %2496 = vmatmul.bf16.gmra.mxu0 %v2486
      %v2497 = vpop.f32.mrf.mxu0
      %v2498 = vadd.f32 %v2459, %v2497
      %v2499 = vpop.f32.mrf.mxu0
      %2500 = vdwg.mxu0
      %s2501 = scalar_lea.vmem %s6, 128
      %v2502 = vld [vmem:[%s2501] sm:$0xf]
      %v2503 = vld [vmem:[%s2501 + $0x4] sm:$0xf]
      %v2504 = vld [vmem:[%s2501 + $0x8] sm:$0xf]
      %v2505 = vld [vmem:[%s2501 + $0xc] sm:$0xf]
      %v2506 = vld [vmem:[%s2501 + $0x10] sm:$0xf]
      %v2507 = vld [vmem:[%s2501 + $0x14] sm:$0xf]
      %v2508 = vld [vmem:[%s2501 + $0x18] sm:$0xf]
      %v2509 = vld [vmem:[%s2501 + $0x1c] sm:$0xf]
      %s2510 = scalar_lea.vmem %s9, 4
      %v2511 = vld [vmem:[%s2510] sm:$0x1]
      %v2513 = vperm.slane %v2511, 0
      %v2523 = vunpack.c.l.b16 %v2502
      %v2524 = vunpack.c.l.b16 %v2503
      %v2525 = vunpack.c.l.b16 %v2504
      %v2526 = vunpack.c.l.b16 %v2505
      %v2527 = vunpack.c.l.b16 %v2506
      %v2528 = vunpack.c.l.b16 %v2507
      %v2529 = vunpack.c.l.b16 %v2508
      %v2530 = vunpack.c.l.b16 %v2509
      %v2531 = vpack.c.b16 %v2524, %v2523
      %v2532 = vpack.c.b16 %v2526, %v2525
      %v2533 = vpack.c.b16 %v2528, %v2527
      %v2534 = vpack.c.b16 %v2530, %v2529
      %2539 = vmatpush.bf16.msra.mxu0 0
      %2540 = vmatpush.bf16.msra.mxu0 0
      %2541 = vmatpush.bf16.msra.mxu0 0
      %2542 = vmatpush.bf16.msra.mxu0 0
      %2543 = vmatpush.bf16.msra.mxu0 %v2534
      %2544 = vmatpush.bf16.msra.mxu0 %v2533
      %2545 = vmatpush.bf16.msra.mxu0 %v2532
      %2546 = vmatpush.bf16.msra.mxu0 %v2531
      %2547 = vmatmul.bf16.gmra.mxu0 %v2486
      %v2548 = vpop.f32.mrf.mxu0
      %v2549 = vadd.f32 %v2513, %v2548
      %v2550 = vpop.f32.mrf.mxu0
      %2551 = vdwg.mxu0
      %s2552 = scalar_lea.vmem %s7, 128
      %v2553 = vld [vmem:[%s2552] sm:$0xf]
      %v2554 = vld [vmem:[%s2552 + $0x4] sm:$0xf]
      %v2555 = vld [vmem:[%s2552 + $0x8] sm:$0xf]
      %v2556 = vld [vmem:[%s2552 + $0xc] sm:$0xf]
      %v2557 = vld [vmem:[%s2552 + $0x10] sm:$0xf]
      %v2558 = vld [vmem:[%s2552 + $0x14] sm:$0xf]
      %v2559 = vld [vmem:[%s2552 + $0x18] sm:$0xf]
      %v2560 = vld [vmem:[%s2552 + $0x1c] sm:$0xf]
      %s2561 = scalar_lea.vmem %s10, 4
      %v2562 = vld [vmem:[%s2561] sm:$0x1]
      %v2564 = vperm.slane %v2562, 0
      %v2574 = vunpack.c.l.b16 %v2553
      %v2575 = vunpack.c.l.b16 %v2554
      %v2576 = vunpack.c.l.b16 %v2555
      %v2577 = vunpack.c.l.b16 %v2556
      %v2578 = vunpack.c.l.b16 %v2557
      %v2579 = vunpack.c.l.b16 %v2558
      %v2580 = vunpack.c.l.b16 %v2559
      %v2581 = vunpack.c.l.b16 %v2560
      %v2582 = vpack.c.b16 %v2575, %v2574
      %v2583 = vpack.c.b16 %v2577, %v2576
      %v2584 = vpack.c.b16 %v2579, %v2578
      %v2585 = vpack.c.b16 %v2581, %v2580
      %2590 = vmatpush.bf16.msra.mxu0 0
      %2591 = vmatpush.bf16.msra.mxu0 0
      %2592 = vmatpush.bf16.msra.mxu0 0
      %2593 = vmatpush.bf16.msra.mxu0 0
      %2594 = vmatpush.bf16.msra.mxu0 %v2585
      %2595 = vmatpush.bf16.msra.mxu0 %v2584
      %2596 = vmatpush.bf16.msra.mxu0 %v2583
      %2597 = vmatpush.bf16.msra.mxu0 %v2582
      %2598 = vmatmul.bf16.gmra.mxu0 %v2486
      %v2599 = vpop.f32.mrf.mxu0
      %v2600 = vadd.f32 %v2564, %v2599
      %v2601 = vpop.f32.mrf.mxu0
      %2602 = vdwg.mxu0
      %v2603 = vpack.c.bf16 %v2498, %v2498
      %v2604 = vpack.c.bf16 %v2549, %v2549
      %v2606 = vsel %vm1325, %v2603, 0
      %v2609 = vsel %vm1325, %v2604, 0
      %2611 = vmatpush.bf16.xpose.msra.mxu0 0
      %2612 = vmatpush.bf16.xpose.msra.mxu0 0
      %2613 = vmatpush.bf16.xpose.msra.mxu0 0
      %2614 = vmatpush.bf16.xpose.msra.mxu0 0
      %2615 = vmatpush.bf16.xpose.msra.mxu0 0
      %2616 = vmatpush.bf16.xpose.msra.mxu0 0
      %2617 = vmatpush.bf16.xpose.msra.mxu0 0
      %2618 = vmatpush.bf16.xpose.msra.mxu0 %v2609
      %2619 = vmatmul.bf16.gmra.mxu0 %v2606
      %v2620 = vpop.f32.mrf.mxu0
      %v2621 = vadd.f32 0.0, %v2620
      %v2622 = vpop.f32.mrf.mxu0
      %2623 = vdwg.mxu0
      %v2624 = vmul.f32 %v2621, 0.25
      %v2625 = vsel %vm1346, %v2624, -inf
      %2626 = vmax.xlane.f32.xlu0 %v2625
      %v2627 = vpop.xlane.xlu0 %2626
      %v2628 = vsub.f32 %v2624, %v2627
      %v2629 = vmul.f32 %v2628, 1.442695
      %v2630 = vpow.pop %v2629
      %v2631 = vsel %vm1346, %v2630, 0.0
      %2632 = vadd.xlane.f32.xlu0 %v2631
      %v2633 = vpop.xlane.xlu0 %2632
      %v2634 = vrcp.pop %v2633
      %v2635 = vmul.f32 %v2630, %v2634
      %v2636 = vpack.c.bf16 %v2635, %v2635
      %v2637 = vpack.c.bf16 %v2600, %v2600
      %v2639 = vsel %vm1360, %v2636, 0
      %v2642 = vand.u32 %v2637, %v1367
      %2644 = vmatpush.bf16.msra.mxu0 0
      %2645 = vmatpush.bf16.msra.mxu0 0
      %2646 = vmatpush.bf16.msra.mxu0 0
      %2647 = vmatpush.bf16.msra.mxu0 0
      %2648 = vmatpush.bf16.msra.mxu0 0
      %2649 = vmatpush.bf16.msra.mxu0 0
      %2650 = vmatpush.bf16.msra.mxu0 0
      %2651 = vmatpush.bf16.msra.mxu0 %v2642
      %2652 = vmatmul.bf16.gmra.mxu0 %v2639
      %v2653 = vpop.f32.mrf.mxu0
      %v2654 = vadd.f32 0.0, %v2653
      %v2655 = vpop.f32.mrf.mxu0
      %2656 = vdwg.mxu0
      %v2657 = vpack.c.bf16 %v2654, %v2654
      %s2658 = scalar_lea.vmem %s11, 32
      %v2659 = vld [vmem:[%s2658] sm:$0xf]
      %v2660 = vld [vmem:[%s2658 + $0x4] sm:$0xf]
      %s2661 = scalar_lea.vmem %s5, 160
      %v2662 = vld [vmem:[%s2661] sm:$0xf]
      %v2663 = vld [vmem:[%s2661 + $0x4] sm:$0xf]
      %v2664 = vld [vmem:[%s2661 + $0x8] sm:$0xf]
      %v2665 = vld [vmem:[%s2661 + $0xc] sm:$0xf]
      %v2666 = vld [vmem:[%s2661 + $0x10] sm:$0xf]
      %v2667 = vld [vmem:[%s2661 + $0x14] sm:$0xf]
      %v2668 = vld [vmem:[%s2661 + $0x18] sm:$0xf]
      %v2669 = vld [vmem:[%s2661 + $0x1c] sm:$0xf]
      %s2670 = scalar_lea.vmem %s8, 5
      %v2671 = vld [vmem:[%s2670] sm:$0x1]
      %v2673 = vperm.slane %v2671, 0
      %v2683 = vunpack.c.l.b16 %v2662
      %v2684 = vunpack.c.l.b16 %v2663
      %v2685 = vunpack.c.l.b16 %v2664
      %v2686 = vunpack.c.l.b16 %v2665
      %v2687 = vunpack.c.l.b16 %v2666
      %v2688 = vunpack.c.l.b16 %v2667
      %v2689 = vunpack.c.l.b16 %v2668
      %v2690 = vunpack.c.l.b16 %v2669
      %v2691 = vpack.c.b16 %v2684, %v2683
      %v2692 = vpack.c.b16 %v2686, %v2685
      %v2693 = vpack.c.b16 %v2688, %v2687
      %v2694 = vpack.c.b16 %v2690, %v2689
      %2699 = vmatpush.bf16.msra.mxu0 0
      %2700 = vmatpush.bf16.msra.mxu0 0
      %2701 = vmatpush.bf16.msra.mxu0 0
      %2702 = vmatpush.bf16.msra.mxu0 0
      %2703 = vmatpush.bf16.msra.mxu0 %v2694
      %2704 = vmatpush.bf16.msra.mxu0 %v2693
      %2705 = vmatpush.bf16.msra.mxu0 %v2692
      %2706 = vmatpush.bf16.msra.mxu0 %v2691
      %2707 = vmatmul.bf16.gmra.mxu0 %v2486
      %v2708 = vpop.f32.mrf.mxu0
      %v2709 = vadd.f32 %v2673, %v2708
      %v2710 = vpop.f32.mrf.mxu0
      %2711 = vdwg.mxu0
      %s2712 = scalar_lea.vmem %s6, 160
      %v2713 = vld [vmem:[%s2712] sm:$0xf]
      %v2714 = vld [vmem:[%s2712 + $0x4] sm:$0xf]
      %v2715 = vld [vmem:[%s2712 + $0x8] sm:$0xf]
      %v2716 = vld [vmem:[%s2712 + $0xc] sm:$0xf]
      %v2717 = vld [vmem:[%s2712 + $0x10] sm:$0xf]
      %v2718 = vld [vmem:[%s2712 + $0x14] sm:$0xf]
      %v2719 = vld [vmem:[%s2712 + $0x18] sm:$0xf]
      %v2720 = vld [vmem:[%s2712 + $0x1c] sm:$0xf]
      %s2721 = scalar_lea.vmem %s9, 5
      %v2722 = vld [vmem:[%s2721] sm:$0x1]
      %v2724 = vperm.slane %v2722, 0
      %v2734 = vunpack.c.l.b16 %v2713
      %v2735 = vunpack.c.l.b16 %v2714
      %v2736 = vunpack.c.l.b16 %v2715
      %v2737 = vunpack.c.l.b16 %v2716
      %v2738 = vunpack.c.l.b16 %v2717
      %v2739 = vunpack.c.l.b16 %v2718
      %v2740 = vunpack.c.l.b16 %v2719
      %v2741 = vunpack.c.l.b16 %v2720
      %v2742 = vpack.c.b16 %v2735, %v2734
      %v2743 = vpack.c.b16 %v2737, %v2736
      %v2744 = vpack.c.b16 %v2739, %v2738
      %v2745 = vpack.c.b16 %v2741, %v2740
      %2750 = vmatpush.bf16.msra.mxu0 0
      %2751 = vmatpush.bf16.msra.mxu0 0
      %2752 = vmatpush.bf16.msra.mxu0 0
      %2753 = vmatpush.bf16.msra.mxu0 0
      %2754 = vmatpush.bf16.msra.mxu0 %v2745
      %2755 = vmatpush.bf16.msra.mxu0 %v2744
      %2756 = vmatpush.bf16.msra.mxu0 %v2743
      %2757 = vmatpush.bf16.msra.mxu0 %v2742
      %2758 = vmatmul.bf16.gmra.mxu0 %v2486
      %v2759 = vpop.f32.mrf.mxu0
      %v2760 = vadd.f32 %v2724, %v2759
      %v2761 = vpop.f32.mrf.mxu0
      %2762 = vdwg.mxu0
      %s2763 = scalar_lea.vmem %s7, 160
      %v2764 = vld [vmem:[%s2763] sm:$0xf]
      %v2765 = vld [vmem:[%s2763 + $0x4] sm:$0xf]
      %v2766 = vld [vmem:[%s2763 + $0x8] sm:$0xf]
      %v2767 = vld [vmem:[%s2763 + $0xc] sm:$0xf]
      %v2768 = vld [vmem:[%s2763 + $0x10] sm:$0xf]
      %v2769 = vld [vmem:[%s2763 + $0x14] sm:$0xf]
      %v2770 = vld [vmem:[%s2763 + $0x18] sm:$0xf]
      %v2771 = vld [vmem:[%s2763 + $0x1c] sm:$0xf]
      %s2772 = scalar_lea.vmem %s10, 5
      %v2773 = vld [vmem:[%s2772] sm:$0x1]
      %v2775 = vperm.slane %v2773, 0
      %v2785 = vunpack.c.l.b16 %v2764
      %v2786 = vunpack.c.l.b16 %v2765
      %v2787 = vunpack.c.l.b16 %v2766
      %v2788 = vunpack.c.l.b16 %v2767
      %v2789 = vunpack.c.l.b16 %v2768
      %v2790 = vunpack.c.l.b16 %v2769
      %v2791 = vunpack.c.l.b16 %v2770
      %v2792 = vunpack.c.l.b16 %v2771
      %v2793 = vpack.c.b16 %v2786, %v2785
      %v2794 = vpack.c.b16 %v2788, %v2787
      %v2795 = vpack.c.b16 %v2790, %v2789
      %v2796 = vpack.c.b16 %v2792, %v2791
      %2801 = vmatpush.bf16.msra.mxu0 0
      %2802 = vmatpush.bf16.msra.mxu0 0
      %2803 = vmatpush.bf16.msra.mxu0 0
      %2804 = vmatpush.bf16.msra.mxu0 0
      %2805 = vmatpush.bf16.msra.mxu0 %v2796
      %2806 = vmatpush.bf16.msra.mxu0 %v2795
      %2807 = vmatpush.bf16.msra.mxu0 %v2794
      %2808 = vmatpush.bf16.msra.mxu0 %v2793
      %2809 = vmatmul.bf16.gmra.mxu0 %v2486
      %v2810 = vpop.f32.mrf.mxu0
      %v2811 = vadd.f32 %v2775, %v2810
      %v2812 = vpop.f32.mrf.mxu0
      %2813 = vdwg.mxu0
      %v2814 = vpack.c.bf16 %v2709, %v2709
      %v2815 = vpack.c.bf16 %v2760, %v2760
      %v2817 = vsel %vm1325, %v2814, 0
      %v2820 = vsel %vm1325, %v2815, 0
      %2822 = vmatpush.bf16.xpose.msra.mxu0 0
      %2823 = vmatpush.bf16.xpose.msra.mxu0 0
      %2824 = vmatpush.bf16.xpose.msra.mxu0 0
      %2825 = vmatpush.bf16.xpose.msra.mxu0 0
      %2826 = vmatpush.bf16.xpose.msra.mxu0 0
      %2827 = vmatpush.bf16.xpose.msra.mxu0 0
      %2828 = vmatpush.bf16.xpose.msra.mxu0 0
      %2829 = vmatpush.bf16.xpose.msra.mxu0 %v2820
      %2830 = vmatmul.bf16.gmra.mxu0 %v2817
      %v2831 = vpop.f32.mrf.mxu0
      %v2832 = vadd.f32 0.0, %v2831
      %v2833 = vpop.f32.mrf.mxu0
      %2834 = vdwg.mxu0
      %v2835 = vmul.f32 %v2832, 0.25
      %v2836 = vsel %vm1346, %v2835, -inf
      %2837 = vmax.xlane.f32.xlu0 %v2836
      %v2838 = vpop.xlane.xlu0 %2837
      %v2839 = vsub.f32 %v2835, %v2838
      %v2840 = vmul.f32 %v2839, 1.442695
      %v2841 = vpow.pop %v2840
      %v2842 = vsel %vm1346, %v2841, 0.0
      %2843 = vadd.xlane.f32.xlu0 %v2842
      %v2844 = vpop.xlane.xlu0 %2843
      %v2845 = vrcp.pop %v2844
      %v2846 = vmul.f32 %v2841, %v2845
      %v2847 = vpack.c.bf16 %v2846, %v2846
      %v2848 = vpack.c.bf16 %v2811, %v2811
      %v2850 = vsel %vm1360, %v2847, 0
      %v2853 = vand.u32 %v2848, %v1367
      %2855 = vmatpush.bf16.msra.mxu0 0
      %2856 = vmatpush.bf16.msra.mxu0 0
      %2857 = vmatpush.bf16.msra.mxu0 0
      %2858 = vmatpush.bf16.msra.mxu0 0
      %2859 = vmatpush.bf16.msra.mxu0 0
      %2860 = vmatpush.bf16.msra.mxu0 0
      %2861 = vmatpush.bf16.msra.mxu0 0
      %2862 = vmatpush.bf16.msra.mxu0 %v2853
      %2863 = vmatmul.bf16.gmra.mxu0 %v2850
      %v2864 = vpop.f32.mrf.mxu0
      %v2865 = vadd.f32 0.0, %v2864
      %v2866 = vpop.f32.mrf.mxu0
      %2867 = vdwg.mxu0
      %v2868 = vpack.c.bf16 %v2865, %v2865
      %s2869 = scalar_lea.vmem %s11, 40
      %v2870 = vld [vmem:[%s2869] sm:$0xf]
      %v2871 = vld [vmem:[%s2869 + $0x4] sm:$0xf]
      %v2874 = vunpack.c.l.b16 %v2870
      %v2875 = vunpack.c.l.b16 %v2871
      %v2876 = vpack.c.b16 %v2875, %v2874
      %v2879 = vsel %vm1325, %v2868, 0
      %2881 = vmatpush.bf16.msra.mxu0 0
      %2882 = vmatpush.bf16.msra.mxu0 0
      %2883 = vmatpush.bf16.msra.mxu0 0
      %2884 = vmatpush.bf16.msra.mxu0 0
      %2885 = vmatpush.bf16.msra.mxu0 0
      %2886 = vmatpush.bf16.msra.mxu0 0
      %2887 = vmatpush.bf16.msra.mxu0 0
      %2888 = vmatpush.bf16.msra.mxu0 %v2876
      %2889 = vmatmul.bf16.gmra.mxu0 %v2879
      %v2890 = vpop.f32.mrf.mxu0
      %v2891 = vadd.f32 0.0, %v2890
      %v2892 = vpop.f32.mrf.mxu0
      %2893 = vdwg.mxu0
      %v2896 = vunpack.c.l.b16 %v2659
      %v2897 = vunpack.c.l.b16 %v2660
      %v2898 = vpack.c.b16 %v2897, %v2896
      %v2901 = vsel %vm1325, %v2657, 0
      %2903 = vmatpush.bf16.msra.mxu0 0
      %2904 = vmatpush.bf16.msra.mxu0 0
      %2905 = vmatpush.bf16.msra.mxu0 0
      %2906 = vmatpush.bf16.msra.mxu0 0
      %2907 = vmatpush.bf16.msra.mxu0 0
      %2908 = vmatpush.bf16.msra.mxu0 0
      %2909 = vmatpush.bf16.msra.mxu0 0
      %2910 = vmatpush.bf16.msra.mxu0 %v2898
      %2911 = vmatmul.bf16.gmra.mxu0 %v2901
      %v2912 = vpop.f32.mrf.mxu0
      %v2913 = vadd.f32 %v2891, %v2912
      %v2914 = vpop.f32.mrf.mxu0
      %2915 = vdwg.mxu0
      %s2916 = scalar_lea.vmem %s5, 192
      %v2917 = vld [vmem:[%s2916] sm:$0xf]
      %v2918 = vld [vmem:[%s2916 + $0x4] sm:$0xf]
      %v2919 = vld [vmem:[%s2916 + $0x8] sm:$0xf]
      %v2920 = vld [vmem:[%s2916 + $0xc] sm:$0xf]
      %v2921 = vld [vmem:[%s2916 + $0x10] sm:$0xf]
      %v2922 = vld [vmem:[%s2916 + $0x14] sm:$0xf]
      %v2923 = vld [vmem:[%s2916 + $0x18] sm:$0xf]
      %v2924 = vld [vmem:[%s2916 + $0x1c] sm:$0xf]
      %s2925 = scalar_lea.vmem %s8, 6
      %v2926 = vld [vmem:[%s2925] sm:$0x1]
      %v2928 = vperm.slane %v2926, 0
      %v2938 = vunpack.c.l.b16 %v2917
      %v2939 = vunpack.c.l.b16 %v2918
      %v2940 = vunpack.c.l.b16 %v2919
      %v2941 = vunpack.c.l.b16 %v2920
      %v2942 = vunpack.c.l.b16 %v2921
      %v2943 = vunpack.c.l.b16 %v2922
      %v2944 = vunpack.c.l.b16 %v2923
      %v2945 = vunpack.c.l.b16 %v2924
      %v2946 = vpack.c.b16 %v2939, %v2938
      %v2947 = vpack.c.b16 %v2941, %v2940
      %v2948 = vpack.c.b16 %v2943, %v2942
      %v2949 = vpack.c.b16 %v2945, %v2944
      %2954 = vmatpush.bf16.msra.mxu0 0
      %2955 = vmatpush.bf16.msra.mxu0 0
      %2956 = vmatpush.bf16.msra.mxu0 0
      %2957 = vmatpush.bf16.msra.mxu0 0
      %2958 = vmatpush.bf16.msra.mxu0 %v2949
      %2959 = vmatpush.bf16.msra.mxu0 %v2948
      %2960 = vmatpush.bf16.msra.mxu0 %v2947
      %2961 = vmatpush.bf16.msra.mxu0 %v2946
      %2962 = vmatmul.bf16.gmra.mxu0 %v2486
      %v2963 = vpop.f32.mrf.mxu0
      %v2964 = vadd.f32 %v2928, %v2963
      %v2965 = vpop.f32.mrf.mxu0
      %2966 = vdwg.mxu0
      %s2967 = scalar_lea.vmem %s6, 192
      %v2968 = vld [vmem:[%s2967] sm:$0xf]
      %v2969 = vld [vmem:[%s2967 + $0x4] sm:$0xf]
      %v2970 = vld [vmem:[%s2967 + $0x8] sm:$0xf]
      %v2971 = vld [vmem:[%s2967 + $0xc] sm:$0xf]
      %v2972 = vld [vmem:[%s2967 + $0x10] sm:$0xf]
      %v2973 = vld [vmem:[%s2967 + $0x14] sm:$0xf]
      %v2974 = vld [vmem:[%s2967 + $0x18] sm:$0xf]
      %v2975 = vld [vmem:[%s2967 + $0x1c] sm:$0xf]
      %s2976 = scalar_lea.vmem %s9, 6
      %v2977 = vld [vmem:[%s2976] sm:$0x1]
      %v2979 = vperm.slane %v2977, 0
      %v2989 = vunpack.c.l.b16 %v2968
      %v2990 = vunpack.c.l.b16 %v2969
      %v2991 = vunpack.c.l.b16 %v2970
      %v2992 = vunpack.c.l.b16 %v2971
      %v2993 = vunpack.c.l.b16 %v2972
      %v2994 = vunpack.c.l.b16 %v2973
      %v2995 = vunpack.c.l.b16 %v2974
      %v2996 = vunpack.c.l.b16 %v2975
      %v2997 = vpack.c.b16 %v2990, %v2989
      %v2998 = vpack.c.b16 %v2992, %v2991
      %v2999 = vpack.c.b16 %v2994, %v2993
      %v3000 = vpack.c.b16 %v2996, %v2995
      %3005 = vmatpush.bf16.msra.mxu0 0
      %3006 = vmatpush.bf16.msra.mxu0 0
      %3007 = vmatpush.bf16.msra.mxu0 0
      %3008 = vmatpush.bf16.msra.mxu0 0
      %3009 = vmatpush.bf16.msra.mxu0 %v3000
      %3010 = vmatpush.bf16.msra.mxu0 %v2999
      %3011 = vmatpush.bf16.msra.mxu0 %v2998
      %3012 = vmatpush.bf16.msra.mxu0 %v2997
      %3013 = vmatmul.bf16.gmra.mxu0 %v2486
      %v3014 = vpop.f32.mrf.mxu0
      %v3015 = vadd.f32 %v2979, %v3014
      %v3016 = vpop.f32.mrf.mxu0
      %3017 = vdwg.mxu0
      %s3018 = scalar_lea.vmem %s7, 192
      %v3019 = vld [vmem:[%s3018] sm:$0xf]
      %v3020 = vld [vmem:[%s3018 + $0x4] sm:$0xf]
      %v3021 = vld [vmem:[%s3018 + $0x8] sm:$0xf]
      %v3022 = vld [vmem:[%s3018 + $0xc] sm:$0xf]
      %v3023 = vld [vmem:[%s3018 + $0x10] sm:$0xf]
      %v3024 = vld [vmem:[%s3018 + $0x14] sm:$0xf]
      %v3025 = vld [vmem:[%s3018 + $0x18] sm:$0xf]
      %v3026 = vld [vmem:[%s3018 + $0x1c] sm:$0xf]
      %s3027 = scalar_lea.vmem %s10, 6
      %v3028 = vld [vmem:[%s3027] sm:$0x1]
      %v3030 = vperm.slane %v3028, 0
      %v3040 = vunpack.c.l.b16 %v3019
      %v3041 = vunpack.c.l.b16 %v3020
      %v3042 = vunpack.c.l.b16 %v3021
      %v3043 = vunpack.c.l.b16 %v3022
      %v3044 = vunpack.c.l.b16 %v3023
      %v3045 = vunpack.c.l.b16 %v3024
      %v3046 = vunpack.c.l.b16 %v3025
      %v3047 = vunpack.c.l.b16 %v3026
      %v3048 = vpack.c.b16 %v3041, %v3040
      %v3049 = vpack.c.b16 %v3043, %v3042
      %v3050 = vpack.c.b16 %v3045, %v3044
      %v3051 = vpack.c.b16 %v3047, %v3046
      %3056 = vmatpush.bf16.msra.mxu0 0
      %3057 = vmatpush.bf16.msra.mxu0 0
      %3058 = vmatpush.bf16.msra.mxu0 0
      %3059 = vmatpush.bf16.msra.mxu0 0
      %3060 = vmatpush.bf16.msra.mxu0 %v3051
      %3061 = vmatpush.bf16.msra.mxu0 %v3050
      %3062 = vmatpush.bf16.msra.mxu0 %v3049
      %3063 = vmatpush.bf16.msra.mxu0 %v3048
      %3064 = vmatmul.bf16.gmra.mxu0 %v2486
      %v3065 = vpop.f32.mrf.mxu0
      %v3066 = vadd.f32 %v3030, %v3065
      %v3067 = vpop.f32.mrf.mxu0
      %3068 = vdwg.mxu0
      %v3069 = vpack.c.bf16 %v2964, %v2964
      %v3070 = vpack.c.bf16 %v3015, %v3015
      %v3072 = vsel %vm1325, %v3069, 0
      %v3075 = vsel %vm1325, %v3070, 0
      %3077 = vmatpush.bf16.xpose.msra.mxu0 0
      %3078 = vmatpush.bf16.xpose.msra.mxu0 0
      %3079 = vmatpush.bf16.xpose.msra.mxu0 0
      %3080 = vmatpush.bf16.xpose.msra.mxu0 0
      %3081 = vmatpush.bf16.xpose.msra.mxu0 0
      %3082 = vmatpush.bf16.xpose.msra.mxu0 0
      %3083 = vmatpush.bf16.xpose.msra.mxu0 0
      %3084 = vmatpush.bf16.xpose.msra.mxu0 %v3075
      %3085 = vmatmul.bf16.gmra.mxu0 %v3072
      %v3086 = vpop.f32.mrf.mxu0
      %v3087 = vadd.f32 0.0, %v3086
      %v3088 = vpop.f32.mrf.mxu0
      %3089 = vdwg.mxu0
      %v3090 = vmul.f32 %v3087, 0.25
      %v3091 = vsel %vm1346, %v3090, -inf
      %3092 = vmax.xlane.f32.xlu0 %v3091
      %v3093 = vpop.xlane.xlu0 %3092
      %v3094 = vsub.f32 %v3090, %v3093
      %v3095 = vmul.f32 %v3094, 1.442695
      %v3096 = vpow.pop %v3095
      %v3097 = vsel %vm1346, %v3096, 0.0
      %3098 = vadd.xlane.f32.xlu0 %v3097
      %v3099 = vpop.xlane.xlu0 %3098
      %v3100 = vrcp.pop %v3099
      %v3101 = vmul.f32 %v3096, %v3100
      %v3102 = vpack.c.bf16 %v3101, %v3101
      %v3103 = vpack.c.bf16 %v3066, %v3066
      %v3105 = vsel %vm1360, %v3102, 0
      %v3108 = vand.u32 %v3103, %v1367
      %3110 = vmatpush.bf16.msra.mxu0 0
      %3111 = vmatpush.bf16.msra.mxu0 0
      %3112 = vmatpush.bf16.msra.mxu0 0
      %3113 = vmatpush.bf16.msra.mxu0 0
      %3114 = vmatpush.bf16.msra.mxu0 0
      %3115 = vmatpush.bf16.msra.mxu0 0
      %3116 = vmatpush.bf16.msra.mxu0 0
      %3117 = vmatpush.bf16.msra.mxu0 %v3108
      %3118 = vmatmul.bf16.gmra.mxu0 %v3105
      %v3119 = vpop.f32.mrf.mxu0
      %v3120 = vadd.f32 0.0, %v3119
      %v3121 = vpop.f32.mrf.mxu0
      %3122 = vdwg.mxu0
      %v3123 = vpack.c.bf16 %v3120, %v3120
      %s3124 = scalar_lea.vmem %s11, 48
      %v3125 = vld [vmem:[%s3124] sm:$0xf]
      %v3126 = vld [vmem:[%s3124 + $0x4] sm:$0xf]
      %v3129 = vunpack.c.l.b16 %v3125
      %v3130 = vunpack.c.l.b16 %v3126
      %v3131 = vpack.c.b16 %v3130, %v3129
      %v3134 = vsel %vm1325, %v3123, 0
      %3136 = vmatpush.bf16.msra.mxu0 0
      %3137 = vmatpush.bf16.msra.mxu0 0
      %3138 = vmatpush.bf16.msra.mxu0 0
      %3139 = vmatpush.bf16.msra.mxu0 0
      %3140 = vmatpush.bf16.msra.mxu0 0
      %3141 = vmatpush.bf16.msra.mxu0 0
      %3142 = vmatpush.bf16.msra.mxu0 0
      %3143 = vmatpush.bf16.msra.mxu0 %v3131
      %3144 = vmatmul.bf16.gmra.mxu0 %v3134
      %v3145 = vpop.f32.mrf.mxu0
      %v3146 = vadd.f32 0.0, %v3145
      %v3147 = vpop.f32.mrf.mxu0
      %3148 = vdwg.mxu0
      %v3149 = vadd.f32 %v2913, %v3146
      %s3150 = scalar_lea.vmem %s5, 224
      %v3151 = vld [vmem:[%s3150] sm:$0xf]
      %v3152 = vld [vmem:[%s3150 + $0x4] sm:$0xf]
      %v3153 = vld [vmem:[%s3150 + $0x8] sm:$0xf]
      %v3154 = vld [vmem:[%s3150 + $0xc] sm:$0xf]
      %v3155 = vld [vmem:[%s3150 + $0x10] sm:$0xf]
      %v3156 = vld [vmem:[%s3150 + $0x14] sm:$0xf]
      %v3157 = vld [vmem:[%s3150 + $0x18] sm:$0xf]
      %v3158 = vld [vmem:[%s3150 + $0x1c] sm:$0xf]
      %s3159 = scalar_lea.vmem %s8, 7
      %v3160 = vld [vmem:[%s3159] sm:$0x1]
      %v3162 = vperm.slane %v3160, 0
      %v3172 = vunpack.c.l.b16 %v3151
      %v3173 = vunpack.c.l.b16 %v3152
      %v3174 = vunpack.c.l.b16 %v3153
      %v3175 = vunpack.c.l.b16 %v3154
      %v3176 = vunpack.c.l.b16 %v3155
      %v3177 = vunpack.c.l.b16 %v3156
      %v3178 = vunpack.c.l.b16 %v3157
      %v3179 = vunpack.c.l.b16 %v3158
      %v3180 = vpack.c.b16 %v3173, %v3172
      %v3181 = vpack.c.b16 %v3175, %v3174
      %v3182 = vpack.c.b16 %v3177, %v3176
      %v3183 = vpack.c.b16 %v3179, %v3178
      %3188 = vmatpush.bf16.msra.mxu0 0
      %3189 = vmatpush.bf16.msra.mxu0 0
      %3190 = vmatpush.bf16.msra.mxu0 0
      %3191 = vmatpush.bf16.msra.mxu0 0
      %3192 = vmatpush.bf16.msra.mxu0 %v3183
      %3193 = vmatpush.bf16.msra.mxu0 %v3182
      %3194 = vmatpush.bf16.msra.mxu0 %v3181
      %3195 = vmatpush.bf16.msra.mxu0 %v3180
      %3196 = vmatmul.bf16.gmra.mxu0 %v2486
      %v3197 = vpop.f32.mrf.mxu0
      %v3198 = vadd.f32 %v3162, %v3197
      %v3199 = vpop.f32.mrf.mxu0
      %3200 = vdwg.mxu0
      %s3201 = scalar_lea.vmem %s6, 224
      %v3202 = vld [vmem:[%s3201] sm:$0xf]
      %v3203 = vld [vmem:[%s3201 + $0x4] sm:$0xf]
      %v3204 = vld [vmem:[%s3201 + $0x8] sm:$0xf]
      %v3205 = vld [vmem:[%s3201 + $0xc] sm:$0xf]
      %v3206 = vld [vmem:[%s3201 + $0x10] sm:$0xf]
      %v3207 = vld [vmem:[%s3201 + $0x14] sm:$0xf]
      %v3208 = vld [vmem:[%s3201 + $0x18] sm:$0xf]
      %v3209 = vld [vmem:[%s3201 + $0x1c] sm:$0xf]
      %s3210 = scalar_lea.vmem %s9, 7
      %v3211 = vld [vmem:[%s3210] sm:$0x1]
      %v3213 = vperm.slane %v3211, 0
      %v3223 = vunpack.c.l.b16 %v3202
      %v3224 = vunpack.c.l.b16 %v3203
      %v3225 = vunpack.c.l.b16 %v3204
      %v3226 = vunpack.c.l.b16 %v3205
      %v3227 = vunpack.c.l.b16 %v3206
      %v3228 = vunpack.c.l.b16 %v3207
      %v3229 = vunpack.c.l.b16 %v3208
      %v3230 = vunpack.c.l.b16 %v3209
      %v3231 = vpack.c.b16 %v3224, %v3223
      %v3232 = vpack.c.b16 %v3226, %v3225
      %v3233 = vpack.c.b16 %v3228, %v3227
      %v3234 = vpack.c.b16 %v3230, %v3229
      %3239 = vmatpush.bf16.msra.mxu0 0
      %3240 = vmatpush.bf16.msra.mxu0 0
      %3241 = vmatpush.bf16.msra.mxu0 0
      %3242 = vmatpush.bf16.msra.mxu0 0
      %3243 = vmatpush.bf16.msra.mxu0 %v3234
      %3244 = vmatpush.bf16.msra.mxu0 %v3233
      %3245 = vmatpush.bf16.msra.mxu0 %v3232
      %3246 = vmatpush.bf16.msra.mxu0 %v3231
      %3247 = vmatmul.bf16.gmra.mxu0 %v2486
      %v3248 = vpop.f32.mrf.mxu0
      %v3249 = vadd.f32 %v3213, %v3248
      %v3250 = vpop.f32.mrf.mxu0
      %3251 = vdwg.mxu0
      %s3252 = scalar_lea.vmem %s7, 224
      %v3253 = vld [vmem:[%s3252] sm:$0xf]
      %v3254 = vld [vmem:[%s3252 + $0x4] sm:$0xf]
      %v3255 = vld [vmem:[%s3252 + $0x8] sm:$0xf]
      %v3256 = vld [vmem:[%s3252 + $0xc] sm:$0xf]
      %v3257 = vld [vmem:[%s3252 + $0x10] sm:$0xf]
      %v3258 = vld [vmem:[%s3252 + $0x14] sm:$0xf]
      %v3259 = vld [vmem:[%s3252 + $0x18] sm:$0xf]
      %v3260 = vld [vmem:[%s3252 + $0x1c] sm:$0xf]
      %s3261 = scalar_lea.vmem %s10, 7
      %v3262 = vld [vmem:[%s3261] sm:$0x1]
      %v3264 = vperm.slane %v3262, 0
      %v3274 = vunpack.c.l.b16 %v3253
      %v3275 = vunpack.c.l.b16 %v3254
      %v3276 = vunpack.c.l.b16 %v3255
      %v3277 = vunpack.c.l.b16 %v3256
      %v3278 = vunpack.c.l.b16 %v3257
      %v3279 = vunpack.c.l.b16 %v3258
      %v3280 = vunpack.c.l.b16 %v3259
      %v3281 = vunpack.c.l.b16 %v3260
      %v3282 = vpack.c.b16 %v3275, %v3274
      %v3283 = vpack.c.b16 %v3277, %v3276
      %v3284 = vpack.c.b16 %v3279, %v3278
      %v3285 = vpack.c.b16 %v3281, %v3280
      %3290 = vmatpush.bf16.msra.mxu0 0
      %3291 = vmatpush.bf16.msra.mxu0 0
      %3292 = vmatpush.bf16.msra.mxu0 0
      %3293 = vmatpush.bf16.msra.mxu0 0
      %3294 = vmatpush.bf16.msra.mxu0 %v3285
      %3295 = vmatpush.bf16.msra.mxu0 %v3284
      %3296 = vmatpush.bf16.msra.mxu0 %v3283
      %3297 = vmatpush.bf16.msra.mxu0 %v3282
      %3298 = vmatmul.bf16.gmra.mxu0 %v2486
      %v3299 = vpop.f32.mrf.mxu0
      %v3300 = vadd.f32 %v3264, %v3299
      %v3301 = vpop.f32.mrf.mxu0
      %3302 = vdwg.mxu0
      %v3303 = vpack.c.bf16 %v3198, %v3198
      %v3304 = vpack.c.bf16 %v3249, %v3249
      %v3306 = vsel %vm1325, %v3303, 0
      %v3309 = vsel %vm1325, %v3304, 0
      %3311 = vmatpush.bf16.xpose.msra.mxu0 0
      %3312 = vmatpush.bf16.xpose.msra.mxu0 0
      %3313 = vmatpush.bf16.xpose.msra.mxu0 0
      %3314 = vmatpush.bf16.xpose.msra.mxu0 0
      %3315 = vmatpush.bf16.xpose.msra.mxu0 0
      %3316 = vmatpush.bf16.xpose.msra.mxu0 0
      %3317 = vmatpush.bf16.xpose.msra.mxu0 0
      %3318 = vmatpush.bf16.xpose.msra.mxu0 %v3309
      %3319 = vmatmul.bf16.gmra.mxu0 %v3306
      %v3320 = vpop.f32.mrf.mxu0
      %v3321 = vadd.f32 0.0, %v3320
      %v3322 = vpop.f32.mrf.mxu0
      %3323 = vdwg.mxu0
      %v3324 = vmul.f32 %v3321, 0.25
      %v3325 = vsel %vm1346, %v3324, -inf
      %3326 = vmax.xlane.f32.xlu0 %v3325
      %v3327 = vpop.xlane.xlu0 %3326
      %v3328 = vsub.f32 %v3324, %v3327
      %v3329 = vmul.f32 %v3328, 1.442695
      %v3330 = vpow.pop %v3329
      %v3331 = vsel %vm1346, %v3330, 0.0
      %3332 = vadd.xlane.f32.xlu0 %v3331
      %v3333 = vpop.xlane.xlu0 %3332
      %v3334 = vrcp.pop %v3333
      %v3335 = vmul.f32 %v3330, %v3334
      %v3336 = vpack.c.bf16 %v3335, %v3335
      %v3337 = vpack.c.bf16 %v3300, %v3300
      %v3339 = vsel %vm1360, %v3336, 0
      %v3342 = vand.u32 %v3337, %v1367
      %3344 = vmatpush.bf16.msra.mxu0 0
      %3345 = vmatpush.bf16.msra.mxu0 0
      %3346 = vmatpush.bf16.msra.mxu0 0
      %3347 = vmatpush.bf16.msra.mxu0 0
      %3348 = vmatpush.bf16.msra.mxu0 0
      %3349 = vmatpush.bf16.msra.mxu0 0
      %3350 = vmatpush.bf16.msra.mxu0 0
      %3351 = vmatpush.bf16.msra.mxu0 %v3342
      %3352 = vmatmul.bf16.gmra.mxu0 %v3339
      %v3353 = vpop.f32.mrf.mxu0
      %v3354 = vadd.f32 0.0, %v3353
      %v3355 = vpop.f32.mrf.mxu0
      %3356 = vdwg.mxu0
      %v3357 = vpack.c.bf16 %v3354, %v3354
      %s3358 = scalar_lea.vmem %s11, 56
      %v3359 = vld [vmem:[%s3358] sm:$0xf]
      %v3360 = vld [vmem:[%s3358 + $0x4] sm:$0xf]
      %v3363 = vunpack.c.l.b16 %v3359
      %v3364 = vunpack.c.l.b16 %v3360
      %v3365 = vpack.c.b16 %v3364, %v3363
      %v3368 = vsel %vm1325, %v3357, 0
      %3370 = vmatpush.bf16.msra.mxu0 0
      %3371 = vmatpush.bf16.msra.mxu0 0
      %3372 = vmatpush.bf16.msra.mxu0 0
      %3373 = vmatpush.bf16.msra.mxu0 0
      %3374 = vmatpush.bf16.msra.mxu0 0
      %3375 = vmatpush.bf16.msra.mxu0 0
      %3376 = vmatpush.bf16.msra.mxu0 0
      %3377 = vmatpush.bf16.msra.mxu0 %v3365
      %3378 = vmatmul.bf16.gmra.mxu0 %v3368
      %v3379 = vpop.f32.mrf.mxu0
      %v3380 = vadd.f32 0.0, %v3379
      %v3381 = vpop.f32.mrf.mxu0
      %3382 = vdwg.mxu0
      %v3383 = vadd.f32 %v3149, %v3380
      %v3384 = vadd.f32 %v2411, %v3383
      %s3385 = scalar_lea.vmem %s12, 1
      %v3386 = vld [vmem:[%s3385] sm:$0x1]
      %v3388 = vperm.slane %v3386, 0
      %v3390 = vadd.f32 %v3384, %v3388
      %s3391 = scalar_lea.vmem %s13, 1
      %v3392 = vld [vmem:[%s3391] sm:$0x1]
      %s3393 = scalar_lea.vmem %s14, 1
      %v3394 = vld [vmem:[%s3393] sm:$0x1]
      %v3395 = vsel %vm1133, %v3390, 0.0
      %3396 = vadd.xlane.f32.xlu0 %v3395
      %v3397 = vpop.xlane.xlu0 %3396
      %v3398 = vmul.f32 %v3397, %v1143
      %v3399 = vsub.f32 %v3390, %v3398
      %v3400 = vmul.f32 %v3399, %v3399
      %v3401 = vsel %vm1133, %v3400, 0.0
      %3402 = vadd.xlane.f32.xlu0 %v3401
      %v3403 = vpop.xlane.xlu0 %3402
      %v3404 = vmul.f32 %v3403, %v1143
      %v3405 = vadd.f32 %v3404, 1e-06
      %v3406 = vrsqrt.pop %v3405
      %v3407 = vmul.f32 %v3406, %v3405
      %v3408 = vmul.f32 %v3407, %v3406
      %v3409 = vmul.f32 0.5, %v3408
      %v3410 = vsub.f32 1.5, %v3409
      %v3411 = vmul.f32 %v3406, %v3410
      %vm3412 = vweird.f32 %v3405
      %vm3413 = vweird.f32 %v3406
      %vm3414 = vmor %vm3412, %vm3413
      %v3415 = vsel %vm3414, %v3406, %v3411
      %v3416 = vmul.f32 %v3399, %v3415
      %v3418 = vperm.slane %v3392, 0
      %v3420 = vmul.f32 %v3416, %v3418
      %v3422 = vperm.slane %v3394, 0
      %v3424 = vadd.f32 %v3420, %v3422
      %v3425 = vpack.c.bf16 %v3424, %v3424
      %s3426 = scalar_lea.vmem %s15, 64
      %v3427 = vld [vmem:[%s3426] sm:$0xff]
      %v3428 = vld [vmem:[%s3426 + $0x8] sm:$0xff]
      %v3429 = vld [vmem:[%s3426 + $0x10] sm:$0xff]
      %v3430 = vld [vmem:[%s3426 + $0x18] sm:$0xff]
      %v3431 = vld [vmem:[%s3426 + $0x20] sm:$0xff]
      %v3432 = vld [vmem:[%s3426 + $0x28] sm:$0xff]
      %v3433 = vld [vmem:[%s3426 + $0x30] sm:$0xff]
      %v3434 = vld [vmem:[%s3426 + $0x38] sm:$0xff]
      %s3435 = scalar_lea.vmem %s16, 2
      %v3436 = vld [vmem:[%s3435] sm:$0x3]
      %v3438 = vperm.slane %v3436, 0
      %v3439 = vperm.slane %v3436, 1
      %v3450 = vunpack.c.l.b16 %v3427
      %v3451 = vunpack.c.h.b16 %v3427
      %v3452 = vunpack.c.l.b16 %v3428
      %v3453 = vunpack.c.h.b16 %v3428
      %v3454 = vunpack.c.l.b16 %v3429
      %v3455 = vunpack.c.h.b16 %v3429
      %v3456 = vunpack.c.l.b16 %v3430
      %v3457 = vunpack.c.h.b16 %v3430
      %v3458 = vunpack.c.l.b16 %v3431
      %v3459 = vunpack.c.h.b16 %v3431
      %v3460 = vunpack.c.l.b16 %v3432
      %v3461 = vunpack.c.h.b16 %v3432
      %v3462 = vunpack.c.l.b16 %v3433
      %v3463 = vunpack.c.h.b16 %v3433
      %v3464 = vunpack.c.l.b16 %v3434
      %v3465 = vunpack.c.h.b16 %v3434
      %v3466 = vpack.c.b16 %v3452, %v3450
      %v3467 = vpack.c.b16 %v3453, %v3451
      %v3468 = vpack.c.b16 %v3456, %v3454
      %v3469 = vpack.c.b16 %v3457, %v3455
      %v3470 = vpack.c.b16 %v3460, %v3458
      %v3471 = vpack.c.b16 %v3461, %v3459
      %v3472 = vpack.c.b16 %v3464, %v3462
      %v3473 = vpack.c.b16 %v3465, %v3463
      %v3483 = vsel %vm1208, %v3425, 0
      %3485 = vmatpush.bf16.msra.mxu0 0
      %3486 = vmatpush.bf16.msra.mxu0 0
      %3487 = vmatpush.bf16.msra.mxu0 0
      %3488 = vmatpush.bf16.msra.mxu0 0
      %3489 = vmatpush.bf16.msra.mxu0 %v3472
      %3490 = vmatpush.bf16.msra.mxu0 %v3470
      %3491 = vmatpush.bf16.msra.mxu0 %v3468
      %3492 = vmatpush.bf16.msra.mxu0 %v3466
      %3493 = vmatmul.bf16.gmra.mxu0 %v3483
      %v3494 = vpop.f32.mrf.mxu0
      %v3495 = vadd.f32 %v3438, %v3494
      %v3496 = vpop.f32.mrf.mxu0
      %3497 = vdwg.mxu0
      %3498 = vmatpush.bf16.msra.mxu0 0
      %3499 = vmatpush.bf16.msra.mxu0 0
      %3500 = vmatpush.bf16.msra.mxu0 0
      %3501 = vmatpush.bf16.msra.mxu0 0
      %3502 = vmatpush.bf16.msra.mxu0 %v3473
      %3503 = vmatpush.bf16.msra.mxu0 %v3471
      %3504 = vmatpush.bf16.msra.mxu0 %v3469
      %3505 = vmatpush.bf16.msra.mxu0 %v3467
      %3506 = vmatmul.bf16.gmra.mxu0 %v3483
      %v3507 = vpop.f32.mrf.mxu0
      %v3508 = vadd.f32 %v3439, %v3507
      %v3509 = vpop.f32.mrf.mxu0
      %3510 = vdwg.mxu0
      %v3511 = vmul.f32 %v3495, %v3495
      %v3512 = vmul.f32 %v3508, %v3508
      %v3513 = vmul.f32 %v3495, %v3511
      %v3514 = vmul.f32 %v3508, %v3512
      %v3515 = vmul.f32 %v3513, 0.044715
      %v3516 = vmul.f32 %v3514, 0.044715
      %v3517 = vadd.f32 %v3495, %v3515
      %v3518 = vadd.f32 %v3508, %v3516
      %v3519 = vmul.f32 %v3517, 0.7978846
      %v3520 = vmul.f32 %v3518, 0.7978846
      %v3521 = vtanh.pop %v3519
      %v3522 = vtanh.pop %v3520
      %v3523 = vadd.f32 %v3521, 1.0
      %v3524 = vadd.f32 %v3522, 1.0
      %v3525 = vmul.f32 %v3523, 0.5
      %v3526 = vmul.f32 %v3524, 0.5
      %v3527 = vmul.f32 %v3495, %v3525
      %v3528 = vmul.f32 %v3508, %v3526
      %v3529 = vpack.c.bf16 %v3527, %v3527
      %v3530 = vpack.c.bf16 %v3528, %v3528
      %s3531 = scalar_lea.vmem %s17, 128
      %v3532 = vld [vmem:[%s3531] sm:$0xf]
      %v3533 = vld [vmem:[%s3531 + $0x4] sm:$0xf]
      %v3534 = vld [vmem:[%s3531 + $0x8] sm:$0xf]
      %v3535 = vld [vmem:[%s3531 + $0xc] sm:$0xf]
      %v3536 = vld [vmem:[%s3531 + $0x10] sm:$0xf]
      %v3537 = vld [vmem:[%s3531 + $0x14] sm:$0xf]
      %v3538 = vld [vmem:[%s3531 + $0x18] sm:$0xf]
      %v3539 = vld [vmem:[%s3531 + $0x1c] sm:$0xf]
      %v3540 = vld [vmem:[%s3531 + $0x20] sm:$0xf]
      %v3541 = vld [vmem:[%s3531 + $0x24] sm:$0xf]
      %v3542 = vld [vmem:[%s3531 + $0x28] sm:$0xf]
      %v3543 = vld [vmem:[%s3531 + $0x2c] sm:$0xf]
      %v3544 = vld [vmem:[%s3531 + $0x30] sm:$0xf]
      %v3545 = vld [vmem:[%s3531 + $0x34] sm:$0xf]
      %v3546 = vld [vmem:[%s3531 + $0x38] sm:$0xf]
      %v3547 = vld [vmem:[%s3531 + $0x3c] sm:$0xf]
      %v3548 = vld [vmem:[%s3531 + $0x40] sm:$0xf]
      %v3549 = vld [vmem:[%s3531 + $0x44] sm:$0xf]
      %v3550 = vld [vmem:[%s3531 + $0x48] sm:$0xf]
      %v3551 = vld [vmem:[%s3531 + $0x4c] sm:$0xf]
      %v3552 = vld [vmem:[%s3531 + $0x50] sm:$0xf]
      %v3553 = vld [vmem:[%s3531 + $0x54] sm:$0xf]
      %v3554 = vld [vmem:[%s3531 + $0x58] sm:$0xf]
      %v3555 = vld [vmem:[%s3531 + $0x5c] sm:$0xf]
      %v3556 = vld [vmem:[%s3531 + $0x60] sm:$0xf]
      %v3557 = vld [vmem:[%s3531 + $0x64] sm:$0xf]
      %v3558 = vld [vmem:[%s3531 + $0x68] sm:$0xf]
      %v3559 = vld [vmem:[%s3531 + $0x6c] sm:$0xf]
      %v3560 = vld [vmem:[%s3531 + $0x70] sm:$0xf]
      %v3561 = vld [vmem:[%s3531 + $0x74] sm:$0xf]
      %v3562 = vld [vmem:[%s3531 + $0x78] sm:$0xf]
      %v3563 = vld [vmem:[%s3531 + $0x7c] sm:$0xf]
      %v3596 = vunpack.c.l.b16 %v3532
      %v3597 = vunpack.c.l.b16 %v3533
      %v3598 = vunpack.c.l.b16 %v3534
      %v3599 = vunpack.c.l.b16 %v3535
      %v3600 = vunpack.c.l.b16 %v3536
      %v3601 = vunpack.c.l.b16 %v3537
      %v3602 = vunpack.c.l.b16 %v3538
      %v3603 = vunpack.c.l.b16 %v3539
      %v3604 = vunpack.c.l.b16 %v3540
      %v3605 = vunpack.c.l.b16 %v3541
      %v3606 = vunpack.c.l.b16 %v3542
      %v3607 = vunpack.c.l.b16 %v3543
      %v3608 = vunpack.c.l.b16 %v3544
      %v3609 = vunpack.c.l.b16 %v3545
      %v3610 = vunpack.c.l.b16 %v3546
      %v3611 = vunpack.c.l.b16 %v3547
      %v3612 = vunpack.c.l.b16 %v3548
      %v3613 = vunpack.c.l.b16 %v3549
      %v3614 = vunpack.c.l.b16 %v3550
      %v3615 = vunpack.c.l.b16 %v3551
      %v3616 = vunpack.c.l.b16 %v3552
      %v3617 = vunpack.c.l.b16 %v3553
      %v3618 = vunpack.c.l.b16 %v3554
      %v3619 = vunpack.c.l.b16 %v3555
      %v3620 = vunpack.c.l.b16 %v3556
      %v3621 = vunpack.c.l.b16 %v3557
      %v3622 = vunpack.c.l.b16 %v3558
      %v3623 = vunpack.c.l.b16 %v3559
      %v3624 = vunpack.c.l.b16 %v3560
      %v3625 = vunpack.c.l.b16 %v3561
      %v3626 = vunpack.c.l.b16 %v3562
      %v3627 = vunpack.c.l.b16 %v3563
      %v3628 = vpack.c.b16 %v3597, %v3596
      %v3629 = vpack.c.b16 %v3599, %v3598
      %v3630 = vpack.c.b16 %v3601, %v3600
      %v3631 = vpack.c.b16 %v3603, %v3602
      %v3632 = vpack.c.b16 %v3605, %v3604
      %v3633 = vpack.c.b16 %v3607, %v3606
      %v3634 = vpack.c.b16 %v3609, %v3608
      %v3635 = vpack.c.b16 %v3611, %v3610
      %v3636 = vpack.c.b16 %v3613, %v3612
      %v3637 = vpack.c.b16 %v3615, %v3614
      %v3638 = vpack.c.b16 %v3617, %v3616
      %v3639 = vpack.c.b16 %v3619, %v3618
      %v3640 = vpack.c.b16 %v3621, %v3620
      %v3641 = vpack.c.b16 %v3623, %v3622
      %v3642 = vpack.c.b16 %v3625, %v3624
      %v3643 = vpack.c.b16 %v3627, %v3626
      %3660 = vmatpush.bf16.msra.mxu0 %v3635
      %3661 = vmatpush.bf16.msra.mxu0 %v3634
      %3662 = vmatpush.bf16.msra.mxu0 %v3633
      %3663 = vmatpush.bf16.msra.mxu0 %v3632
      %3664 = vmatpush.bf16.msra.mxu0 %v3631
      %3665 = vmatpush.bf16.msra.mxu0 %v3630
      %3666 = vmatpush.bf16.msra.mxu0 %v3629
      %3667 = vmatpush.bf16.msra.mxu0 %v3628
      %3668 = vmatmul.bf16.gmra.mxu0 %v3529
      %v3669 = vpop.f32.mrf.mxu0
      %v3670 = vadd.f32 0.0, %v3669
      %v3671 = vpop.f32.mrf.mxu0
      %3672 = vdwg.mxu0
      %3673 = vmatpush.bf16.msra.mxu0 %v3643
      %3674 = vmatpush.bf16.msra.mxu0 %v3642
      %3675 = vmatpush.bf16.msra.mxu0 %v3641
      %3676 = vmatpush.bf16.msra.mxu0 %v3640
      %3677 = vmatpush.bf16.msra.mxu0 %v3639
      %3678 = vmatpush.bf16.msra.mxu0 %v3638
      %3679 = vmatpush.bf16.msra.mxu0 %v3637
      %3680 = vmatpush.bf16.msra.mxu0 %v3636
      %3681 = vmatmul.bf16.gmra.mxu0 %v3530
      %v3682 = vpop.f32.mrf.mxu0
      %v3683 = vadd.f32 %v3670, %v3682
      %v3684 = vpop.f32.mrf.mxu0
      %3685 = vdwg.mxu0
      %v3686 = vadd.f32 %v3390, %v3683
      %s3687 = scalar_lea.vmem %s18, 1
      %v3688 = vld [vmem:[%s3687] sm:$0x1]
      %v3690 = vperm.slane %v3688, 0
      %v3692 = vadd.f32 %v3686, %v3690
      %v3693 = vld [vmem:[%s19] sm:$0x1]
      %v3694 = vld [vmem:[%s20] sm:$0x1]
      %v3695 = vsel %vm1133, %v3692, 0.0
      %3696 = vadd.xlane.f32.xlu0 %v3695
      %v3697 = vpop.xlane.xlu0 %3696
      %v3698 = vmul.f32 %v3697, %v1143
      %v3699 = vsub.f32 %v3692, %v3698
      %v3700 = vmul.f32 %v3699, %v3699
      %v3701 = vsel %vm1133, %v3700, 0.0
      %3702 = vadd.xlane.f32.xlu0 %v3701
      %v3703 = vpop.xlane.xlu0 %3702
      %v3704 = vmul.f32 %v3703, %v1143
      %v3705 = vadd.f32 %v3704, 1e-06
      %v3706 = vrsqrt.pop %v3705
      %v3707 = vmul.f32 %v3706, %v3705
      %v3708 = vmul.f32 %v3707, %v3706
      %v3709 = vmul.f32 0.5, %v3708
      %v3710 = vsub.f32 1.5, %v3709
      %v3711 = vmul.f32 %v3706, %v3710
      %vm3712 = vweird.f32 %v3705
      %vm3713 = vweird.f32 %v3706
      %vm3714 = vmor %vm3712, %vm3713
      %v3715 = vsel %vm3714, %v3706, %v3711
      %v3716 = vmul.f32 %v3699, %v3715
      %v3718 = vperm.slane %v3693, 0
      %v3720 = vmul.f32 %v3716, %v3718
      %v3722 = vperm.slane %v3694, 0
      %v3724 = vadd.f32 %v3720, %v3722
      %3725 = vst.msk [vmem:[%s654] sm:$0x1f] %vm1133, %v3724
      %p3726 = scmp.lt.s32.totalorder %s32, 1
      %s3727 = scalar_select %p3726, %s32, 1
      %s3728 = smul.addr %s3727, 8
      %s3729 = scalar_lea.vmem %s21, %s3728
      // Predicated region
      $region105: #{_lambda_.2} parent=103 // pred_check
        %p3730 = pneg %p496
      $region106: #{_lambda_.2} parent=103 // pred_check_branch
        %3732 = sbr.rel (%p3730) target = $region108
      $region107: #{_lambda_.2} parent=103 // pred_region
        _
      $region108: #{_lambda_.2} parent=103 // pred_fallthru
        _
    $region104: #{_lambda_.2} parent=5 // pred_fallthru
      _
    %p3733 = scmp.le.s32.totalorder 2, %s27
    // Predicated region
    $region109: #{_lambda_.2} parent=5 // pred_check
      %p3734 = pneg %p3733
    $region110: #{_lambda_.2} parent=5 // pred_check_branch
      %3736 = sbr.rel (%p3734) target = $region112
    $region111: #{_lambda_.2} parent=5 // pred_region
      %s3737 = ssub.s32 %s27, 2
      // Predicated region
      $region113: #{_lambda_.2} parent=111 // pred_check
        %p3738 = pneg %p502
      $region114: #{_lambda_.2} parent=111 // pred_check_branch
        %3740 = sbr.rel (%p3738) target = $region116
      $region115: #{_lambda_.2} parent=111 // pred_region
        %p3741 = scmp.lt.s32.totalorder %s33, 1
        %s3742 = scalar_select %p3741, %s33, 1
        %s3743 = smul.addr %s3742, 8
        %s3744 = scalar_lea.vmem %s21, %s3743
      $region116: #{_lambda_.2} parent=111 // pred_fallthru
        _
    $region112: #{_lambda_.2} parent=5 // pred_fallthru
      _
  $region6: #{_lambda_.2} parent=0 // loop_footer
    %s31 = sadd.s32 1, %s27
  $region7: #{_lambda_.2} parent=0 // loop_footer_branch
    %26 = sbr.rel target = $region3
  $region8: #{_lambda_.2} parent=0 // loop_exit
    _

</llo_original>
